<compile_context>
chip_gen: v6e
topology: v6e:2x2x1
jax: 0.10.0
libtpu: 0.0.40
codegen_flags: <defaults>
</compile_context>

<pallas_src>
import functools

import jax
import jax.numpy as jnp
import numpy as np
from jax import lax
from jax.experimental import pallas as pl
from jax.experimental.pallas import tpu as pltpu

_BN_EPS = 1e-5
_LANE = 128
_VMEM_LIMIT = 48 * 1024 * 1024   # within physical VMEM on v5e/v6e (128 MiB) and v7x (64 MiB)


def _round_up(x, m):
    return ((x + m - 1) // m) * m


# ----------------------------------------------------------------------------
# Kernel 1: stage-1 conv (dx-K-packed, 3 matmuls) + global BN-stat accumulation
# ----------------------------------------------------------------------------
def _conv3x3_stats_kernel(x_ref, w_ref, y_ref, s_ref, xk_ref, acc_ref, *, H, W):
    # x_ref : (H+2, W+2, Ci_p) bf16  spatially pre-padded, channel lane-padded input
    # w_ref : (3, 3*Ci_p, Co_p) bf16 dy-major, dx-packed-K weights (VMEM resident)
    # y_ref : (H, W, Co_p)      bf16 raw conv output for this image
    # s_ref : (2, Co_p)         f32  [sum; sum of squares] accumulated over the grid
    # xk_ref: (H+2, W, 3*Ci_p)  bf16 VMEM scratch: dx-packed input tile
    # acc_ref:(H*W, Co_p)       f32  VMEM scratch accumulator (bounded live range)
    b = pl.program_id(0)
    ci = x_ref.shape[-1]
    co = w_ref.shape[-1]
    kk = w_ref.shape[1]

    # dx-shift hoist: 3 sublane-shifted copies built once per tile; destinations are
    # lane-aligned because ci is a multiple of 128.
    xk_ref[:, :, 0 * ci:1 * ci] = x_ref[:, 0:W, :]
    xk_ref[:, :, 1 * ci:2 * ci] = x_ref[:, 1:W + 1, :]
    xk_ref[:, :, 2 * ci:3 * ci] = x_ref[:, 2:W + 2, :]

    # 3 matmuls with K = 3*Ci_p, accumulated in an explicit f32 VMEM accumulator.
    acc_ref[...] = jnp.dot(xk_ref[0:H, :, :].reshape(H * W, kk), w_ref[0],
                           preferred_element_type=jnp.float32)
    for dy in (1, 2):
        acc_ref[...] += jnp.dot(xk_ref[dy:dy + H, :, :].reshape(H * W, kk), w_ref[dy],
                                preferred_element_type=jnp.float32)

    acc = acc_ref[...]
    y_ref[...] = acc.reshape(H, W, co).astype(y_ref.dtype)   # bf16 inter-pass HBM

    @pl.when(b == 0)
    def _():
        s_ref[...] = jnp.zeros_like(s_ref)

    s_ref[0:1, :] += jnp.sum(acc, axis=0, keepdims=True)
    s_ref[1:2, :] += jnp.sum(acc * acc, axis=0, keepdims=True)


# ----------------------------------------------------------------------------
# Kernel 2: BN(stage1 stats)+ReLU fused with stage-2 conv + stage-2 BN stats
# ----------------------------------------------------------------------------
def _bn_relu_conv3x3_stats_kernel(y1_ref, s1_ref, g_ref, beta_ref, w_ref,
                                  y2_ref, s2_ref, hk_ref, acc_ref, *, H, W, n_total):
    # y1_ref: (H, W, Co_p) bf16 raw stage-1 conv output
    # s1_ref: (2, Co_p) f32 global stage-1 stats ; g_ref/beta_ref: (1, Co_p) f32
    # w_ref : (3, 3*Co_p, Co_p) bf16 stage-2 weights (dy-major, dx-packed K)
    # y2_ref: (H, W, Co_p) bf16 raw stage-2 conv output
    # s2_ref: (2, Co_p) f32 stage-2 stats accumulator
    # hk_ref: (H+2, W, 3*Co_p) bf16 VMEM scratch: dx-packed, zero-bordered activation
    # acc_ref:(H*W, Co_p) f32 VMEM scratch accumulator
    b = pl.program_id(0)
    co = y1_ref.shape[-1]
    kk = w_ref.shape[1]

    @pl.when(b == 0)
    def _():
        hk_ref[...] = jnp.zeros_like(hk_ref)   # zero once; border regions stay zero
        s2_ref[...] = jnp.zeros_like(s2_ref)

    inv_n = 1.0 / float(n_total)
    mean = s1_ref[0:1, :] * inv_n                                    # (1, co) f32
    var = jnp.maximum(s1_ref[1:2, :] * inv_n - mean * mean, 0.0)     # clamp: no NaN
    scale = lax.rsqrt(var + _BN_EPS) * g_ref[...]                    # (1, co)
    shift = beta_ref[...] - mean * scale                             # (1, co)

    h1 = jnp.maximum(y1_ref[...].astype(jnp.float32) * scale.reshape(1, 1, co)
                     + shift.reshape(1, 1, co), 0.0).astype(jnp.bfloat16)  # (H, W, co)

    # dx-packed, implicitly zero-padded stage-2 input: hk[h, w, dx*co + c] = h1pad[h, w+dx, c]
    hk_ref[1:H + 1, 1:W, 0 * co:1 * co] = h1[:, 0:W - 1, :]
    hk_ref[1:H + 1, 0:W, 1 * co:2 * co] = h1
    hk_ref[1:H + 1, 0:W - 1, 2 * co:3 * co] = h1[:, 1:W, :]

    acc_ref[...] = jnp.dot(hk_ref[0:H, :, :].reshape(H * W, kk), w_ref[0],
                           preferred_element_type=jnp.float32)
    for dy in (1, 2):
        acc_ref[...] += jnp.dot(hk_ref[dy:dy + H, :, :].reshape(H * W, kk), w_ref[dy],
                                preferred_element_type=jnp.float32)

    acc = acc_ref[...]
    y2_ref[...] = acc.reshape(H, W, co).astype(y2_ref.dtype)

    s2_ref[0:1, :] += jnp.sum(acc, axis=0, keepdims=True)
    s2_ref[1:2, :] += jnp.sum(acc * acc, axis=0, keepdims=True)


# ----------------------------------------------------------------------------
# Kernel 3: final BN normalize + ReLU (streamed, mem-bound; bf16 in, f32 out)
# ----------------------------------------------------------------------------
def _bn_relu_kernel(y_ref, s_ref, g_ref, beta_ref, o_ref, *, n_total):
    co = y_ref.shape[-1]
    inv_n = 1.0 / float(n_total)
    mean = s_ref[0:1, :] * inv_n
    var = jnp.maximum(s_ref[1:2, :] * inv_n - mean * mean, 0.0)
    scale = lax.rsqrt(var + _BN_EPS) * g_ref[...]
    shift = beta_ref[...] - mean * scale
    y = y_ref[...].astype(jnp.float32)
    out = jnp.maximum(y * scale.reshape(1, 1, co) + shift.reshape(1, 1, co), 0.0)
    o_ref[...] = out.astype(o_ref.dtype)


# ----------------------------------------------------------------------------
# One-time parameter preparation (hoisted out of the per-call path)
# ----------------------------------------------------------------------------
def prepare_block_params(params):
    wt = params["w_stage1_convT"]          # (Cin, Cout, 3, 3) ConvTranspose2d layout
    Cin, Cout = int(wt.shape[0]), int(wt.shape[1])
    ci_p = _round_up(Cin, _LANE)
    co_p = _round_up(Cout, _LANE)

    # ConvTranspose2d(k=3,s=1,p=1) == Conv2d with spatially flipped, in/out-swapped weight.
    wc1 = jnp.flip(wt, axis=(2, 3)).transpose(1, 0, 2, 3)      # (Cout, Cin, 3, 3) OIHW
    w1_taps = wc1.transpose(2, 3, 1, 0)                        # (dy, dx, Cin, Cout)
    w2_taps = params["w_stage2_conv"].transpose(2, 3, 1, 0)    # (dy, dx, Cout, Cout)

    def pack(w_taps, cin, cin_p, cout, cout_p):
        # (dy, dx, ci, co) -> (dy, dx*cin_p + ci, co): matches the dx-packed K layout.
        w = jnp.zeros((3, 3, cin_p, cout_p), jnp.float32)
        w = w.at[:, :, :cin, :cout].set(w_taps.astype(jnp.float32))
        return w.reshape(3, 3 * cin_p, cout_p).astype(jnp.bfloat16)

    def pad_vec(v, n, n_p):
        return jnp.zeros((1, n_p), jnp.float32).at[0, :n].set(v.astype(jnp.float32))

    return {
        "w1": pack(w1_taps, Cin, ci_p, Cout, co_p),
        "w2": pack(w2_taps, Cout, co_p, Cout, co_p),
        "g1": pad_vec(params["bn1_gamma"], Cout, co_p),
        "b1": pad_vec(params["bn1_beta"], Cout, co_p),
        "g2": pad_vec(params["bn2_gamma"], Cout, co_p),
        "b2": pad_vec(params["bn2_beta"], Cout, co_p),
    }


# ----------------------------------------------------------------------------
# ConvTransposeBlock forward
# ----------------------------------------------------------------------------
def conv_transpose_block_forward(x_nchw, p, cout):
    """x_nchw: (B, Cin, H, W) f32 -> (B, Cout, H, W) f32."""
    B, Cin, H, W = x_nchw.shape
    ci_p = p["w1"].shape[1] // 3
    co_p = p["w1"].shape[2]
    n_total = B * H * W

    # NCHW -> NHWC, cast to bf16 *before* padding, halo + channel pad in one jnp.pad.
    x = jnp.transpose(x_nchw, (0, 2, 3, 1)).astype(jnp.bfloat16)
    xp = jnp.pad(x, ((0, 0), (1, 1), (1, 1), (0, ci_p - Cin)))

    acc_params = pltpu.CompilerParams(dimension_semantics=("arbitrary",),
                                      vmem_limit_bytes=_VMEM_LIMIT)

    # ---- pass 1: stage-1 conv + global BN statistics --------------------------
    y1, s1 = pl.pallas_call(
        functools.partial(_conv3x3_stats_kernel, H=H, W=W),
        out_shape=(jax.ShapeDtypeStruct((B, H, W, co_p), jnp.bfloat16),
                   jax.ShapeDtypeStruct((2, co_p), jnp.float32)),
        grid=(B,),
        in_specs=[
            pl.BlockSpec((None, H + 2, W + 2, ci_p), lambda b: (b, 0, 0, 0)),
            pl.BlockSpec((3, 3 * ci_p, co_p), lambda b: (0, 0, 0)),
        ],
        out_specs=(
            pl.BlockSpec((None, H, W, co_p), lambda b: (b, 0, 0, 0)),
            pl.BlockSpec((2, co_p), lambda b: (0, 0)),
        ),
        scratch_shapes=[pltpu.VMEM((H + 2, W, 3 * ci_p), jnp.bfloat16),
                        pltpu.VMEM((H * W, co_p), jnp.float32)],
        compiler_params=acc_params,
        cost_estimate=pl.CostEstimate(
            flops=2 * n_total * 9 * ci_p * co_p, transcendentals=0,
            bytes_accessed=(xp.size + p["w1"].size + n_total * co_p) * 2),
    )(xp, p["w1"])

    # ---- pass 2: BN1+ReLU fused with stage-2 conv + stage-2 BN statistics -----
    y2, s2 = pl.pallas_call(
        functools.partial(_bn_relu_conv3x3_stats_kernel, H=H, W=W, n_total=n_total),
        out_shape=(jax.ShapeDtypeStruct((B, H, W, co_p), jnp.bfloat16),
                   jax.ShapeDtypeStruct((2, co_p), jnp.float32)),
        grid=(B,),
        in_specs=[
            pl.BlockSpec((None, H, W, co_p), lambda b: (b, 0, 0, 0)),
            pl.BlockSpec((2, co_p), lambda b: (0, 0)),
            pl.BlockSpec((1, co_p), lambda b: (0, 0)),
            pl.BlockSpec((1, co_p), lambda b: (0, 0)),
            pl.BlockSpec((3, 3 * co_p, co_p), lambda b: (0, 0, 0)),
        ],
        out_specs=(
            pl.BlockSpec((None, H, W, co_p), lambda b: (b, 0, 0, 0)),
            pl.BlockSpec((2, co_p), lambda b: (0, 0)),
        ),
        scratch_shapes=[pltpu.VMEM((H + 2, W, 3 * co_p), jnp.bfloat16),
                        pltpu.VMEM((H * W, co_p), jnp.float32)],
        compiler_params=acc_params,
        cost_estimate=pl.CostEstimate(
            flops=2 * n_total * 9 * co_p * co_p, transcendentals=0,
            bytes_accessed=(2 * n_total * co_p + p["w2"].size) * 2),
    )(y1, s1, p["g1"], p["b1"], p["w2"])

    # ---- pass 3: final BN normalize + block ReLU ------------------------------
    out_p = pl.pallas_call(
        functools.partial(_bn_relu_kernel, n_total=n_total),
        out_shape=jax.ShapeDtypeStruct((B, H, W, co_p), jnp.float32),
        grid=(B,),
        in_specs=[
            pl.BlockSpec((None, H, W, co_p), lambda b: (b, 0, 0, 0)),
            pl.BlockSpec((2, co_p), lambda b: (0, 0)),
            pl.BlockSpec((1, co_p), lambda b: (0, 0)),
            pl.BlockSpec((1, co_p), lambda b: (0, 0)),
        ],
        out_specs=pl.BlockSpec((None, H, W, co_p), lambda b: (b, 0, 0, 0)),
        compiler_params=pltpu.CompilerParams(dimension_semantics=("parallel",),
                                             vmem_limit_bytes=_VMEM_LIMIT),
    )(y2, s2, p["g2"], p["b2"])

    # Drop channel padding and return NCHW (XLA fuses the slice into the transpose).
    out = out_p[:, :, :, :cout]
    return jnp.transpose(out, (0, 3, 1, 2))


# ----------------------------------------------------------------------------
# Pure-JAX reference (correctness check)
# ----------------------------------------------------------------------------
def _reference_forward(x_nchw, params):
    def conv3x3(x, w_oihw):
        return lax.conv_general_dilated(
            x, w_oihw, window_strides=(1, 1), padding=((1, 1), (1, 1)),
            dimension_numbers=("NCHW", "OIHW", "NCHW"))

    def bn_train(x, gamma, beta):
        mean = jnp.mean(x, axis=(0, 2, 3), keepdims=True)
        var = jnp.mean((x - mean) ** 2, axis=(0, 2, 3), keepdims=True)
        xh = (x - mean) * lax.rsqrt(var + _BN_EPS)
        return xh * gamma.reshape(1, -1, 1, 1) + beta.reshape(1, -1, 1, 1)

    wt = params["w_stage1_convT"]
    w1 = jnp.flip(wt, axis=(2, 3)).transpose(1, 0, 2, 3)
    h = jnp.maximum(bn_train(conv3x3(x_nchw, w1),
                             params["bn1_gamma"], params["bn1_beta"]), 0.0)
    h = bn_train(conv3x3(h, params["w_stage2_conv"]),
                 params["bn2_gamma"], params["bn2_beta"])
    return jnp.maximum(h, 0.0)


if __name__ == "__main__":
    B, Cin, Cout, H, W = 2, 4, 8, 16, 16

    key = jax.random.PRNGKey(0)
    k1, k2, kx = jax.random.split(key, 3)

    params = {
        # nn.ConvTranspose2d(inplanes, planes, 3, 1, 1, bias=False): (Cin, Cout, 3, 3)
        "w_stage1_convT": jax.random.normal(k1, (Cin, Cout, 3, 3), jnp.float32) * 0.1,
        # nn.Conv2d(planes, planes, 3, 1, 1, bias=False): (Cout, Cout, 3, 3)
        "w_stage2_conv": jax.random.normal(k2, (Cout, Cout, 3, 3), jnp.float32) * 0.1,
        # BatchNorm2d default init: weight=1, bias=0
        "bn1_gamma": jnp.ones((Cout,), jnp.float32),
        "bn1_beta": jnp.zeros((Cout,), jnp.float32),
        "bn2_gamma": jnp.ones((Cout,), jnp.float32),
        "bn2_beta": jnp.zeros((Cout,), jnp.float32),
    }

    x = jax.random.normal(kx, (B, Cin, H, W), jnp.float32)

    prepped = prepare_block_params(params)          # one-time weight prep (hoisted)
    fwd = jax.jit(conv_transpose_block_forward, static_argnums=2)

    out = jax.block_until_ready(fwd(x, prepped, Cout))

    ref = jax.block_until_ready(_reference_forward(x, params))
    # bf16 MXU operands and bf16 inter-pass intermediates (f32 accumulation / BN stats)
    # -> slightly looser tolerance than a pure-f32 pipeline.
    np.testing.assert_allclose(np.asarray(out), np.asarray(ref), rtol=2e-2, atol=3e-2)

    assert out.shape == (B, Cout, H, W)
    print("KERNEL_OK")
</pallas_src>

<mosaic_0001>
module attributes {stable_mosaic.version = 11 : i64} {
  func.func @_conv3x3_stats_kernel(%arg0: i32, %arg1: memref<1x18x18x128xbf16, #tpu.memory_space<vmem>>, %arg2: memref<3x384x128xbf16, #tpu.memory_space<vmem>>, %arg3: memref<1x16x16x128xbf16, #tpu.memory_space<vmem>>, %arg4: memref<2x128xf32, #tpu.memory_space<vmem>>, %arg5: memref<18x16x384xbf16, #tpu.memory_space<vmem>>, %arg6: memref<256x128xf32, #tpu.memory_space<vmem>>) attributes {dimension_semantics = [#tpu.dimension_semantics<arbitrary>], iteration_bounds = array<i64: 2>, scalar_prefetch = 0 : i64, scratch_operands = 2 : i64, tpu.core_type = #tpu.core_type<tc>, window_params = [{transform_indices = @transform_0, window_bounds = array<i64: 1, 18, 18, 128>}, {pipeline_mode = #tpu.pipeline_mode<synchronous>, transform_indices = @transform_1, window_bounds = array<i64: 3, 384, 128>}, {transform_indices = @transform_2, window_bounds = array<i64: 1, 16, 16, 128>}, {pipeline_mode = #tpu.pipeline_mode<synchronous>, transform_indices = @transform_3, window_bounds = array<i64: 2, 128>}]} {
    %c0 = arith.constant 0 : index
    %c0_0 = arith.constant 0 : index
    %c0_1 = arith.constant 0 : index
    %c0_2 = arith.constant 0 : index
    %0 = vector.load %arg1[%c0, %c0_0, %c0_1, %c0_2] : memref<1x18x18x128xbf16, #tpu.memory_space<vmem>>, vector<1x18x16x128xbf16>
    %1 = vector.shape_cast %0 : vector<1x18x16x128xbf16> to vector<18x16x128xbf16>
    %c0_3 = arith.constant 0 : index
    %c0_4 = arith.constant 0 : index
    %c0_5 = arith.constant 0 : index
    %2 = vector.load %arg5[%c0_3, %c0_4, %c0_5] : memref<18x16x384xbf16, #tpu.memory_space<vmem>>, vector<18x16x128xbf16>
    tpu.vector_store %arg5[%c0_3, %c0_4, %c0_5], %1 {strides = array<i32>} : memref<18x16x384xbf16, #tpu.memory_space<vmem>>, vector<18x16x128xbf16>,
    %c0_6 = arith.constant 0 : index
    %c0_7 = arith.constant 0 : index
    %c1 = arith.constant 1 : index
    %c0_8 = arith.constant 0 : index
    %3 = vector.load %arg1[%c0_6, %c0_7, %c1, %c0_8] : memref<1x18x18x128xbf16, #tpu.memory_space<vmem>>, vector<1x18x16x128xbf16>
    %4 = vector.shape_cast %3 : vector<1x18x16x128xbf16> to vector<18x16x128xbf16>
    %c0_9 = arith.constant 0 : index
    %c0_10 = arith.constant 0 : index
    %c128 = arith.constant 128 : index
    %5 = vector.load %arg5[%c0_9, %c0_10, %c128] : memref<18x16x384xbf16, #tpu.memory_space<vmem>>, vector<18x16x128xbf16>
    tpu.vector_store %arg5[%c0_9, %c0_10, %c128], %4 {strides = array<i32>} : memref<18x16x384xbf16, #tpu.memory_space<vmem>>, vector<18x16x128xbf16>,
    %c0_11 = arith.constant 0 : index
    %c0_12 = arith.constant 0 : index
    %c2 = arith.constant 2 : index
    %c0_13 = arith.constant 0 : index
    %6 = vector.load %arg1[%c0_11, %c0_12, %c2, %c0_13] : memref<1x18x18x128xbf16, #tpu.memory_space<vmem>>, vector<1x18x16x128xbf16>
    %7 = vector.shape_cast %6 : vector<1x18x16x128xbf16> to vector<18x16x128xbf16>
    %c0_14 = arith.constant 0 : index
    %c0_15 = arith.constant 0 : index
    %c256 = arith.constant 256 : index
    %8 = vector.load %arg5[%c0_14, %c0_15, %c256] : memref<18x16x384xbf16, #tpu.memory_space<vmem>>, vector<18x16x128xbf16>
    tpu.vector_store %arg5[%c0_14, %c0_15, %c256], %7 {strides = array<i32>} : memref<18x16x384xbf16, #tpu.memory_space<vmem>>, vector<18x16x128xbf16>,
    %c0_16 = arith.constant 0 : index
    %c0_17 = arith.constant 0 : index
    %c0_18 = arith.constant 0 : index
    %9 = vector.load %arg5[%c0_16, %c0_17, %c0_18] : memref<18x16x384xbf16, #tpu.memory_space<vmem>>, vector<16x16x384xbf16>
    %10 = vector.shape_cast %9 : vector<16x16x384xbf16> to vector<256x384xbf16>
    %c0_19 = arith.constant 0 : index
    %c0_20 = arith.constant 0 : index
    %c0_21 = arith.constant 0 : index
    %11 = vector.load %arg2[%c0_19, %c0_20, %c0_21] : memref<3x384x128xbf16, #tpu.memory_space<vmem>>, vector<1x384x128xbf16>
    %12 = vector.shape_cast %11 : vector<1x384x128xbf16> to vector<384x128xbf16>
    %cst = arith.constant dense<0.000000e+00> : vector<256x128xf32>
    %13 = tpu.matmul %10, %12, %cst {dimension_numbers = #tpu.dot_dimension_numbers<[1], [0], [0], [1], [0, 0, 1, 1], [], []>} : vector<256x384xbf16>, vector<384x128xbf16>, vector<256x128xf32> -> vector<256x128xf32>
    %c0_22 = arith.constant 0 : index
    %c0_23 = arith.constant 0 : index
    %14 = vector.load %arg6[%c0_22, %c0_23] : memref<256x128xf32, #tpu.memory_space<vmem>>, vector<256x128xf32>
    tpu.vector_store %arg6[%c0_22, %c0_23], %13 {strides = array<i32>} : memref<256x128xf32, #tpu.memory_space<vmem>>, vector<256x128xf32>,
    %c0_24 = arith.constant 0 : index
    %c0_25 = arith.constant 0 : index
    %15 = vector.load %arg6[%c0_24, %c0_25] : memref<256x128xf32, #tpu.memory_space<vmem>>, vector<256x128xf32>
    %c1_26 = arith.constant 1 : index
    %c0_27 = arith.constant 0 : index
    %c0_28 = arith.constant 0 : index
    %16 = vector.load %arg5[%c1_26, %c0_27, %c0_28] : memref<18x16x384xbf16, #tpu.memory_space<vmem>>, vector<16x16x384xbf16>
    %17 = vector.shape_cast %16 : vector<16x16x384xbf16> to vector<256x384xbf16>
    %c1_29 = arith.constant 1 : index
    %c0_30 = arith.constant 0 : index
    %c0_31 = arith.constant 0 : index
    %18 = vector.load %arg2[%c1_29, %c0_30, %c0_31] : memref<3x384x128xbf16, #tpu.memory_space<vmem>>, vector<1x384x128xbf16>
    %19 = vector.shape_cast %18 : vector<1x384x128xbf16> to vector<384x128xbf16>
    %cst_32 = arith.constant dense<0.000000e+00> : vector<256x128xf32>
    %20 = tpu.matmul %17, %19, %cst_32 {dimension_numbers = #tpu.dot_dimension_numbers<[1], [0], [0], [1], [0, 0, 1, 1], [], []>} : vector<256x384xbf16>, vector<384x128xbf16>, vector<256x128xf32> -> vector<256x128xf32>
    %21 = arith.addf %15, %20 : vector<256x128xf32>
    %c0_33 = arith.constant 0 : index
    %c0_34 = arith.constant 0 : index
    %22 = vector.load %arg6[%c0_33, %c0_34] : memref<256x128xf32, #tpu.memory_space<vmem>>, vector<256x128xf32>
    tpu.vector_store %arg6[%c0_33, %c0_34], %21 {strides = array<i32>} : memref<256x128xf32, #tpu.memory_space<vmem>>, vector<256x128xf32>,
    %c0_35 = arith.constant 0 : index
    %c0_36 = arith.constant 0 : index
    %23 = vector.load %arg6[%c0_35, %c0_36] : memref<256x128xf32, #tpu.memory_space<vmem>>, vector<256x128xf32>
    %c2_37 = arith.constant 2 : index
    %c0_38 = arith.constant 0 : index
    %c0_39 = arith.constant 0 : index
    %24 = vector.load %arg5[%c2_37, %c0_38, %c0_39] : memref<18x16x384xbf16, #tpu.memory_space<vmem>>, vector<16x16x384xbf16>
    %25 = vector.shape_cast %24 : vector<16x16x384xbf16> to vector<256x384xbf16>
    %c2_40 = arith.constant 2 : index
    %c0_41 = arith.constant 0 : index
    %c0_42 = arith.constant 0 : index
    %26 = vector.load %arg2[%c2_40, %c0_41, %c0_42] : memref<3x384x128xbf16, #tpu.memory_space<vmem>>, vector<1x384x128xbf16>
    %27 = vector.shape_cast %26 : vector<1x384x128xbf16> to vector<384x128xbf16>
    %cst_43 = arith.constant dense<0.000000e+00> : vector<256x128xf32>
    %28 = tpu.matmul %25, %27, %cst_43 {dimension_numbers = #tpu.dot_dimension_numbers<[1], [0], [0], [1], [0, 0, 1, 1], [], []>} : vector<256x384xbf16>, vector<384x128xbf16>, vector<256x128xf32> -> vector<256x128xf32>
    %29 = arith.addf %23, %28 : vector<256x128xf32>
    %c0_44 = arith.constant 0 : index
    %c0_45 = arith.constant 0 : index
    %30 = vector.load %arg6[%c0_44, %c0_45] : memref<256x128xf32, #tpu.memory_space<vmem>>, vector<256x128xf32>
    tpu.vector_store %arg6[%c0_44, %c0_45], %29 {strides = array<i32>} : memref<256x128xf32, #tpu.memory_space<vmem>>, vector<256x128xf32>,
    %c0_46 = arith.constant 0 : index
    %c0_47 = arith.constant 0 : index
    %31 = vector.load %arg6[%c0_46, %c0_47] : memref<256x128xf32, #tpu.memory_space<vmem>>, vector<256x128xf32>
    %32 = vector.shape_cast %31 : vector<256x128xf32> to vector<16x16x128xf32>
    %33 = arith.truncf %32 : vector<16x16x128xf32> to vector<16x16x128xbf16>
    %c0_48 = arith.constant 0 : index
    %c0_49 = arith.constant 0 : index
    %c0_50 = arith.constant 0 : index
    %c0_51 = arith.constant 0 : index
    %34 = vector.load %arg3[%c0_48, %c0_49, %c0_50, %c0_51] : memref<1x16x16x128xbf16, #tpu.memory_space<vmem>>, vector<1x16x16x128xbf16>
    %35 = vector.shape_cast %34 : vector<1x16x16x128xbf16> to vector<16x16x128xbf16>
    %36 = vector.shape_cast %33 : vector<16x16x128xbf16> to vector<1x16x16x128xbf16>
    tpu.vector_store %arg3[%c0_48, %c0_49, %c0_50, %c0_51], %36 {strides = array<i32>} : memref<1x16x16x128xbf16, #tpu.memory_space<vmem>>, vector<1x16x16x128xbf16>,
    %c0_i32 = arith.constant 0 : i32
    %37 = arith.cmpi eq, %arg0, %c0_i32 : i32
    %38 = arith.extui %37 : i1 to i32
    %c0_i32_52 = arith.constant 0 : i32
    %39 = arith.cmpi ne, %38, %c0_i32_52 : i32
    scf.if %39 {
      %cst_63 = arith.constant 0.000000e+00 : f32
      %51 = vector.broadcast %cst_63 : f32 to vector<2x128xf32>
      %c0_64 = arith.constant 0 : index
      %c0_65 = arith.constant 0 : index
      %52 = vector.load %arg4[%c0_64, %c0_65] : memref<2x128xf32, #tpu.memory_space<vmem>>, vector<2x128xf32>
      tpu.vector_store %arg4[%c0_64, %c0_65], %51 {strides = array<i32>} : memref<2x128xf32, #tpu.memory_space<vmem>>, vector<2x128xf32>,
    } else {
    }
    %c0_53 = arith.constant 0 : index
    %c0_54 = arith.constant 0 : index
    %40 = vector.load %arg4[%c0_53, %c0_54] : memref<2x128xf32, #tpu.memory_space<vmem>>, vector<1x128xf32>
    %cst_55 = arith.constant dense<0.000000e+00> : vector<128xf32>
    %41 = vector.multi_reduction <add>, %31, %cst_55 [0] : vector<256x128xf32> to vector<128xf32>
    %42 = vector.shape_cast %41 : vector<128xf32> to vector<1x128xf32>
    %43 = arith.addf %40, %42 : vector<1x128xf32>
    %c0_56 = arith.constant 0 : index
    %c0_57 = arith.constant 0 : index
    %44 = vector.load %arg4[%c0_56, %c0_57] : memref<2x128xf32, #tpu.memory_space<vmem>>, vector<1x128xf32>
    tpu.vector_store %arg4[%c0_56, %c0_57], %43 {strides = array<i32>} : memref<2x128xf32, #tpu.memory_space<vmem>>, vector<1x128xf32>,
    %c1_58 = arith.constant 1 : index
    %c0_59 = arith.constant 0 : index
    %45 = vector.load %arg4[%c1_58, %c0_59] : memref<2x128xf32, #tpu.memory_space<vmem>>, vector<1x128xf32>
    %46 = arith.mulf %31, %31 : vector<256x128xf32>
    %cst_60 = arith.constant dense<0.000000e+00> : vector<128xf32>
    %47 = vector.multi_reduction <add>, %46, %cst_60 [0] : vector<256x128xf32> to vector<128xf32>
    %48 = vector.shape_cast %47 : vector<128xf32> to vector<1x128xf32>
    %49 = arith.addf %45, %48 : vector<1x128xf32>
    %c1_61 = arith.constant 1 : index
    %c0_62 = arith.constant 0 : index
    %50 = vector.load %arg4[%c1_61, %c0_62] : memref<2x128xf32, #tpu.memory_space<vmem>>, vector<1x128xf32>
    tpu.vector_store %arg4[%c1_61, %c0_62], %49 {strides = array<i32>} : memref<2x128xf32, #tpu.memory_space<vmem>>, vector<1x128xf32>,
    return
  }
  func.func @transform_0(%arg0: i32) -> (i32, i32, i32, i32) {
    %c0_i32 = arith.constant 0 : i32
    %c0_i32_0 = arith.constant 0 : i32
    %c0_i32_1 = arith.constant 0 : i32
    %c0_i32_2 = arith.constant 0 : i32
    return %arg0, %c0_i32, %c0_i32_0, %c0_i32_1 : i32, i32, i32, i32
  }
  func.func @transform_1(%arg0: i32) -> (i32, i32, i32) {
    %c0_i32 = arith.constant 0 : i32
    %c0_i32_0 = arith.constant 0 : i32
    %c0_i32_1 = arith.constant 0 : i32
    %c0_i32_2 = arith.constant 0 : i32
    return %c0_i32, %c0_i32_0, %c0_i32_1 : i32, i32, i32
  }
  func.func @transform_2(%arg0: i32) -> (i32, i32, i32, i32) {
    %c0_i32 = arith.constant 0 : i32
    %c0_i32_0 = arith.constant 0 : i32
    %c0_i32_1 = arith.constant 0 : i32
    %c0_i32_2 = arith.constant 0 : i32
    return %arg0, %c0_i32, %c0_i32_0, %c0_i32_1 : i32, i32, i32, i32
  }
  func.func @transform_3(%arg0: i32) -> (i32, i32) {
    %c0_i32 = arith.constant 0 : i32
    %c0_i32_0 = arith.constant 0 : i32
    %c0_i32_1 = arith.constant 0 : i32
    return %c0_i32, %c0_i32_0 : i32, i32
  }
}

module attributes {stable_mosaic.version = 11 : i64} {
  func.func @_bn_relu_conv3x3_stats_kernel(%arg0: i32, %arg1: memref<1x16x16x128xbf16, #tpu.memory_space<vmem>>, %arg2: memref<2x128xf32, #tpu.memory_space<vmem>>, %arg3: memref<1x128xf32, #tpu.memory_space<vmem>>, %arg4: memref<1x128xf32, #tpu.memory_space<vmem>>, %arg5: memref<3x384x128xbf16, #tpu.memory_space<vmem>>, %arg6: memref<1x16x16x128xbf16, #tpu.memory_space<vmem>>, %arg7: memref<2x128xf32, #tpu.memory_space<vmem>>, %arg8: memref<18x16x384xbf16, #tpu.memory_space<vmem>>, %arg9: memref<256x128xf32, #tpu.memory_space<vmem>>) attributes {dimension_semantics = [#tpu.dimension_semantics<arbitrary>], iteration_bounds = array<i64: 2>, scalar_prefetch = 0 : i64, scratch_operands = 2 : i64, tpu.core_type = #tpu.core_type<tc>, window_params = [{transform_indices = @transform_0, window_bounds = array<i64: 1, 16, 16, 128>}, {pipeline_mode = #tpu.pipeline_mode<synchronous>, transform_indices = @transform_1, window_bounds = array<i64: 2, 128>}, {pipeline_mode = #tpu.pipeline_mode<synchronous>, transform_indices = @transform_2, window_bounds = array<i64: 1, 128>}, {pipeline_mode = #tpu.pipeline_mode<synchronous>, transform_indices = @transform_3, window_bounds = array<i64: 1, 128>}, {pipeline_mode = #tpu.pipeline_mode<synchronous>, transform_indices = @transform_4, window_bounds = array<i64: 3, 384, 128>}, {transform_indices = @transform_5, window_bounds = array<i64: 1, 16, 16, 128>}, {pipeline_mode = #tpu.pipeline_mode<synchronous>, transform_indices = @transform_6, window_bounds = array<i64: 2, 128>}]} {
    %c0_i32 = arith.constant 0 : i32
    %0 = arith.cmpi eq, %arg0, %c0_i32 : i32
    %1 = arith.extui %0 : i1 to i32
    %c0_i32_0 = arith.constant 0 : i32
    %2 = arith.cmpi ne, %1, %c0_i32_0 : i32
    scf.if %2 {
      %cst_68 = arith.constant 0.000000e+00 : bf16
      %77 = vector.broadcast %cst_68 : bf16 to vector<18x16x384xbf16>
      %c0_69 = arith.constant 0 : index
      %c0_70 = arith.constant 0 : index
      %c0_71 = arith.constant 0 : index
      %78 = vector.load %arg8[%c0_69, %c0_70, %c0_71] : memref<18x16x384xbf16, #tpu.memory_space<vmem>>, vector<18x16x384xbf16>
      tpu.vector_store %arg8[%c0_69, %c0_70, %c0_71], %77 {strides = array<i32>} : memref<18x16x384xbf16, #tpu.memory_space<vmem>>, vector<18x16x384xbf16>,
      %cst_72 = arith.constant 0.000000e+00 : f32
      %79 = vector.broadcast %cst_72 : f32 to vector<2x128xf32>
      %c0_73 = arith.constant 0 : index
      %c0_74 = arith.constant 0 : index
      %80 = vector.load %arg7[%c0_73, %c0_74] : memref<2x128xf32, #tpu.memory_space<vmem>>, vector<2x128xf32>
      tpu.vector_store %arg7[%c0_73, %c0_74], %79 {strides = array<i32>} : memref<2x128xf32, #tpu.memory_space<vmem>>, vector<2x128xf32>,
    } else {
    }
    %c0 = arith.constant 0 : index
    %c0_1 = arith.constant 0 : index
    %3 = vector.load %arg2[%c0, %c0_1] : memref<2x128xf32, #tpu.memory_space<vmem>>, vector<1x128xf32>
    %cst = arith.constant 0.001953125 : f32
    %4 = vector.broadcast %cst : f32 to vector<1x128xf32>
    %5 = arith.mulf %3, %4 : vector<1x128xf32>
    %c1 = arith.constant 1 : index
    %c0_2 = arith.constant 0 : index
    %6 = vector.load %arg2[%c1, %c0_2] : memref<2x128xf32, #tpu.memory_space<vmem>>, vector<1x128xf32>
    %cst_3 = arith.constant 0.001953125 : f32
    %7 = vector.broadcast %cst_3 : f32 to vector<1x128xf32>
    %8 = arith.mulf %6, %7 : vector<1x128xf32>
    %9 = arith.mulf %5, %5 : vector<1x128xf32>
    %10 = arith.subf %8, %9 : vector<1x128xf32>
    %cst_4 = arith.constant 0.000000e+00 : f32
    %11 = vector.broadcast %cst_4 : f32 to vector<1x128xf32>
    %12 = arith.maximumf %10, %11 : vector<1x128xf32>
    %cst_5 = arith.constant 9.99999974E-6 : f32
    %13 = vector.broadcast %cst_5 : f32 to vector<1x128xf32>
    %14 = arith.addf %12, %13 : vector<1x128xf32>
    %15 = math.rsqrt %14 : vector<1x128xf32>
    %c0_6 = arith.constant 0 : index
    %c0_7 = arith.constant 0 : index
    %16 = vector.load %arg3[%c0_6, %c0_7] : memref<1x128xf32, #tpu.memory_space<vmem>>, vector<1x128xf32>
    %17 = arith.mulf %15, %16 : vector<1x128xf32>
    %c0_8 = arith.constant 0 : index
    %c0_9 = arith.constant 0 : index
    %18 = vector.load %arg4[%c0_8, %c0_9] : memref<1x128xf32, #tpu.memory_space<vmem>>, vector<1x128xf32>
    %19 = arith.mulf %5, %17 : vector<1x128xf32>
    %20 = arith.subf %18, %19 : vector<1x128xf32>
    %c0_10 = arith.constant 0 : index
    %c0_11 = arith.constant 0 : index
    %c0_12 = arith.constant 0 : index
    %c0_13 = arith.constant 0 : index
    %21 = vector.load %arg1[%c0_10, %c0_11, %c0_12, %c0_13] : memref<1x16x16x128xbf16, #tpu.memory_space<vmem>>, vector<1x16x16x128xbf16>
    %22 = vector.shape_cast %21 : vector<1x16x16x128xbf16> to vector<16x16x128xbf16>
    %23 = arith.extf %22 : vector<16x16x128xbf16> to vector<16x16x128xf32>
    %24 = vector.shape_cast %17 : vector<1x128xf32> to vector<1x1x128xf32>
    %25 = vector.broadcast %24 : vector<1x1x128xf32> to vector<16x16x128xf32>
    %26 = arith.mulf %23, %25 : vector<16x16x128xf32>
    %27 = vector.shape_cast %20 : vector<1x128xf32> to vector<1x1x128xf32>
    %28 = vector.broadcast %27 : vector<1x1x128xf32> to vector<16x16x128xf32>
    %29 = arith.addf %26, %28 : vector<16x16x128xf32>
    %cst_14 = arith.constant 0.000000e+00 : f32
    %30 = vector.broadcast %cst_14 : f32 to vector<16x16x128xf32>
    %31 = arith.maximumf %29, %30 : vector<16x16x128xf32>
    %32 = arith.truncf %31 : vector<16x16x128xf32> to vector<16x16x128xbf16>
    %33 = vector.extract_strided_slice %32 {offsets = [0, 0, 0], sizes = [16, 15, 128], strides = [1, 1, 1]} : vector<16x16x128xbf16> to vector<16x15x128xbf16>
    %c1_15 = arith.constant 1 : index
    %c1_16 = arith.constant 1 : index
    %c0_17 = arith.constant 0 : index
    %34 = vector.load %arg8[%c1_15, %c1_16, %c0_17] : memref<18x16x384xbf16, #tpu.memory_space<vmem>>, vector<16x15x128xbf16>
    tpu.vector_store %arg8[%c1_15, %c1_16, %c0_17], %33 {strides = array<i32>} : memref<18x16x384xbf16, #tpu.memory_space<vmem>>, vector<16x15x128xbf16>,
    %c1_18 = arith.constant 1 : index
    %c0_19 = arith.constant 0 : index
    %c128 = arith.constant 128 : index
    %35 = vector.load %arg8[%c1_18, %c0_19, %c128] : memref<18x16x384xbf16, #tpu.memory_space<vmem>>, vector<16x16x128xbf16>
    tpu.vector_store %arg8[%c1_18, %c0_19, %c128], %32 {strides = array<i32>} : memref<18x16x384xbf16, #tpu.memory_space<vmem>>, vector<16x16x128xbf16>,
    %36 = vector.extract_strided_slice %32 {offsets = [0, 1, 0], sizes = [16, 15, 128], strides = [1, 1, 1]} : vector<16x16x128xbf16> to vector<16x15x128xbf16>
    %c1_20 = arith.constant 1 : index
    %c0_21 = arith.constant 0 : index
    %c256 = arith.constant 256 : index
    %37 = vector.load %arg8[%c1_20, %c0_21, %c256] : memref<18x16x384xbf16, #tpu.memory_space<vmem>>, vector<16x15x128xbf16>
    tpu.vector_store %arg8[%c1_20, %c0_21, %c256], %36 {strides = array<i32>} : memref<18x16x384xbf16, #tpu.memory_space<vmem>>, vector<16x15x128xbf16>,
    %c0_22 = arith.constant 0 : index
    %c0_23 = arith.constant 0 : index
    %c0_24 = arith.constant 0 : index
    %38 = vector.load %arg8[%c0_22, %c0_23, %c0_24] : memref<18x16x384xbf16, #tpu.memory_space<vmem>>, vector<16x16x384xbf16>
    %39 = vector.shape_cast %38 : vector<16x16x384xbf16> to vector<256x384xbf16>
    %c0_25 = arith.constant 0 : index
    %c0_26 = arith.constant 0 : index
    %c0_27 = arith.constant 0 : index
    %40 = vector.load %arg5[%c0_25, %c0_26, %c0_27] : memref<3x384x128xbf16, #tpu.memory_space<vmem>>, vector<1x384x128xbf16>
    %41 = vector.shape_cast %40 : vector<1x384x128xbf16> to vector<384x128xbf16>
    %cst_28 = arith.constant dense<0.000000e+00> : vector<256x128xf32>
    %42 = tpu.matmul %39, %41, %cst_28 {dimension_numbers = #tpu.dot_dimension_numbers<[1], [0], [0], [1], [0, 0, 1, 1], [], []>} : vector<256x384xbf16>, vector<384x128xbf16>, vector<256x128xf32> -> vector<256x128xf32>
    %c0_29 = arith.constant 0 : index
    %c0_30 = arith.constant 0 : index
    %43 = vector.load %arg9[%c0_29, %c0_30] : memref<256x128xf32, #tpu.memory_space<vmem>>, vector<256x128xf32>
    tpu.vector_store %arg9[%c0_29, %c0_30], %42 {strides = array<i32>} : memref<256x128xf32, #tpu.memory_space<vmem>>, vector<256x128xf32>,
    %c0_31 = arith.constant 0 : index
    %c0_32 = arith.constant 0 : index
    %44 = vector.load %arg9[%c0_31, %c0_32] : memref<256x128xf32, #tpu.memory_space<vmem>>, vector<256x128xf32>
    %c1_33 = arith.constant 1 : index
    %c0_34 = arith.constant 0 : index
    %c0_35 = arith.constant 0 : index
    %45 = vector.load %arg8[%c1_33, %c0_34, %c0_35] : memref<18x16x384xbf16, #tpu.memory_space<vmem>>, vector<16x16x384xbf16>
    %46 = vector.shape_cast %45 : vector<16x16x384xbf16> to vector<256x384xbf16>
    %c1_36 = arith.constant 1 : index
    %c0_37 = arith.constant 0 : index
    %c0_38 = arith.constant 0 : index
    %47 = vector.load %arg5[%c1_36, %c0_37, %c0_38] : memref<3x384x128xbf16, #tpu.memory_space<vmem>>, vector<1x384x128xbf16>
    %48 = vector.shape_cast %47 : vector<1x384x128xbf16> to vector<384x128xbf16>
    %cst_39 = arith.constant dense<0.000000e+00> : vector<256x128xf32>
    %49 = tpu.matmul %46, %48, %cst_39 {dimension_numbers = #tpu.dot_dimension_numbers<[1], [0], [0], [1], [0, 0, 1, 1], [], []>} : vector<256x384xbf16>, vector<384x128xbf16>, vector<256x128xf32> -> vector<256x128xf32>
    %50 = arith.addf %44, %49 : vector<256x128xf32>
    %c0_40 = arith.constant 0 : index
    %c0_41 = arith.constant 0 : index
    %51 = vector.load %arg9[%c0_40, %c0_41] : memref<256x128xf32, #tpu.memory_space<vmem>>, vector<256x128xf32>
    tpu.vector_store %arg9[%c0_40, %c0_41], %50 {strides = array<i32>} : memref<256x128xf32, #tpu.memory_space<vmem>>, vector<256x128xf32>,
    %c0_42 = arith.constant 0 : index
    %c0_43 = arith.constant 0 : index
    %52 = vector.load %arg9[%c0_42, %c0_43] : memref<256x128xf32, #tpu.memory_space<vmem>>, vector<256x128xf32>
    %c2 = arith.constant 2 : index
    %c0_44 = arith.constant 0 : index
    %c0_45 = arith.constant 0 : index
    %53 = vector.load %arg8[%c2, %c0_44, %c0_45] : memref<18x16x384xbf16, #tpu.memory_space<vmem>>, vector<16x16x384xbf16>
    %54 = vector.shape_cast %53 : vector<16x16x384xbf16> to vector<256x384xbf16>
    %c2_46 = arith.constant 2 : index
    %c0_47 = arith.constant 0 : index
    %c0_48 = arith.constant 0 : index
    %55 = vector.load %arg5[%c2_46, %c0_47, %c0_48] : memref<3x384x128xbf16, #tpu.memory_space<vmem>>, vector<1x384x128xbf16>
    %56 = vector.shape_cast %55 : vector<1x384x128xbf16> to vector<384x128xbf16>
    %cst_49 = arith.constant dense<0.000000e+00> : vector<256x128xf32>
    %57 = tpu.matmul %54, %56, %cst_49 {dimension_numbers = #tpu.dot_dimension_numbers<[1], [0], [0], [1], [0, 0, 1, 1], [], []>} : vector<256x384xbf16>, vector<384x128xbf16>, vector<256x128xf32> -> vector<256x128xf32>
    %58 = arith.addf %52, %57 : vector<256x128xf32>
    %c0_50 = arith.constant 0 : index
    %c0_51 = arith.constant 0 : index
    %59 = vector.load %arg9[%c0_50, %c0_51] : memref<256x128xf32, #tpu.memory_space<vmem>>, vector<256x128xf32>
    tpu.vector_store %arg9[%c0_50, %c0_51], %58 {strides = array<i32>} : memref<256x128xf32, #tpu.memory_space<vmem>>, vector<256x128xf32>,
    %c0_52 = arith.constant 0 : index
    %c0_53 = arith.constant 0 : index
    %60 = vector.load %arg9[%c0_52, %c0_53] : memref<256x128xf32, #tpu.memory_space<vmem>>, vector<256x128xf32>
    %61 = vector.shape_cast %60 : vector<256x128xf32> to vector<16x16x128xf32>
    %62 = arith.truncf %61 : vector<16x16x128xf32> to vector<16x16x128xbf16>
    %c0_54 = arith.constant 0 : index
    %c0_55 = arith.constant 0 : index
    %c0_56 = arith.constant 0 : index
    %c0_57 = arith.constant 0 : index
    %63 = vector.load %arg6[%c0_54, %c0_55, %c0_56, %c0_57] : memref<1x16x16x128xbf16, #tpu.memory_space<vmem>>, vector<1x16x16x128xbf16>
    %64 = vector.shape_cast %63 : vector<1x16x16x128xbf16> to vector<16x16x128xbf16>
    %65 = vector.shape_cast %62 : vector<16x16x128xbf16> to vector<1x16x16x128xbf16>
    tpu.vector_store %arg6[%c0_54, %c0_55, %c0_56, %c0_57], %65 {strides = array<i32>} : memref<1x16x16x128xbf16, #tpu.memory_space<vmem>>, vector<1x16x16x128xbf16>,
    %c0_58 = arith.constant 0 : index
    %c0_59 = arith.constant 0 : index
    %66 = vector.load %arg7[%c0_58, %c0_59] : memref<2x128xf32, #tpu.memory_space<vmem>>, vector<1x128xf32>
    %cst_60 = arith.constant dense<0.000000e+00> : vector<128xf32>
    %67 = vector.multi_reduction <add>, %60, %cst_60 [0] : vector<256x128xf32> to vector<128xf32>
    %68 = vector.shape_cast %67 : vector<128xf32> to vector<1x128xf32>
    %69 = arith.addf %66, %68 : vector<1x128xf32>
    %c0_61 = arith.constant 0 : index
    %c0_62 = arith.constant 0 : index
    %70 = vector.load %arg7[%c0_61, %c0_62] : memref<2x128xf32, #tpu.memory_space<vmem>>, vector<1x128xf32>
    tpu.vector_store %arg7[%c0_61, %c0_62], %69 {strides = array<i32>} : memref<2x128xf32, #tpu.memory_space<vmem>>, vector<1x128xf32>,
    %c1_63 = arith.constant 1 : index
    %c0_64 = arith.constant 0 : index
    %71 = vector.load %arg7[%c1_63, %c0_64] : memref<2x128xf32, #tpu.memory_space<vmem>>, vector<1x128xf32>
    %72 = arith.mulf %60, %60 : vector<256x128xf32>
    %cst_65 = arith.constant dense<0.000000e+00> : vector<128xf32>
    %73 = vector.multi_reduction <add>, %72, %cst_65 [0] : vector<256x128xf32> to vector<128xf32>
    %74 = vector.shape_cast %73 : vector<128xf32> to vector<1x128xf32>
    %75 = arith.addf %71, %74 : vector<1x128xf32>
    %c1_66 = arith.constant 1 : index
    %c0_67 = arith.constant 0 : index
    %76 = vector.load %arg7[%c1_66, %c0_67] : memref<2x128xf32, #tpu.memory_space<vmem>>, vector<1x128xf32>
    tpu.vector_store %arg7[%c1_66, %c0_67], %75 {strides = array<i32>} : memref<2x128xf32, #tpu.memory_space<vmem>>, vector<1x128xf32>,
    return
  }
  func.func @transform_0(%arg0: i32) -> (i32, i32, i32, i32) {
    %c0_i32 = arith.constant 0 : i32
    %c0_i32_0 = arith.constant 0 : i32
    %c0_i32_1 = arith.constant 0 : i32
    %c0_i32_2 = arith.constant 0 : i32
    return %arg0, %c0_i32, %c0_i32_0, %c0_i32_1 : i32, i32, i32, i32
  }
  func.func @transform_1(%arg0: i32) -> (i32, i32) {
    %c0_i32 = arith.constant 0 : i32
    %c0_i32_0 = arith.constant 0 : i32
    %c0_i32_1 = arith.constant 0 : i32
    return %c0_i32, %c0_i32_0 : i32, i32
  }
  func.func @transform_2(%arg0: i32) -> (i32, i32) {
    %c0_i32 = arith.constant 0 : i32
    %c0_i32_0 = arith.constant 0 : i32
    %c0_i32_1 = arith.constant 0 : i32
    return %c0_i32, %c0_i32_0 : i32, i32
  }
  func.func @transform_3(%arg0: i32) -> (i32, i32) {
    %c0_i32 = arith.constant 0 : i32
    %c0_i32_0 = arith.constant 0 : i32
    %c0_i32_1 = arith.constant 0 : i32
    return %c0_i32, %c0_i32_0 : i32, i32
  }
  func.func @transform_4(%arg0: i32) -> (i32, i32, i32) {
    %c0_i32 = arith.constant 0 : i32
    %c0_i32_0 = arith.constant 0 : i32
    %c0_i32_1 = arith.constant 0 : i32
    %c0_i32_2 = arith.constant 0 : i32
    return %c0_i32, %c0_i32_0, %c0_i32_1 : i32, i32, i32
  }
  func.func @transform_5(%arg0: i32) -> (i32, i32, i32, i32) {
    %c0_i32 = arith.constant 0 : i32
    %c0_i32_0 = arith.constant 0 : i32
    %c0_i32_1 = arith.constant 0 : i32
    %c0_i32_2 = arith.constant 0 : i32
    return %arg0, %c0_i32, %c0_i32_0, %c0_i32_1 : i32, i32, i32, i32
  }
  func.func @transform_6(%arg0: i32) -> (i32, i32) {
    %c0_i32 = arith.constant 0 : i32
    %c0_i32_0 = arith.constant 0 : i32
    %c0_i32_1 = arith.constant 0 : i32
    return %c0_i32, %c0_i32_0 : i32, i32
  }
}

module attributes {stable_mosaic.version = 11 : i64} {
  func.func @_bn_relu_kernel(%arg0: i32, %arg1: memref<1x16x16x128xbf16, #tpu.memory_space<vmem>>, %arg2: memref<2x128xf32, #tpu.memory_space<vmem>>, %arg3: memref<1x128xf32, #tpu.memory_space<vmem>>, %arg4: memref<1x128xf32, #tpu.memory_space<vmem>>, %arg5: memref<1x16x16x128xf32, #tpu.memory_space<vmem>>) attributes {dimension_semantics = [#tpu.dimension_semantics<parallel>], iteration_bounds = array<i64: 2>, scalar_prefetch = 0 : i64, scratch_operands = 0 : i64, tpu.core_type = #tpu.core_type<tc>, window_params = [{transform_indices = @transform_0, window_bounds = array<i64: 1, 16, 16, 128>}, {pipeline_mode = #tpu.pipeline_mode<synchronous>, transform_indices = @transform_1, window_bounds = array<i64: 2, 128>}, {pipeline_mode = #tpu.pipeline_mode<synchronous>, transform_indices = @transform_2, window_bounds = array<i64: 1, 128>}, {pipeline_mode = #tpu.pipeline_mode<synchronous>, transform_indices = @transform_3, window_bounds = array<i64: 1, 128>}, {transform_indices = @transform_4, window_bounds = array<i64: 1, 16, 16, 128>}]} {
    %c0 = arith.constant 0 : index
    %c0_0 = arith.constant 0 : index
    %0 = vector.load %arg2[%c0, %c0_0] : memref<2x128xf32, #tpu.memory_space<vmem>>, vector<1x128xf32>
    %cst = arith.constant 0.001953125 : f32
    %1 = vector.broadcast %cst : f32 to vector<1x128xf32>
    %2 = arith.mulf %0, %1 : vector<1x128xf32>
    %c1 = arith.constant 1 : index
    %c0_1 = arith.constant 0 : index
    %3 = vector.load %arg2[%c1, %c0_1] : memref<2x128xf32, #tpu.memory_space<vmem>>, vector<1x128xf32>
    %cst_2 = arith.constant 0.001953125 : f32
    %4 = vector.broadcast %cst_2 : f32 to vector<1x128xf32>
    %5 = arith.mulf %3, %4 : vector<1x128xf32>
    %6 = arith.mulf %2, %2 : vector<1x128xf32>
    %7 = arith.subf %5, %6 : vector<1x128xf32>
    %cst_3 = arith.constant 0.000000e+00 : f32
    %8 = vector.broadcast %cst_3 : f32 to vector<1x128xf32>
    %9 = arith.maximumf %7, %8 : vector<1x128xf32>
    %cst_4 = arith.constant 9.99999974E-6 : f32
    %10 = vector.broadcast %cst_4 : f32 to vector<1x128xf32>
    %11 = arith.addf %9, %10 : vector<1x128xf32>
    %12 = math.rsqrt %11 : vector<1x128xf32>
    %c0_5 = arith.constant 0 : index
    %c0_6 = arith.constant 0 : index
    %13 = vector.load %arg3[%c0_5, %c0_6] : memref<1x128xf32, #tpu.memory_space<vmem>>, vector<1x128xf32>
    %14 = arith.mulf %12, %13 : vector<1x128xf32>
    %c0_7 = arith.constant 0 : index
    %c0_8 = arith.constant 0 : index
    %15 = vector.load %arg4[%c0_7, %c0_8] : memref<1x128xf32, #tpu.memory_space<vmem>>, vector<1x128xf32>
    %16 = arith.mulf %2, %14 : vector<1x128xf32>
    %17 = arith.subf %15, %16 : vector<1x128xf32>
    %c0_9 = arith.constant 0 : index
    %c0_10 = arith.constant 0 : index
    %c0_11 = arith.constant 0 : index
    %c0_12 = arith.constant 0 : index
    %18 = vector.load %arg1[%c0_9, %c0_10, %c0_11, %c0_12] : memref<1x16x16x128xbf16, #tpu.memory_space<vmem>>, vector<1x16x16x128xbf16>
    %19 = vector.shape_cast %18 : vector<1x16x16x128xbf16> to vector<16x16x128xbf16>
    %20 = arith.extf %19 : vector<16x16x128xbf16> to vector<16x16x128xf32>
    %21 = vector.shape_cast %14 : vector<1x128xf32> to vector<1x1x128xf32>
    %22 = vector.broadcast %21 : vector<1x1x128xf32> to vector<16x16x128xf32>
    %23 = arith.mulf %20, %22 : vector<16x16x128xf32>
    %24 = vector.shape_cast %17 : vector<1x128xf32> to vector<1x1x128xf32>
    %25 = vector.broadcast %24 : vector<1x1x128xf32> to vector<16x16x128xf32>
    %26 = arith.addf %23, %25 : vector<16x16x128xf32>
    %cst_13 = arith.constant 0.000000e+00 : f32
    %27 = vector.broadcast %cst_13 : f32 to vector<16x16x128xf32>
    %28 = arith.maximumf %26, %27 : vector<16x16x128xf32>
    %c0_14 = arith.constant 0 : index
    %c0_15 = arith.constant 0 : index
    %c0_16 = arith.constant 0 : index
    %c0_17 = arith.constant 0 : index
    %29 = vector.load %arg5[%c0_14, %c0_15, %c0_16, %c0_17] : memref<1x16x16x128xf32, #tpu.memory_space<vmem>>, vector<1x16x16x128xf32>
    %30 = vector.shape_cast %29 : vector<1x16x16x128xf32> to vector<16x16x128xf32>
    %31 = vector.shape_cast %28 : vector<16x16x128xf32> to vector<1x16x16x128xf32>
    tpu.vector_store %arg5[%c0_14, %c0_15, %c0_16, %c0_17], %31 {strides = array<i32>} : memref<1x16x16x128xf32, #tpu.memory_space<vmem>>, vector<1x16x16x128xf32>,
    return
  }
  func.func @transform_0(%arg0: i32) -> (i32, i32, i32, i32) {
    %c0_i32 = arith.constant 0 : i32
    %c0_i32_0 = arith.constant 0 : i32
    %c0_i32_1 = arith.constant 0 : i32
    %c0_i32_2 = arith.constant 0 : i32
    return %arg0, %c0_i32, %c0_i32_0, %c0_i32_1 : i32, i32, i32, i32
  }
  func.func @transform_1(%arg0: i32) -> (i32, i32) {
    %c0_i32 = arith.constant 0 : i32
    %c0_i32_0 = arith.constant 0 : i32
    %c0_i32_1 = arith.constant 0 : i32
    return %c0_i32, %c0_i32_0 : i32, i32
  }
  func.func @transform_2(%arg0: i32) -> (i32, i32) {
    %c0_i32 = arith.constant 0 : i32
    %c0_i32_0 = arith.constant 0 : i32
    %c0_i32_1 = arith.constant 0 : i32
    return %c0_i32, %c0_i32_0 : i32, i32
  }
  func.func @transform_3(%arg0: i32) -> (i32, i32) {
    %c0_i32 = arith.constant 0 : i32
    %c0_i32_0 = arith.constant 0 : i32
    %c0_i32_1 = arith.constant 0 : i32
    return %c0_i32, %c0_i32_0 : i32, i32
  }
  func.func @transform_4(%arg0: i32) -> (i32, i32, i32, i32) {
    %c0_i32 = arith.constant 0 : i32
    %c0_i32_0 = arith.constant 0 : i32
    %c0_i32_1 = arith.constant 0 : i32
    %c0_i32_2 = arith.constant 0 : i32
    return %arg0, %c0_i32, %c0_i32_0, %c0_i32_1 : i32, i32, i32, i32
  }
}

</mosaic_0001>

<llo_original>
// kernel: conv_transpose_block_forward.5
$region0: #{conv_transpose_block_forward.5}
  #allocation0 [shape = 'u32[]', space=smem, size = 0x4, offset = 0x4, fixed_abs, tag = 'smem constant byte address 0x4 - core index']
  #allocation1 [shape = 'u32[144,128]{1,0:T(1,128)}', space=vmem, size = 0x12000, scoped, tag = 'internal scratch']
  %s0 = inlined_call_operand.vmem [shape: bf16[2,16,16,128], index: 0, kind: input, shape index: {}]
  %s1 = inlined_call_operand.vmem [shape: f32[2,128], index: 1, kind: input, shape index: {}]
  %s2 = inlined_call_operand.vmem [shape: f32[1,128], index: 2, kind: input, shape index: {}]
  %s3 = inlined_call_operand.vmem [shape: f32[1,128], index: 3, kind: input, shape index: {}]
  %s4 = inlined_call_operand.vmem [shape: f32[2,16,16,128], index: 4, kind: output, shape index: {}]
  %s5 = sld [smem:[#allocation0]]
  $region49: #{conv_transpose_block_forward.5} parent=0
    _
  %s7 = ssub.s32 1, %s5
  %s8 = scalar_select 0, %s7, %s5
  loop: start=0, step=1, limit=4
  $region2: #{conv_transpose_block_forward.5} parent=0 // loop_pre_header
    _
  $region3: #{conv_transpose_block_forward.5} parent=0 // loop_header
    %s10 = sphi 0, %s14
    %p11 = scmp.ge.s32.totalorder %s10, 4
    %s20 = sphi 0, %s22
    %s23 = sphi 0, %s20
    %s24 = sphi 0, %s23
    %s40 = sphi 0, %s24
    %s44 = sphi 0, %s44
    %s46 = sphi 0, %s44
    %s47 = sphi 0, %s46
    %s61 = sphi 0, %s47
    %s65 = sphi 0, %s65
    %s67 = sphi 0, %s65
    %s68 = sphi 0, %s67
    %s82 = sphi 0, %s68
    %s86 = sphi 0, %s86
    %s88 = sphi 0, %s86
    %s89 = sphi 0, %s88
    %s103 = sphi 0, %s89
    %s109 = sphi 0, %s111
    %s112 = sphi 0, %s109
    %s113 = sphi 0, %s112
    %s129 = sphi 0, %s113
  $region4: #{conv_transpose_block_forward.5} parent=0 // loop_header_branch
    %13 = sbr.rel (%p11) target = $region8
  $region5: #{conv_transpose_block_forward.5} parent=0 // loop_body
    %s15 = ssub.s32 %s10, 1
    %s16 = ssub.s32 %s10, 2
    %s17 = sadd.s32 %s10, 1
    %s18 = ssub.s32 %s10, %s17
    %p19 = scmp.eq.s32.totalorder %s18, 0
    %s21 = sadd.s32 %s20, 1
    %s22 = scalar_select %p19, %s20, %s21
    %p25 = pneg %p19
    %p26 = scmp.eq.s32.totalorder %s10, 1
    %p27 = por %p25, %p26
    %p28 = scmp.ne.s32.totalorder %s20, %s23
    %p29 = scmp.eq.s32.totalorder %s10, 0
    %p30 = por %p28, %p29
    %p31 = scmp.ne.s32.totalorder %s20, %s23
    %p32 = scmp.eq.s32.totalorder %s15, 1
    %p33 = por %p31, %p32
    %p34 = scmp.ne.s32.totalorder %s23, %s24
    %p35 = scmp.eq.s32.totalorder %s15, 0
    %p36 = por %p34, %p35
    %p37 = scmp.ne.s32.totalorder %s23, %s24
    %p38 = scmp.eq.s32.totalorder %s16, 1
    %p39 = por %p37, %p38
    %p41 = scmp.ne.s32.totalorder %s24, %s40
    %p42 = scmp.eq.s32.totalorder %s16, 0
    %p43 = por %p41, %p42
    %s45 = sadd.s32 %s44, 1
    %p48 = scmp.eq.s32.totalorder %s10, 1
    %p49 = scmp.ne.s32.totalorder %s44, %s46
    %p50 = scmp.eq.s32.totalorder %s10, 0
    %p51 = por %p49, %p50
    %p52 = scmp.ne.s32.totalorder %s44, %s46
    %p53 = scmp.eq.s32.totalorder %s15, 1
    %p54 = por %p52, %p53
    %p55 = scmp.ne.s32.totalorder %s46, %s47
    %p56 = scmp.eq.s32.totalorder %s15, 0
    %p57 = por %p55, %p56
    %p58 = scmp.ne.s32.totalorder %s46, %s47
    %p59 = scmp.eq.s32.totalorder %s16, 1
    %p60 = por %p58, %p59
    %p62 = scmp.ne.s32.totalorder %s47, %s61
    %p63 = scmp.eq.s32.totalorder %s16, 0
    %p64 = por %p62, %p63
    %s66 = sadd.s32 %s65, 1
    %p69 = scmp.eq.s32.totalorder %s10, 1
    %p70 = scmp.ne.s32.totalorder %s65, %s67
    %p71 = scmp.eq.s32.totalorder %s10, 0
    %p72 = por %p70, %p71
    %p73 = scmp.ne.s32.totalorder %s65, %s67
    %p74 = scmp.eq.s32.totalorder %s15, 1
    %p75 = por %p73, %p74
    %p76 = scmp.ne.s32.totalorder %s67, %s68
    %p77 = scmp.eq.s32.totalorder %s15, 0
    %p78 = por %p76, %p77
    %p79 = scmp.ne.s32.totalorder %s67, %s68
    %p80 = scmp.eq.s32.totalorder %s16, 1
    %p81 = por %p79, %p80
    %p83 = scmp.ne.s32.totalorder %s68, %s82
    %p84 = scmp.eq.s32.totalorder %s16, 0
    %p85 = por %p83, %p84
    %s87 = sadd.s32 %s86, 1
    %p90 = scmp.eq.s32.totalorder %s10, 1
    %p91 = scmp.ne.s32.totalorder %s86, %s88
    %p92 = scmp.eq.s32.totalorder %s10, 0
    %p93 = por %p91, %p92
    %p94 = scmp.ne.s32.totalorder %s86, %s88
    %p95 = scmp.eq.s32.totalorder %s15, 1
    %p96 = por %p94, %p95
    %p97 = scmp.ne.s32.totalorder %s88, %s89
    %p98 = scmp.eq.s32.totalorder %s15, 0
    %p99 = por %p97, %p98
    %p100 = scmp.ne.s32.totalorder %s88, %s89
    %p101 = scmp.eq.s32.totalorder %s16, 1
    %p102 = por %p100, %p101
    %p104 = scmp.ne.s32.totalorder %s89, %s103
    %p105 = scmp.eq.s32.totalorder %s16, 0
    %p106 = por %p104, %p105
    %s107 = ssub.s32 %s10, %s17
    %p108 = scmp.eq.s32.totalorder %s107, 0
    %s110 = sadd.s32 %s109, 1
    %s111 = scalar_select %p108, %s109, %s110
    %p114 = pneg %p108
    %p115 = scmp.eq.s32.totalorder %s10, 1
    %p116 = por %p114, %p115
    %p117 = scmp.ne.s32.totalorder %s109, %s112
    %p118 = scmp.eq.s32.totalorder %s10, 0
    %p119 = por %p117, %p118
    %p120 = scmp.ne.s32.totalorder %s109, %s112
    %p121 = scmp.eq.s32.totalorder %s15, 1
    %p122 = por %p120, %p121
    %p123 = scmp.ne.s32.totalorder %s112, %s113
    %p124 = scmp.eq.s32.totalorder %s15, 0
    %p125 = por %p123, %p124
    %p126 = scmp.ne.s32.totalorder %s112, %s113
    %p127 = scmp.eq.s32.totalorder %s16, 1
    %p128 = por %p126, %p127
    %p130 = scmp.ne.s32.totalorder %s113, %s129
    %p131 = scmp.eq.s32.totalorder %s16, 0
    %p132 = por %p130, %p131
    %p133 = scmp.le.s32.totalorder 1, %s10
    %p134 = scmp.lt.s32.totalorder %s10, 3
    %p135 = pnand %p133, %p134
    %p136 = pneg %p135
    // Predicated region
    $region9: #{conv_transpose_block_forward.5} parent=5 // pred_check
      _
    $region10: #{conv_transpose_block_forward.5} parent=5 // pred_check_branch
      %138 = sbr.rel (%p135) target = $region12
    $region11: #{conv_transpose_block_forward.5} parent=5 // pred_region
      %s139 = ssub.s32 %s10, 1
      // Predicated region
      $region13: #{conv_transpose_block_forward.5} parent=11 // pred_check
        %p140 = pneg %p57
      $region14: #{conv_transpose_block_forward.5} parent=11 // pred_check_branch
        %142 = sbr.rel (%p140) target = $region16
      $region15: #{conv_transpose_block_forward.5} parent=11 // pred_region
        _
      $region16: #{conv_transpose_block_forward.5} parent=11 // pred_fallthru
        _
      // Predicated region
      $region17: #{conv_transpose_block_forward.5} parent=11 // pred_check
        %p143 = pneg %p78
      $region18: #{conv_transpose_block_forward.5} parent=11 // pred_check_branch
        %145 = sbr.rel (%p143) target = $region20
      $region19: #{conv_transpose_block_forward.5} parent=11 // pred_region
        _
      $region20: #{conv_transpose_block_forward.5} parent=11 // pred_fallthru
        _
      // Predicated region
      $region21: #{conv_transpose_block_forward.5} parent=11 // pred_check
        %p146 = pneg %p99
      $region22: #{conv_transpose_block_forward.5} parent=11 // pred_check_branch
        %148 = sbr.rel (%p146) target = $region24
      $region23: #{conv_transpose_block_forward.5} parent=11 // pred_region
        _
      $region24: #{conv_transpose_block_forward.5} parent=11 // pred_fallthru
        _
    $region12: #{conv_transpose_block_forward.5} parent=5 // pred_fallthru
      _
    %p149 = scmp.lt.s32.totalorder %s10, 2
    // Predicated region
    $region25: #{conv_transpose_block_forward.5} parent=5 // pred_check
      %p150 = pneg %p149
    $region26: #{conv_transpose_block_forward.5} parent=5 // pred_check_branch
      %152 = sbr.rel (%p150) target = $region28
    $region27: #{conv_transpose_block_forward.5} parent=5 // pred_region
      // Predicated region
      $region29: #{conv_transpose_block_forward.5} parent=27 // pred_check
        %p153 = pneg %p30
      $region30: #{conv_transpose_block_forward.5} parent=27 // pred_check_branch
        %155 = sbr.rel (%p153) target = $region32
      $region31: #{conv_transpose_block_forward.5} parent=27 // pred_region
        %p156 = scmp.lt.s32.totalorder %s10, 1
        %s157 = scalar_select %p156, %s10, 1
        %s158 = smul.addr %s157, 32
        %s159 = smul.addr %s158, 4
        %s160 = scalar_lea.vmem %s0, %s159
      $region32: #{conv_transpose_block_forward.5} parent=27 // pred_fallthru
        _
    $region28: #{conv_transpose_block_forward.5} parent=5 // pred_fallthru
      _
    %p161 = scmp.le.s32.totalorder 1, %s10
    %p162 = scmp.lt.s32.totalorder %s10, 3
    %p163 = pnand %p161, %p162
    %p164 = pneg %p163
    // Predicated region
    $region33: #{conv_transpose_block_forward.5} parent=5 // pred_check
      _
    $region34: #{conv_transpose_block_forward.5} parent=5 // pred_check_branch
      %166 = sbr.rel (%p163) target = $region36
    $region35: #{conv_transpose_block_forward.5} parent=5 // pred_region
      %s167 = ssub.s32 %s10, 1
      %p168 = scmp.lt.s32.totalorder %s15, 1
      %s169 = scalar_select %p168, %s15, 1
      %s170 = smul.addr %s169, 32
      %s171 = smul.addr %s170, 4
      %s172 = scalar_lea.vmem %s0, %s171
      %p173 = pneg %p36
      %p174 = pneg %p33
      %p175 = pneg %p57
      %p176 = pneg %p54
      %p177 = pneg %p78
      %p178 = pneg %p75
      %p179 = pneg %p99
      %p180 = pneg %p96
      %p181 = pneg %p125
      %p182 = pneg %p122
      %p183 = scmp.lt.s32.totalorder %s15, 1
      %s184 = scalar_select %p183, %s15, 1
      %s185 = smul.addr %s184, 32
      %s186 = smul.addr %s185, 8
      %s187 = scalar_lea.vmem %s4, %s186
      %p188 = scmp.lt.s32.totalorder %s15, 1
      %s189 = scalar_select %p188, %s15, 1
      %s190 = smul.addr %s189, 32
      %s191 = smul.addr %s190, 4
      %s192 = scalar_lea.vmem %s0, %s191
      %p193 = scmp.lt.s32.totalorder %s15, 1
      %s194 = scalar_select %p193, %s15, 1
      %s195 = smul.addr %s194, 32
      %s196 = smul.addr %s195, 8
      %s197 = scalar_lea.vmem %s4, %s196
      %v198 = vld [vmem:[%s1] sm:$0x1]
      %v199 = vmul.f32 %v198, 0.001953125
      %v200 = vld [vmem:[%s1 + $0x1] sm:$0x1]
      %v201 = vmul.f32 %v200, 0.001953125
      %v202 = vmul.f32 %v199, %v199
      %v203 = vsub.f32 %v201, %v202
      %v204 = vmax.f32 %v203, 0.0
      %v205 = vadd.f32 %v204, 1e-05
      %v206 = vrsqrt.pop %v205
      %v207 = vld [vmem:[%s2] sm:$0x1]
      %v208 = vmul.f32 %v206, %v207
      %v209 = vld [vmem:[%s3] sm:$0x1]
      %v210 = vmul.f32 %v199, %v208
      %v211 = vsub.f32 %v209, %v210
      %v212 = vld [vmem:[%s192] sm:$0xf]
      %v213 = vld [vmem:[%s192 + $0x4] sm:$0xf]
      %v214 = vld [vmem:[%s192 + $0x8] sm:$0xf]
      %v215 = vld [vmem:[%s192 + $0xc] sm:$0xf]
      %v216 = vld [vmem:[%s192 + $0x10] sm:$0xf]
      %v217 = vld [vmem:[%s192 + $0x14] sm:$0xf]
      %v218 = vld [vmem:[%s192 + $0x18] sm:$0xf]
      %v219 = vld [vmem:[%s192 + $0x1c] sm:$0xf]
      %v220 = vld [vmem:[%s192 + $0x20] sm:$0xf]
      %v221 = vld [vmem:[%s192 + $0x24] sm:$0xf]
      %v222 = vld [vmem:[%s192 + $0x28] sm:$0xf]
      %v223 = vld [vmem:[%s192 + $0x2c] sm:$0xf]
      %v224 = vld [vmem:[%s192 + $0x30] sm:$0xf]
      %v225 = vld [vmem:[%s192 + $0x34] sm:$0xf]
      %v226 = vld [vmem:[%s192 + $0x38] sm:$0xf]
      %v227 = vld [vmem:[%s192 + $0x3c] sm:$0xf]
      %v228 = vld [vmem:[%s192 + $0x40] sm:$0xf]
      %v229 = vld [vmem:[%s192 + $0x44] sm:$0xf]
      %v230 = vld [vmem:[%s192 + $0x48] sm:$0xf]
      %v231 = vld [vmem:[%s192 + $0x4c] sm:$0xf]
      %v232 = vld [vmem:[%s192 + $0x50] sm:$0xf]
      %v233 = vld [vmem:[%s192 + $0x54] sm:$0xf]
      %v234 = vld [vmem:[%s192 + $0x58] sm:$0xf]
      %v235 = vld [vmem:[%s192 + $0x5c] sm:$0xf]
      %v236 = vld [vmem:[%s192 + $0x60] sm:$0xf]
      %v237 = vld [vmem:[%s192 + $0x64] sm:$0xf]
      %v238 = vld [vmem:[%s192 + $0x68] sm:$0xf]
      %v239 = vld [vmem:[%s192 + $0x6c] sm:$0xf]
      %v240 = vld [vmem:[%s192 + $0x70] sm:$0xf]
      %v241 = vld [vmem:[%s192 + $0x74] sm:$0xf]
      %v242 = vld [vmem:[%s192 + $0x78] sm:$0xf]
      %v243 = vld [vmem:[%s192 + $0x7c] sm:$0xf]
      %v244 = vunpack.c.l.bf16 %v212
      %v245 = vunpack.c.l.bf16 %v213
      %v246 = vunpack.c.l.bf16 %v214
      %v247 = vunpack.c.l.bf16 %v215
      %v248 = vunpack.c.l.bf16 %v216
      %v249 = vunpack.c.l.bf16 %v217
      %v250 = vunpack.c.l.bf16 %v218
      %v251 = vunpack.c.l.bf16 %v219
      %v252 = vunpack.c.l.bf16 %v220
      %v253 = vunpack.c.l.bf16 %v221
      %v254 = vunpack.c.l.bf16 %v222
      %v255 = vunpack.c.l.bf16 %v223
      %v256 = vunpack.c.l.bf16 %v224
      %v257 = vunpack.c.l.bf16 %v225
      %v258 = vunpack.c.l.bf16 %v226
      %v259 = vunpack.c.l.bf16 %v227
      %v260 = vunpack.c.l.bf16 %v228
      %v261 = vunpack.c.l.bf16 %v229
      %v262 = vunpack.c.l.bf16 %v230
      %v263 = vunpack.c.l.bf16 %v231
      %v264 = vunpack.c.l.bf16 %v232
      %v265 = vunpack.c.l.bf16 %v233
      %v266 = vunpack.c.l.bf16 %v234
      %v267 = vunpack.c.l.bf16 %v235
      %v268 = vunpack.c.l.bf16 %v236
      %v269 = vunpack.c.l.bf16 %v237
      %v270 = vunpack.c.l.bf16 %v238
      %v271 = vunpack.c.l.bf16 %v239
      %v272 = vunpack.c.l.bf16 %v240
      %v273 = vunpack.c.l.bf16 %v241
      %v274 = vunpack.c.l.bf16 %v242
      %v275 = vunpack.c.l.bf16 %v243
      %v276 = vlaneseq
      %v277 = vshrl.u32 %v276, 7
      %v278 = vsub.s32 0, %v277
      %v279 = vrot.slane %v208, %v278
      %v280 = vmul.f32 %v244, %v279
      %v281 = vmul.f32 %v245, %v279
      %v282 = vmul.f32 %v246, %v279
      %v283 = vmul.f32 %v247, %v279
      %v284 = vmul.f32 %v248, %v279
      %v285 = vmul.f32 %v249, %v279
      %v286 = vmul.f32 %v250, %v279
      %v287 = vmul.f32 %v251, %v279
      %v288 = vmul.f32 %v252, %v279
      %v289 = vmul.f32 %v253, %v279
      %v290 = vmul.f32 %v254, %v279
      %v291 = vmul.f32 %v255, %v279
      %v292 = vmul.f32 %v256, %v279
      %v293 = vmul.f32 %v257, %v279
      %v294 = vmul.f32 %v258, %v279
      %v295 = vmul.f32 %v259, %v279
      %v296 = vmul.f32 %v260, %v279
      %v297 = vmul.f32 %v261, %v279
      %v298 = vmul.f32 %v262, %v279
      %v299 = vmul.f32 %v263, %v279
      %v300 = vmul.f32 %v264, %v279
      %v301 = vmul.f32 %v265, %v279
      %v302 = vmul.f32 %v266, %v279
      %v303 = vmul.f32 %v267, %v279
      %v304 = vmul.f32 %v268, %v279
      %v305 = vmul.f32 %v269, %v279
      %v306 = vmul.f32 %v270, %v279
      %v307 = vmul.f32 %v271, %v279
      %v308 = vmul.f32 %v272, %v279
      %v309 = vmul.f32 %v273, %v279
      %v310 = vmul.f32 %v274, %v279
      %v311 = vmul.f32 %v275, %v279
      %v313 = vlaneseq
      %v314 = vshrl.u32 %v313, 7
      %v315 = vsub.s32 0, %v314
      %v316 = vrot.slane %v211, %v315
      %v318 = vadd.f32 %v280, %v316
      %v319 = vadd.f32 %v281, %v316
      %v320 = vadd.f32 %v282, %v316
      %v321 = vadd.f32 %v283, %v316
      %v322 = vadd.f32 %v284, %v316
      %v323 = vadd.f32 %v285, %v316
      %v324 = vadd.f32 %v286, %v316
      %v325 = vadd.f32 %v287, %v316
      %v326 = vadd.f32 %v288, %v316
      %v327 = vadd.f32 %v289, %v316
      %v328 = vadd.f32 %v290, %v316
      %v329 = vadd.f32 %v291, %v316
      %v330 = vadd.f32 %v292, %v316
      %v331 = vadd.f32 %v293, %v316
      %v332 = vadd.f32 %v294, %v316
      %v333 = vadd.f32 %v295, %v316
      %v334 = vadd.f32 %v296, %v316
      %v335 = vadd.f32 %v297, %v316
      %v336 = vadd.f32 %v298, %v316
      %v337 = vadd.f32 %v299, %v316
      %v338 = vadd.f32 %v300, %v316
      %v339 = vadd.f32 %v301, %v316
      %v340 = vadd.f32 %v302, %v316
      %v341 = vadd.f32 %v303, %v316
      %v342 = vadd.f32 %v304, %v316
      %v343 = vadd.f32 %v305, %v316
      %v344 = vadd.f32 %v306, %v316
      %v345 = vadd.f32 %v307, %v316
      %v346 = vadd.f32 %v308, %v316
      %v347 = vadd.f32 %v309, %v316
      %v348 = vadd.f32 %v310, %v316
      %v349 = vadd.f32 %v311, %v316
      %v350 = vmax.f32 %v318, 0.0
      %v351 = vmax.f32 %v319, 0.0
      %v352 = vmax.f32 %v320, 0.0
      %v353 = vmax.f32 %v321, 0.0
      %v354 = vmax.f32 %v322, 0.0
      %v355 = vmax.f32 %v323, 0.0
      %v356 = vmax.f32 %v324, 0.0
      %v357 = vmax.f32 %v325, 0.0
      %v358 = vmax.f32 %v326, 0.0
      %v359 = vmax.f32 %v327, 0.0
      %v360 = vmax.f32 %v328, 0.0
      %v361 = vmax.f32 %v329, 0.0
      %v362 = vmax.f32 %v330, 0.0
      %v363 = vmax.f32 %v331, 0.0
      %v364 = vmax.f32 %v332, 0.0
      %v365 = vmax.f32 %v333, 0.0
      %v366 = vmax.f32 %v334, 0.0
      %v367 = vmax.f32 %v335, 0.0
      %v368 = vmax.f32 %v336, 0.0
      %v369 = vmax.f32 %v337, 0.0
      %v370 = vmax.f32 %v338, 0.0
      %v371 = vmax.f32 %v339, 0.0
      %v372 = vmax.f32 %v340, 0.0
      %v373 = vmax.f32 %v341, 0.0
      %v374 = vmax.f32 %v342, 0.0
      %v375 = vmax.f32 %v343, 0.0
      %v376 = vmax.f32 %v344, 0.0
      %v377 = vmax.f32 %v345, 0.0
      %v378 = vmax.f32 %v346, 0.0
      %v379 = vmax.f32 %v347, 0.0
      %v380 = vmax.f32 %v348, 0.0
      %v381 = vmax.f32 %v349, 0.0
      %382 = vst [vmem:[%s197] sm:$0xff] %v350
      %383 = vst [vmem:[%s197 + $0x8] sm:$0xff] %v351
      %384 = vst [vmem:[%s197 + $0x10] sm:$0xff] %v352
      %385 = vst [vmem:[%s197 + $0x18] sm:$0xff] %v353
      %386 = vst [vmem:[%s197 + $0x20] sm:$0xff] %v354
      %387 = vst [vmem:[%s197 + $0x28] sm:$0xff] %v355
      %388 = vst [vmem:[%s197 + $0x30] sm:$0xff] %v356
      %389 = vst [vmem:[%s197 + $0x38] sm:$0xff] %v357
      %390 = vst [vmem:[%s197 + $0x40] sm:$0xff] %v358
      %391 = vst [vmem:[%s197 + $0x48] sm:$0xff] %v359
      %392 = vst [vmem:[%s197 + $0x50] sm:$0xff] %v360
      %393 = vst [vmem:[%s197 + $0x58] sm:$0xff] %v361
      %394 = vst [vmem:[%s197 + $0x60] sm:$0xff] %v362
      %395 = vst [vmem:[%s197 + $0x68] sm:$0xff] %v363
      %396 = vst [vmem:[%s197 + $0x70] sm:$0xff] %v364
      %397 = vst [vmem:[%s197 + $0x78] sm:$0xff] %v365
      %398 = vst [vmem:[%s197 + $0x80] sm:$0xff] %v366
      %399 = vst [vmem:[%s197 + $0x88] sm:$0xff] %v367
      %400 = vst [vmem:[%s197 + $0x90] sm:$0xff] %v368
      %401 = vst [vmem:[%s197 + $0x98] sm:$0xff] %v369
      %402 = vst [vmem:[%s197 + $0xa0] sm:$0xff] %v370
      %403 = vst [vmem:[%s197 + $0xa8] sm:$0xff] %v371
      %404 = vst [vmem:[%s197 + $0xb0] sm:$0xff] %v372
      %405 = vst [vmem:[%s197 + $0xb8] sm:$0xff] %v373
      %406 = vst [vmem:[%s197 + $0xc0] sm:$0xff] %v374
      %407 = vst [vmem:[%s197 + $0xc8] sm:$0xff] %v375
      %408 = vst [vmem:[%s197 + $0xd0] sm:$0xff] %v376
      %409 = vst [vmem:[%s197 + $0xd8] sm:$0xff] %v377
      %410 = vst [vmem:[%s197 + $0xe0] sm:$0xff] %v378
      %411 = vst [vmem:[%s197 + $0xe8] sm:$0xff] %v379
      %412 = vst [vmem:[%s197 + $0xf0] sm:$0xff] %v380
      %413 = vst [vmem:[%s197 + $0xf8] sm:$0xff] %v381
      %p414 = scmp.lt.s32.totalorder %s15, 1
      %s415 = scalar_select %p414, %s15, 1
      %s416 = smul.addr %s415, 32
      %s417 = smul.addr %s416, 8
      %s418 = scalar_lea.vmem %s4, %s417
      // Predicated region
      $region37: #{conv_transpose_block_forward.5} parent=35 // pred_check
        %p419 = pneg %p122
      $region38: #{conv_transpose_block_forward.5} parent=35 // pred_check_branch
        %421 = sbr.rel (%p419) target = $region40
      $region39: #{conv_transpose_block_forward.5} parent=35 // pred_region
        _
      $region40: #{conv_transpose_block_forward.5} parent=35 // pred_fallthru
        _
    $region36: #{conv_transpose_block_forward.5} parent=5 // pred_fallthru
      _
    %p422 = scmp.le.s32.totalorder 2, %s10
    // Predicated region
    $region41: #{conv_transpose_block_forward.5} parent=5 // pred_check
      %p423 = pneg %p422
    $region42: #{conv_transpose_block_forward.5} parent=5 // pred_check_branch
      %425 = sbr.rel (%p423) target = $region44
    $region43: #{conv_transpose_block_forward.5} parent=5 // pred_region
      %s426 = ssub.s32 %s10, 2
      // Predicated region
      $region45: #{conv_transpose_block_forward.5} parent=43 // pred_check
        %p427 = pneg %p128
      $region46: #{conv_transpose_block_forward.5} parent=43 // pred_check_branch
        %429 = sbr.rel (%p427) target = $region48
      $region47: #{conv_transpose_block_forward.5} parent=43 // pred_region
        %p430 = scmp.lt.s32.totalorder %s16, 1
        %s431 = scalar_select %p430, %s16, 1
        %s432 = smul.addr %s431, 32
        %s433 = smul.addr %s432, 8
        %s434 = scalar_lea.vmem %s4, %s433
      $region48: #{conv_transpose_block_forward.5} parent=43 // pred_fallthru
        _
    $region44: #{conv_transpose_block_forward.5} parent=5 // pred_fallthru
      _
  $region6: #{conv_transpose_block_forward.5} parent=0 // loop_footer
    %s14 = sadd.s32 1, %s10
  $region7: #{conv_transpose_block_forward.5} parent=0 // loop_footer_branch
    %9 = sbr.rel target = $region3
  $region8: #{conv_transpose_block_forward.5} parent=0 // loop_exit
    _

// kernel: conv_transpose_block_forward.4
$region0: #{conv_transpose_block_forward.4}
  #allocation0 [shape = 'u32[]', space=smem, size = 0x4, offset = 0x4, fixed_abs, tag = 'smem constant byte address 0x4 - core index']
  #allocation1 [shape = 'u32[144,128]{1,0:T(1,128)}', space=vmem, size = 0x12000, scoped, tag = 'internal scratch']
  #allocation2 [shape = 'bf16[18,16,384]{2,1,0:T(8,128)(2,1)}', space=vmem, size = 0x36000, scoped, tag = 'scratch operand']
  #allocation3 [shape = 'f32[256,128]{1,0:T(8,128)}', space=vmem, size = 0x20000, scoped, tag = 'scratch operand']
  %s0 = inlined_call_operand.vmem [shape: bf16[2,16,16,128], index: 0, kind: input, shape index: {}]
  %s1 = inlined_call_operand.vmem [shape: f32[2,128], index: 1, kind: input, shape index: {}]
  %s2 = inlined_call_operand.vmem [shape: f32[1,128], index: 2, kind: input, shape index: {}]
  %s3 = inlined_call_operand.vmem [shape: f32[1,128], index: 3, kind: input, shape index: {}]
  %s4 = inlined_call_operand.vmem [shape: bf16[3,384,128], index: 4, kind: input, shape index: {}]
  %s5 = inlined_call_operand.vmem [shape: bf16[2,16,16,128], index: 5, kind: output, shape index: {0}]
  %s6 = inlined_call_operand.vmem [shape: f32[2,128], index: 6, kind: output, shape index: {1}]
  %7 = xla_tuple %s5, %s6
  %s8 = sld [smem:[#allocation0]]
  $region65: #{conv_transpose_block_forward.4} parent=0
    _
  %s10 = ssub.s32 1, %s8
  %s11 = scalar_select 0, %s10, %s8
  loop: start=0, step=1, limit=4
  $region2: #{conv_transpose_block_forward.4} parent=0 // loop_pre_header
    _
  $region3: #{conv_transpose_block_forward.4} parent=0 // loop_header
    %s13 = sphi 0, %s17
    %p14 = scmp.ge.s32.totalorder %s13, 4
    %s23 = sphi 0, %s25
    %s26 = sphi 0, %s23
    %s27 = sphi 0, %s26
    %s43 = sphi 0, %s27
    %s47 = sphi 0, %s47
    %s49 = sphi 0, %s47
    %s50 = sphi 0, %s49
    %s64 = sphi 0, %s50
    %s68 = sphi 0, %s68
    %s70 = sphi 0, %s68
    %s71 = sphi 0, %s70
    %s85 = sphi 0, %s71
    %s89 = sphi 0, %s89
    %s91 = sphi 0, %s89
    %s92 = sphi 0, %s91
    %s106 = sphi 0, %s92
    %s110 = sphi 0, %s110
    %s112 = sphi 0, %s110
    %s113 = sphi 0, %s112
    %s127 = sphi 0, %s113
    %s133 = sphi 0, %s135
    %s136 = sphi 0, %s133
    %s137 = sphi 0, %s136
    %s153 = sphi 0, %s137
    %s157 = sphi 0, %s157
    %s159 = sphi 0, %s157
    %s160 = sphi 0, %s159
    %s174 = sphi 0, %s160
  $region4: #{conv_transpose_block_forward.4} parent=0 // loop_header_branch
    %16 = sbr.rel (%p14) target = $region8
  $region5: #{conv_transpose_block_forward.4} parent=0 // loop_body
    %s18 = ssub.s32 %s13, 1
    %s19 = ssub.s32 %s13, 2
    %s20 = sadd.s32 %s13, 1
    %s21 = ssub.s32 %s13, %s20
    %p22 = scmp.eq.s32.totalorder %s21, 0
    %s24 = sadd.s32 %s23, 1
    %s25 = scalar_select %p22, %s23, %s24
    %p28 = pneg %p22
    %p29 = scmp.eq.s32.totalorder %s13, 1
    %p30 = por %p28, %p29
    %p31 = scmp.ne.s32.totalorder %s23, %s26
    %p32 = scmp.eq.s32.totalorder %s13, 0
    %p33 = por %p31, %p32
    %p34 = scmp.ne.s32.totalorder %s23, %s26
    %p35 = scmp.eq.s32.totalorder %s18, 1
    %p36 = por %p34, %p35
    %p37 = scmp.ne.s32.totalorder %s26, %s27
    %p38 = scmp.eq.s32.totalorder %s18, 0
    %p39 = por %p37, %p38
    %p40 = scmp.ne.s32.totalorder %s26, %s27
    %p41 = scmp.eq.s32.totalorder %s19, 1
    %p42 = por %p40, %p41
    %p44 = scmp.ne.s32.totalorder %s27, %s43
    %p45 = scmp.eq.s32.totalorder %s19, 0
    %p46 = por %p44, %p45
    %s48 = sadd.s32 %s47, 1
    %p51 = scmp.eq.s32.totalorder %s13, 1
    %p52 = scmp.ne.s32.totalorder %s47, %s49
    %p53 = scmp.eq.s32.totalorder %s13, 0
    %p54 = por %p52, %p53
    %p55 = scmp.ne.s32.totalorder %s47, %s49
    %p56 = scmp.eq.s32.totalorder %s18, 1
    %p57 = por %p55, %p56
    %p58 = scmp.ne.s32.totalorder %s49, %s50
    %p59 = scmp.eq.s32.totalorder %s18, 0
    %p60 = por %p58, %p59
    %p61 = scmp.ne.s32.totalorder %s49, %s50
    %p62 = scmp.eq.s32.totalorder %s19, 1
    %p63 = por %p61, %p62
    %p65 = scmp.ne.s32.totalorder %s50, %s64
    %p66 = scmp.eq.s32.totalorder %s19, 0
    %p67 = por %p65, %p66
    %s69 = sadd.s32 %s68, 1
    %p72 = scmp.eq.s32.totalorder %s13, 1
    %p73 = scmp.ne.s32.totalorder %s68, %s70
    %p74 = scmp.eq.s32.totalorder %s13, 0
    %p75 = por %p73, %p74
    %p76 = scmp.ne.s32.totalorder %s68, %s70
    %p77 = scmp.eq.s32.totalorder %s18, 1
    %p78 = por %p76, %p77
    %p79 = scmp.ne.s32.totalorder %s70, %s71
    %p80 = scmp.eq.s32.totalorder %s18, 0
    %p81 = por %p79, %p80
    %p82 = scmp.ne.s32.totalorder %s70, %s71
    %p83 = scmp.eq.s32.totalorder %s19, 1
    %p84 = por %p82, %p83
    %p86 = scmp.ne.s32.totalorder %s71, %s85
    %p87 = scmp.eq.s32.totalorder %s19, 0
    %p88 = por %p86, %p87
    %s90 = sadd.s32 %s89, 1
    %p93 = scmp.eq.s32.totalorder %s13, 1
    %p94 = scmp.ne.s32.totalorder %s89, %s91
    %p95 = scmp.eq.s32.totalorder %s13, 0
    %p96 = por %p94, %p95
    %p97 = scmp.ne.s32.totalorder %s89, %s91
    %p98 = scmp.eq.s32.totalorder %s18, 1
    %p99 = por %p97, %p98
    %p100 = scmp.ne.s32.totalorder %s91, %s92
    %p101 = scmp.eq.s32.totalorder %s18, 0
    %p102 = por %p100, %p101
    %p103 = scmp.ne.s32.totalorder %s91, %s92
    %p104 = scmp.eq.s32.totalorder %s19, 1
    %p105 = por %p103, %p104
    %p107 = scmp.ne.s32.totalorder %s92, %s106
    %p108 = scmp.eq.s32.totalorder %s19, 0
    %p109 = por %p107, %p108
    %s111 = sadd.s32 %s110, 1
    %p114 = scmp.eq.s32.totalorder %s13, 1
    %p115 = scmp.ne.s32.totalorder %s110, %s112
    %p116 = scmp.eq.s32.totalorder %s13, 0
    %p117 = por %p115, %p116
    %p118 = scmp.ne.s32.totalorder %s110, %s112
    %p119 = scmp.eq.s32.totalorder %s18, 1
    %p120 = por %p118, %p119
    %p121 = scmp.ne.s32.totalorder %s112, %s113
    %p122 = scmp.eq.s32.totalorder %s18, 0
    %p123 = por %p121, %p122
    %p124 = scmp.ne.s32.totalorder %s112, %s113
    %p125 = scmp.eq.s32.totalorder %s19, 1
    %p126 = por %p124, %p125
    %p128 = scmp.ne.s32.totalorder %s113, %s127
    %p129 = scmp.eq.s32.totalorder %s19, 0
    %p130 = por %p128, %p129
    %s131 = ssub.s32 %s13, %s20
    %p132 = scmp.eq.s32.totalorder %s131, 0
    %s134 = sadd.s32 %s133, 1
    %s135 = scalar_select %p132, %s133, %s134
    %p138 = pneg %p132
    %p139 = scmp.eq.s32.totalorder %s13, 1
    %p140 = por %p138, %p139
    %p141 = scmp.ne.s32.totalorder %s133, %s136
    %p142 = scmp.eq.s32.totalorder %s13, 0
    %p143 = por %p141, %p142
    %p144 = scmp.ne.s32.totalorder %s133, %s136
    %p145 = scmp.eq.s32.totalorder %s18, 1
    %p146 = por %p144, %p145
    %p147 = scmp.ne.s32.totalorder %s136, %s137
    %p148 = scmp.eq.s32.totalorder %s18, 0
    %p149 = por %p147, %p148
    %p150 = scmp.ne.s32.totalorder %s136, %s137
    %p151 = scmp.eq.s32.totalorder %s19, 1
    %p152 = por %p150, %p151
    %p154 = scmp.ne.s32.totalorder %s137, %s153
    %p155 = scmp.eq.s32.totalorder %s19, 0
    %p156 = por %p154, %p155
    %s158 = sadd.s32 %s157, 1
    %p161 = scmp.eq.s32.totalorder %s13, 1
    %p162 = scmp.ne.s32.totalorder %s157, %s159
    %p163 = scmp.eq.s32.totalorder %s13, 0
    %p164 = por %p162, %p163
    %p165 = scmp.ne.s32.totalorder %s157, %s159
    %p166 = scmp.eq.s32.totalorder %s18, 1
    %p167 = por %p165, %p166
    %p168 = scmp.ne.s32.totalorder %s159, %s160
    %p169 = scmp.eq.s32.totalorder %s18, 0
    %p170 = por %p168, %p169
    %p171 = scmp.ne.s32.totalorder %s159, %s160
    %p172 = scmp.eq.s32.totalorder %s19, 1
    %p173 = por %p171, %p172
    %p175 = scmp.ne.s32.totalorder %s160, %s174
    %p176 = scmp.eq.s32.totalorder %s19, 0
    %p177 = por %p175, %p176
    %p178 = scmp.le.s32.totalorder 1, %s13
    %p179 = scmp.lt.s32.totalorder %s13, 3
    %p180 = pnand %p178, %p179
    %p181 = pneg %p180
    // Predicated region
    $region9: #{conv_transpose_block_forward.4} parent=5 // pred_check
      _
    $region10: #{conv_transpose_block_forward.4} parent=5 // pred_check_branch
      %183 = sbr.rel (%p180) target = $region12
    $region11: #{conv_transpose_block_forward.4} parent=5 // pred_region
      %s184 = ssub.s32 %s13, 1
      // Predicated region
      $region13: #{conv_transpose_block_forward.4} parent=11 // pred_check
        %p185 = pneg %p60
      $region14: #{conv_transpose_block_forward.4} parent=11 // pred_check_branch
        %187 = sbr.rel (%p185) target = $region16
      $region15: #{conv_transpose_block_forward.4} parent=11 // pred_region
        _
      $region16: #{conv_transpose_block_forward.4} parent=11 // pred_fallthru
        _
      // Predicated region
      $region17: #{conv_transpose_block_forward.4} parent=11 // pred_check
        %p188 = pneg %p81
      $region18: #{conv_transpose_block_forward.4} parent=11 // pred_check_branch
        %190 = sbr.rel (%p188) target = $region20
      $region19: #{conv_transpose_block_forward.4} parent=11 // pred_region
        _
      $region20: #{conv_transpose_block_forward.4} parent=11 // pred_fallthru
        _
      // Predicated region
      $region21: #{conv_transpose_block_forward.4} parent=11 // pred_check
        %p191 = pneg %p102
      $region22: #{conv_transpose_block_forward.4} parent=11 // pred_check_branch
        %193 = sbr.rel (%p191) target = $region24
      $region23: #{conv_transpose_block_forward.4} parent=11 // pred_region
        _
      $region24: #{conv_transpose_block_forward.4} parent=11 // pred_fallthru
        _
      // Predicated region
      $region25: #{conv_transpose_block_forward.4} parent=11 // pred_check
        %p194 = pneg %p123
      $region26: #{conv_transpose_block_forward.4} parent=11 // pred_check_branch
        %196 = sbr.rel (%p194) target = $region28
      $region27: #{conv_transpose_block_forward.4} parent=11 // pred_region
        _
      $region28: #{conv_transpose_block_forward.4} parent=11 // pred_fallthru
        _
    $region12: #{conv_transpose_block_forward.4} parent=5 // pred_fallthru
      _
    %p197 = scmp.lt.s32.totalorder %s13, 2
    // Predicated region
    $region29: #{conv_transpose_block_forward.4} parent=5 // pred_check
      %p198 = pneg %p197
    $region30: #{conv_transpose_block_forward.4} parent=5 // pred_check_branch
      %200 = sbr.rel (%p198) target = $region32
    $region31: #{conv_transpose_block_forward.4} parent=5 // pred_region
      // Predicated region
      $region33: #{conv_transpose_block_forward.4} parent=31 // pred_check
        %p201 = pneg %p33
      $region34: #{conv_transpose_block_forward.4} parent=31 // pred_check_branch
        %203 = sbr.rel (%p201) target = $region36
      $region35: #{conv_transpose_block_forward.4} parent=31 // pred_region
        %p204 = scmp.lt.s32.totalorder %s13, 1
        %s205 = scalar_select %p204, %s13, 1
        %s206 = smul.addr %s205, 32
        %s207 = smul.addr %s206, 4
        %s208 = scalar_lea.vmem %s0, %s207
      $region36: #{conv_transpose_block_forward.4} parent=31 // pred_fallthru
        _
    $region32: #{conv_transpose_block_forward.4} parent=5 // pred_fallthru
      _
    %p209 = scmp.le.s32.totalorder 1, %s13
    %p210 = scmp.lt.s32.totalorder %s13, 3
    %p211 = pnand %p209, %p210
    %p212 = pneg %p211
    // Predicated region
    $region37: #{conv_transpose_block_forward.4} parent=5 // pred_check
      _
    $region38: #{conv_transpose_block_forward.4} parent=5 // pred_check_branch
      %214 = sbr.rel (%p211) target = $region40
    $region39: #{conv_transpose_block_forward.4} parent=5 // pred_region
      %s215 = ssub.s32 %s13, 1
      %p216 = scmp.lt.s32.totalorder %s18, 1
      %s217 = scalar_select %p216, %s18, 1
      %s218 = smul.addr %s217, 32
      %s219 = smul.addr %s218, 4
      %s220 = scalar_lea.vmem %s0, %s219
      %p221 = pneg %p39
      %p222 = pneg %p36
      %p223 = pneg %p60
      %p224 = pneg %p57
      %p225 = pneg %p81
      %p226 = pneg %p78
      %p227 = pneg %p102
      %p228 = pneg %p99
      %p229 = pneg %p123
      %p230 = pneg %p120
      %p231 = pneg %p149
      %p232 = pneg %p146
      %p233 = scmp.lt.s32.totalorder %s18, 1
      %s234 = scalar_select %p233, %s18, 1
      %s235 = smul.addr %s234, 32
      %s236 = smul.addr %s235, 4
      %s237 = scalar_lea.vmem %s5, %s236
      %p238 = pneg %p170
      %p239 = pneg %p167
      %p240 = scmp.lt.s32.totalorder %s18, 1
      %s241 = scalar_select %p240, %s18, 1
      %s242 = smul.addr %s241, 32
      %s243 = smul.addr %s242, 4
      %s244 = scalar_lea.vmem %s0, %s243
      %p245 = scmp.lt.s32.totalorder %s18, 1
      %s246 = scalar_select %p245, %s18, 1
      %s247 = smul.addr %s246, 32
      %s248 = smul.addr %s247, 4
      %s249 = scalar_lea.vmem %s5, %s248
      %p251 = scmp.eq.s32.totalorder %s18, 0
      // Predicated region
      $region41: #{conv_transpose_block_forward.4} parent=39 // pred_check
        %p252 = pneg %p251
      $region42: #{conv_transpose_block_forward.4} parent=39 // pred_check_branch
        %254 = sbr.rel (%p252) target = $region44
      $region43: #{conv_transpose_block_forward.4} parent=39 // pred_region
        %255 = vst [vmem:[#allocation2] sm:$0xff] 0
        %256 = vst [vmem:[#allocation2 + $0x8] sm:$0xf] 0
        %257 = vst [vmem:[#allocation2 + $0xc] sm:$0xff] 0
        %258 = vst [vmem:[#allocation2 + $0x14] sm:$0xf] 0
        %259 = vst [vmem:[#allocation2 + $0x18] sm:$0xff] 0
        %260 = vst [vmem:[#allocation2 + $0x20] sm:$0xf] 0
        %261 = vst [vmem:[#allocation2 + $0x24] sm:$0xff] 0
        %262 = vst [vmem:[#allocation2 + $0x2c] sm:$0xf] 0
        %263 = vst [vmem:[#allocation2 + $0x30] sm:$0xff] 0
        %264 = vst [vmem:[#allocation2 + $0x38] sm:$0xf] 0
        %265 = vst [vmem:[#allocation2 + $0x3c] sm:$0xff] 0
        %266 = vst [vmem:[#allocation2 + $0x44] sm:$0xf] 0
        %267 = vst [vmem:[#allocation2 + $0x48] sm:$0xff] 0
        %268 = vst [vmem:[#allocation2 + $0x50] sm:$0xf] 0
        %269 = vst [vmem:[#allocation2 + $0x54] sm:$0xff] 0
        %270 = vst [vmem:[#allocation2 + $0x5c] sm:$0xf] 0
        %271 = vst [vmem:[#allocation2 + $0x60] sm:$0xff] 0
        %272 = vst [vmem:[#allocation2 + $0x68] sm:$0xf] 0
        %273 = vst [vmem:[#allocation2 + $0x6c] sm:$0xff] 0
        %274 = vst [vmem:[#allocation2 + $0x74] sm:$0xf] 0
        %275 = vst [vmem:[#allocation2 + $0x78] sm:$0xff] 0
        %276 = vst [vmem:[#allocation2 + $0x80] sm:$0xf] 0
        %277 = vst [vmem:[#allocation2 + $0x84] sm:$0xff] 0
        %278 = vst [vmem:[#allocation2 + $0x8c] sm:$0xf] 0
        %279 = vst [vmem:[#allocation2 + $0x90] sm:$0xff] 0
        %280 = vst [vmem:[#allocation2 + $0x98] sm:$0xf] 0
        %281 = vst [vmem:[#allocation2 + $0x9c] sm:$0xff] 0
        %282 = vst [vmem:[#allocation2 + $0xa4] sm:$0xf] 0
        %283 = vst [vmem:[#allocation2 + $0xa8] sm:$0xff] 0
        %284 = vst [vmem:[#allocation2 + $0xb0] sm:$0xf] 0
        %285 = vst [vmem:[#allocation2 + $0xb4] sm:$0xff] 0
        %286 = vst [vmem:[#allocation2 + $0xbc] sm:$0xf] 0
        %287 = vst [vmem:[#allocation2 + $0xc0] sm:$0xff] 0
        %288 = vst [vmem:[#allocation2 + $0xc8] sm:$0xf] 0
        %289 = vst [vmem:[#allocation2 + $0xcc] sm:$0xff] 0
        %290 = vst [vmem:[#allocation2 + $0xd4] sm:$0xf] 0
        %291 = vst [vmem:[#allocation2 + $0xd8] sm:$0xff] 0
        %292 = vst [vmem:[#allocation2 + $0xe0] sm:$0xf] 0
        %293 = vst [vmem:[#allocation2 + $0xe4] sm:$0xff] 0
        %294 = vst [vmem:[#allocation2 + $0xec] sm:$0xf] 0
        %295 = vst [vmem:[#allocation2 + $0xf0] sm:$0xff] 0
        %296 = vst [vmem:[#allocation2 + $0xf8] sm:$0xf] 0
        %297 = vst [vmem:[#allocation2 + $0xfc] sm:$0xff] 0
        %298 = vst [vmem:[#allocation2 + $0x104] sm:$0xf] 0
        %299 = vst [vmem:[#allocation2 + $0x108] sm:$0xff] 0
        %300 = vst [vmem:[#allocation2 + $0x110] sm:$0xf] 0
        %301 = vst [vmem:[#allocation2 + $0x114] sm:$0xff] 0
        %302 = vst [vmem:[#allocation2 + $0x11c] sm:$0xf] 0
        %303 = vst [vmem:[#allocation2 + $0x120] sm:$0xff] 0
        %304 = vst [vmem:[#allocation2 + $0x128] sm:$0xf] 0
        %305 = vst [vmem:[#allocation2 + $0x12c] sm:$0xff] 0
        %306 = vst [vmem:[#allocation2 + $0x134] sm:$0xf] 0
        %307 = vst [vmem:[#allocation2 + $0x138] sm:$0xff] 0
        %308 = vst [vmem:[#allocation2 + $0x140] sm:$0xf] 0
        %309 = vst [vmem:[#allocation2 + $0x144] sm:$0xff] 0
        %310 = vst [vmem:[#allocation2 + $0x14c] sm:$0xf] 0
        %311 = vst [vmem:[#allocation2 + $0x150] sm:$0xff] 0
        %312 = vst [vmem:[#allocation2 + $0x158] sm:$0xf] 0
        %313 = vst [vmem:[#allocation2 + $0x15c] sm:$0xff] 0
        %314 = vst [vmem:[#allocation2 + $0x164] sm:$0xf] 0
        %315 = vst [vmem:[#allocation2 + $0x168] sm:$0xff] 0
        %316 = vst [vmem:[#allocation2 + $0x170] sm:$0xf] 0
        %317 = vst [vmem:[#allocation2 + $0x174] sm:$0xff] 0
        %318 = vst [vmem:[#allocation2 + $0x17c] sm:$0xf] 0
        %319 = vst [vmem:[#allocation2 + $0x180] sm:$0xff] 0
        %320 = vst [vmem:[#allocation2 + $0x188] sm:$0xf] 0
        %321 = vst [vmem:[#allocation2 + $0x18c] sm:$0xff] 0
        %322 = vst [vmem:[#allocation2 + $0x194] sm:$0xf] 0
        %323 = vst [vmem:[#allocation2 + $0x198] sm:$0xff] 0
        %324 = vst [vmem:[#allocation2 + $0x1a0] sm:$0xf] 0
        %325 = vst [vmem:[#allocation2 + $0x1a4] sm:$0xff] 0
        %326 = vst [vmem:[#allocation2 + $0x1ac] sm:$0xf] 0
        %327 = vst [vmem:[%s6] sm:$0x3] 0.0
      $region44: #{conv_transpose_block_forward.4} parent=39 // pred_fallthru
        _
      %v328 = vld [vmem:[%s1] sm:$0x1]
      %v329 = vmul.f32 %v328, 0.001953125
      %v330 = vld [vmem:[%s1 + $0x1] sm:$0x1]
      %v331 = vmul.f32 %v330, 0.001953125
      %v332 = vmul.f32 %v329, %v329
      %v333 = vsub.f32 %v331, %v332
      %v334 = vmax.f32 %v333, 0.0
      %v335 = vadd.f32 %v334, 1e-05
      %v336 = vrsqrt.pop %v335
      %v337 = vld [vmem:[%s2] sm:$0x1]
      %v338 = vmul.f32 %v336, %v337
      %v339 = vld [vmem:[%s3] sm:$0x1]
      %v340 = vmul.f32 %v329, %v338
      %v341 = vsub.f32 %v339, %v340
      %v342 = vld [vmem:[%s244] sm:$0xf]
      %v343 = vld [vmem:[%s244 + $0x4] sm:$0xf]
      %v344 = vld [vmem:[%s244 + $0x8] sm:$0xf]
      %v345 = vld [vmem:[%s244 + $0xc] sm:$0xf]
      %v346 = vld [vmem:[%s244 + $0x10] sm:$0xf]
      %v347 = vld [vmem:[%s244 + $0x14] sm:$0xf]
      %v348 = vld [vmem:[%s244 + $0x18] sm:$0xf]
      %v349 = vld [vmem:[%s244 + $0x1c] sm:$0xf]
      %v350 = vld [vmem:[%s244 + $0x20] sm:$0xf]
      %v351 = vld [vmem:[%s244 + $0x24] sm:$0xf]
      %v352 = vld [vmem:[%s244 + $0x28] sm:$0xf]
      %v353 = vld [vmem:[%s244 + $0x2c] sm:$0xf]
      %v354 = vld [vmem:[%s244 + $0x30] sm:$0xf]
      %v355 = vld [vmem:[%s244 + $0x34] sm:$0xf]
      %v356 = vld [vmem:[%s244 + $0x38] sm:$0xf]
      %v357 = vld [vmem:[%s244 + $0x3c] sm:$0xf]
      %v358 = vld [vmem:[%s244 + $0x40] sm:$0xf]
      %v359 = vld [vmem:[%s244 + $0x44] sm:$0xf]
      %v360 = vld [vmem:[%s244 + $0x48] sm:$0xf]
      %v361 = vld [vmem:[%s244 + $0x4c] sm:$0xf]
      %v362 = vld [vmem:[%s244 + $0x50] sm:$0xf]
      %v363 = vld [vmem:[%s244 + $0x54] sm:$0xf]
      %v364 = vld [vmem:[%s244 + $0x58] sm:$0xf]
      %v365 = vld [vmem:[%s244 + $0x5c] sm:$0xf]
      %v366 = vld [vmem:[%s244 + $0x60] sm:$0xf]
      %v367 = vld [vmem:[%s244 + $0x64] sm:$0xf]
      %v368 = vld [vmem:[%s244 + $0x68] sm:$0xf]
      %v369 = vld [vmem:[%s244 + $0x6c] sm:$0xf]
      %v370 = vld [vmem:[%s244 + $0x70] sm:$0xf]
      %v371 = vld [vmem:[%s244 + $0x74] sm:$0xf]
      %v372 = vld [vmem:[%s244 + $0x78] sm:$0xf]
      %v373 = vld [vmem:[%s244 + $0x7c] sm:$0xf]
      %v374 = vunpack.c.l.bf16 %v342
      %v375 = vunpack.c.l.bf16 %v343
      %v376 = vunpack.c.l.bf16 %v344
      %v377 = vunpack.c.l.bf16 %v345
      %v378 = vunpack.c.l.bf16 %v346
      %v379 = vunpack.c.l.bf16 %v347
      %v380 = vunpack.c.l.bf16 %v348
      %v381 = vunpack.c.l.bf16 %v349
      %v382 = vunpack.c.l.bf16 %v350
      %v383 = vunpack.c.l.bf16 %v351
      %v384 = vunpack.c.l.bf16 %v352
      %v385 = vunpack.c.l.bf16 %v353
      %v386 = vunpack.c.l.bf16 %v354
      %v387 = vunpack.c.l.bf16 %v355
      %v388 = vunpack.c.l.bf16 %v356
      %v389 = vunpack.c.l.bf16 %v357
      %v390 = vunpack.c.l.bf16 %v358
      %v391 = vunpack.c.l.bf16 %v359
      %v392 = vunpack.c.l.bf16 %v360
      %v393 = vunpack.c.l.bf16 %v361
      %v394 = vunpack.c.l.bf16 %v362
      %v395 = vunpack.c.l.bf16 %v363
      %v396 = vunpack.c.l.bf16 %v364
      %v397 = vunpack.c.l.bf16 %v365
      %v398 = vunpack.c.l.bf16 %v366
      %v399 = vunpack.c.l.bf16 %v367
      %v400 = vunpack.c.l.bf16 %v368
      %v401 = vunpack.c.l.bf16 %v369
      %v402 = vunpack.c.l.bf16 %v370
      %v403 = vunpack.c.l.bf16 %v371
      %v404 = vunpack.c.l.bf16 %v372
      %v405 = vunpack.c.l.bf16 %v373
      %v406 = vlaneseq
      %v407 = vshrl.u32 %v406, 7
      %v408 = vsub.s32 0, %v407
      %v409 = vrot.slane %v338, %v408
      %v410 = vmul.f32 %v374, %v409
      %v411 = vmul.f32 %v375, %v409
      %v412 = vmul.f32 %v376, %v409
      %v413 = vmul.f32 %v377, %v409
      %v414 = vmul.f32 %v378, %v409
      %v415 = vmul.f32 %v379, %v409
      %v416 = vmul.f32 %v380, %v409
      %v417 = vmul.f32 %v381, %v409
      %v418 = vmul.f32 %v382, %v409
      %v419 = vmul.f32 %v383, %v409
      %v420 = vmul.f32 %v384, %v409
      %v421 = vmul.f32 %v385, %v409
      %v422 = vmul.f32 %v386, %v409
      %v423 = vmul.f32 %v387, %v409
      %v424 = vmul.f32 %v388, %v409
      %v425 = vmul.f32 %v389, %v409
      %v426 = vmul.f32 %v390, %v409
      %v427 = vmul.f32 %v391, %v409
      %v428 = vmul.f32 %v392, %v409
      %v429 = vmul.f32 %v393, %v409
      %v430 = vmul.f32 %v394, %v409
      %v431 = vmul.f32 %v395, %v409
      %v432 = vmul.f32 %v396, %v409
      %v433 = vmul.f32 %v397, %v409
      %v434 = vmul.f32 %v398, %v409
      %v435 = vmul.f32 %v399, %v409
      %v436 = vmul.f32 %v400, %v409
      %v437 = vmul.f32 %v401, %v409
      %v438 = vmul.f32 %v402, %v409
      %v439 = vmul.f32 %v403, %v409
      %v440 = vmul.f32 %v404, %v409
      %v441 = vmul.f32 %v405, %v409
      %v443 = vlaneseq
      %v444 = vshrl.u32 %v443, 7
      %v445 = vsub.s32 0, %v444
      %v446 = vrot.slane %v341, %v445
      %v448 = vadd.f32 %v410, %v446
      %v449 = vadd.f32 %v411, %v446
      %v450 = vadd.f32 %v412, %v446
      %v451 = vadd.f32 %v413, %v446
      %v452 = vadd.f32 %v414, %v446
      %v453 = vadd.f32 %v415, %v446
      %v454 = vadd.f32 %v416, %v446
      %v455 = vadd.f32 %v417, %v446
      %v456 = vadd.f32 %v418, %v446
      %v457 = vadd.f32 %v419, %v446
      %v458 = vadd.f32 %v420, %v446
      %v459 = vadd.f32 %v421, %v446
      %v460 = vadd.f32 %v422, %v446
      %v461 = vadd.f32 %v423, %v446
      %v462 = vadd.f32 %v424, %v446
      %v463 = vadd.f32 %v425, %v446
      %v464 = vadd.f32 %v426, %v446
      %v465 = vadd.f32 %v427, %v446
      %v466 = vadd.f32 %v428, %v446
      %v467 = vadd.f32 %v429, %v446
      %v468 = vadd.f32 %v430, %v446
      %v469 = vadd.f32 %v431, %v446
      %v470 = vadd.f32 %v432, %v446
      %v471 = vadd.f32 %v433, %v446
      %v472 = vadd.f32 %v434, %v446
      %v473 = vadd.f32 %v435, %v446
      %v474 = vadd.f32 %v436, %v446
      %v475 = vadd.f32 %v437, %v446
      %v476 = vadd.f32 %v438, %v446
      %v477 = vadd.f32 %v439, %v446
      %v478 = vadd.f32 %v440, %v446
      %v479 = vadd.f32 %v441, %v446
      %v480 = vmax.f32 %v448, 0.0
      %v481 = vmax.f32 %v449, 0.0
      %v482 = vmax.f32 %v450, 0.0
      %v483 = vmax.f32 %v451, 0.0
      %v484 = vmax.f32 %v452, 0.0
      %v485 = vmax.f32 %v453, 0.0
      %v486 = vmax.f32 %v454, 0.0
      %v487 = vmax.f32 %v455, 0.0
      %v488 = vmax.f32 %v456, 0.0
      %v489 = vmax.f32 %v457, 0.0
      %v490 = vmax.f32 %v458, 0.0
      %v491 = vmax.f32 %v459, 0.0
      %v492 = vmax.f32 %v460, 0.0
      %v493 = vmax.f32 %v461, 0.0
      %v494 = vmax.f32 %v462, 0.0
      %v495 = vmax.f32 %v463, 0.0
      %v496 = vmax.f32 %v464, 0.0
      %v497 = vmax.f32 %v465, 0.0
      %v498 = vmax.f32 %v466, 0.0
      %v499 = vmax.f32 %v467, 0.0
      %v500 = vmax.f32 %v468, 0.0
      %v501 = vmax.f32 %v469, 0.0
      %v502 = vmax.f32 %v470, 0.0
      %v503 = vmax.f32 %v471, 0.0
      %v504 = vmax.f32 %v472, 0.0
      %v505 = vmax.f32 %v473, 0.0
      %v506 = vmax.f32 %v474, 0.0
      %v507 = vmax.f32 %v475, 0.0
      %v508 = vmax.f32 %v476, 0.0
      %v509 = vmax.f32 %v477, 0.0
      %v510 = vmax.f32 %v478, 0.0
      %v511 = vmax.f32 %v479, 0.0
      %v512 = vpack.c.bf16 %v481, %v480
      %v513 = vpack.c.bf16 %v483, %v482
      %v514 = vpack.c.bf16 %v485, %v484
      %v515 = vpack.c.bf16 %v487, %v486
      %v516 = vpack.c.bf16 %v489, %v488
      %v517 = vpack.c.bf16 %v491, %v490
      %v518 = vpack.c.bf16 %v493, %v492
      %v519 = vpack.c.bf16 %v495, %v494
      %v520 = vpack.c.bf16 %v497, %v496
      %v521 = vpack.c.bf16 %v499, %v498
      %v522 = vpack.c.bf16 %v501, %v500
      %v523 = vpack.c.bf16 %v503, %v502
      %v524 = vpack.c.bf16 %v505, %v504
      %v525 = vpack.c.bf16 %v507, %v506
      %v526 = vpack.c.bf16 %v509, %v508
      %v527 = vpack.c.bf16 %v511, %v510
      %v544 = vunpack.c.l.b16 %v512
      %v545 = vunpack.c.h.b16 %v512
      %v546 = vunpack.c.l.b16 %v513
      %v547 = vunpack.c.h.b16 %v513
      %v548 = vunpack.c.l.b16 %v514
      %v549 = vunpack.c.h.b16 %v514
      %v550 = vunpack.c.l.b16 %v515
      %v551 = vunpack.c.h.b16 %v515
      %v552 = vunpack.c.l.b16 %v516
      %v553 = vunpack.c.h.b16 %v516
      %v554 = vunpack.c.l.b16 %v517
      %v555 = vunpack.c.h.b16 %v517
      %v556 = vunpack.c.l.b16 %v518
      %v557 = vunpack.c.h.b16 %v518
      %v558 = vunpack.c.l.b16 %v519
      %v559 = vunpack.c.h.b16 %v519
      %v560 = vunpack.c.l.b16 %v520
      %v561 = vunpack.c.h.b16 %v520
      %v562 = vunpack.c.l.b16 %v521
      %v563 = vunpack.c.h.b16 %v521
      %v564 = vunpack.c.l.b16 %v522
      %v565 = vunpack.c.h.b16 %v522
      %v566 = vunpack.c.l.b16 %v523
      %v567 = vunpack.c.h.b16 %v523
      %v568 = vunpack.c.l.b16 %v524
      %v569 = vunpack.c.h.b16 %v524
      %v570 = vunpack.c.l.b16 %v525
      %v571 = vunpack.c.h.b16 %v525
      %v572 = vunpack.c.l.b16 %v526
      %v573 = vunpack.c.h.b16 %v526
      %v574 = vunpack.c.l.b16 %v527
      %v575 = vunpack.c.h.b16 %v527
      %v576 = vpack.c.b16 %v544, %v544
      %v577 = vpack.c.b16 %v545, %v545
      %v578 = vpack.c.b16 %v546, %v546
      %v579 = vpack.c.b16 %v547, %v547
      %v580 = vpack.c.b16 %v548, %v548
      %v581 = vpack.c.b16 %v549, %v549
      %v582 = vpack.c.b16 %v550, %v550
      %v583 = vpack.c.b16 %v551, %v551
      %v584 = vpack.c.b16 %v552, %v552
      %v585 = vpack.c.b16 %v553, %v553
      %v586 = vpack.c.b16 %v554, %v554
      %v587 = vpack.c.b16 %v555, %v555
      %v588 = vpack.c.b16 %v556, %v556
      %v589 = vpack.c.b16 %v557, %v557
      %v590 = vpack.c.b16 %v558, %v558
      %v591 = vpack.c.b16 %v559, %v559
      %v592 = vpack.c.b16 %v560, %v560
      %v593 = vpack.c.b16 %v561, %v561
      %v594 = vpack.c.b16 %v562, %v562
      %v595 = vpack.c.b16 %v563, %v563
      %v596 = vpack.c.b16 %v564, %v564
      %v597 = vpack.c.b16 %v565, %v565
      %v598 = vpack.c.b16 %v566, %v566
      %v599 = vpack.c.b16 %v567, %v567
      %v600 = vpack.c.b16 %v568, %v568
      %v601 = vpack.c.b16 %v569, %v569
      %v602 = vpack.c.b16 %v570, %v570
      %v603 = vpack.c.b16 %v571, %v571
      %v604 = vpack.c.b16 %v572, %v572
      %v605 = vpack.c.b16 %v573, %v573
      %v606 = vpack.c.b16 %v574, %v574
      %v607 = vpack.c.b16 %v575, %v575
      %vm608 = vsmask.f32 256
      %vm609 = vsmask.f32 4368
      %vm610 = vmor %vm608, %vm609
      %v612 = vshrl.u32 %v576, 16
      %v614 = vrot.slane %v612, 7
      %v615 = vshll.u32 %v576, 16
      %v617 = vor.u32 %v614, %v615
      %v618 = vrot.slane %v614, 4
      %v620 = vshrl.u32 %v577, 16
      %v622 = vrot.slane %v620, 7
      %v623 = vshll.u32 %v577, 16
      %v625 = vor.u32 %v622, %v623
      %v626 = vsel %vm610, %v618, %v625
      %v628 = vshrl.u32 %v578, 16
      %v630 = vrot.slane %v628, 7
      %v631 = vshll.u32 %v578, 16
      %v633 = vor.u32 %v630, %v631
      %v634 = vrot.slane %v630, 4
      %v636 = vshrl.u32 %v579, 16
      %v638 = vrot.slane %v636, 7
      %v639 = vshll.u32 %v579, 16
      %v641 = vor.u32 %v638, %v639
      %v642 = vsel %vm610, %v634, %v641
      %v644 = vshrl.u32 %v580, 16
      %v646 = vrot.slane %v644, 7
      %v647 = vshll.u32 %v580, 16
      %v649 = vor.u32 %v646, %v647
      %v650 = vrot.slane %v646, 4
      %v652 = vshrl.u32 %v581, 16
      %v654 = vrot.slane %v652, 7
      %v655 = vshll.u32 %v581, 16
      %v657 = vor.u32 %v654, %v655
      %v658 = vsel %vm610, %v650, %v657
      %v660 = vshrl.u32 %v582, 16
      %v662 = vrot.slane %v660, 7
      %v663 = vshll.u32 %v582, 16
      %v665 = vor.u32 %v662, %v663
      %v666 = vrot.slane %v662, 4
      %v668 = vshrl.u32 %v583, 16
      %v670 = vrot.slane %v668, 7
      %v671 = vshll.u32 %v583, 16
      %v673 = vor.u32 %v670, %v671
      %v674 = vsel %vm610, %v666, %v673
      %v676 = vshrl.u32 %v584, 16
      %v678 = vrot.slane %v676, 7
      %v679 = vshll.u32 %v584, 16
      %v681 = vor.u32 %v678, %v679
      %v682 = vrot.slane %v678, 4
      %v684 = vshrl.u32 %v585, 16
      %v686 = vrot.slane %v684, 7
      %v687 = vshll.u32 %v585, 16
      %v689 = vor.u32 %v686, %v687
      %v690 = vsel %vm610, %v682, %v689
      %v692 = vshrl.u32 %v586, 16
      %v694 = vrot.slane %v692, 7
      %v695 = vshll.u32 %v586, 16
      %v697 = vor.u32 %v694, %v695
      %v698 = vrot.slane %v694, 4
      %v700 = vshrl.u32 %v587, 16
      %v702 = vrot.slane %v700, 7
      %v703 = vshll.u32 %v587, 16
      %v705 = vor.u32 %v702, %v703
      %v706 = vsel %vm610, %v698, %v705
      %v708 = vshrl.u32 %v588, 16
      %v710 = vrot.slane %v708, 7
      %v711 = vshll.u32 %v588, 16
      %v713 = vor.u32 %v710, %v711
      %v714 = vrot.slane %v710, 4
      %v716 = vshrl.u32 %v589, 16
      %v718 = vrot.slane %v716, 7
      %v719 = vshll.u32 %v589, 16
      %v721 = vor.u32 %v718, %v719
      %v722 = vsel %vm610, %v714, %v721
      %v724 = vshrl.u32 %v590, 16
      %v726 = vrot.slane %v724, 7
      %v727 = vshll.u32 %v590, 16
      %v729 = vor.u32 %v726, %v727
      %v730 = vrot.slane %v726, 4
      %v732 = vshrl.u32 %v591, 16
      %v734 = vrot.slane %v732, 7
      %v735 = vshll.u32 %v591, 16
      %v737 = vor.u32 %v734, %v735
      %v738 = vsel %vm610, %v730, %v737
      %v740 = vshrl.u32 %v592, 16
      %v742 = vrot.slane %v740, 7
      %v743 = vshll.u32 %v592, 16
      %v745 = vor.u32 %v742, %v743
      %v746 = vrot.slane %v742, 4
      %v748 = vshrl.u32 %v593, 16
      %v750 = vrot.slane %v748, 7
      %v751 = vshll.u32 %v593, 16
      %v753 = vor.u32 %v750, %v751
      %v754 = vsel %vm610, %v746, %v753
      %v756 = vshrl.u32 %v594, 16
      %v758 = vrot.slane %v756, 7
      %v759 = vshll.u32 %v594, 16
      %v761 = vor.u32 %v758, %v759
      %v762 = vrot.slane %v758, 4
      %v764 = vshrl.u32 %v595, 16
      %v766 = vrot.slane %v764, 7
      %v767 = vshll.u32 %v595, 16
      %v769 = vor.u32 %v766, %v767
      %v770 = vsel %vm610, %v762, %v769
      %v772 = vshrl.u32 %v596, 16
      %v774 = vrot.slane %v772, 7
      %v775 = vshll.u32 %v596, 16
      %v777 = vor.u32 %v774, %v775
      %v778 = vrot.slane %v774, 4
      %v780 = vshrl.u32 %v597, 16
      %v782 = vrot.slane %v780, 7
      %v783 = vshll.u32 %v597, 16
      %v785 = vor.u32 %v782, %v783
      %v786 = vsel %vm610, %v778, %v785
      %v788 = vshrl.u32 %v598, 16
      %v790 = vrot.slane %v788, 7
      %v791 = vshll.u32 %v598, 16
      %v793 = vor.u32 %v790, %v791
      %v794 = vrot.slane %v790, 4
      %v796 = vshrl.u32 %v599, 16
      %v798 = vrot.slane %v796, 7
      %v799 = vshll.u32 %v599, 16
      %v801 = vor.u32 %v798, %v799
      %v802 = vsel %vm610, %v794, %v801
      %v804 = vshrl.u32 %v600, 16
      %v806 = vrot.slane %v804, 7
      %v807 = vshll.u32 %v600, 16
      %v809 = vor.u32 %v806, %v807
      %v810 = vrot.slane %v806, 4
      %v812 = vshrl.u32 %v601, 16
      %v814 = vrot.slane %v812, 7
      %v815 = vshll.u32 %v601, 16
      %v817 = vor.u32 %v814, %v815
      %v818 = vsel %vm610, %v810, %v817
      %v820 = vshrl.u32 %v602, 16
      %v822 = vrot.slane %v820, 7
      %v823 = vshll.u32 %v602, 16
      %v825 = vor.u32 %v822, %v823
      %v826 = vrot.slane %v822, 4
      %v828 = vshrl.u32 %v603, 16
      %v830 = vrot.slane %v828, 7
      %v831 = vshll.u32 %v603, 16
      %v833 = vor.u32 %v830, %v831
      %v834 = vsel %vm610, %v826, %v833
      %v836 = vshrl.u32 %v604, 16
      %v838 = vrot.slane %v836, 7
      %v839 = vshll.u32 %v604, 16
      %v841 = vor.u32 %v838, %v839
      %v842 = vrot.slane %v838, 4
      %v844 = vshrl.u32 %v605, 16
      %v846 = vrot.slane %v844, 7
      %v847 = vshll.u32 %v605, 16
      %v849 = vor.u32 %v846, %v847
      %v850 = vsel %vm610, %v842, %v849
      %v852 = vshrl.u32 %v606, 16
      %v854 = vrot.slane %v852, 7
      %v855 = vshll.u32 %v606, 16
      %v857 = vor.u32 %v854, %v855
      %v858 = vrot.slane %v854, 4
      %v860 = vshrl.u32 %v607, 16
      %v862 = vrot.slane %v860, 7
      %v863 = vshll.u32 %v607, 16
      %v865 = vor.u32 %v862, %v863
      %v866 = vsel %vm610, %v858, %v865
      %s899 = scalar_lea.vmem [#allocation2], 24
      %vm900 = vcmask 1043456
      %vm901 = vsmask.f32 7938
      %vm902 = vmand %vm900, %vm901
      %v903 = vld [vmem:[%s899] sm:$0xf]
      %v904 = vsel %vm902, %v617, %v903
      %905 = vst [vmem:[%s899] sm:$0xf] %v904
      %906 = vst [vmem:[%s899 + $0xc] sm:$0xf] %v626
      %v907 = vld [vmem:[%s899 + $0x18] sm:$0xf]
      %v908 = vsel %vm902, %v633, %v907
      %909 = vst [vmem:[%s899 + $0x18] sm:$0xf] %v908
      %910 = vst [vmem:[%s899 + $0x24] sm:$0xf] %v642
      %v911 = vld [vmem:[%s899 + $0x30] sm:$0xf]
      %v912 = vsel %vm902, %v649, %v911
      %913 = vst [vmem:[%s899 + $0x30] sm:$0xf] %v912
      %914 = vst [vmem:[%s899 + $0x3c] sm:$0xf] %v658
      %v915 = vld [vmem:[%s899 + $0x48] sm:$0xf]
      %v916 = vsel %vm902, %v665, %v915
      %917 = vst [vmem:[%s899 + $0x48] sm:$0xf] %v916
      %918 = vst [vmem:[%s899 + $0x54] sm:$0xf] %v674
      %v919 = vld [vmem:[%s899 + $0x60] sm:$0xf]
      %v920 = vsel %vm902, %v681, %v919
      %921 = vst [vmem:[%s899 + $0x60] sm:$0xf] %v920
      %922 = vst [vmem:[%s899 + $0x6c] sm:$0xf] %v690
      %v923 = vld [vmem:[%s899 + $0x78] sm:$0xf]
      %v924 = vsel %vm902, %v697, %v923
      %925 = vst [vmem:[%s899 + $0x78] sm:$0xf] %v924
      %926 = vst [vmem:[%s899 + $0x84] sm:$0xf] %v706
      %v927 = vld [vmem:[%s899 + $0x90] sm:$0xf]
      %v928 = vsel %vm902, %v713, %v927
      %929 = vst [vmem:[%s899 + $0x90] sm:$0xf] %v928
      %930 = vst [vmem:[%s899 + $0x9c] sm:$0xf] %v722
      %v931 = vld [vmem:[%s899 + $0xa8] sm:$0xf]
      %v932 = vsel %vm902, %v729, %v931
      %933 = vst [vmem:[%s899 + $0xa8] sm:$0xf] %v932
      %934 = vst [vmem:[%s899 + $0xb4] sm:$0xf] %v738
      %v935 = vld [vmem:[%s899 + $0xc0] sm:$0xf]
      %v936 = vsel %vm902, %v745, %v935
      %937 = vst [vmem:[%s899 + $0xc0] sm:$0xf] %v936
      %938 = vst [vmem:[%s899 + $0xcc] sm:$0xf] %v754
      %v939 = vld [vmem:[%s899 + $0xd8] sm:$0xf]
      %v940 = vsel %vm902, %v761, %v939
      %941 = vst [vmem:[%s899 + $0xd8] sm:$0xf] %v940
      %942 = vst [vmem:[%s899 + $0xe4] sm:$0xf] %v770
      %v943 = vld [vmem:[%s899 + $0xf0] sm:$0xf]
      %v944 = vsel %vm902, %v777, %v943
      %945 = vst [vmem:[%s899 + $0xf0] sm:$0xf] %v944
      %946 = vst [vmem:[%s899 + $0xfc] sm:$0xf] %v786
      %v947 = vld [vmem:[%s899 + $0x108] sm:$0xf]
      %v948 = vsel %vm902, %v793, %v947
      %949 = vst [vmem:[%s899 + $0x108] sm:$0xf] %v948
      %950 = vst [vmem:[%s899 + $0x114] sm:$0xf] %v802
      %v951 = vld [vmem:[%s899 + $0x120] sm:$0xf]
      %v952 = vsel %vm902, %v809, %v951
      %953 = vst [vmem:[%s899 + $0x120] sm:$0xf] %v952
      %954 = vst [vmem:[%s899 + $0x12c] sm:$0xf] %v818
      %v955 = vld [vmem:[%s899 + $0x138] sm:$0xf]
      %v956 = vsel %vm902, %v825, %v955
      %957 = vst [vmem:[%s899 + $0x138] sm:$0xf] %v956
      %958 = vst [vmem:[%s899 + $0x144] sm:$0xf] %v834
      %v959 = vld [vmem:[%s899 + $0x150] sm:$0xf]
      %v960 = vsel %vm902, %v841, %v959
      %961 = vst [vmem:[%s899 + $0x150] sm:$0xf] %v960
      %962 = vst [vmem:[%s899 + $0x15c] sm:$0xf] %v850
      %v963 = vld [vmem:[%s899 + $0x168] sm:$0xf]
      %v964 = vsel %vm902, %v857, %v963
      %965 = vst [vmem:[%s899 + $0x168] sm:$0xf] %v964
      %966 = vst [vmem:[%s899 + $0x174] sm:$0xf] %v866
      %999 = vst [vmem:[%s899 + $0x4] sm:$0xf] %v576
      %1000 = vst [vmem:[%s899 + $0x10] sm:$0xf] %v577
      %1001 = vst [vmem:[%s899 + $0x1c] sm:$0xf] %v578
      %1002 = vst [vmem:[%s899 + $0x28] sm:$0xf] %v579
      %1003 = vst [vmem:[%s899 + $0x34] sm:$0xf] %v580
      %1004 = vst [vmem:[%s899 + $0x40] sm:$0xf] %v581
      %1005 = vst [vmem:[%s899 + $0x4c] sm:$0xf] %v582
      %1006 = vst [vmem:[%s899 + $0x58] sm:$0xf] %v583
      %1007 = vst [vmem:[%s899 + $0x64] sm:$0xf] %v584
      %1008 = vst [vmem:[%s899 + $0x70] sm:$0xf] %v585
      %1009 = vst [vmem:[%s899 + $0x7c] sm:$0xf] %v586
      %1010 = vst [vmem:[%s899 + $0x88] sm:$0xf] %v587
      %1011 = vst [vmem:[%s899 + $0x94] sm:$0xf] %v588
      %1012 = vst [vmem:[%s899 + $0xa0] sm:$0xf] %v589
      %1013 = vst [vmem:[%s899 + $0xac] sm:$0xf] %v590
      %1014 = vst [vmem:[%s899 + $0xb8] sm:$0xf] %v591
      %1015 = vst [vmem:[%s899 + $0xc4] sm:$0xf] %v592
      %1016 = vst [vmem:[%s899 + $0xd0] sm:$0xf] %v593
      %1017 = vst [vmem:[%s899 + $0xdc] sm:$0xf] %v594
      %1018 = vst [vmem:[%s899 + $0xe8] sm:$0xf] %v595
      %1019 = vst [vmem:[%s899 + $0xf4] sm:$0xf] %v596
      %1020 = vst [vmem:[%s899 + $0x100] sm:$0xf] %v597
      %1021 = vst [vmem:[%s899 + $0x10c] sm:$0xf] %v598
      %1022 = vst [vmem:[%s899 + $0x118] sm:$0xf] %v599
      %1023 = vst [vmem:[%s899 + $0x124] sm:$0xf] %v600
      %1024 = vst [vmem:[%s899 + $0x130] sm:$0xf] %v601
      %1025 = vst [vmem:[%s899 + $0x13c] sm:$0xf] %v602
      %1026 = vst [vmem:[%s899 + $0x148] sm:$0xf] %v603
      %1027 = vst [vmem:[%s899 + $0x154] sm:$0xf] %v604
      %1028 = vst [vmem:[%s899 + $0x160] sm:$0xf] %v605
      %1029 = vst [vmem:[%s899 + $0x16c] sm:$0xf] %v606
      %1030 = vst [vmem:[%s899 + $0x178] sm:$0xf] %v607
      %vm1031 = vsmask.f32 3328
      %vm1032 = vsmask.f32 7440
      %vm1033 = vmor %vm1031, %vm1032
      %v1034 = vrot.slane %v612, 4
      %v1035 = vrot.slane %v615, 5
      %v1036 = vor.u32 %v1034, %v1035
      %v1037 = vrot.slane %v1036, 4
      %v1038 = vrot.slane %v623, 5
      %v1039 = vsel %vm1033, %v1037, %v1038
      %v1040 = vrot.slane %v620, 4
      %v1041 = vor.u32 %v1040, %v1038
      %v1042 = vrot.slane %v1041, 4
      %v1043 = vrot.slane %v628, 4
      %v1044 = vrot.slane %v631, 5
      %v1045 = vor.u32 %v1043, %v1044
      %v1046 = vrot.slane %v1045, 4
      %v1047 = vrot.slane %v639, 5
      %v1048 = vsel %vm1033, %v1046, %v1047
      %v1049 = vrot.slane %v636, 4
      %v1050 = vor.u32 %v1049, %v1047
      %v1051 = vrot.slane %v1050, 4
      %v1052 = vrot.slane %v644, 4
      %v1053 = vrot.slane %v647, 5
      %v1054 = vor.u32 %v1052, %v1053
      %v1055 = vrot.slane %v1054, 4
      %v1056 = vrot.slane %v655, 5
      %v1057 = vsel %vm1033, %v1055, %v1056
      %v1058 = vrot.slane %v652, 4
      %v1059 = vor.u32 %v1058, %v1056
      %v1060 = vrot.slane %v1059, 4
      %v1061 = vrot.slane %v660, 4
      %v1062 = vrot.slane %v663, 5
      %v1063 = vor.u32 %v1061, %v1062
      %v1064 = vrot.slane %v1063, 4
      %v1065 = vrot.slane %v671, 5
      %v1066 = vsel %vm1033, %v1064, %v1065
      %v1067 = vrot.slane %v668, 4
      %v1068 = vor.u32 %v1067, %v1065
      %v1069 = vrot.slane %v1068, 4
      %v1070 = vrot.slane %v676, 4
      %v1071 = vrot.slane %v679, 5
      %v1072 = vor.u32 %v1070, %v1071
      %v1073 = vrot.slane %v1072, 4
      %v1074 = vrot.slane %v687, 5
      %v1075 = vsel %vm1033, %v1073, %v1074
      %v1076 = vrot.slane %v684, 4
      %v1077 = vor.u32 %v1076, %v1074
      %v1078 = vrot.slane %v1077, 4
      %v1079 = vrot.slane %v692, 4
      %v1080 = vrot.slane %v695, 5
      %v1081 = vor.u32 %v1079, %v1080
      %v1082 = vrot.slane %v1081, 4
      %v1083 = vrot.slane %v703, 5
      %v1084 = vsel %vm1033, %v1082, %v1083
      %v1085 = vrot.slane %v700, 4
      %v1086 = vor.u32 %v1085, %v1083
      %v1087 = vrot.slane %v1086, 4
      %v1088 = vrot.slane %v708, 4
      %v1089 = vrot.slane %v711, 5
      %v1090 = vor.u32 %v1088, %v1089
      %v1091 = vrot.slane %v1090, 4
      %v1092 = vrot.slane %v719, 5
      %v1093 = vsel %vm1033, %v1091, %v1092
      %v1094 = vrot.slane %v716, 4
      %v1095 = vor.u32 %v1094, %v1092
      %v1096 = vrot.slane %v1095, 4
      %v1097 = vrot.slane %v724, 4
      %v1098 = vrot.slane %v727, 5
      %v1099 = vor.u32 %v1097, %v1098
      %v1100 = vrot.slane %v1099, 4
      %v1101 = vrot.slane %v735, 5
      %v1102 = vsel %vm1033, %v1100, %v1101
      %v1103 = vrot.slane %v732, 4
      %v1104 = vor.u32 %v1103, %v1101
      %v1105 = vrot.slane %v1104, 4
      %v1106 = vrot.slane %v740, 4
      %v1107 = vrot.slane %v743, 5
      %v1108 = vor.u32 %v1106, %v1107
      %v1109 = vrot.slane %v1108, 4
      %v1110 = vrot.slane %v751, 5
      %v1111 = vsel %vm1033, %v1109, %v1110
      %v1112 = vrot.slane %v748, 4
      %v1113 = vor.u32 %v1112, %v1110
      %v1114 = vrot.slane %v1113, 4
      %v1115 = vrot.slane %v756, 4
      %v1116 = vrot.slane %v759, 5
      %v1117 = vor.u32 %v1115, %v1116
      %v1118 = vrot.slane %v1117, 4
      %v1119 = vrot.slane %v767, 5
      %v1120 = vsel %vm1033, %v1118, %v1119
      %v1121 = vrot.slane %v764, 4
      %v1122 = vor.u32 %v1121, %v1119
      %v1123 = vrot.slane %v1122, 4
      %v1124 = vrot.slane %v772, 4
      %v1125 = vrot.slane %v775, 5
      %v1126 = vor.u32 %v1124, %v1125
      %v1127 = vrot.slane %v1126, 4
      %v1128 = vrot.slane %v783, 5
      %v1129 = vsel %vm1033, %v1127, %v1128
      %v1130 = vrot.slane %v780, 4
      %v1131 = vor.u32 %v1130, %v1128
      %v1132 = vrot.slane %v1131, 4
      %v1133 = vrot.slane %v788, 4
      %v1134 = vrot.slane %v791, 5
      %v1135 = vor.u32 %v1133, %v1134
      %v1136 = vrot.slane %v1135, 4
      %v1137 = vrot.slane %v799, 5
      %v1138 = vsel %vm1033, %v1136, %v1137
      %v1139 = vrot.slane %v796, 4
      %v1140 = vor.u32 %v1139, %v1137
      %v1141 = vrot.slane %v1140, 4
      %v1142 = vrot.slane %v804, 4
      %v1143 = vrot.slane %v807, 5
      %v1144 = vor.u32 %v1142, %v1143
      %v1145 = vrot.slane %v1144, 4
      %v1146 = vrot.slane %v815, 5
      %v1147 = vsel %vm1033, %v1145, %v1146
      %v1148 = vrot.slane %v812, 4
      %v1149 = vor.u32 %v1148, %v1146
      %v1150 = vrot.slane %v1149, 4
      %v1151 = vrot.slane %v820, 4
      %v1152 = vrot.slane %v823, 5
      %v1153 = vor.u32 %v1151, %v1152
      %v1154 = vrot.slane %v1153, 4
      %v1155 = vrot.slane %v831, 5
      %v1156 = vsel %vm1033, %v1154, %v1155
      %v1157 = vrot.slane %v828, 4
      %v1158 = vor.u32 %v1157, %v1155
      %v1159 = vrot.slane %v1158, 4
      %v1160 = vrot.slane %v836, 4
      %v1161 = vrot.slane %v839, 5
      %v1162 = vor.u32 %v1160, %v1161
      %v1163 = vrot.slane %v1162, 4
      %v1164 = vrot.slane %v847, 5
      %v1165 = vsel %vm1033, %v1163, %v1164
      %v1166 = vrot.slane %v844, 4
      %v1167 = vor.u32 %v1166, %v1164
      %v1168 = vrot.slane %v1167, 4
      %v1169 = vrot.slane %v852, 4
      %v1170 = vrot.slane %v855, 5
      %v1171 = vor.u32 %v1169, %v1170
      %v1172 = vrot.slane %v1171, 4
      %v1173 = vrot.slane %v863, 5
      %v1174 = vsel %vm1033, %v1172, %v1173
      %v1175 = vrot.slane %v860, 4
      %v1176 = vor.u32 %v1175, %v1173
      %v1177 = vrot.slane %v1176, 4
      %1210 = vst [vmem:[%s899 + $0x8] sm:$0xf] %v1039
      %vm1211 = vmand %vm900, %vm1031
      %v1212 = vld [vmem:[%s899 + $0x14] sm:$0xf]
      %v1213 = vsel %vm1211, %v1042, %v1212
      %1214 = vst [vmem:[%s899 + $0x14] sm:$0xf] %v1213
      %1215 = vst [vmem:[%s899 + $0x20] sm:$0xf] %v1048
      %v1216 = vld [vmem:[%s899 + $0x2c] sm:$0xf]
      %v1217 = vsel %vm1211, %v1051, %v1216
      %1218 = vst [vmem:[%s899 + $0x2c] sm:$0xf] %v1217
      %1219 = vst [vmem:[%s899 + $0x38] sm:$0xf] %v1057
      %v1220 = vld [vmem:[%s899 + $0x44] sm:$0xf]
      %v1221 = vsel %vm1211, %v1060, %v1220
      %1222 = vst [vmem:[%s899 + $0x44] sm:$0xf] %v1221
      %1223 = vst [vmem:[%s899 + $0x50] sm:$0xf] %v1066
      %v1224 = vld [vmem:[%s899 + $0x5c] sm:$0xf]
      %v1225 = vsel %vm1211, %v1069, %v1224
      %1226 = vst [vmem:[%s899 + $0x5c] sm:$0xf] %v1225
      %1227 = vst [vmem:[%s899 + $0x68] sm:$0xf] %v1075
      %v1228 = vld [vmem:[%s899 + $0x74] sm:$0xf]
      %v1229 = vsel %vm1211, %v1078, %v1228
      %1230 = vst [vmem:[%s899 + $0x74] sm:$0xf] %v1229
      %1231 = vst [vmem:[%s899 + $0x80] sm:$0xf] %v1084
      %v1232 = vld [vmem:[%s899 + $0x8c] sm:$0xf]
      %v1233 = vsel %vm1211, %v1087, %v1232
      %1234 = vst [vmem:[%s899 + $0x8c] sm:$0xf] %v1233
      %1235 = vst [vmem:[%s899 + $0x98] sm:$0xf] %v1093
      %v1236 = vld [vmem:[%s899 + $0xa4] sm:$0xf]
      %v1237 = vsel %vm1211, %v1096, %v1236
      %1238 = vst [vmem:[%s899 + $0xa4] sm:$0xf] %v1237
      %1239 = vst [vmem:[%s899 + $0xb0] sm:$0xf] %v1102
      %v1240 = vld [vmem:[%s899 + $0xbc] sm:$0xf]
      %v1241 = vsel %vm1211, %v1105, %v1240
      %1242 = vst [vmem:[%s899 + $0xbc] sm:$0xf] %v1241
      %1243 = vst [vmem:[%s899 + $0xc8] sm:$0xf] %v1111
      %v1244 = vld [vmem:[%s899 + $0xd4] sm:$0xf]
      %v1245 = vsel %vm1211, %v1114, %v1244
      %1246 = vst [vmem:[%s899 + $0xd4] sm:$0xf] %v1245
      %1247 = vst [vmem:[%s899 + $0xe0] sm:$0xf] %v1120
      %v1248 = vld [vmem:[%s899 + $0xec] sm:$0xf]
      %v1249 = vsel %vm1211, %v1123, %v1248
      %1250 = vst [vmem:[%s899 + $0xec] sm:$0xf] %v1249
      %1251 = vst [vmem:[%s899 + $0xf8] sm:$0xf] %v1129
      %v1252 = vld [vmem:[%s899 + $0x104] sm:$0xf]
      %v1253 = vsel %vm1211, %v1132, %v1252
      %1254 = vst [vmem:[%s899 + $0x104] sm:$0xf] %v1253
      %1255 = vst [vmem:[%s899 + $0x110] sm:$0xf] %v1138
      %v1256 = vld [vmem:[%s899 + $0x11c] sm:$0xf]
      %v1257 = vsel %vm1211, %v1141, %v1256
      %1258 = vst [vmem:[%s899 + $0x11c] sm:$0xf] %v1257
      %1259 = vst [vmem:[%s899 + $0x128] sm:$0xf] %v1147
      %v1260 = vld [vmem:[%s899 + $0x134] sm:$0xf]
      %v1261 = vsel %vm1211, %v1150, %v1260
      %1262 = vst [vmem:[%s899 + $0x134] sm:$0xf] %v1261
      %1263 = vst [vmem:[%s899 + $0x140] sm:$0xf] %v1156
      %v1264 = vld [vmem:[%s899 + $0x14c] sm:$0xf]
      %v1265 = vsel %vm1211, %v1159, %v1264
      %1266 = vst [vmem:[%s899 + $0x14c] sm:$0xf] %v1265
      %1267 = vst [vmem:[%s899 + $0x158] sm:$0xf] %v1165
      %v1268 = vld [vmem:[%s899 + $0x164] sm:$0xf]
      %v1269 = vsel %vm1211, %v1168, %v1268
      %1270 = vst [vmem:[%s899 + $0x164] sm:$0xf] %v1269
      %1271 = vst [vmem:[%s899 + $0x170] sm:$0xf] %v1174
      %v1272 = vld [vmem:[%s899 + $0x17c] sm:$0xf]
      %v1273 = vsel %vm1211, %v1177, %v1272
      %1274 = vst [vmem:[%s899 + $0x17c] sm:$0xf] %v1273
      %v1275 = vld [vmem:[#allocation2] sm:$0xff]
      %v1276 = vld [vmem:[#allocation2 + $0x8] sm:$0xf]
      %v1277 = vld [vmem:[#allocation2 + $0xc] sm:$0xff]
      %v1278 = vld [vmem:[#allocation2 + $0x14] sm:$0xf]
      %v1279 = vld [vmem:[#allocation2 + $0x18] sm:$0xff]
      %v1280 = vld [vmem:[#allocation2 + $0x20] sm:$0xf]
      %v1281 = vld [vmem:[#allocation2 + $0x24] sm:$0xff]
      %v1282 = vld [vmem:[#allocation2 + $0x2c] sm:$0xf]
      %v1283 = vld [vmem:[#allocation2 + $0x30] sm:$0xff]
      %v1284 = vld [vmem:[#allocation2 + $0x38] sm:$0xf]
      %v1285 = vld [vmem:[#allocation2 + $0x3c] sm:$0xff]
      %v1286 = vld [vmem:[#allocation2 + $0x44] sm:$0xf]
      %v1287 = vld [vmem:[#allocation2 + $0x48] sm:$0xff]
      %v1288 = vld [vmem:[#allocation2 + $0x50] sm:$0xf]
      %v1289 = vld [vmem:[#allocation2 + $0x54] sm:$0xff]
      %v1290 = vld [vmem:[#allocation2 + $0x5c] sm:$0xf]
      %v1291 = vld [vmem:[#allocation2 + $0x60] sm:$0xff]
      %v1292 = vld [vmem:[#allocation2 + $0x68] sm:$0xf]
      %v1293 = vld [vmem:[#allocation2 + $0x6c] sm:$0xff]
      %v1294 = vld [vmem:[#allocation2 + $0x74] sm:$0xf]
      %v1295 = vld [vmem:[#allocation2 + $0x78] sm:$0xff]
      %v1296 = vld [vmem:[#allocation2 + $0x80] sm:$0xf]
      %v1297 = vld [vmem:[#allocation2 + $0x84] sm:$0xff]
      %v1298 = vld [vmem:[#allocation2 + $0x8c] sm:$0xf]
      %v1299 = vld [vmem:[#allocation2 + $0x90] sm:$0xff]
      %v1300 = vld [vmem:[#allocation2 + $0x98] sm:$0xf]
      %v1301 = vld [vmem:[#allocation2 + $0x9c] sm:$0xff]
      %v1302 = vld [vmem:[#allocation2 + $0xa4] sm:$0xf]
      %v1303 = vld [vmem:[#allocation2 + $0xa8] sm:$0xff]
      %v1304 = vld [vmem:[#allocation2 + $0xb0] sm:$0xf]
      %v1305 = vld [vmem:[#allocation2 + $0xb4] sm:$0xff]
      %v1306 = vld [vmem:[#allocation2 + $0xbc] sm:$0xf]
      %v1307 = vld [vmem:[#allocation2 + $0xc0] sm:$0xff]
      %v1308 = vld [vmem:[#allocation2 + $0xc8] sm:$0xf]
      %v1309 = vld [vmem:[#allocation2 + $0xcc] sm:$0xff]
      %v1310 = vld [vmem:[#allocation2 + $0xd4] sm:$0xf]
      %v1311 = vld [vmem:[#allocation2 + $0xd8] sm:$0xff]
      %v1312 = vld [vmem:[#allocation2 + $0xe0] sm:$0xf]
      %v1313 = vld [vmem:[#allocation2 + $0xe4] sm:$0xff]
      %v1314 = vld [vmem:[#allocation2 + $0xec] sm:$0xf]
      %v1315 = vld [vmem:[#allocation2 + $0xf0] sm:$0xff]
      %v1316 = vld [vmem:[#allocation2 + $0xf8] sm:$0xf]
      %v1317 = vld [vmem:[#allocation2 + $0xfc] sm:$0xff]
      %v1318 = vld [vmem:[#allocation2 + $0x104] sm:$0xf]
      %v1319 = vld [vmem:[#allocation2 + $0x108] sm:$0xff]
      %v1320 = vld [vmem:[#allocation2 + $0x110] sm:$0xf]
      %v1321 = vld [vmem:[#allocation2 + $0x114] sm:$0xff]
      %v1322 = vld [vmem:[#allocation2 + $0x11c] sm:$0xf]
      %v1323 = vld [vmem:[#allocation2 + $0x120] sm:$0xff]
      %v1324 = vld [vmem:[#allocation2 + $0x128] sm:$0xf]
      %v1325 = vld [vmem:[#allocation2 + $0x12c] sm:$0xff]
      %v1326 = vld [vmem:[#allocation2 + $0x134] sm:$0xf]
      %v1327 = vld [vmem:[#allocation2 + $0x138] sm:$0xff]
      %v1328 = vld [vmem:[#allocation2 + $0x140] sm:$0xf]
      %v1329 = vld [vmem:[#allocation2 + $0x144] sm:$0xff]
      %v1330 = vld [vmem:[#allocation2 + $0x14c] sm:$0xf]
      %v1331 = vld [vmem:[#allocation2 + $0x150] sm:$0xff]
      %v1332 = vld [vmem:[#allocation2 + $0x158] sm:$0xf]
      %v1333 = vld [vmem:[#allocation2 + $0x15c] sm:$0xff]
      %v1334 = vld [vmem:[#allocation2 + $0x164] sm:$0xf]
      %v1335 = vld [vmem:[#allocation2 + $0x168] sm:$0xff]
      %v1336 = vld [vmem:[#allocation2 + $0x170] sm:$0xf]
      %v1337 = vld [vmem:[#allocation2 + $0x174] sm:$0xff]
      %v1338 = vld [vmem:[#allocation2 + $0x17c] sm:$0xf]
      %v1339 = vld [vmem:[%s4] sm:$0xf]
      %v1340 = vld [vmem:[%s4 + $0x4] sm:$0xf]
      %v1341 = vld [vmem:[%s4 + $0x8] sm:$0xf]
      %v1342 = vld [vmem:[%s4 + $0xc] sm:$0xf]
      %v1343 = vld [vmem:[%s4 + $0x10] sm:$0xf]
      %v1344 = vld [vmem:[%s4 + $0x14] sm:$0xf]
      %v1345 = vld [vmem:[%s4 + $0x18] sm:$0xf]
      %v1346 = vld [vmem:[%s4 + $0x1c] sm:$0xf]
      %v1347 = vld [vmem:[%s4 + $0x20] sm:$0xf]
      %v1348 = vld [vmem:[%s4 + $0x24] sm:$0xf]
      %v1349 = vld [vmem:[%s4 + $0x28] sm:$0xf]
      %v1350 = vld [vmem:[%s4 + $0x2c] sm:$0xf]
      %v1351 = vld [vmem:[%s4 + $0x30] sm:$0xf]
      %v1352 = vld [vmem:[%s4 + $0x34] sm:$0xf]
      %v1353 = vld [vmem:[%s4 + $0x38] sm:$0xf]
      %v1354 = vld [vmem:[%s4 + $0x3c] sm:$0xf]
      %v1355 = vld [vmem:[%s4 + $0x40] sm:$0xf]
      %v1356 = vld [vmem:[%s4 + $0x44] sm:$0xf]
      %v1357 = vld [vmem:[%s4 + $0x48] sm:$0xf]
      %v1358 = vld [vmem:[%s4 + $0x4c] sm:$0xf]
      %v1359 = vld [vmem:[%s4 + $0x50] sm:$0xf]
      %v1360 = vld [vmem:[%s4 + $0x54] sm:$0xf]
      %v1361 = vld [vmem:[%s4 + $0x58] sm:$0xf]
      %v1362 = vld [vmem:[%s4 + $0x5c] sm:$0xf]
      %v1363 = vld [vmem:[%s4 + $0x60] sm:$0xf]
      %v1364 = vld [vmem:[%s4 + $0x64] sm:$0xf]
      %v1365 = vld [vmem:[%s4 + $0x68] sm:$0xf]
      %v1366 = vld [vmem:[%s4 + $0x6c] sm:$0xf]
      %v1367 = vld [vmem:[%s4 + $0x70] sm:$0xf]
      %v1368 = vld [vmem:[%s4 + $0x74] sm:$0xf]
      %v1369 = vld [vmem:[%s4 + $0x78] sm:$0xf]
      %v1370 = vld [vmem:[%s4 + $0x7c] sm:$0xf]
      %v1371 = vld [vmem:[%s4 + $0x80] sm:$0xf]
      %v1372 = vld [vmem:[%s4 + $0x84] sm:$0xf]
      %v1373 = vld [vmem:[%s4 + $0x88] sm:$0xf]
      %v1374 = vld [vmem:[%s4 + $0x8c] sm:$0xf]
      %v1375 = vld [vmem:[%s4 + $0x90] sm:$0xf]
      %v1376 = vld [vmem:[%s4 + $0x94] sm:$0xf]
      %v1377 = vld [vmem:[%s4 + $0x98] sm:$0xf]
      %v1378 = vld [vmem:[%s4 + $0x9c] sm:$0xf]
      %v1379 = vld [vmem:[%s4 + $0xa0] sm:$0xf]
      %v1380 = vld [vmem:[%s4 + $0xa4] sm:$0xf]
      %v1381 = vld [vmem:[%s4 + $0xa8] sm:$0xf]
      %v1382 = vld [vmem:[%s4 + $0xac] sm:$0xf]
      %v1383 = vld [vmem:[%s4 + $0xb0] sm:$0xf]
      %v1384 = vld [vmem:[%s4 + $0xb4] sm:$0xf]
      %v1385 = vld [vmem:[%s4 + $0xb8] sm:$0xf]
      %v1386 = vld [vmem:[%s4 + $0xbc] sm:$0xf]
      %v1451 = vunpack.c.l.b16 %v1275
      %v1452 = vunpack.c.h.b16 %v1275
      %v1453 = vunpack.c.l.b16 %v1276
      %v1454 = vunpack.c.l.b16 %v1277
      %v1455 = vunpack.c.h.b16 %v1277
      %v1456 = vunpack.c.l.b16 %v1278
      %v1457 = vunpack.c.l.b16 %v1279
      %v1458 = vunpack.c.h.b16 %v1279
      %v1459 = vunpack.c.l.b16 %v1280
      %v1460 = vunpack.c.l.b16 %v1281
      %v1461 = vunpack.c.h.b16 %v1281
      %v1462 = vunpack.c.l.b16 %v1282
      %v1463 = vunpack.c.l.b16 %v1283
      %v1464 = vunpack.c.h.b16 %v1283
      %v1465 = vunpack.c.l.b16 %v1284
      %v1466 = vunpack.c.l.b16 %v1285
      %v1467 = vunpack.c.h.b16 %v1285
      %v1468 = vunpack.c.l.b16 %v1286
      %v1469 = vunpack.c.l.b16 %v1287
      %v1470 = vunpack.c.h.b16 %v1287
      %v1471 = vunpack.c.l.b16 %v1288
      %v1472 = vunpack.c.l.b16 %v1289
      %v1473 = vunpack.c.h.b16 %v1289
      %v1474 = vunpack.c.l.b16 %v1290
      %v1475 = vunpack.c.l.b16 %v1291
      %v1476 = vunpack.c.h.b16 %v1291
      %v1477 = vunpack.c.l.b16 %v1292
      %v1478 = vunpack.c.l.b16 %v1293
      %v1479 = vunpack.c.h.b16 %v1293
      %v1480 = vunpack.c.l.b16 %v1294
      %v1481 = vunpack.c.l.b16 %v1295
      %v1482 = vunpack.c.h.b16 %v1295
      %v1483 = vunpack.c.l.b16 %v1296
      %v1484 = vunpack.c.l.b16 %v1297
      %v1485 = vunpack.c.h.b16 %v1297
      %v1486 = vunpack.c.l.b16 %v1298
      %v1487 = vunpack.c.l.b16 %v1299
      %v1488 = vunpack.c.h.b16 %v1299
      %v1489 = vunpack.c.l.b16 %v1300
      %v1490 = vunpack.c.l.b16 %v1301
      %v1491 = vunpack.c.h.b16 %v1301
      %v1492 = vunpack.c.l.b16 %v1302
      %v1493 = vunpack.c.l.b16 %v1303
      %v1494 = vunpack.c.h.b16 %v1303
      %v1495 = vunpack.c.l.b16 %v1304
      %v1496 = vunpack.c.l.b16 %v1305
      %v1497 = vunpack.c.h.b16 %v1305
      %v1498 = vunpack.c.l.b16 %v1306
      %v1499 = vunpack.c.l.b16 %v1307
      %v1500 = vunpack.c.h.b16 %v1307
      %v1501 = vunpack.c.l.b16 %v1308
      %v1502 = vunpack.c.l.b16 %v1309
      %v1503 = vunpack.c.h.b16 %v1309
      %v1504 = vunpack.c.l.b16 %v1310
      %v1505 = vunpack.c.l.b16 %v1311
      %v1506 = vunpack.c.h.b16 %v1311
      %v1507 = vunpack.c.l.b16 %v1312
      %v1508 = vunpack.c.l.b16 %v1313
      %v1509 = vunpack.c.h.b16 %v1313
      %v1510 = vunpack.c.l.b16 %v1314
      %v1511 = vunpack.c.l.b16 %v1315
      %v1512 = vunpack.c.h.b16 %v1315
      %v1513 = vunpack.c.l.b16 %v1316
      %v1514 = vunpack.c.l.b16 %v1317
      %v1515 = vunpack.c.h.b16 %v1317
      %v1516 = vunpack.c.l.b16 %v1318
      %v1517 = vunpack.c.l.b16 %v1319
      %v1518 = vunpack.c.h.b16 %v1319
      %v1519 = vunpack.c.l.b16 %v1320
      %v1520 = vunpack.c.l.b16 %v1321
      %v1521 = vunpack.c.h.b16 %v1321
      %v1522 = vunpack.c.l.b16 %v1322
      %v1523 = vunpack.c.l.b16 %v1323
      %v1524 = vunpack.c.h.b16 %v1323
      %v1525 = vunpack.c.l.b16 %v1324
      %v1526 = vunpack.c.l.b16 %v1325
      %v1527 = vunpack.c.h.b16 %v1325
      %v1528 = vunpack.c.l.b16 %v1326
      %v1529 = vunpack.c.l.b16 %v1327
      %v1530 = vunpack.c.h.b16 %v1327
      %v1531 = vunpack.c.l.b16 %v1328
      %v1532 = vunpack.c.l.b16 %v1329
      %v1533 = vunpack.c.h.b16 %v1329
      %v1534 = vunpack.c.l.b16 %v1330
      %v1535 = vunpack.c.l.b16 %v1331
      %v1536 = vunpack.c.h.b16 %v1331
      %v1537 = vunpack.c.l.b16 %v1332
      %v1538 = vunpack.c.l.b16 %v1333
      %v1539 = vunpack.c.h.b16 %v1333
      %v1540 = vunpack.c.l.b16 %v1334
      %v1541 = vunpack.c.l.b16 %v1335
      %v1542 = vunpack.c.h.b16 %v1335
      %v1543 = vunpack.c.l.b16 %v1336
      %v1544 = vunpack.c.l.b16 %v1337
      %v1545 = vunpack.c.h.b16 %v1337
      %v1546 = vunpack.c.l.b16 %v1338
      %v1547 = vpack.c.b16 %v1454, %v1451
      %v1548 = vpack.c.b16 %v1455, %v1452
      %v1549 = vpack.c.b16 %v1456, %v1453
      %v1550 = vpack.c.b16 %v1460, %v1457
      %v1551 = vpack.c.b16 %v1461, %v1458
      %v1552 = vpack.c.b16 %v1462, %v1459
      %v1553 = vpack.c.b16 %v1466, %v1463
      %v1554 = vpack.c.b16 %v1467, %v1464
      %v1555 = vpack.c.b16 %v1468, %v1465
      %v1556 = vpack.c.b16 %v1472, %v1469
      %v1557 = vpack.c.b16 %v1473, %v1470
      %v1558 = vpack.c.b16 %v1474, %v1471
      %v1559 = vpack.c.b16 %v1478, %v1475
      %v1560 = vpack.c.b16 %v1479, %v1476
      %v1561 = vpack.c.b16 %v1480, %v1477
      %v1562 = vpack.c.b16 %v1484, %v1481
      %v1563 = vpack.c.b16 %v1485, %v1482
      %v1564 = vpack.c.b16 %v1486, %v1483
      %v1565 = vpack.c.b16 %v1490, %v1487
      %v1566 = vpack.c.b16 %v1491, %v1488
      %v1567 = vpack.c.b16 %v1492, %v1489
      %v1568 = vpack.c.b16 %v1496, %v1493
      %v1569 = vpack.c.b16 %v1497, %v1494
      %v1570 = vpack.c.b16 %v1498, %v1495
      %v1571 = vpack.c.b16 %v1502, %v1499
      %v1572 = vpack.c.b16 %v1503, %v1500
      %v1573 = vpack.c.b16 %v1504, %v1501
      %v1574 = vpack.c.b16 %v1508, %v1505
      %v1575 = vpack.c.b16 %v1509, %v1506
      %v1576 = vpack.c.b16 %v1510, %v1507
      %v1577 = vpack.c.b16 %v1514, %v1511
      %v1578 = vpack.c.b16 %v1515, %v1512
      %v1579 = vpack.c.b16 %v1516, %v1513
      %v1580 = vpack.c.b16 %v1520, %v1517
      %v1581 = vpack.c.b16 %v1521, %v1518
      %v1582 = vpack.c.b16 %v1522, %v1519
      %v1583 = vpack.c.b16 %v1526, %v1523
      %v1584 = vpack.c.b16 %v1527, %v1524
      %v1585 = vpack.c.b16 %v1528, %v1525
      %v1586 = vpack.c.b16 %v1532, %v1529
      %v1587 = vpack.c.b16 %v1533, %v1530
      %v1588 = vpack.c.b16 %v1534, %v1531
      %v1589 = vpack.c.b16 %v1538, %v1535
      %v1590 = vpack.c.b16 %v1539, %v1536
      %v1591 = vpack.c.b16 %v1540, %v1537
      %v1592 = vpack.c.b16 %v1544, %v1541
      %v1593 = vpack.c.b16 %v1545, %v1542
      %v1594 = vpack.c.b16 %v1546, %v1543
      %v1691 = vunpack.c.l.b16 %v1339
      %v1692 = vunpack.c.l.b16 %v1340
      %v1693 = vunpack.c.l.b16 %v1341
      %v1694 = vunpack.c.l.b16 %v1342
      %v1695 = vunpack.c.l.b16 %v1343
      %v1696 = vunpack.c.l.b16 %v1344
      %v1697 = vunpack.c.l.b16 %v1345
      %v1698 = vunpack.c.l.b16 %v1346
      %v1699 = vunpack.c.l.b16 %v1347
      %v1700 = vunpack.c.l.b16 %v1348
      %v1701 = vunpack.c.l.b16 %v1349
      %v1702 = vunpack.c.l.b16 %v1350
      %v1703 = vunpack.c.l.b16 %v1351
      %v1704 = vunpack.c.l.b16 %v1352
      %v1705 = vunpack.c.l.b16 %v1353
      %v1706 = vunpack.c.l.b16 %v1354
      %v1707 = vunpack.c.l.b16 %v1355
      %v1708 = vunpack.c.l.b16 %v1356
      %v1709 = vunpack.c.l.b16 %v1357
      %v1710 = vunpack.c.l.b16 %v1358
      %v1711 = vunpack.c.l.b16 %v1359
      %v1712 = vunpack.c.l.b16 %v1360
      %v1713 = vunpack.c.l.b16 %v1361
      %v1714 = vunpack.c.l.b16 %v1362
      %v1715 = vunpack.c.l.b16 %v1363
      %v1716 = vunpack.c.l.b16 %v1364
      %v1717 = vunpack.c.l.b16 %v1365
      %v1718 = vunpack.c.l.b16 %v1366
      %v1719 = vunpack.c.l.b16 %v1367
      %v1720 = vunpack.c.l.b16 %v1368
      %v1721 = vunpack.c.l.b16 %v1369
      %v1722 = vunpack.c.l.b16 %v1370
      %v1723 = vunpack.c.l.b16 %v1371
      %v1724 = vunpack.c.l.b16 %v1372
      %v1725 = vunpack.c.l.b16 %v1373
      %v1726 = vunpack.c.l.b16 %v1374
      %v1727 = vunpack.c.l.b16 %v1375
      %v1728 = vunpack.c.l.b16 %v1376
      %v1729 = vunpack.c.l.b16 %v1377
      %v1730 = vunpack.c.l.b16 %v1378
      %v1731 = vunpack.c.l.b16 %v1379
      %v1732 = vunpack.c.l.b16 %v1380
      %v1733 = vunpack.c.l.b16 %v1381
      %v1734 = vunpack.c.l.b16 %v1382
      %v1735 = vunpack.c.l.b16 %v1383
      %v1736 = vunpack.c.l.b16 %v1384
      %v1737 = vunpack.c.l.b16 %v1385
      %v1738 = vunpack.c.l.b16 %v1386
      %v1739 = vpack.c.b16 %v1692, %v1691
      %v1740 = vpack.c.b16 %v1694, %v1693
      %v1741 = vpack.c.b16 %v1696, %v1695
      %v1742 = vpack.c.b16 %v1698, %v1697
      %v1743 = vpack.c.b16 %v1700, %v1699
      %v1744 = vpack.c.b16 %v1702, %v1701
      %v1745 = vpack.c.b16 %v1704, %v1703
      %v1746 = vpack.c.b16 %v1706, %v1705
      %v1747 = vpack.c.b16 %v1708, %v1707
      %v1748 = vpack.c.b16 %v1710, %v1709
      %v1749 = vpack.c.b16 %v1712, %v1711
      %v1750 = vpack.c.b16 %v1714, %v1713
      %v1751 = vpack.c.b16 %v1716, %v1715
      %v1752 = vpack.c.b16 %v1718, %v1717
      %v1753 = vpack.c.b16 %v1720, %v1719
      %v1754 = vpack.c.b16 %v1722, %v1721
      %v1755 = vpack.c.b16 %v1724, %v1723
      %v1756 = vpack.c.b16 %v1726, %v1725
      %v1757 = vpack.c.b16 %v1728, %v1727
      %v1758 = vpack.c.b16 %v1730, %v1729
      %v1759 = vpack.c.b16 %v1732, %v1731
      %v1760 = vpack.c.b16 %v1734, %v1733
      %v1761 = vpack.c.b16 %v1736, %v1735
      %v1762 = vpack.c.b16 %v1738, %v1737
      %1787 = vmatprep.subr.bf16.mxu0 0
      %1788 = vmatpush1.bf16.msra.mxu0 %v1746
      %1789 = vmatprep.subr.bf16.mxu0 0
      %1790 = vmatpush1.bf16.msra.mxu0 %v1745
      %1791 = vmatprep.subr.bf16.mxu0 0
      %1792 = vmatpush1.bf16.msra.mxu0 %v1744
      %1793 = vmatprep.subr.bf16.mxu0 0
      %1794 = vmatpush1.bf16.msra.mxu0 %v1743
      %1795 = vmatprep.subr.bf16.mxu0 0
      %1796 = vmatpush1.bf16.msra.mxu0 %v1742
      %1797 = vmatprep.subr.bf16.mxu0 0
      %1798 = vmatpush1.bf16.msra.mxu0 %v1741
      %1799 = vmatprep.subr.bf16.mxu0 0
      %1800 = vmatpush1.bf16.msra.mxu0 %v1740
      %1801 = vmatprep.subr.bf16.mxu0 0
      %1802 = vmatpush1.bf16.msra.mxu0 %v1739
      %1803 = vmatprep.subr.bf16.mxu0 0
      %1804 = vmatpush2.bf16.msra.mxu0 %v1754
      %1805 = vmatprep.subr.bf16.mxu0 0
      %1806 = vmatpush2.bf16.msra.mxu0 %v1753
      %1807 = vmatprep.subr.bf16.mxu0 0
      %1808 = vmatpush2.bf16.msra.mxu0 %v1752
      %1809 = vmatprep.subr.bf16.mxu0 0
      %1810 = vmatpush2.bf16.msra.mxu0 %v1751
      %1811 = vmatprep.subr.bf16.mxu0 0
      %1812 = vmatpush2.bf16.msra.mxu0 %v1750
      %1813 = vmatprep.subr.bf16.mxu0 0
      %1814 = vmatpush2.bf16.msra.mxu0 %v1749
      %1815 = vmatprep.subr.bf16.mxu0 0
      %1816 = vmatpush2.bf16.msra.mxu0 %v1748
      %1817 = vmatprep.subr.bf16.mxu0 0
      %1818 = vmatpush2.bf16.msra.mxu0 %v1747
      %1819 = vmatprep.mubr.bf16.mxu0 %v1548
      %1820 = vmatmul.mubr.bf16.gmra.mxu0 %v1547
      %v1821 = vpop.f32.mrf.mxu0
      %v1822 = vadd.f32 0.0, %v1821
      %v1823 = vpop.f32.mrf.mxu0
      %v1824 = vpop.f32.mrf.mxu0
      %v1825 = vadd.f32 0.0, %v1824
      %v1826 = vpop.f32.mrf.mxu0
      %1827 = vmatprep.mubr.bf16.mxu0 %v1551
      %1828 = vmatmul.mubr.bf16.gmra.mxu0 %v1550
      %v1829 = vpop.f32.mrf.mxu0
      %v1830 = vadd.f32 0.0, %v1829
      %v1831 = vpop.f32.mrf.mxu0
      %v1832 = vpop.f32.mrf.mxu0
      %v1833 = vadd.f32 0.0, %v1832
      %v1834 = vpop.f32.mrf.mxu0
      %1835 = vmatprep.mubr.bf16.mxu0 %v1554
      %1836 = vmatmul.mubr.bf16.gmra.mxu0 %v1553
      %v1837 = vpop.f32.mrf.mxu0
      %v1838 = vadd.f32 0.0, %v1837
      %v1839 = vpop.f32.mrf.mxu0
      %v1840 = vpop.f32.mrf.mxu0
      %v1841 = vadd.f32 0.0, %v1840
      %v1842 = vpop.f32.mrf.mxu0
      %1843 = vmatprep.mubr.bf16.mxu0 %v1557
      %1844 = vmatmul.mubr.bf16.gmra.mxu0 %v1556
      %v1845 = vpop.f32.mrf.mxu0
      %v1846 = vadd.f32 0.0, %v1845
      %v1847 = vpop.f32.mrf.mxu0
      %v1848 = vpop.f32.mrf.mxu0
      %v1849 = vadd.f32 0.0, %v1848
      %v1850 = vpop.f32.mrf.mxu0
      %1851 = vmatprep.mubr.bf16.mxu0 %v1560
      %1852 = vmatmul.mubr.bf16.gmra.mxu0 %v1559
      %v1853 = vpop.f32.mrf.mxu0
      %v1854 = vadd.f32 0.0, %v1853
      %v1855 = vpop.f32.mrf.mxu0
      %v1856 = vpop.f32.mrf.mxu0
      %v1857 = vadd.f32 0.0, %v1856
      %v1858 = vpop.f32.mrf.mxu0
      %1859 = vmatprep.mubr.bf16.mxu0 %v1563
      %1860 = vmatmul.mubr.bf16.gmra.mxu0 %v1562
      %v1861 = vpop.f32.mrf.mxu0
      %v1862 = vadd.f32 0.0, %v1861
      %v1863 = vpop.f32.mrf.mxu0
      %v1864 = vpop.f32.mrf.mxu0
      %v1865 = vadd.f32 0.0, %v1864
      %v1866 = vpop.f32.mrf.mxu0
      %1867 = vmatprep.mubr.bf16.mxu0 %v1566
      %1868 = vmatmul.mubr.bf16.gmra.mxu0 %v1565
      %v1869 = vpop.f32.mrf.mxu0
      %v1870 = vadd.f32 0.0, %v1869
      %v1871 = vpop.f32.mrf.mxu0
      %v1872 = vpop.f32.mrf.mxu0
      %v1873 = vadd.f32 0.0, %v1872
      %v1874 = vpop.f32.mrf.mxu0
      %1875 = vmatprep.mubr.bf16.mxu0 %v1569
      %1876 = vmatmul.mubr.bf16.gmra.mxu0 %v1568
      %v1877 = vpop.f32.mrf.mxu0
      %v1878 = vadd.f32 0.0, %v1877
      %v1879 = vpop.f32.mrf.mxu0
      %v1880 = vpop.f32.mrf.mxu0
      %v1881 = vadd.f32 0.0, %v1880
      %v1882 = vpop.f32.mrf.mxu0
      %1883 = vmatprep.mubr.bf16.mxu0 %v1572
      %1884 = vmatmul.mubr.bf16.gmra.mxu0 %v1571
      %v1885 = vpop.f32.mrf.mxu0
      %v1886 = vadd.f32 0.0, %v1885
      %v1887 = vpop.f32.mrf.mxu0
      %v1888 = vpop.f32.mrf.mxu0
      %v1889 = vadd.f32 0.0, %v1888
      %v1890 = vpop.f32.mrf.mxu0
      %1891 = vmatprep.mubr.bf16.mxu0 %v1575
      %1892 = vmatmul.mubr.bf16.gmra.mxu0 %v1574
      %v1893 = vpop.f32.mrf.mxu0
      %v1894 = vadd.f32 0.0, %v1893
      %v1895 = vpop.f32.mrf.mxu0
      %v1896 = vpop.f32.mrf.mxu0
      %v1897 = vadd.f32 0.0, %v1896
      %v1898 = vpop.f32.mrf.mxu0
      %1899 = vmatprep.mubr.bf16.mxu0 %v1578
      %1900 = vmatmul.mubr.bf16.gmra.mxu0 %v1577
      %v1901 = vpop.f32.mrf.mxu0
      %v1902 = vadd.f32 0.0, %v1901
      %v1903 = vpop.f32.mrf.mxu0
      %v1904 = vpop.f32.mrf.mxu0
      %v1905 = vadd.f32 0.0, %v1904
      %v1906 = vpop.f32.mrf.mxu0
      %1907 = vmatprep.mubr.bf16.mxu0 %v1581
      %1908 = vmatmul.mubr.bf16.gmra.mxu0 %v1580
      %v1909 = vpop.f32.mrf.mxu0
      %v1910 = vadd.f32 0.0, %v1909
      %v1911 = vpop.f32.mrf.mxu0
      %v1912 = vpop.f32.mrf.mxu0
      %v1913 = vadd.f32 0.0, %v1912
      %v1914 = vpop.f32.mrf.mxu0
      %1915 = vmatprep.mubr.bf16.mxu0 %v1584
      %1916 = vmatmul.mubr.bf16.gmra.mxu0 %v1583
      %v1917 = vpop.f32.mrf.mxu0
      %v1918 = vadd.f32 0.0, %v1917
      %v1919 = vpop.f32.mrf.mxu0
      %v1920 = vpop.f32.mrf.mxu0
      %v1921 = vadd.f32 0.0, %v1920
      %v1922 = vpop.f32.mrf.mxu0
      %1923 = vmatprep.mubr.bf16.mxu0 %v1587
      %1924 = vmatmul.mubr.bf16.gmra.mxu0 %v1586
      %v1925 = vpop.f32.mrf.mxu0
      %v1926 = vadd.f32 0.0, %v1925
      %v1927 = vpop.f32.mrf.mxu0
      %v1928 = vpop.f32.mrf.mxu0
      %v1929 = vadd.f32 0.0, %v1928
      %v1930 = vpop.f32.mrf.mxu0
      %1931 = vmatprep.mubr.bf16.mxu0 %v1590
      %1932 = vmatmul.mubr.bf16.gmra.mxu0 %v1589
      %v1933 = vpop.f32.mrf.mxu0
      %v1934 = vadd.f32 0.0, %v1933
      %v1935 = vpop.f32.mrf.mxu0
      %v1936 = vpop.f32.mrf.mxu0
      %v1937 = vadd.f32 0.0, %v1936
      %v1938 = vpop.f32.mrf.mxu0
      %1939 = vmatprep.mubr.bf16.mxu0 %v1593
      %1940 = vmatmul.mubr.bf16.gmra.mxu0 %v1592
      %v1941 = vpop.f32.mrf.mxu0
      %v1942 = vadd.f32 0.0, %v1941
      %v1943 = vpop.f32.mrf.mxu0
      %v1944 = vpop.f32.mrf.mxu0
      %v1945 = vadd.f32 0.0, %v1944
      %v1946 = vpop.f32.mrf.mxu0
      %1947 = vdwg.mxu0
      %1948 = vmatprep.subr.bf16.mxu0 0
      %1949 = vmatpush1.bf16.msra.mxu0 %v1762
      %1950 = vmatprep.subr.bf16.mxu0 0
      %1951 = vmatpush1.bf16.msra.mxu0 %v1761
      %1952 = vmatprep.subr.bf16.mxu0 0
      %1953 = vmatpush1.bf16.msra.mxu0 %v1760
      %1954 = vmatprep.subr.bf16.mxu0 0
      %1955 = vmatpush1.bf16.msra.mxu0 %v1759
      %1956 = vmatprep.subr.bf16.mxu0 0
      %1957 = vmatpush1.bf16.msra.mxu0 %v1758
      %1958 = vmatprep.subr.bf16.mxu0 0
      %1959 = vmatpush1.bf16.msra.mxu0 %v1757
      %1960 = vmatprep.subr.bf16.mxu0 0
      %1961 = vmatpush1.bf16.msra.mxu0 %v1756
      %1962 = vmatprep.subr.bf16.mxu0 0
      %1963 = vmatpush1.bf16.msra.mxu0 %v1755
      %1964 = vmatprep.subr.bf16.mxu0 0
      %1965 = vmatpush2.bf16.msra.mxu0 0
      %1966 = vmatprep.subr.bf16.mxu0 0
      %1967 = vmatpush2.bf16.msra.mxu0 0
      %1968 = vmatprep.subr.bf16.mxu0 0
      %1969 = vmatpush2.bf16.msra.mxu0 0
      %1970 = vmatprep.subr.bf16.mxu0 0
      %1971 = vmatpush2.bf16.msra.mxu0 0
      %1972 = vmatprep.subr.bf16.mxu0 0
      %1973 = vmatpush2.bf16.msra.mxu0 0
      %1974 = vmatprep.subr.bf16.mxu0 0
      %1975 = vmatpush2.bf16.msra.mxu0 0
      %1976 = vmatprep.subr.bf16.mxu0 0
      %1977 = vmatpush2.bf16.msra.mxu0 0
      %1978 = vmatprep.subr.bf16.mxu0 0
      %1979 = vmatpush2.bf16.msra.mxu0 0
      %1980 = vmatprep.mubr.bf16.mxu0 0
      %1981 = vmatmul.mubr.bf16.gmra.mxu0 %v1549
      %v1982 = vpop.f32.mrf.mxu0
      %v1983 = vadd.f32 %v1822, %v1982
      %v1984 = vpop.f32.mrf.mxu0
      %v1985 = vpop.f32.mrf.mxu0
      %v1986 = vadd.f32 %v1825, %v1985
      %v1987 = vpop.f32.mrf.mxu0
      %1988 = vmatprep.mubr.bf16.mxu0 0
      %1989 = vmatmul.mubr.bf16.gmra.mxu0 %v1552
      %v1990 = vpop.f32.mrf.mxu0
      %v1991 = vadd.f32 %v1830, %v1990
      %v1992 = vpop.f32.mrf.mxu0
      %v1993 = vpop.f32.mrf.mxu0
      %v1994 = vadd.f32 %v1833, %v1993
      %v1995 = vpop.f32.mrf.mxu0
      %1996 = vmatprep.mubr.bf16.mxu0 0
      %1997 = vmatmul.mubr.bf16.gmra.mxu0 %v1555
      %v1998 = vpop.f32.mrf.mxu0
      %v1999 = vadd.f32 %v1838, %v1998
      %v2000 = vpop.f32.mrf.mxu0
      %v2001 = vpop.f32.mrf.mxu0
      %v2002 = vadd.f32 %v1841, %v2001
      %v2003 = vpop.f32.mrf.mxu0
      %2004 = vmatprep.mubr.bf16.mxu0 0
      %2005 = vmatmul.mubr.bf16.gmra.mxu0 %v1558
      %v2006 = vpop.f32.mrf.mxu0
      %v2007 = vadd.f32 %v1846, %v2006
      %v2008 = vpop.f32.mrf.mxu0
      %v2009 = vpop.f32.mrf.mxu0
      %v2010 = vadd.f32 %v1849, %v2009
      %v2011 = vpop.f32.mrf.mxu0
      %2012 = vmatprep.mubr.bf16.mxu0 0
      %2013 = vmatmul.mubr.bf16.gmra.mxu0 %v1561
      %v2014 = vpop.f32.mrf.mxu0
      %v2015 = vadd.f32 %v1854, %v2014
      %v2016 = vpop.f32.mrf.mxu0
      %v2017 = vpop.f32.mrf.mxu0
      %v2018 = vadd.f32 %v1857, %v2017
      %v2019 = vpop.f32.mrf.mxu0
      %2020 = vmatprep.mubr.bf16.mxu0 0
      %2021 = vmatmul.mubr.bf16.gmra.mxu0 %v1564
      %v2022 = vpop.f32.mrf.mxu0
      %v2023 = vadd.f32 %v1862, %v2022
      %v2024 = vpop.f32.mrf.mxu0
      %v2025 = vpop.f32.mrf.mxu0
      %v2026 = vadd.f32 %v1865, %v2025
      %v2027 = vpop.f32.mrf.mxu0
      %2028 = vmatprep.mubr.bf16.mxu0 0
      %2029 = vmatmul.mubr.bf16.gmra.mxu0 %v1567
      %v2030 = vpop.f32.mrf.mxu0
      %v2031 = vadd.f32 %v1870, %v2030
      %v2032 = vpop.f32.mrf.mxu0
      %v2033 = vpop.f32.mrf.mxu0
      %v2034 = vadd.f32 %v1873, %v2033
      %v2035 = vpop.f32.mrf.mxu0
      %2036 = vmatprep.mubr.bf16.mxu0 0
      %2037 = vmatmul.mubr.bf16.gmra.mxu0 %v1570
      %v2038 = vpop.f32.mrf.mxu0
      %v2039 = vadd.f32 %v1878, %v2038
      %v2040 = vpop.f32.mrf.mxu0
      %v2041 = vpop.f32.mrf.mxu0
      %v2042 = vadd.f32 %v1881, %v2041
      %v2043 = vpop.f32.mrf.mxu0
      %2044 = vmatprep.mubr.bf16.mxu0 0
      %2045 = vmatmul.mubr.bf16.gmra.mxu0 %v1573
      %v2046 = vpop.f32.mrf.mxu0
      %v2047 = vadd.f32 %v1886, %v2046
      %v2048 = vpop.f32.mrf.mxu0
      %v2049 = vpop.f32.mrf.mxu0
      %v2050 = vadd.f32 %v1889, %v2049
      %v2051 = vpop.f32.mrf.mxu0
      %2052 = vmatprep.mubr.bf16.mxu0 0
      %2053 = vmatmul.mubr.bf16.gmra.mxu0 %v1576
      %v2054 = vpop.f32.mrf.mxu0
      %v2055 = vadd.f32 %v1894, %v2054
      %v2056 = vpop.f32.mrf.mxu0
      %v2057 = vpop.f32.mrf.mxu0
      %v2058 = vadd.f32 %v1897, %v2057
      %v2059 = vpop.f32.mrf.mxu0
      %2060 = vmatprep.mubr.bf16.mxu0 0
      %2061 = vmatmul.mubr.bf16.gmra.mxu0 %v1579
      %v2062 = vpop.f32.mrf.mxu0
      %v2063 = vadd.f32 %v1902, %v2062
      %v2064 = vpop.f32.mrf.mxu0
      %v2065 = vpop.f32.mrf.mxu0
      %v2066 = vadd.f32 %v1905, %v2065
      %v2067 = vpop.f32.mrf.mxu0
      %2068 = vmatprep.mubr.bf16.mxu0 0
      %2069 = vmatmul.mubr.bf16.gmra.mxu0 %v1582
      %v2070 = vpop.f32.mrf.mxu0
      %v2071 = vadd.f32 %v1910, %v2070
      %v2072 = vpop.f32.mrf.mxu0
      %v2073 = vpop.f32.mrf.mxu0
      %v2074 = vadd.f32 %v1913, %v2073
      %v2075 = vpop.f32.mrf.mxu0
      %2076 = vmatprep.mubr.bf16.mxu0 0
      %2077 = vmatmul.mubr.bf16.gmra.mxu0 %v1585
      %v2078 = vpop.f32.mrf.mxu0
      %v2079 = vadd.f32 %v1918, %v2078
      %v2080 = vpop.f32.mrf.mxu0
      %v2081 = vpop.f32.mrf.mxu0
      %v2082 = vadd.f32 %v1921, %v2081
      %v2083 = vpop.f32.mrf.mxu0
      %2084 = vmatprep.mubr.bf16.mxu0 0
      %2085 = vmatmul.mubr.bf16.gmra.mxu0 %v1588
      %v2086 = vpop.f32.mrf.mxu0
      %v2087 = vadd.f32 %v1926, %v2086
      %v2088 = vpop.f32.mrf.mxu0
      %v2089 = vpop.f32.mrf.mxu0
      %v2090 = vadd.f32 %v1929, %v2089
      %v2091 = vpop.f32.mrf.mxu0
      %2092 = vmatprep.mubr.bf16.mxu0 0
      %2093 = vmatmul.mubr.bf16.gmra.mxu0 %v1591
      %v2094 = vpop.f32.mrf.mxu0
      %v2095 = vadd.f32 %v1934, %v2094
      %v2096 = vpop.f32.mrf.mxu0
      %v2097 = vpop.f32.mrf.mxu0
      %v2098 = vadd.f32 %v1937, %v2097
      %v2099 = vpop.f32.mrf.mxu0
      %2100 = vmatprep.mubr.bf16.mxu0 0
      %2101 = vmatmul.mubr.bf16.gmra.mxu0 %v1594
      %v2102 = vpop.f32.mrf.mxu0
      %v2103 = vadd.f32 %v1942, %v2102
      %v2104 = vpop.f32.mrf.mxu0
      %v2105 = vpop.f32.mrf.mxu0
      %v2106 = vadd.f32 %v1945, %v2105
      %v2107 = vpop.f32.mrf.mxu0
      %2108 = vdwg.mxu0
      %2109 = vst [vmem:[#allocation3] sm:$0xff] %v1983
      %2110 = vst [vmem:[#allocation3 + $0x8] sm:$0xff] %v1986
      %2111 = vst [vmem:[#allocation3 + $0x10] sm:$0xff] %v1991
      %2112 = vst [vmem:[#allocation3 + $0x18] sm:$0xff] %v1994
      %2113 = vst [vmem:[#allocation3 + $0x20] sm:$0xff] %v1999
      %2114 = vst [vmem:[#allocation3 + $0x28] sm:$0xff] %v2002
      %2115 = vst [vmem:[#allocation3 + $0x30] sm:$0xff] %v2007
      %2116 = vst [vmem:[#allocation3 + $0x38] sm:$0xff] %v2010
      %2117 = vst [vmem:[#allocation3 + $0x40] sm:$0xff] %v2015
      %2118 = vst [vmem:[#allocation3 + $0x48] sm:$0xff] %v2018
      %2119 = vst [vmem:[#allocation3 + $0x50] sm:$0xff] %v2023
      %2120 = vst [vmem:[#allocation3 + $0x58] sm:$0xff] %v2026
      %2121 = vst [vmem:[#allocation3 + $0x60] sm:$0xff] %v2031
      %2122 = vst [vmem:[#allocation3 + $0x68] sm:$0xff] %v2034
      %2123 = vst [vmem:[#allocation3 + $0x70] sm:$0xff] %v2039
      %2124 = vst [vmem:[#allocation3 + $0x78] sm:$0xff] %v2042
      %2125 = vst [vmem:[#allocation3 + $0x80] sm:$0xff] %v2047
      %2126 = vst [vmem:[#allocation3 + $0x88] sm:$0xff] %v2050
      %2127 = vst [vmem:[#allocation3 + $0x90] sm:$0xff] %v2055
      %2128 = vst [vmem:[#allocation3 + $0x98] sm:$0xff] %v2058
      %2129 = vst [vmem:[#allocation3 + $0xa0] sm:$0xff] %v2063
      %2130 = vst [vmem:[#allocation3 + $0xa8] sm:$0xff] %v2066
      %2131 = vst [vmem:[#allocation3 + $0xb0] sm:$0xff] %v2071
      %2132 = vst [vmem:[#allocation3 + $0xb8] sm:$0xff] %v2074
      %2133 = vst [vmem:[#allocation3 + $0xc0] sm:$0xff] %v2079
      %2134 = vst [vmem:[#allocation3 + $0xc8] sm:$0xff] %v2082
      %2135 = vst [vmem:[#allocation3 + $0xd0] sm:$0xff] %v2087
      %2136 = vst [vmem:[#allocation3 + $0xd8] sm:$0xff] %v2090
      %2137 = vst [vmem:[#allocation3 + $0xe0] sm:$0xff] %v2095
      %2138 = vst [vmem:[#allocation3 + $0xe8] sm:$0xff] %v2098
      %2139 = vst [vmem:[#allocation3 + $0xf0] sm:$0xff] %v2103
      %2140 = vst [vmem:[#allocation3 + $0xf8] sm:$0xff] %v2106
      %v2141 = vld [vmem:[#allocation3] sm:$0xff]
      %v2142 = vld [vmem:[#allocation3 + $0x8] sm:$0xff]
      %v2143 = vld [vmem:[#allocation3 + $0x10] sm:$0xff]
      %v2144 = vld [vmem:[#allocation3 + $0x18] sm:$0xff]
      %v2145 = vld [vmem:[#allocation3 + $0x20] sm:$0xff]
      %v2146 = vld [vmem:[#allocation3 + $0x28] sm:$0xff]
      %v2147 = vld [vmem:[#allocation3 + $0x30] sm:$0xff]
      %v2148 = vld [vmem:[#allocation3 + $0x38] sm:$0xff]
      %v2149 = vld [vmem:[#allocation3 + $0x40] sm:$0xff]
      %v2150 = vld [vmem:[#allocation3 + $0x48] sm:$0xff]
      %v2151 = vld [vmem:[#allocation3 + $0x50] sm:$0xff]
      %v2152 = vld [vmem:[#allocation3 + $0x58] sm:$0xff]
      %v2153 = vld [vmem:[#allocation3 + $0x60] sm:$0xff]
      %v2154 = vld [vmem:[#allocation3 + $0x68] sm:$0xff]
      %v2155 = vld [vmem:[#allocation3 + $0x70] sm:$0xff]
      %v2156 = vld [vmem:[#allocation3 + $0x78] sm:$0xff]
      %v2157 = vld [vmem:[#allocation3 + $0x80] sm:$0xff]
      %v2158 = vld [vmem:[#allocation3 + $0x88] sm:$0xff]
      %v2159 = vld [vmem:[#allocation3 + $0x90] sm:$0xff]
      %v2160 = vld [vmem:[#allocation3 + $0x98] sm:$0xff]
      %v2161 = vld [vmem:[#allocation3 + $0xa0] sm:$0xff]
      %v2162 = vld [vmem:[#allocation3 + $0xa8] sm:$0xff]
      %v2163 = vld [vmem:[#allocation3 + $0xb0] sm:$0xff]
      %v2164 = vld [vmem:[#allocation3 + $0xb8] sm:$0xff]
      %v2165 = vld [vmem:[#allocation3 + $0xc0] sm:$0xff]
      %v2166 = vld [vmem:[#allocation3 + $0xc8] sm:$0xff]
      %v2167 = vld [vmem:[#allocation3 + $0xd0] sm:$0xff]
      %v2168 = vld [vmem:[#allocation3 + $0xd8] sm:$0xff]
      %v2169 = vld [vmem:[#allocation3 + $0xe0] sm:$0xff]
      %v2170 = vld [vmem:[#allocation3 + $0xe8] sm:$0xff]
      %v2171 = vld [vmem:[#allocation3 + $0xf0] sm:$0xff]
      %v2172 = vld [vmem:[#allocation3 + $0xf8] sm:$0xff]
      %v2173 = vld [vmem:[%s899] sm:$0xff]
      %v2174 = vld [vmem:[%s899 + $0x8] sm:$0xf]
      %v2175 = vld [vmem:[%s899 + $0xc] sm:$0xff]
      %v2176 = vld [vmem:[%s899 + $0x14] sm:$0xf]
      %v2177 = vld [vmem:[%s899 + $0x18] sm:$0xff]
      %v2178 = vld [vmem:[%s899 + $0x20] sm:$0xf]
      %v2179 = vld [vmem:[%s899 + $0x24] sm:$0xff]
      %v2180 = vld [vmem:[%s899 + $0x2c] sm:$0xf]
      %v2181 = vld [vmem:[%s899 + $0x30] sm:$0xff]
      %v2182 = vld [vmem:[%s899 + $0x38] sm:$0xf]
      %v2183 = vld [vmem:[%s899 + $0x3c] sm:$0xff]
      %v2184 = vld [vmem:[%s899 + $0x44] sm:$0xf]
      %v2185 = vld [vmem:[%s899 + $0x48] sm:$0xff]
      %v2186 = vld [vmem:[%s899 + $0x50] sm:$0xf]
      %v2187 = vld [vmem:[%s899 + $0x54] sm:$0xff]
      %v2188 = vld [vmem:[%s899 + $0x5c] sm:$0xf]
      %v2189 = vld [vmem:[%s899 + $0x60] sm:$0xff]
      %v2190 = vld [vmem:[%s899 + $0x68] sm:$0xf]
      %v2191 = vld [vmem:[%s899 + $0x6c] sm:$0xff]
      %v2192 = vld [vmem:[%s899 + $0x74] sm:$0xf]
      %v2193 = vld [vmem:[%s899 + $0x78] sm:$0xff]
      %v2194 = vld [vmem:[%s899 + $0x80] sm:$0xf]
      %v2195 = vld [vmem:[%s899 + $0x84] sm:$0xff]
      %v2196 = vld [vmem:[%s899 + $0x8c] sm:$0xf]
      %v2197 = vld [vmem:[%s899 + $0x90] sm:$0xff]
      %v2198 = vld [vmem:[%s899 + $0x98] sm:$0xf]
      %v2199 = vld [vmem:[%s899 + $0x9c] sm:$0xff]
      %v2200 = vld [vmem:[%s899 + $0xa4] sm:$0xf]
      %v2201 = vld [vmem:[%s899 + $0xa8] sm:$0xff]
      %v2202 = vld [vmem:[%s899 + $0xb0] sm:$0xf]
      %v2203 = vld [vmem:[%s899 + $0xb4] sm:$0xff]
      %v2204 = vld [vmem:[%s899 + $0xbc] sm:$0xf]
      %v2205 = vld [vmem:[%s899 + $0xc0] sm:$0xff]
      %v2206 = vld [vmem:[%s899 + $0xc8] sm:$0xf]
      %v2207 = vld [vmem:[%s899 + $0xcc] sm:$0xff]
      %v2208 = vld [vmem:[%s899 + $0xd4] sm:$0xf]
      %v2209 = vld [vmem:[%s899 + $0xd8] sm:$0xff]
      %v2210 = vld [vmem:[%s899 + $0xe0] sm:$0xf]
      %v2211 = vld [vmem:[%s899 + $0xe4] sm:$0xff]
      %v2212 = vld [vmem:[%s899 + $0xec] sm:$0xf]
      %v2213 = vld [vmem:[%s899 + $0xf0] sm:$0xff]
      %v2214 = vld [vmem:[%s899 + $0xf8] sm:$0xf]
      %v2215 = vld [vmem:[%s899 + $0xfc] sm:$0xff]
      %v2216 = vld [vmem:[%s899 + $0x104] sm:$0xf]
      %v2217 = vld [vmem:[%s899 + $0x108] sm:$0xff]
      %v2218 = vld [vmem:[%s899 + $0x110] sm:$0xf]
      %v2219 = vld [vmem:[%s899 + $0x114] sm:$0xff]
      %v2220 = vld [vmem:[%s899 + $0x11c] sm:$0xf]
      %v2221 = vld [vmem:[%s899 + $0x120] sm:$0xff]
      %v2222 = vld [vmem:[%s899 + $0x128] sm:$0xf]
      %v2223 = vld [vmem:[%s899 + $0x12c] sm:$0xff]
      %v2224 = vld [vmem:[%s899 + $0x134] sm:$0xf]
      %v2225 = vld [vmem:[%s899 + $0x138] sm:$0xff]
      %v2226 = vld [vmem:[%s899 + $0x140] sm:$0xf]
      %v2227 = vld [vmem:[%s899 + $0x144] sm:$0xff]
      %v2228 = vld [vmem:[%s899 + $0x14c] sm:$0xf]
      %v2229 = vld [vmem:[%s899 + $0x150] sm:$0xff]
      %v2230 = vld [vmem:[%s899 + $0x158] sm:$0xf]
      %v2231 = vld [vmem:[%s899 + $0x15c] sm:$0xff]
      %v2232 = vld [vmem:[%s899 + $0x164] sm:$0xf]
      %v2233 = vld [vmem:[%s899 + $0x168] sm:$0xff]
      %v2234 = vld [vmem:[%s899 + $0x170] sm:$0xf]
      %v2235 = vld [vmem:[%s899 + $0x174] sm:$0xff]
      %v2236 = vld [vmem:[%s899 + $0x17c] sm:$0xf]
      %s2237 = scalar_lea.vmem %s4, 192
      %v2238 = vld [vmem:[%s2237] sm:$0xf]
      %v2239 = vld [vmem:[%s2237 + $0x4] sm:$0xf]
      %v2240 = vld [vmem:[%s2237 + $0x8] sm:$0xf]
      %v2241 = vld [vmem:[%s2237 + $0xc] sm:$0xf]
      %v2242 = vld [vmem:[%s2237 + $0x10] sm:$0xf]
      %v2243 = vld [vmem:[%s2237 + $0x14] sm:$0xf]
      %v2244 = vld [vmem:[%s2237 + $0x18] sm:$0xf]
      %v2245 = vld [vmem:[%s2237 + $0x1c] sm:$0xf]
      %v2246 = vld [vmem:[%s2237 + $0x20] sm:$0xf]
      %v2247 = vld [vmem:[%s2237 + $0x24] sm:$0xf]
      %v2248 = vld [vmem:[%s2237 + $0x28] sm:$0xf]
      %v2249 = vld [vmem:[%s2237 + $0x2c] sm:$0xf]
      %v2250 = vld [vmem:[%s2237 + $0x30] sm:$0xf]
      %v2251 = vld [vmem:[%s2237 + $0x34] sm:$0xf]
      %v2252 = vld [vmem:[%s2237 + $0x38] sm:$0xf]
      %v2253 = vld [vmem:[%s2237 + $0x3c] sm:$0xf]
      %v2254 = vld [vmem:[%s2237 + $0x40] sm:$0xf]
      %v2255 = vld [vmem:[%s2237 + $0x44] sm:$0xf]
      %v2256 = vld [vmem:[%s2237 + $0x48] sm:$0xf]
      %v2257 = vld [vmem:[%s2237 + $0x4c] sm:$0xf]
      %v2258 = vld [vmem:[%s2237 + $0x50] sm:$0xf]
      %v2259 = vld [vmem:[%s2237 + $0x54] sm:$0xf]
      %v2260 = vld [vmem:[%s2237 + $0x58] sm:$0xf]
      %v2261 = vld [vmem:[%s2237 + $0x5c] sm:$0xf]
      %v2262 = vld [vmem:[%s2237 + $0x60] sm:$0xf]
      %v2263 = vld [vmem:[%s2237 + $0x64] sm:$0xf]
      %v2264 = vld [vmem:[%s2237 + $0x68] sm:$0xf]
      %v2265 = vld [vmem:[%s2237 + $0x6c] sm:$0xf]
      %v2266 = vld [vmem:[%s2237 + $0x70] sm:$0xf]
      %v2267 = vld [vmem:[%s2237 + $0x74] sm:$0xf]
      %v2268 = vld [vmem:[%s2237 + $0x78] sm:$0xf]
      %v2269 = vld [vmem:[%s2237 + $0x7c] sm:$0xf]
      %v2270 = vld [vmem:[%s2237 + $0x80] sm:$0xf]
      %v2271 = vld [vmem:[%s2237 + $0x84] sm:$0xf]
      %v2272 = vld [vmem:[%s2237 + $0x88] sm:$0xf]
      %v2273 = vld [vmem:[%s2237 + $0x8c] sm:$0xf]
      %v2274 = vld [vmem:[%s2237 + $0x90] sm:$0xf]
      %v2275 = vld [vmem:[%s2237 + $0x94] sm:$0xf]
      %v2276 = vld [vmem:[%s2237 + $0x98] sm:$0xf]
      %v2277 = vld [vmem:[%s2237 + $0x9c] sm:$0xf]
      %v2278 = vld [vmem:[%s2237 + $0xa0] sm:$0xf]
      %v2279 = vld [vmem:[%s2237 + $0xa4] sm:$0xf]
      %v2280 = vld [vmem:[%s2237 + $0xa8] sm:$0xf]
      %v2281 = vld [vmem:[%s2237 + $0xac] sm:$0xf]
      %v2282 = vld [vmem:[%s2237 + $0xb0] sm:$0xf]
      %v2283 = vld [vmem:[%s2237 + $0xb4] sm:$0xf]
      %v2284 = vld [vmem:[%s2237 + $0xb8] sm:$0xf]
      %v2285 = vld [vmem:[%s2237 + $0xbc] sm:$0xf]
      %v2350 = vunpack.c.l.b16 %v2173
      %v2351 = vunpack.c.h.b16 %v2173
      %v2352 = vunpack.c.l.b16 %v2174
      %v2353 = vunpack.c.l.b16 %v2175
      %v2354 = vunpack.c.h.b16 %v2175
      %v2355 = vunpack.c.l.b16 %v2176
      %v2356 = vunpack.c.l.b16 %v2177
      %v2357 = vunpack.c.h.b16 %v2177
      %v2358 = vunpack.c.l.b16 %v2178
      %v2359 = vunpack.c.l.b16 %v2179
      %v2360 = vunpack.c.h.b16 %v2179
      %v2361 = vunpack.c.l.b16 %v2180
      %v2362 = vunpack.c.l.b16 %v2181
      %v2363 = vunpack.c.h.b16 %v2181
      %v2364 = vunpack.c.l.b16 %v2182
      %v2365 = vunpack.c.l.b16 %v2183
      %v2366 = vunpack.c.h.b16 %v2183
      %v2367 = vunpack.c.l.b16 %v2184
      %v2368 = vunpack.c.l.b16 %v2185
      %v2369 = vunpack.c.h.b16 %v2185
      %v2370 = vunpack.c.l.b16 %v2186
      %v2371 = vunpack.c.l.b16 %v2187
      %v2372 = vunpack.c.h.b16 %v2187
      %v2373 = vunpack.c.l.b16 %v2188
      %v2374 = vunpack.c.l.b16 %v2189
      %v2375 = vunpack.c.h.b16 %v2189
      %v2376 = vunpack.c.l.b16 %v2190
      %v2377 = vunpack.c.l.b16 %v2191
      %v2378 = vunpack.c.h.b16 %v2191
      %v2379 = vunpack.c.l.b16 %v2192
      %v2380 = vunpack.c.l.b16 %v2193
      %v2381 = vunpack.c.h.b16 %v2193
      %v2382 = vunpack.c.l.b16 %v2194
      %v2383 = vunpack.c.l.b16 %v2195
      %v2384 = vunpack.c.h.b16 %v2195
      %v2385 = vunpack.c.l.b16 %v2196
      %v2386 = vunpack.c.l.b16 %v2197
      %v2387 = vunpack.c.h.b16 %v2197
      %v2388 = vunpack.c.l.b16 %v2198
      %v2389 = vunpack.c.l.b16 %v2199
      %v2390 = vunpack.c.h.b16 %v2199
      %v2391 = vunpack.c.l.b16 %v2200
      %v2392 = vunpack.c.l.b16 %v2201
      %v2393 = vunpack.c.h.b16 %v2201
      %v2394 = vunpack.c.l.b16 %v2202
      %v2395 = vunpack.c.l.b16 %v2203
      %v2396 = vunpack.c.h.b16 %v2203
      %v2397 = vunpack.c.l.b16 %v2204
      %v2398 = vunpack.c.l.b16 %v2205
      %v2399 = vunpack.c.h.b16 %v2205
      %v2400 = vunpack.c.l.b16 %v2206
      %v2401 = vunpack.c.l.b16 %v2207
      %v2402 = vunpack.c.h.b16 %v2207
      %v2403 = vunpack.c.l.b16 %v2208
      %v2404 = vunpack.c.l.b16 %v2209
      %v2405 = vunpack.c.h.b16 %v2209
      %v2406 = vunpack.c.l.b16 %v2210
      %v2407 = vunpack.c.l.b16 %v2211
      %v2408 = vunpack.c.h.b16 %v2211
      %v2409 = vunpack.c.l.b16 %v2212
      %v2410 = vunpack.c.l.b16 %v2213
      %v2411 = vunpack.c.h.b16 %v2213
      %v2412 = vunpack.c.l.b16 %v2214
      %v2413 = vunpack.c.l.b16 %v2215
      %v2414 = vunpack.c.h.b16 %v2215
      %v2415 = vunpack.c.l.b16 %v2216
      %v2416 = vunpack.c.l.b16 %v2217
      %v2417 = vunpack.c.h.b16 %v2217
      %v2418 = vunpack.c.l.b16 %v2218
      %v2419 = vunpack.c.l.b16 %v2219
      %v2420 = vunpack.c.h.b16 %v2219
      %v2421 = vunpack.c.l.b16 %v2220
      %v2422 = vunpack.c.l.b16 %v2221
      %v2423 = vunpack.c.h.b16 %v2221
      %v2424 = vunpack.c.l.b16 %v2222
      %v2425 = vunpack.c.l.b16 %v2223
      %v2426 = vunpack.c.h.b16 %v2223
      %v2427 = vunpack.c.l.b16 %v2224
      %v2428 = vunpack.c.l.b16 %v2225
      %v2429 = vunpack.c.h.b16 %v2225
      %v2430 = vunpack.c.l.b16 %v2226
      %v2431 = vunpack.c.l.b16 %v2227
      %v2432 = vunpack.c.h.b16 %v2227
      %v2433 = vunpack.c.l.b16 %v2228
      %v2434 = vunpack.c.l.b16 %v2229
      %v2435 = vunpack.c.h.b16 %v2229
      %v2436 = vunpack.c.l.b16 %v2230
      %v2437 = vunpack.c.l.b16 %v2231
      %v2438 = vunpack.c.h.b16 %v2231
      %v2439 = vunpack.c.l.b16 %v2232
      %v2440 = vunpack.c.l.b16 %v2233
      %v2441 = vunpack.c.h.b16 %v2233
      %v2442 = vunpack.c.l.b16 %v2234
      %v2443 = vunpack.c.l.b16 %v2235
      %v2444 = vunpack.c.h.b16 %v2235
      %v2445 = vunpack.c.l.b16 %v2236
      %v2446 = vpack.c.b16 %v2353, %v2350
      %v2447 = vpack.c.b16 %v2354, %v2351
      %v2448 = vpack.c.b16 %v2355, %v2352
      %v2449 = vpack.c.b16 %v2359, %v2356
      %v2450 = vpack.c.b16 %v2360, %v2357
      %v2451 = vpack.c.b16 %v2361, %v2358
      %v2452 = vpack.c.b16 %v2365, %v2362
      %v2453 = vpack.c.b16 %v2366, %v2363
      %v2454 = vpack.c.b16 %v2367, %v2364
      %v2455 = vpack.c.b16 %v2371, %v2368
      %v2456 = vpack.c.b16 %v2372, %v2369
      %v2457 = vpack.c.b16 %v2373, %v2370
      %v2458 = vpack.c.b16 %v2377, %v2374
      %v2459 = vpack.c.b16 %v2378, %v2375
      %v2460 = vpack.c.b16 %v2379, %v2376
      %v2461 = vpack.c.b16 %v2383, %v2380
      %v2462 = vpack.c.b16 %v2384, %v2381
      %v2463 = vpack.c.b16 %v2385, %v2382
      %v2464 = vpack.c.b16 %v2389, %v2386
      %v2465 = vpack.c.b16 %v2390, %v2387
      %v2466 = vpack.c.b16 %v2391, %v2388
      %v2467 = vpack.c.b16 %v2395, %v2392
      %v2468 = vpack.c.b16 %v2396, %v2393
      %v2469 = vpack.c.b16 %v2397, %v2394
      %v2470 = vpack.c.b16 %v2401, %v2398
      %v2471 = vpack.c.b16 %v2402, %v2399
      %v2472 = vpack.c.b16 %v2403, %v2400
      %v2473 = vpack.c.b16 %v2407, %v2404
      %v2474 = vpack.c.b16 %v2408, %v2405
      %v2475 = vpack.c.b16 %v2409, %v2406
      %v2476 = vpack.c.b16 %v2413, %v2410
      %v2477 = vpack.c.b16 %v2414, %v2411
      %v2478 = vpack.c.b16 %v2415, %v2412
      %v2479 = vpack.c.b16 %v2419, %v2416
      %v2480 = vpack.c.b16 %v2420, %v2417
      %v2481 = vpack.c.b16 %v2421, %v2418
      %v2482 = vpack.c.b16 %v2425, %v2422
      %v2483 = vpack.c.b16 %v2426, %v2423
      %v2484 = vpack.c.b16 %v2427, %v2424
      %v2485 = vpack.c.b16 %v2431, %v2428
      %v2486 = vpack.c.b16 %v2432, %v2429
      %v2487 = vpack.c.b16 %v2433, %v2430
      %v2488 = vpack.c.b16 %v2437, %v2434
      %v2489 = vpack.c.b16 %v2438, %v2435
      %v2490 = vpack.c.b16 %v2439, %v2436
      %v2491 = vpack.c.b16 %v2443, %v2440
      %v2492 = vpack.c.b16 %v2444, %v2441
      %v2493 = vpack.c.b16 %v2445, %v2442
      %v2590 = vunpack.c.l.b16 %v2238
      %v2591 = vunpack.c.l.b16 %v2239
      %v2592 = vunpack.c.l.b16 %v2240
      %v2593 = vunpack.c.l.b16 %v2241
      %v2594 = vunpack.c.l.b16 %v2242
      %v2595 = vunpack.c.l.b16 %v2243
      %v2596 = vunpack.c.l.b16 %v2244
      %v2597 = vunpack.c.l.b16 %v2245
      %v2598 = vunpack.c.l.b16 %v2246
      %v2599 = vunpack.c.l.b16 %v2247
      %v2600 = vunpack.c.l.b16 %v2248
      %v2601 = vunpack.c.l.b16 %v2249
      %v2602 = vunpack.c.l.b16 %v2250
      %v2603 = vunpack.c.l.b16 %v2251
      %v2604 = vunpack.c.l.b16 %v2252
      %v2605 = vunpack.c.l.b16 %v2253
      %v2606 = vunpack.c.l.b16 %v2254
      %v2607 = vunpack.c.l.b16 %v2255
      %v2608 = vunpack.c.l.b16 %v2256
      %v2609 = vunpack.c.l.b16 %v2257
      %v2610 = vunpack.c.l.b16 %v2258
      %v2611 = vunpack.c.l.b16 %v2259
      %v2612 = vunpack.c.l.b16 %v2260
      %v2613 = vunpack.c.l.b16 %v2261
      %v2614 = vunpack.c.l.b16 %v2262
      %v2615 = vunpack.c.l.b16 %v2263
      %v2616 = vunpack.c.l.b16 %v2264
      %v2617 = vunpack.c.l.b16 %v2265
      %v2618 = vunpack.c.l.b16 %v2266
      %v2619 = vunpack.c.l.b16 %v2267
      %v2620 = vunpack.c.l.b16 %v2268
      %v2621 = vunpack.c.l.b16 %v2269
      %v2622 = vunpack.c.l.b16 %v2270
      %v2623 = vunpack.c.l.b16 %v2271
      %v2624 = vunpack.c.l.b16 %v2272
      %v2625 = vunpack.c.l.b16 %v2273
      %v2626 = vunpack.c.l.b16 %v2274
      %v2627 = vunpack.c.l.b16 %v2275
      %v2628 = vunpack.c.l.b16 %v2276
      %v2629 = vunpack.c.l.b16 %v2277
      %v2630 = vunpack.c.l.b16 %v2278
      %v2631 = vunpack.c.l.b16 %v2279
      %v2632 = vunpack.c.l.b16 %v2280
      %v2633 = vunpack.c.l.b16 %v2281
      %v2634 = vunpack.c.l.b16 %v2282
      %v2635 = vunpack.c.l.b16 %v2283
      %v2636 = vunpack.c.l.b16 %v2284
      %v2637 = vunpack.c.l.b16 %v2285
      %v2638 = vpack.c.b16 %v2591, %v2590
      %v2639 = vpack.c.b16 %v2593, %v2592
      %v2640 = vpack.c.b16 %v2595, %v2594
      %v2641 = vpack.c.b16 %v2597, %v2596
      %v2642 = vpack.c.b16 %v2599, %v2598
      %v2643 = vpack.c.b16 %v2601, %v2600
      %v2644 = vpack.c.b16 %v2603, %v2602
      %v2645 = vpack.c.b16 %v2605, %v2604
      %v2646 = vpack.c.b16 %v2607, %v2606
      %v2647 = vpack.c.b16 %v2609, %v2608
      %v2648 = vpack.c.b16 %v2611, %v2610
      %v2649 = vpack.c.b16 %v2613, %v2612
      %v2650 = vpack.c.b16 %v2615, %v2614
      %v2651 = vpack.c.b16 %v2617, %v2616
      %v2652 = vpack.c.b16 %v2619, %v2618
      %v2653 = vpack.c.b16 %v2621, %v2620
      %v2654 = vpack.c.b16 %v2623, %v2622
      %v2655 = vpack.c.b16 %v2625, %v2624
      %v2656 = vpack.c.b16 %v2627, %v2626
      %v2657 = vpack.c.b16 %v2629, %v2628
      %v2658 = vpack.c.b16 %v2631, %v2630
      %v2659 = vpack.c.b16 %v2633, %v2632
      %v2660 = vpack.c.b16 %v2635, %v2634
      %v2661 = vpack.c.b16 %v2637, %v2636
      %2686 = vmatprep.subr.bf16.mxu0 0
      %2687 = vmatpush1.bf16.msra.mxu0 %v2645
      %2688 = vmatprep.subr.bf16.mxu0 0
      %2689 = vmatpush1.bf16.msra.mxu0 %v2644
      %2690 = vmatprep.subr.bf16.mxu0 0
      %2691 = vmatpush1.bf16.msra.mxu0 %v2643
      %2692 = vmatprep.subr.bf16.mxu0 0
      %2693 = vmatpush1.bf16.msra.mxu0 %v2642
      %2694 = vmatprep.subr.bf16.mxu0 0
      %2695 = vmatpush1.bf16.msra.mxu0 %v2641
      %2696 = vmatprep.subr.bf16.mxu0 0
      %2697 = vmatpush1.bf16.msra.mxu0 %v2640
      %2698 = vmatprep.subr.bf16.mxu0 0
      %2699 = vmatpush1.bf16.msra.mxu0 %v2639
      %2700 = vmatprep.subr.bf16.mxu0 0
      %2701 = vmatpush1.bf16.msra.mxu0 %v2638
      %2702 = vmatprep.subr.bf16.mxu0 0
      %2703 = vmatpush2.bf16.msra.mxu0 %v2653
      %2704 = vmatprep.subr.bf16.mxu0 0
      %2705 = vmatpush2.bf16.msra.mxu0 %v2652
      %2706 = vmatprep.subr.bf16.mxu0 0
      %2707 = vmatpush2.bf16.msra.mxu0 %v2651
      %2708 = vmatprep.subr.bf16.mxu0 0
      %2709 = vmatpush2.bf16.msra.mxu0 %v2650
      %2710 = vmatprep.subr.bf16.mxu0 0
      %2711 = vmatpush2.bf16.msra.mxu0 %v2649
      %2712 = vmatprep.subr.bf16.mxu0 0
      %2713 = vmatpush2.bf16.msra.mxu0 %v2648
      %2714 = vmatprep.subr.bf16.mxu0 0
      %2715 = vmatpush2.bf16.msra.mxu0 %v2647
      %2716 = vmatprep.subr.bf16.mxu0 0
      %2717 = vmatpush2.bf16.msra.mxu0 %v2646
      %2718 = vmatprep.mubr.bf16.mxu0 %v2447
      %2719 = vmatmul.mubr.bf16.gmra.mxu0 %v2446
      %v2720 = vpop.f32.mrf.mxu0
      %v2721 = vadd.f32 0.0, %v2720
      %v2722 = vpop.f32.mrf.mxu0
      %v2723 = vpop.f32.mrf.mxu0
      %v2724 = vadd.f32 0.0, %v2723
      %v2725 = vpop.f32.mrf.mxu0
      %2726 = vmatprep.mubr.bf16.mxu0 %v2450
      %2727 = vmatmul.mubr.bf16.gmra.mxu0 %v2449
      %v2728 = vpop.f32.mrf.mxu0
      %v2729 = vadd.f32 0.0, %v2728
      %v2730 = vpop.f32.mrf.mxu0
      %v2731 = vpop.f32.mrf.mxu0
      %v2732 = vadd.f32 0.0, %v2731
      %v2733 = vpop.f32.mrf.mxu0
      %2734 = vmatprep.mubr.bf16.mxu0 %v2453
      %2735 = vmatmul.mubr.bf16.gmra.mxu0 %v2452
      %v2736 = vpop.f32.mrf.mxu0
      %v2737 = vadd.f32 0.0, %v2736
      %v2738 = vpop.f32.mrf.mxu0
      %v2739 = vpop.f32.mrf.mxu0
      %v2740 = vadd.f32 0.0, %v2739
      %v2741 = vpop.f32.mrf.mxu0
      %2742 = vmatprep.mubr.bf16.mxu0 %v2456
      %2743 = vmatmul.mubr.bf16.gmra.mxu0 %v2455
      %v2744 = vpop.f32.mrf.mxu0
      %v2745 = vadd.f32 0.0, %v2744
      %v2746 = vpop.f32.mrf.mxu0
      %v2747 = vpop.f32.mrf.mxu0
      %v2748 = vadd.f32 0.0, %v2747
      %v2749 = vpop.f32.mrf.mxu0
      %2750 = vmatprep.mubr.bf16.mxu0 %v2459
      %2751 = vmatmul.mubr.bf16.gmra.mxu0 %v2458
      %v2752 = vpop.f32.mrf.mxu0
      %v2753 = vadd.f32 0.0, %v2752
      %v2754 = vpop.f32.mrf.mxu0
      %v2755 = vpop.f32.mrf.mxu0
      %v2756 = vadd.f32 0.0, %v2755
      %v2757 = vpop.f32.mrf.mxu0
      %2758 = vmatprep.mubr.bf16.mxu0 %v2462
      %2759 = vmatmul.mubr.bf16.gmra.mxu0 %v2461
      %v2760 = vpop.f32.mrf.mxu0
      %v2761 = vadd.f32 0.0, %v2760
      %v2762 = vpop.f32.mrf.mxu0
      %v2763 = vpop.f32.mrf.mxu0
      %v2764 = vadd.f32 0.0, %v2763
      %v2765 = vpop.f32.mrf.mxu0
      %2766 = vmatprep.mubr.bf16.mxu0 %v2465
      %2767 = vmatmul.mubr.bf16.gmra.mxu0 %v2464
      %v2768 = vpop.f32.mrf.mxu0
      %v2769 = vadd.f32 0.0, %v2768
      %v2770 = vpop.f32.mrf.mxu0
      %v2771 = vpop.f32.mrf.mxu0
      %v2772 = vadd.f32 0.0, %v2771
      %v2773 = vpop.f32.mrf.mxu0
      %2774 = vmatprep.mubr.bf16.mxu0 %v2468
      %2775 = vmatmul.mubr.bf16.gmra.mxu0 %v2467
      %v2776 = vpop.f32.mrf.mxu0
      %v2777 = vadd.f32 0.0, %v2776
      %v2778 = vpop.f32.mrf.mxu0
      %v2779 = vpop.f32.mrf.mxu0
      %v2780 = vadd.f32 0.0, %v2779
      %v2781 = vpop.f32.mrf.mxu0
      %2782 = vmatprep.mubr.bf16.mxu0 %v2471
      %2783 = vmatmul.mubr.bf16.gmra.mxu0 %v2470
      %v2784 = vpop.f32.mrf.mxu0
      %v2785 = vadd.f32 0.0, %v2784
      %v2786 = vpop.f32.mrf.mxu0
      %v2787 = vpop.f32.mrf.mxu0
      %v2788 = vadd.f32 0.0, %v2787
      %v2789 = vpop.f32.mrf.mxu0
      %2790 = vmatprep.mubr.bf16.mxu0 %v2474
      %2791 = vmatmul.mubr.bf16.gmra.mxu0 %v2473
      %v2792 = vpop.f32.mrf.mxu0
      %v2793 = vadd.f32 0.0, %v2792
      %v2794 = vpop.f32.mrf.mxu0
      %v2795 = vpop.f32.mrf.mxu0
      %v2796 = vadd.f32 0.0, %v2795
      %v2797 = vpop.f32.mrf.mxu0
      %2798 = vmatprep.mubr.bf16.mxu0 %v2477
      %2799 = vmatmul.mubr.bf16.gmra.mxu0 %v2476
      %v2800 = vpop.f32.mrf.mxu0
      %v2801 = vadd.f32 0.0, %v2800
      %v2802 = vpop.f32.mrf.mxu0
      %v2803 = vpop.f32.mrf.mxu0
      %v2804 = vadd.f32 0.0, %v2803
      %v2805 = vpop.f32.mrf.mxu0
      %2806 = vmatprep.mubr.bf16.mxu0 %v2480
      %2807 = vmatmul.mubr.bf16.gmra.mxu0 %v2479
      %v2808 = vpop.f32.mrf.mxu0
      %v2809 = vadd.f32 0.0, %v2808
      %v2810 = vpop.f32.mrf.mxu0
      %v2811 = vpop.f32.mrf.mxu0
      %v2812 = vadd.f32 0.0, %v2811
      %v2813 = vpop.f32.mrf.mxu0
      %2814 = vmatprep.mubr.bf16.mxu0 %v2483
      %2815 = vmatmul.mubr.bf16.gmra.mxu0 %v2482
      %v2816 = vpop.f32.mrf.mxu0
      %v2817 = vadd.f32 0.0, %v2816
      %v2818 = vpop.f32.mrf.mxu0
      %v2819 = vpop.f32.mrf.mxu0
      %v2820 = vadd.f32 0.0, %v2819
      %v2821 = vpop.f32.mrf.mxu0
      %2822 = vmatprep.mubr.bf16.mxu0 %v2486
      %2823 = vmatmul.mubr.bf16.gmra.mxu0 %v2485
      %v2824 = vpop.f32.mrf.mxu0
      %v2825 = vadd.f32 0.0, %v2824
      %v2826 = vpop.f32.mrf.mxu0
      %v2827 = vpop.f32.mrf.mxu0
      %v2828 = vadd.f32 0.0, %v2827
      %v2829 = vpop.f32.mrf.mxu0
      %2830 = vmatprep.mubr.bf16.mxu0 %v2489
      %2831 = vmatmul.mubr.bf16.gmra.mxu0 %v2488
      %v2832 = vpop.f32.mrf.mxu0
      %v2833 = vadd.f32 0.0, %v2832
      %v2834 = vpop.f32.mrf.mxu0
      %v2835 = vpop.f32.mrf.mxu0
      %v2836 = vadd.f32 0.0, %v2835
      %v2837 = vpop.f32.mrf.mxu0
      %2838 = vmatprep.mubr.bf16.mxu0 %v2492
      %2839 = vmatmul.mubr.bf16.gmra.mxu0 %v2491
      %v2840 = vpop.f32.mrf.mxu0
      %v2841 = vadd.f32 0.0, %v2840
      %v2842 = vpop.f32.mrf.mxu0
      %v2843 = vpop.f32.mrf.mxu0
      %v2844 = vadd.f32 0.0, %v2843
      %v2845 = vpop.f32.mrf.mxu0
      %2846 = vdwg.mxu0
      %2847 = vmatprep.subr.bf16.mxu0 0
      %2848 = vmatpush1.bf16.msra.mxu0 %v2661
      %2849 = vmatprep.subr.bf16.mxu0 0
      %2850 = vmatpush1.bf16.msra.mxu0 %v2660
      %2851 = vmatprep.subr.bf16.mxu0 0
      %2852 = vmatpush1.bf16.msra.mxu0 %v2659
      %2853 = vmatprep.subr.bf16.mxu0 0
      %2854 = vmatpush1.bf16.msra.mxu0 %v2658
      %2855 = vmatprep.subr.bf16.mxu0 0
      %2856 = vmatpush1.bf16.msra.mxu0 %v2657
      %2857 = vmatprep.subr.bf16.mxu0 0
      %2858 = vmatpush1.bf16.msra.mxu0 %v2656
      %2859 = vmatprep.subr.bf16.mxu0 0
      %2860 = vmatpush1.bf16.msra.mxu0 %v2655
      %2861 = vmatprep.subr.bf16.mxu0 0
      %2862 = vmatpush1.bf16.msra.mxu0 %v2654
      %2863 = vmatprep.subr.bf16.mxu0 0
      %2864 = vmatpush2.bf16.msra.mxu0 0
      %2865 = vmatprep.subr.bf16.mxu0 0
      %2866 = vmatpush2.bf16.msra.mxu0 0
      %2867 = vmatprep.subr.bf16.mxu0 0
      %2868 = vmatpush2.bf16.msra.mxu0 0
      %2869 = vmatprep.subr.bf16.mxu0 0
      %2870 = vmatpush2.bf16.msra.mxu0 0
      %2871 = vmatprep.subr.bf16.mxu0 0
      %2872 = vmatpush2.bf16.msra.mxu0 0
      %2873 = vmatprep.subr.bf16.mxu0 0
      %2874 = vmatpush2.bf16.msra.mxu0 0
      %2875 = vmatprep.subr.bf16.mxu0 0
      %2876 = vmatpush2.bf16.msra.mxu0 0
      %2877 = vmatprep.subr.bf16.mxu0 0
      %2878 = vmatpush2.bf16.msra.mxu0 0
      %2879 = vmatprep.mubr.bf16.mxu0 0
      %2880 = vmatmul.mubr.bf16.gmra.mxu0 %v2448
      %v2881 = vpop.f32.mrf.mxu0
      %v2882 = vadd.f32 %v2721, %v2881
      %v2883 = vpop.f32.mrf.mxu0
      %v2884 = vpop.f32.mrf.mxu0
      %v2885 = vadd.f32 %v2724, %v2884
      %v2886 = vpop.f32.mrf.mxu0
      %2887 = vmatprep.mubr.bf16.mxu0 0
      %2888 = vmatmul.mubr.bf16.gmra.mxu0 %v2451
      %v2889 = vpop.f32.mrf.mxu0
      %v2890 = vadd.f32 %v2729, %v2889
      %v2891 = vpop.f32.mrf.mxu0
      %v2892 = vpop.f32.mrf.mxu0
      %v2893 = vadd.f32 %v2732, %v2892
      %v2894 = vpop.f32.mrf.mxu0
      %2895 = vmatprep.mubr.bf16.mxu0 0
      %2896 = vmatmul.mubr.bf16.gmra.mxu0 %v2454
      %v2897 = vpop.f32.mrf.mxu0
      %v2898 = vadd.f32 %v2737, %v2897
      %v2899 = vpop.f32.mrf.mxu0
      %v2900 = vpop.f32.mrf.mxu0
      %v2901 = vadd.f32 %v2740, %v2900
      %v2902 = vpop.f32.mrf.mxu0
      %2903 = vmatprep.mubr.bf16.mxu0 0
      %2904 = vmatmul.mubr.bf16.gmra.mxu0 %v2457
      %v2905 = vpop.f32.mrf.mxu0
      %v2906 = vadd.f32 %v2745, %v2905
      %v2907 = vpop.f32.mrf.mxu0
      %v2908 = vpop.f32.mrf.mxu0
      %v2909 = vadd.f32 %v2748, %v2908
      %v2910 = vpop.f32.mrf.mxu0
      %2911 = vmatprep.mubr.bf16.mxu0 0
      %2912 = vmatmul.mubr.bf16.gmra.mxu0 %v2460
      %v2913 = vpop.f32.mrf.mxu0
      %v2914 = vadd.f32 %v2753, %v2913
      %v2915 = vpop.f32.mrf.mxu0
      %v2916 = vpop.f32.mrf.mxu0
      %v2917 = vadd.f32 %v2756, %v2916
      %v2918 = vpop.f32.mrf.mxu0
      %2919 = vmatprep.mubr.bf16.mxu0 0
      %2920 = vmatmul.mubr.bf16.gmra.mxu0 %v2463
      %v2921 = vpop.f32.mrf.mxu0
      %v2922 = vadd.f32 %v2761, %v2921
      %v2923 = vpop.f32.mrf.mxu0
      %v2924 = vpop.f32.mrf.mxu0
      %v2925 = vadd.f32 %v2764, %v2924
      %v2926 = vpop.f32.mrf.mxu0
      %2927 = vmatprep.mubr.bf16.mxu0 0
      %2928 = vmatmul.mubr.bf16.gmra.mxu0 %v2466
      %v2929 = vpop.f32.mrf.mxu0
      %v2930 = vadd.f32 %v2769, %v2929
      %v2931 = vpop.f32.mrf.mxu0
      %v2932 = vpop.f32.mrf.mxu0
      %v2933 = vadd.f32 %v2772, %v2932
      %v2934 = vpop.f32.mrf.mxu0
      %2935 = vmatprep.mubr.bf16.mxu0 0
      %2936 = vmatmul.mubr.bf16.gmra.mxu0 %v2469
      %v2937 = vpop.f32.mrf.mxu0
      %v2938 = vadd.f32 %v2777, %v2937
      %v2939 = vpop.f32.mrf.mxu0
      %v2940 = vpop.f32.mrf.mxu0
      %v2941 = vadd.f32 %v2780, %v2940
      %v2942 = vpop.f32.mrf.mxu0
      %2943 = vmatprep.mubr.bf16.mxu0 0
      %2944 = vmatmul.mubr.bf16.gmra.mxu0 %v2472
      %v2945 = vpop.f32.mrf.mxu0
      %v2946 = vadd.f32 %v2785, %v2945
      %v2947 = vpop.f32.mrf.mxu0
      %v2948 = vpop.f32.mrf.mxu0
      %v2949 = vadd.f32 %v2788, %v2948
      %v2950 = vpop.f32.mrf.mxu0
      %2951 = vmatprep.mubr.bf16.mxu0 0
      %2952 = vmatmul.mubr.bf16.gmra.mxu0 %v2475
      %v2953 = vpop.f32.mrf.mxu0
      %v2954 = vadd.f32 %v2793, %v2953
      %v2955 = vpop.f32.mrf.mxu0
      %v2956 = vpop.f32.mrf.mxu0
      %v2957 = vadd.f32 %v2796, %v2956
      %v2958 = vpop.f32.mrf.mxu0
      %2959 = vmatprep.mubr.bf16.mxu0 0
      %2960 = vmatmul.mubr.bf16.gmra.mxu0 %v2478
      %v2961 = vpop.f32.mrf.mxu0
      %v2962 = vadd.f32 %v2801, %v2961
      %v2963 = vpop.f32.mrf.mxu0
      %v2964 = vpop.f32.mrf.mxu0
      %v2965 = vadd.f32 %v2804, %v2964
      %v2966 = vpop.f32.mrf.mxu0
      %2967 = vmatprep.mubr.bf16.mxu0 0
      %2968 = vmatmul.mubr.bf16.gmra.mxu0 %v2481
      %v2969 = vpop.f32.mrf.mxu0
      %v2970 = vadd.f32 %v2809, %v2969
      %v2971 = vpop.f32.mrf.mxu0
      %v2972 = vpop.f32.mrf.mxu0
      %v2973 = vadd.f32 %v2812, %v2972
      %v2974 = vpop.f32.mrf.mxu0
      %2975 = vmatprep.mubr.bf16.mxu0 0
      %2976 = vmatmul.mubr.bf16.gmra.mxu0 %v2484
      %v2977 = vpop.f32.mrf.mxu0
      %v2978 = vadd.f32 %v2817, %v2977
      %v2979 = vpop.f32.mrf.mxu0
      %v2980 = vpop.f32.mrf.mxu0
      %v2981 = vadd.f32 %v2820, %v2980
      %v2982 = vpop.f32.mrf.mxu0
      %2983 = vmatprep.mubr.bf16.mxu0 0
      %2984 = vmatmul.mubr.bf16.gmra.mxu0 %v2487
      %v2985 = vpop.f32.mrf.mxu0
      %v2986 = vadd.f32 %v2825, %v2985
      %v2987 = vpop.f32.mrf.mxu0
      %v2988 = vpop.f32.mrf.mxu0
      %v2989 = vadd.f32 %v2828, %v2988
      %v2990 = vpop.f32.mrf.mxu0
      %2991 = vmatprep.mubr.bf16.mxu0 0
      %2992 = vmatmul.mubr.bf16.gmra.mxu0 %v2490
      %v2993 = vpop.f32.mrf.mxu0
      %v2994 = vadd.f32 %v2833, %v2993
      %v2995 = vpop.f32.mrf.mxu0
      %v2996 = vpop.f32.mrf.mxu0
      %v2997 = vadd.f32 %v2836, %v2996
      %v2998 = vpop.f32.mrf.mxu0
      %2999 = vmatprep.mubr.bf16.mxu0 0
      %3000 = vmatmul.mubr.bf16.gmra.mxu0 %v2493
      %v3001 = vpop.f32.mrf.mxu0
      %v3002 = vadd.f32 %v2841, %v3001
      %v3003 = vpop.f32.mrf.mxu0
      %v3004 = vpop.f32.mrf.mxu0
      %v3005 = vadd.f32 %v2844, %v3004
      %v3006 = vpop.f32.mrf.mxu0
      %3007 = vdwg.mxu0
      %v3008 = vadd.f32 %v2141, %v2882
      %v3009 = vadd.f32 %v2142, %v2885
      %v3010 = vadd.f32 %v2143, %v2890
      %v3011 = vadd.f32 %v2144, %v2893
      %v3012 = vadd.f32 %v2145, %v2898
      %v3013 = vadd.f32 %v2146, %v2901
      %v3014 = vadd.f32 %v2147, %v2906
      %v3015 = vadd.f32 %v2148, %v2909
      %v3016 = vadd.f32 %v2149, %v2914
      %v3017 = vadd.f32 %v2150, %v2917
      %v3018 = vadd.f32 %v2151, %v2922
      %v3019 = vadd.f32 %v2152, %v2925
      %v3020 = vadd.f32 %v2153, %v2930
      %v3021 = vadd.f32 %v2154, %v2933
      %v3022 = vadd.f32 %v2155, %v2938
      %v3023 = vadd.f32 %v2156, %v2941
      %v3024 = vadd.f32 %v2157, %v2946
      %v3025 = vadd.f32 %v2158, %v2949
      %v3026 = vadd.f32 %v2159, %v2954
      %v3027 = vadd.f32 %v2160, %v2957
      %v3028 = vadd.f32 %v2161, %v2962
      %v3029 = vadd.f32 %v2162, %v2965
      %v3030 = vadd.f32 %v2163, %v2970
      %v3031 = vadd.f32 %v2164, %v2973
      %v3032 = vadd.f32 %v2165, %v2978
      %v3033 = vadd.f32 %v2166, %v2981
      %v3034 = vadd.f32 %v2167, %v2986
      %v3035 = vadd.f32 %v2168, %v2989
      %v3036 = vadd.f32 %v2169, %v2994
      %v3037 = vadd.f32 %v2170, %v2997
      %v3038 = vadd.f32 %v2171, %v3002
      %v3039 = vadd.f32 %v2172, %v3005
      %3040 = vst [vmem:[#allocation3] sm:$0xff] %v3008
      %3041 = vst [vmem:[#allocation3 + $0x8] sm:$0xff] %v3009
      %3042 = vst [vmem:[#allocation3 + $0x10] sm:$0xff] %v3010
      %3043 = vst [vmem:[#allocation3 + $0x18] sm:$0xff] %v3011
      %3044 = vst [vmem:[#allocation3 + $0x20] sm:$0xff] %v3012
      %3045 = vst [vmem:[#allocation3 + $0x28] sm:$0xff] %v3013
      %3046 = vst [vmem:[#allocation3 + $0x30] sm:$0xff] %v3014
      %3047 = vst [vmem:[#allocation3 + $0x38] sm:$0xff] %v3015
      %3048 = vst [vmem:[#allocation3 + $0x40] sm:$0xff] %v3016
      %3049 = vst [vmem:[#allocation3 + $0x48] sm:$0xff] %v3017
      %3050 = vst [vmem:[#allocation3 + $0x50] sm:$0xff] %v3018
      %3051 = vst [vmem:[#allocation3 + $0x58] sm:$0xff] %v3019
      %3052 = vst [vmem:[#allocation3 + $0x60] sm:$0xff] %v3020
      %3053 = vst [vmem:[#allocation3 + $0x68] sm:$0xff] %v3021
      %3054 = vst [vmem:[#allocation3 + $0x70] sm:$0xff] %v3022
      %3055 = vst [vmem:[#allocation3 + $0x78] sm:$0xff] %v3023
      %3056 = vst [vmem:[#allocation3 + $0x80] sm:$0xff] %v3024
      %3057 = vst [vmem:[#allocation3 + $0x88] sm:$0xff] %v3025
      %3058 = vst [vmem:[#allocation3 + $0x90] sm:$0xff] %v3026
      %3059 = vst [vmem:[#allocation3 + $0x98] sm:$0xff] %v3027
      %3060 = vst [vmem:[#allocation3 + $0xa0] sm:$0xff] %v3028
      %3061 = vst [vmem:[#allocation3 + $0xa8] sm:$0xff] %v3029
      %3062 = vst [vmem:[#allocation3 + $0xb0] sm:$0xff] %v3030
      %3063 = vst [vmem:[#allocation3 + $0xb8] sm:$0xff] %v3031
      %3064 = vst [vmem:[#allocation3 + $0xc0] sm:$0xff] %v3032
      %3065 = vst [vmem:[#allocation3 + $0xc8] sm:$0xff] %v3033
      %3066 = vst [vmem:[#allocation3 + $0xd0] sm:$0xff] %v3034
      %3067 = vst [vmem:[#allocation3 + $0xd8] sm:$0xff] %v3035
      %3068 = vst [vmem:[#allocation3 + $0xe0] sm:$0xff] %v3036
      %3069 = vst [vmem:[#allocation3 + $0xe8] sm:$0xff] %v3037
      %3070 = vst [vmem:[#allocation3 + $0xf0] sm:$0xff] %v3038
      %3071 = vst [vmem:[#allocation3 + $0xf8] sm:$0xff] %v3039
      %v3072 = vld [vmem:[#allocation3] sm:$0xff]
      %v3073 = vld [vmem:[#allocation3 + $0x8] sm:$0xff]
      %v3074 = vld [vmem:[#allocation3 + $0x10] sm:$0xff]
      %v3075 = vld [vmem:[#allocation3 + $0x18] sm:$0xff]
      %v3076 = vld [vmem:[#allocation3 + $0x20] sm:$0xff]
      %v3077 = vld [vmem:[#allocation3 + $0x28] sm:$0xff]
      %v3078 = vld [vmem:[#allocation3 + $0x30] sm:$0xff]
      %v3079 = vld [vmem:[#allocation3 + $0x38] sm:$0xff]
      %v3080 = vld [vmem:[#allocation3 + $0x40] sm:$0xff]
      %v3081 = vld [vmem:[#allocation3 + $0x48] sm:$0xff]
      %v3082 = vld [vmem:[#allocation3 + $0x50] sm:$0xff]
      %v3083 = vld [vmem:[#allocation3 + $0x58] sm:$0xff]
      %v3084 = vld [vmem:[#allocation3 + $0x60] sm:$0xff]
      %v3085 = vld [vmem:[#allocation3 + $0x68] sm:$0xff]
      %v3086 = vld [vmem:[#allocation3 + $0x70] sm:$0xff]
      %v3087 = vld [vmem:[#allocation3 + $0x78] sm:$0xff]
      %v3088 = vld [vmem:[#allocation3 + $0x80] sm:$0xff]
      %v3089 = vld [vmem:[#allocation3 + $0x88] sm:$0xff]
      %v3090 = vld [vmem:[#allocation3 + $0x90] sm:$0xff]
      %v3091 = vld [vmem:[#allocation3 + $0x98] sm:$0xff]
      %v3092 = vld [vmem:[#allocation3 + $0xa0] sm:$0xff]
      %v3093 = vld [vmem:[#allocation3 + $0xa8] sm:$0xff]
      %v3094 = vld [vmem:[#allocation3 + $0xb0] sm:$0xff]
      %v3095 = vld [vmem:[#allocation3 + $0xb8] sm:$0xff]
      %v3096 = vld [vmem:[#allocation3 + $0xc0] sm:$0xff]
      %v3097 = vld [vmem:[#allocation3 + $0xc8] sm:$0xff]
      %v3098 = vld [vmem:[#allocation3 + $0xd0] sm:$0xff]
      %v3099 = vld [vmem:[#allocation3 + $0xd8] sm:$0xff]
      %v3100 = vld [vmem:[#allocation3 + $0xe0] sm:$0xff]
      %v3101 = vld [vmem:[#allocation3 + $0xe8] sm:$0xff]
      %v3102 = vld [vmem:[#allocation3 + $0xf0] sm:$0xff]
      %v3103 = vld [vmem:[#allocation3 + $0xf8] sm:$0xff]
      %s3104 = scalar_lea.vmem [#allocation2], 48
      %v3105 = vld [vmem:[%s3104] sm:$0xff]
      %v3106 = vld [vmem:[%s3104 + $0x8] sm:$0xf]
      %v3107 = vld [vmem:[%s3104 + $0xc] sm:$0xff]
      %v3108 = vld [vmem:[%s3104 + $0x14] sm:$0xf]
      %v3109 = vld [vmem:[%s3104 + $0x18] sm:$0xff]
      %v3110 = vld [vmem:[%s3104 + $0x20] sm:$0xf]
      %v3111 = vld [vmem:[%s3104 + $0x24] sm:$0xff]
      %v3112 = vld [vmem:[%s3104 + $0x2c] sm:$0xf]
      %v3113 = vld [vmem:[%s3104 + $0x30] sm:$0xff]
      %v3114 = vld [vmem:[%s3104 + $0x38] sm:$0xf]
      %v3115 = vld [vmem:[%s3104 + $0x3c] sm:$0xff]
      %v3116 = vld [vmem:[%s3104 + $0x44] sm:$0xf]
      %v3117 = vld [vmem:[%s3104 + $0x48] sm:$0xff]
      %v3118 = vld [vmem:[%s3104 + $0x50] sm:$0xf]
      %v3119 = vld [vmem:[%s3104 + $0x54] sm:$0xff]
      %v3120 = vld [vmem:[%s3104 + $0x5c] sm:$0xf]
      %v3121 = vld [vmem:[%s3104 + $0x60] sm:$0xff]
      %v3122 = vld [vmem:[%s3104 + $0x68] sm:$0xf]
      %v3123 = vld [vmem:[%s3104 + $0x6c] sm:$0xff]
      %v3124 = vld [vmem:[%s3104 + $0x74] sm:$0xf]
      %v3125 = vld [vmem:[%s3104 + $0x78] sm:$0xff]
      %v3126 = vld [vmem:[%s3104 + $0x80] sm:$0xf]
      %v3127 = vld [vmem:[%s3104 + $0x84] sm:$0xff]
      %v3128 = vld [vmem:[%s3104 + $0x8c] sm:$0xf]
      %v3129 = vld [vmem:[%s3104 + $0x90] sm:$0xff]
      %v3130 = vld [vmem:[%s3104 + $0x98] sm:$0xf]
      %v3131 = vld [vmem:[%s3104 + $0x9c] sm:$0xff]
      %v3132 = vld [vmem:[%s3104 + $0xa4] sm:$0xf]
      %v3133 = vld [vmem:[%s3104 + $0xa8] sm:$0xff]
      %v3134 = vld [vmem:[%s3104 + $0xb0] sm:$0xf]
      %v3135 = vld [vmem:[%s3104 + $0xb4] sm:$0xff]
      %v3136 = vld [vmem:[%s3104 + $0xbc] sm:$0xf]
      %v3137 = vld [vmem:[%s3104 + $0xc0] sm:$0xff]
      %v3138 = vld [vmem:[%s3104 + $0xc8] sm:$0xf]
      %v3139 = vld [vmem:[%s3104 + $0xcc] sm:$0xff]
      %v3140 = vld [vmem:[%s3104 + $0xd4] sm:$0xf]
      %v3141 = vld [vmem:[%s3104 + $0xd8] sm:$0xff]
      %v3142 = vld [vmem:[%s3104 + $0xe0] sm:$0xf]
      %v3143 = vld [vmem:[%s3104 + $0xe4] sm:$0xff]
      %v3144 = vld [vmem:[%s3104 + $0xec] sm:$0xf]
      %v3145 = vld [vmem:[%s3104 + $0xf0] sm:$0xff]
      %v3146 = vld [vmem:[%s3104 + $0xf8] sm:$0xf]
      %v3147 = vld [vmem:[%s3104 + $0xfc] sm:$0xff]
      %v3148 = vld [vmem:[%s3104 + $0x104] sm:$0xf]
      %v3149 = vld [vmem:[%s3104 + $0x108] sm:$0xff]
      %v3150 = vld [vmem:[%s3104 + $0x110] sm:$0xf]
      %v3151 = vld [vmem:[%s3104 + $0x114] sm:$0xff]
      %v3152 = vld [vmem:[%s3104 + $0x11c] sm:$0xf]
      %v3153 = vld [vmem:[%s3104 + $0x120] sm:$0xff]
      %v3154 = vld [vmem:[%s3104 + $0x128] sm:$0xf]
      %v3155 = vld [vmem:[%s3104 + $0x12c] sm:$0xff]
      %v3156 = vld [vmem:[%s3104 + $0x134] sm:$0xf]
      %v3157 = vld [vmem:[%s3104 + $0x138] sm:$0xff]
      %v3158 = vld [vmem:[%s3104 + $0x140] sm:$0xf]
      %v3159 = vld [vmem:[%s3104 + $0x144] sm:$0xff]
      %v3160 = vld [vmem:[%s3104 + $0x14c] sm:$0xf]
      %v3161 = vld [vmem:[%s3104 + $0x150] sm:$0xff]
      %v3162 = vld [vmem:[%s3104 + $0x158] sm:$0xf]
      %v3163 = vld [vmem:[%s3104 + $0x15c] sm:$0xff]
      %v3164 = vld [vmem:[%s3104 + $0x164] sm:$0xf]
      %v3165 = vld [vmem:[%s3104 + $0x168] sm:$0xff]
      %v3166 = vld [vmem:[%s3104 + $0x170] sm:$0xf]
      %v3167 = vld [vmem:[%s3104 + $0x174] sm:$0xff]
      %v3168 = vld [vmem:[%s3104 + $0x17c] sm:$0xf]
      %s3169 = scalar_lea.vmem %s4, 384
      %v3170 = vld [vmem:[%s3169] sm:$0xf]
      %v3171 = vld [vmem:[%s3169 + $0x4] sm:$0xf]
      %v3172 = vld [vmem:[%s3169 + $0x8] sm:$0xf]
      %v3173 = vld [vmem:[%s3169 + $0xc] sm:$0xf]
      %v3174 = vld [vmem:[%s3169 + $0x10] sm:$0xf]
      %v3175 = vld [vmem:[%s3169 + $0x14] sm:$0xf]
      %v3176 = vld [vmem:[%s3169 + $0x18] sm:$0xf]
      %v3177 = vld [vmem:[%s3169 + $0x1c] sm:$0xf]
      %v3178 = vld [vmem:[%s3169 + $0x20] sm:$0xf]
      %v3179 = vld [vmem:[%s3169 + $0x24] sm:$0xf]
      %v3180 = vld [vmem:[%s3169 + $0x28] sm:$0xf]
      %v3181 = vld [vmem:[%s3169 + $0x2c] sm:$0xf]
      %v3182 = vld [vmem:[%s3169 + $0x30] sm:$0xf]
      %v3183 = vld [vmem:[%s3169 + $0x34] sm:$0xf]
      %v3184 = vld [vmem:[%s3169 + $0x38] sm:$0xf]
      %v3185 = vld [vmem:[%s3169 + $0x3c] sm:$0xf]
      %v3186 = vld [vmem:[%s3169 + $0x40] sm:$0xf]
      %v3187 = vld [vmem:[%s3169 + $0x44] sm:$0xf]
      %v3188 = vld [vmem:[%s3169 + $0x48] sm:$0xf]
      %v3189 = vld [vmem:[%s3169 + $0x4c] sm:$0xf]
      %v3190 = vld [vmem:[%s3169 + $0x50] sm:$0xf]
      %v3191 = vld [vmem:[%s3169 + $0x54] sm:$0xf]
      %v3192 = vld [vmem:[%s3169 + $0x58] sm:$0xf]
      %v3193 = vld [vmem:[%s3169 + $0x5c] sm:$0xf]
      %v3194 = vld [vmem:[%s3169 + $0x60] sm:$0xf]
      %v3195 = vld [vmem:[%s3169 + $0x64] sm:$0xf]
      %v3196 = vld [vmem:[%s3169 + $0x68] sm:$0xf]
      %v3197 = vld [vmem:[%s3169 + $0x6c] sm:$0xf]
      %v3198 = vld [vmem:[%s3169 + $0x70] sm:$0xf]
      %v3199 = vld [vmem:[%s3169 + $0x74] sm:$0xf]
      %v3200 = vld [vmem:[%s3169 + $0x78] sm:$0xf]
      %v3201 = vld [vmem:[%s3169 + $0x7c] sm:$0xf]
      %v3202 = vld [vmem:[%s3169 + $0x80] sm:$0xf]
      %v3203 = vld [vmem:[%s3169 + $0x84] sm:$0xf]
      %v3204 = vld [vmem:[%s3169 + $0x88] sm:$0xf]
      %v3205 = vld [vmem:[%s3169 + $0x8c] sm:$0xf]
      %v3206 = vld [vmem:[%s3169 + $0x90] sm:$0xf]
      %v3207 = vld [vmem:[%s3169 + $0x94] sm:$0xf]
      %v3208 = vld [vmem:[%s3169 + $0x98] sm:$0xf]
      %v3209 = vld [vmem:[%s3169 + $0x9c] sm:$0xf]
      %v3210 = vld [vmem:[%s3169 + $0xa0] sm:$0xf]
      %v3211 = vld [vmem:[%s3169 + $0xa4] sm:$0xf]
      %v3212 = vld [vmem:[%s3169 + $0xa8] sm:$0xf]
      %v3213 = vld [vmem:[%s3169 + $0xac] sm:$0xf]
      %v3214 = vld [vmem:[%s3169 + $0xb0] sm:$0xf]
      %v3215 = vld [vmem:[%s3169 + $0xb4] sm:$0xf]
      %v3216 = vld [vmem:[%s3169 + $0xb8] sm:$0xf]
      %v3217 = vld [vmem:[%s3169 + $0xbc] sm:$0xf]
      %v3282 = vunpack.c.l.b16 %v3105
      %v3283 = vunpack.c.h.b16 %v3105
      %v3284 = vunpack.c.l.b16 %v3106
      %v3285 = vunpack.c.l.b16 %v3107
      %v3286 = vunpack.c.h.b16 %v3107
      %v3287 = vunpack.c.l.b16 %v3108
      %v3288 = vunpack.c.l.b16 %v3109
      %v3289 = vunpack.c.h.b16 %v3109
      %v3290 = vunpack.c.l.b16 %v3110
      %v3291 = vunpack.c.l.b16 %v3111
      %v3292 = vunpack.c.h.b16 %v3111
      %v3293 = vunpack.c.l.b16 %v3112
      %v3294 = vunpack.c.l.b16 %v3113
      %v3295 = vunpack.c.h.b16 %v3113
      %v3296 = vunpack.c.l.b16 %v3114
      %v3297 = vunpack.c.l.b16 %v3115
      %v3298 = vunpack.c.h.b16 %v3115
      %v3299 = vunpack.c.l.b16 %v3116
      %v3300 = vunpack.c.l.b16 %v3117
      %v3301 = vunpack.c.h.b16 %v3117
      %v3302 = vunpack.c.l.b16 %v3118
      %v3303 = vunpack.c.l.b16 %v3119
      %v3304 = vunpack.c.h.b16 %v3119
      %v3305 = vunpack.c.l.b16 %v3120
      %v3306 = vunpack.c.l.b16 %v3121
      %v3307 = vunpack.c.h.b16 %v3121
      %v3308 = vunpack.c.l.b16 %v3122
      %v3309 = vunpack.c.l.b16 %v3123
      %v3310 = vunpack.c.h.b16 %v3123
      %v3311 = vunpack.c.l.b16 %v3124
      %v3312 = vunpack.c.l.b16 %v3125
      %v3313 = vunpack.c.h.b16 %v3125
      %v3314 = vunpack.c.l.b16 %v3126
      %v3315 = vunpack.c.l.b16 %v3127
      %v3316 = vunpack.c.h.b16 %v3127
      %v3317 = vunpack.c.l.b16 %v3128
      %v3318 = vunpack.c.l.b16 %v3129
      %v3319 = vunpack.c.h.b16 %v3129
      %v3320 = vunpack.c.l.b16 %v3130
      %v3321 = vunpack.c.l.b16 %v3131
      %v3322 = vunpack.c.h.b16 %v3131
      %v3323 = vunpack.c.l.b16 %v3132
      %v3324 = vunpack.c.l.b16 %v3133
      %v3325 = vunpack.c.h.b16 %v3133
      %v3326 = vunpack.c.l.b16 %v3134
      %v3327 = vunpack.c.l.b16 %v3135
      %v3328 = vunpack.c.h.b16 %v3135
      %v3329 = vunpack.c.l.b16 %v3136
      %v3330 = vunpack.c.l.b16 %v3137
      %v3331 = vunpack.c.h.b16 %v3137
      %v3332 = vunpack.c.l.b16 %v3138
      %v3333 = vunpack.c.l.b16 %v3139
      %v3334 = vunpack.c.h.b16 %v3139
      %v3335 = vunpack.c.l.b16 %v3140
      %v3336 = vunpack.c.l.b16 %v3141
      %v3337 = vunpack.c.h.b16 %v3141
      %v3338 = vunpack.c.l.b16 %v3142
      %v3339 = vunpack.c.l.b16 %v3143
      %v3340 = vunpack.c.h.b16 %v3143
      %v3341 = vunpack.c.l.b16 %v3144
      %v3342 = vunpack.c.l.b16 %v3145
      %v3343 = vunpack.c.h.b16 %v3145
      %v3344 = vunpack.c.l.b16 %v3146
      %v3345 = vunpack.c.l.b16 %v3147
      %v3346 = vunpack.c.h.b16 %v3147
      %v3347 = vunpack.c.l.b16 %v3148
      %v3348 = vunpack.c.l.b16 %v3149
      %v3349 = vunpack.c.h.b16 %v3149
      %v3350 = vunpack.c.l.b16 %v3150
      %v3351 = vunpack.c.l.b16 %v3151
      %v3352 = vunpack.c.h.b16 %v3151
      %v3353 = vunpack.c.l.b16 %v3152
      %v3354 = vunpack.c.l.b16 %v3153
      %v3355 = vunpack.c.h.b16 %v3153
      %v3356 = vunpack.c.l.b16 %v3154
      %v3357 = vunpack.c.l.b16 %v3155
      %v3358 = vunpack.c.h.b16 %v3155
      %v3359 = vunpack.c.l.b16 %v3156
      %v3360 = vunpack.c.l.b16 %v3157
      %v3361 = vunpack.c.h.b16 %v3157
      %v3362 = vunpack.c.l.b16 %v3158
      %v3363 = vunpack.c.l.b16 %v3159
      %v3364 = vunpack.c.h.b16 %v3159
      %v3365 = vunpack.c.l.b16 %v3160
      %v3366 = vunpack.c.l.b16 %v3161
      %v3367 = vunpack.c.h.b16 %v3161
      %v3368 = vunpack.c.l.b16 %v3162
      %v3369 = vunpack.c.l.b16 %v3163
      %v3370 = vunpack.c.h.b16 %v3163
      %v3371 = vunpack.c.l.b16 %v3164
      %v3372 = vunpack.c.l.b16 %v3165
      %v3373 = vunpack.c.h.b16 %v3165
      %v3374 = vunpack.c.l.b16 %v3166
      %v3375 = vunpack.c.l.b16 %v3167
      %v3376 = vunpack.c.h.b16 %v3167
      %v3377 = vunpack.c.l.b16 %v3168
      %v3378 = vpack.c.b16 %v3285, %v3282
      %v3379 = vpack.c.b16 %v3286, %v3283
      %v3380 = vpack.c.b16 %v3287, %v3284
      %v3381 = vpack.c.b16 %v3291, %v3288
      %v3382 = vpack.c.b16 %v3292, %v3289
      %v3383 = vpack.c.b16 %v3293, %v3290
      %v3384 = vpack.c.b16 %v3297, %v3294
      %v3385 = vpack.c.b16 %v3298, %v3295
      %v3386 = vpack.c.b16 %v3299, %v3296
      %v3387 = vpack.c.b16 %v3303, %v3300
      %v3388 = vpack.c.b16 %v3304, %v3301
      %v3389 = vpack.c.b16 %v3305, %v3302
      %v3390 = vpack.c.b16 %v3309, %v3306
      %v3391 = vpack.c.b16 %v3310, %v3307
      %v3392 = vpack.c.b16 %v3311, %v3308
      %v3393 = vpack.c.b16 %v3315, %v3312
      %v3394 = vpack.c.b16 %v3316, %v3313
      %v3395 = vpack.c.b16 %v3317, %v3314
      %v3396 = vpack.c.b16 %v3321, %v3318
      %v3397 = vpack.c.b16 %v3322, %v3319
      %v3398 = vpack.c.b16 %v3323, %v3320
      %v3399 = vpack.c.b16 %v3327, %v3324
      %v3400 = vpack.c.b16 %v3328, %v3325
      %v3401 = vpack.c.b16 %v3329, %v3326
      %v3402 = vpack.c.b16 %v3333, %v3330
      %v3403 = vpack.c.b16 %v3334, %v3331
      %v3404 = vpack.c.b16 %v3335, %v3332
      %v3405 = vpack.c.b16 %v3339, %v3336
      %v3406 = vpack.c.b16 %v3340, %v3337
      %v3407 = vpack.c.b16 %v3341, %v3338
      %v3408 = vpack.c.b16 %v3345, %v3342
      %v3409 = vpack.c.b16 %v3346, %v3343
      %v3410 = vpack.c.b16 %v3347, %v3344
      %v3411 = vpack.c.b16 %v3351, %v3348
      %v3412 = vpack.c.b16 %v3352, %v3349
      %v3413 = vpack.c.b16 %v3353, %v3350
      %v3414 = vpack.c.b16 %v3357, %v3354
      %v3415 = vpack.c.b16 %v3358, %v3355
      %v3416 = vpack.c.b16 %v3359, %v3356
      %v3417 = vpack.c.b16 %v3363, %v3360
      %v3418 = vpack.c.b16 %v3364, %v3361
      %v3419 = vpack.c.b16 %v3365, %v3362
      %v3420 = vpack.c.b16 %v3369, %v3366
      %v3421 = vpack.c.b16 %v3370, %v3367
      %v3422 = vpack.c.b16 %v3371, %v3368
      %v3423 = vpack.c.b16 %v3375, %v3372
      %v3424 = vpack.c.b16 %v3376, %v3373
      %v3425 = vpack.c.b16 %v3377, %v3374
      %v3522 = vunpack.c.l.b16 %v3170
      %v3523 = vunpack.c.l.b16 %v3171
      %v3524 = vunpack.c.l.b16 %v3172
      %v3525 = vunpack.c.l.b16 %v3173
      %v3526 = vunpack.c.l.b16 %v3174
      %v3527 = vunpack.c.l.b16 %v3175
      %v3528 = vunpack.c.l.b16 %v3176
      %v3529 = vunpack.c.l.b16 %v3177
      %v3530 = vunpack.c.l.b16 %v3178
      %v3531 = vunpack.c.l.b16 %v3179
      %v3532 = vunpack.c.l.b16 %v3180
      %v3533 = vunpack.c.l.b16 %v3181
      %v3534 = vunpack.c.l.b16 %v3182
      %v3535 = vunpack.c.l.b16 %v3183
      %v3536 = vunpack.c.l.b16 %v3184
      %v3537 = vunpack.c.l.b16 %v3185
      %v3538 = vunpack.c.l.b16 %v3186
      %v3539 = vunpack.c.l.b16 %v3187
      %v3540 = vunpack.c.l.b16 %v3188
      %v3541 = vunpack.c.l.b16 %v3189
      %v3542 = vunpack.c.l.b16 %v3190
      %v3543 = vunpack.c.l.b16 %v3191
      %v3544 = vunpack.c.l.b16 %v3192
      %v3545 = vunpack.c.l.b16 %v3193
      %v3546 = vunpack.c.l.b16 %v3194
      %v3547 = vunpack.c.l.b16 %v3195
      %v3548 = vunpack.c.l.b16 %v3196
      %v3549 = vunpack.c.l.b16 %v3197
      %v3550 = vunpack.c.l.b16 %v3198
      %v3551 = vunpack.c.l.b16 %v3199
      %v3552 = vunpack.c.l.b16 %v3200
      %v3553 = vunpack.c.l.b16 %v3201
      %v3554 = vunpack.c.l.b16 %v3202
      %v3555 = vunpack.c.l.b16 %v3203
      %v3556 = vunpack.c.l.b16 %v3204
      %v3557 = vunpack.c.l.b16 %v3205
      %v3558 = vunpack.c.l.b16 %v3206
      %v3559 = vunpack.c.l.b16 %v3207
      %v3560 = vunpack.c.l.b16 %v3208
      %v3561 = vunpack.c.l.b16 %v3209
      %v3562 = vunpack.c.l.b16 %v3210
      %v3563 = vunpack.c.l.b16 %v3211
      %v3564 = vunpack.c.l.b16 %v3212
      %v3565 = vunpack.c.l.b16 %v3213
      %v3566 = vunpack.c.l.b16 %v3214
      %v3567 = vunpack.c.l.b16 %v3215
      %v3568 = vunpack.c.l.b16 %v3216
      %v3569 = vunpack.c.l.b16 %v3217
      %v3570 = vpack.c.b16 %v3523, %v3522
      %v3571 = vpack.c.b16 %v3525, %v3524
      %v3572 = vpack.c.b16 %v3527, %v3526
      %v3573 = vpack.c.b16 %v3529, %v3528
      %v3574 = vpack.c.b16 %v3531, %v3530
      %v3575 = vpack.c.b16 %v3533, %v3532
      %v3576 = vpack.c.b16 %v3535, %v3534
      %v3577 = vpack.c.b16 %v3537, %v3536
      %v3578 = vpack.c.b16 %v3539, %v3538
      %v3579 = vpack.c.b16 %v3541, %v3540
      %v3580 = vpack.c.b16 %v3543, %v3542
      %v3581 = vpack.c.b16 %v3545, %v3544
      %v3582 = vpack.c.b16 %v3547, %v3546
      %v3583 = vpack.c.b16 %v3549, %v3548
      %v3584 = vpack.c.b16 %v3551, %v3550
      %v3585 = vpack.c.b16 %v3553, %v3552
      %v3586 = vpack.c.b16 %v3555, %v3554
      %v3587 = vpack.c.b16 %v3557, %v3556
      %v3588 = vpack.c.b16 %v3559, %v3558
      %v3589 = vpack.c.b16 %v3561, %v3560
      %v3590 = vpack.c.b16 %v3563, %v3562
      %v3591 = vpack.c.b16 %v3565, %v3564
      %v3592 = vpack.c.b16 %v3567, %v3566
      %v3593 = vpack.c.b16 %v3569, %v3568
      %3618 = vmatprep.subr.bf16.mxu0 0
      %3619 = vmatpush1.bf16.msra.mxu0 %v3577
      %3620 = vmatprep.subr.bf16.mxu0 0
      %3621 = vmatpush1.bf16.msra.mxu0 %v3576
      %3622 = vmatprep.subr.bf16.mxu0 0
      %3623 = vmatpush1.bf16.msra.mxu0 %v3575
      %3624 = vmatprep.subr.bf16.mxu0 0
      %3625 = vmatpush1.bf16.msra.mxu0 %v3574
      %3626 = vmatprep.subr.bf16.mxu0 0
      %3627 = vmatpush1.bf16.msra.mxu0 %v3573
      %3628 = vmatprep.subr.bf16.mxu0 0
      %3629 = vmatpush1.bf16.msra.mxu0 %v3572
      %3630 = vmatprep.subr.bf16.mxu0 0
      %3631 = vmatpush1.bf16.msra.mxu0 %v3571
      %3632 = vmatprep.subr.bf16.mxu0 0
      %3633 = vmatpush1.bf16.msra.mxu0 %v3570
      %3634 = vmatprep.subr.bf16.mxu0 0
      %3635 = vmatpush2.bf16.msra.mxu0 %v3585
      %3636 = vmatprep.subr.bf16.mxu0 0
      %3637 = vmatpush2.bf16.msra.mxu0 %v3584
      %3638 = vmatprep.subr.bf16.mxu0 0
      %3639 = vmatpush2.bf16.msra.mxu0 %v3583
      %3640 = vmatprep.subr.bf16.mxu0 0
      %3641 = vmatpush2.bf16.msra.mxu0 %v3582
      %3642 = vmatprep.subr.bf16.mxu0 0
      %3643 = vmatpush2.bf16.msra.mxu0 %v3581
      %3644 = vmatprep.subr.bf16.mxu0 0
      %3645 = vmatpush2.bf16.msra.mxu0 %v3580
      %3646 = vmatprep.subr.bf16.mxu0 0
      %3647 = vmatpush2.bf16.msra.mxu0 %v3579
      %3648 = vmatprep.subr.bf16.mxu0 0
      %3649 = vmatpush2.bf16.msra.mxu0 %v3578
      %3650 = vmatprep.mubr.bf16.mxu0 %v3379
      %3651 = vmatmul.mubr.bf16.gmra.mxu0 %v3378
      %v3652 = vpop.f32.mrf.mxu0
      %v3653 = vadd.f32 0.0, %v3652
      %v3654 = vpop.f32.mrf.mxu0
      %v3655 = vpop.f32.mrf.mxu0
      %v3656 = vadd.f32 0.0, %v3655
      %v3657 = vpop.f32.mrf.mxu0
      %3658 = vmatprep.mubr.bf16.mxu0 %v3382
      %3659 = vmatmul.mubr.bf16.gmra.mxu0 %v3381
      %v3660 = vpop.f32.mrf.mxu0
      %v3661 = vadd.f32 0.0, %v3660
      %v3662 = vpop.f32.mrf.mxu0
      %v3663 = vpop.f32.mrf.mxu0
      %v3664 = vadd.f32 0.0, %v3663
      %v3665 = vpop.f32.mrf.mxu0
      %3666 = vmatprep.mubr.bf16.mxu0 %v3385
      %3667 = vmatmul.mubr.bf16.gmra.mxu0 %v3384
      %v3668 = vpop.f32.mrf.mxu0
      %v3669 = vadd.f32 0.0, %v3668
      %v3670 = vpop.f32.mrf.mxu0
      %v3671 = vpop.f32.mrf.mxu0
      %v3672 = vadd.f32 0.0, %v3671
      %v3673 = vpop.f32.mrf.mxu0
      %3674 = vmatprep.mubr.bf16.mxu0 %v3388
      %3675 = vmatmul.mubr.bf16.gmra.mxu0 %v3387
      %v3676 = vpop.f32.mrf.mxu0
      %v3677 = vadd.f32 0.0, %v3676
      %v3678 = vpop.f32.mrf.mxu0
      %v3679 = vpop.f32.mrf.mxu0
      %v3680 = vadd.f32 0.0, %v3679
      %v3681 = vpop.f32.mrf.mxu0
      %3682 = vmatprep.mubr.bf16.mxu0 %v3391
      %3683 = vmatmul.mubr.bf16.gmra.mxu0 %v3390
      %v3684 = vpop.f32.mrf.mxu0
      %v3685 = vadd.f32 0.0, %v3684
      %v3686 = vpop.f32.mrf.mxu0
      %v3687 = vpop.f32.mrf.mxu0
      %v3688 = vadd.f32 0.0, %v3687
      %v3689 = vpop.f32.mrf.mxu0
      %3690 = vmatprep.mubr.bf16.mxu0 %v3394
      %3691 = vmatmul.mubr.bf16.gmra.mxu0 %v3393
      %v3692 = vpop.f32.mrf.mxu0
      %v3693 = vadd.f32 0.0, %v3692
      %v3694 = vpop.f32.mrf.mxu0
      %v3695 = vpop.f32.mrf.mxu0
      %v3696 = vadd.f32 0.0, %v3695
      %v3697 = vpop.f32.mrf.mxu0
      %3698 = vmatprep.mubr.bf16.mxu0 %v3397
      %3699 = vmatmul.mubr.bf16.gmra.mxu0 %v3396
      %v3700 = vpop.f32.mrf.mxu0
      %v3701 = vadd.f32 0.0, %v3700
      %v3702 = vpop.f32.mrf.mxu0
      %v3703 = vpop.f32.mrf.mxu0
      %v3704 = vadd.f32 0.0, %v3703
      %v3705 = vpop.f32.mrf.mxu0
      %3706 = vmatprep.mubr.bf16.mxu0 %v3400
      %3707 = vmatmul.mubr.bf16.gmra.mxu0 %v3399
      %v3708 = vpop.f32.mrf.mxu0
      %v3709 = vadd.f32 0.0, %v3708
      %v3710 = vpop.f32.mrf.mxu0
      %v3711 = vpop.f32.mrf.mxu0
      %v3712 = vadd.f32 0.0, %v3711
      %v3713 = vpop.f32.mrf.mxu0
      %3714 = vmatprep.mubr.bf16.mxu0 %v3403
      %3715 = vmatmul.mubr.bf16.gmra.mxu0 %v3402
      %v3716 = vpop.f32.mrf.mxu0
      %v3717 = vadd.f32 0.0, %v3716
      %v3718 = vpop.f32.mrf.mxu0
      %v3719 = vpop.f32.mrf.mxu0
      %v3720 = vadd.f32 0.0, %v3719
      %v3721 = vpop.f32.mrf.mxu0
      %3722 = vmatprep.mubr.bf16.mxu0 %v3406
      %3723 = vmatmul.mubr.bf16.gmra.mxu0 %v3405
      %v3724 = vpop.f32.mrf.mxu0
      %v3725 = vadd.f32 0.0, %v3724
      %v3726 = vpop.f32.mrf.mxu0
      %v3727 = vpop.f32.mrf.mxu0
      %v3728 = vadd.f32 0.0, %v3727
      %v3729 = vpop.f32.mrf.mxu0
      %3730 = vmatprep.mubr.bf16.mxu0 %v3409
      %3731 = vmatmul.mubr.bf16.gmra.mxu0 %v3408
      %v3732 = vpop.f32.mrf.mxu0
      %v3733 = vadd.f32 0.0, %v3732
      %v3734 = vpop.f32.mrf.mxu0
      %v3735 = vpop.f32.mrf.mxu0
      %v3736 = vadd.f32 0.0, %v3735
      %v3737 = vpop.f32.mrf.mxu0
      %3738 = vmatprep.mubr.bf16.mxu0 %v3412
      %3739 = vmatmul.mubr.bf16.gmra.mxu0 %v3411
      %v3740 = vpop.f32.mrf.mxu0
      %v3741 = vadd.f32 0.0, %v3740
      %v3742 = vpop.f32.mrf.mxu0
      %v3743 = vpop.f32.mrf.mxu0
      %v3744 = vadd.f32 0.0, %v3743
      %v3745 = vpop.f32.mrf.mxu0
      %3746 = vmatprep.mubr.bf16.mxu0 %v3415
      %3747 = vmatmul.mubr.bf16.gmra.mxu0 %v3414
      %v3748 = vpop.f32.mrf.mxu0
      %v3749 = vadd.f32 0.0, %v3748
      %v3750 = vpop.f32.mrf.mxu0
      %v3751 = vpop.f32.mrf.mxu0
      %v3752 = vadd.f32 0.0, %v3751
      %v3753 = vpop.f32.mrf.mxu0
      %3754 = vmatprep.mubr.bf16.mxu0 %v3418
      %3755 = vmatmul.mubr.bf16.gmra.mxu0 %v3417
      %v3756 = vpop.f32.mrf.mxu0
      %v3757 = vadd.f32 0.0, %v3756
      %v3758 = vpop.f32.mrf.mxu0
      %v3759 = vpop.f32.mrf.mxu0
      %v3760 = vadd.f32 0.0, %v3759
      %v3761 = vpop.f32.mrf.mxu0
      %3762 = vmatprep.mubr.bf16.mxu0 %v3421
      %3763 = vmatmul.mubr.bf16.gmra.mxu0 %v3420
      %v3764 = vpop.f32.mrf.mxu0
      %v3765 = vadd.f32 0.0, %v3764
      %v3766 = vpop.f32.mrf.mxu0
      %v3767 = vpop.f32.mrf.mxu0
      %v3768 = vadd.f32 0.0, %v3767
      %v3769 = vpop.f32.mrf.mxu0
      %3770 = vmatprep.mubr.bf16.mxu0 %v3424
      %3771 = vmatmul.mubr.bf16.gmra.mxu0 %v3423
      %v3772 = vpop.f32.mrf.mxu0
      %v3773 = vadd.f32 0.0, %v3772
      %v3774 = vpop.f32.mrf.mxu0
      %v3775 = vpop.f32.mrf.mxu0
      %v3776 = vadd.f32 0.0, %v3775
      %v3777 = vpop.f32.mrf.mxu0
      %3778 = vdwg.mxu0
      %3779 = vmatprep.subr.bf16.mxu0 0
      %3780 = vmatpush1.bf16.msra.mxu0 %v3593
      %3781 = vmatprep.subr.bf16.mxu0 0
      %3782 = vmatpush1.bf16.msra.mxu0 %v3592
      %3783 = vmatprep.subr.bf16.mxu0 0
      %3784 = vmatpush1.bf16.msra.mxu0 %v3591
      %3785 = vmatprep.subr.bf16.mxu0 0
      %3786 = vmatpush1.bf16.msra.mxu0 %v3590
      %3787 = vmatprep.subr.bf16.mxu0 0
      %3788 = vmatpush1.bf16.msra.mxu0 %v3589
      %3789 = vmatprep.subr.bf16.mxu0 0
      %3790 = vmatpush1.bf16.msra.mxu0 %v3588
      %3791 = vmatprep.subr.bf16.mxu0 0
      %3792 = vmatpush1.bf16.msra.mxu0 %v3587
      %3793 = vmatprep.subr.bf16.mxu0 0
      %3794 = vmatpush1.bf16.msra.mxu0 %v3586
      %3795 = vmatprep.subr.bf16.mxu0 0
      %3796 = vmatpush2.bf16.msra.mxu0 0
      %3797 = vmatprep.subr.bf16.mxu0 0
      %3798 = vmatpush2.bf16.msra.mxu0 0
      %3799 = vmatprep.subr.bf16.mxu0 0
      %3800 = vmatpush2.bf16.msra.mxu0 0
      %3801 = vmatprep.subr.bf16.mxu0 0
      %3802 = vmatpush2.bf16.msra.mxu0 0
      %3803 = vmatprep.subr.bf16.mxu0 0
      %3804 = vmatpush2.bf16.msra.mxu0 0
      %3805 = vmatprep.subr.bf16.mxu0 0
      %3806 = vmatpush2.bf16.msra.mxu0 0
      %3807 = vmatprep.subr.bf16.mxu0 0
      %3808 = vmatpush2.bf16.msra.mxu0 0
      %3809 = vmatprep.subr.bf16.mxu0 0
      %3810 = vmatpush2.bf16.msra.mxu0 0
      %3811 = vmatprep.mubr.bf16.mxu0 0
      %3812 = vmatmul.mubr.bf16.gmra.mxu0 %v3380
      %v3813 = vpop.f32.mrf.mxu0
      %v3814 = vadd.f32 %v3653, %v3813
      %v3815 = vpop.f32.mrf.mxu0
      %v3816 = vpop.f32.mrf.mxu0
      %v3817 = vadd.f32 %v3656, %v3816
      %v3818 = vpop.f32.mrf.mxu0
      %3819 = vmatprep.mubr.bf16.mxu0 0
      %3820 = vmatmul.mubr.bf16.gmra.mxu0 %v3383
      %v3821 = vpop.f32.mrf.mxu0
      %v3822 = vadd.f32 %v3661, %v3821
      %v3823 = vpop.f32.mrf.mxu0
      %v3824 = vpop.f32.mrf.mxu0
      %v3825 = vadd.f32 %v3664, %v3824
      %v3826 = vpop.f32.mrf.mxu0
      %3827 = vmatprep.mubr.bf16.mxu0 0
      %3828 = vmatmul.mubr.bf16.gmra.mxu0 %v3386
      %v3829 = vpop.f32.mrf.mxu0
      %v3830 = vadd.f32 %v3669, %v3829
      %v3831 = vpop.f32.mrf.mxu0
      %v3832 = vpop.f32.mrf.mxu0
      %v3833 = vadd.f32 %v3672, %v3832
      %v3834 = vpop.f32.mrf.mxu0
      %3835 = vmatprep.mubr.bf16.mxu0 0
      %3836 = vmatmul.mubr.bf16.gmra.mxu0 %v3389
      %v3837 = vpop.f32.mrf.mxu0
      %v3838 = vadd.f32 %v3677, %v3837
      %v3839 = vpop.f32.mrf.mxu0
      %v3840 = vpop.f32.mrf.mxu0
      %v3841 = vadd.f32 %v3680, %v3840
      %v3842 = vpop.f32.mrf.mxu0
      %3843 = vmatprep.mubr.bf16.mxu0 0
      %3844 = vmatmul.mubr.bf16.gmra.mxu0 %v3392
      %v3845 = vpop.f32.mrf.mxu0
      %v3846 = vadd.f32 %v3685, %v3845
      %v3847 = vpop.f32.mrf.mxu0
      %v3848 = vpop.f32.mrf.mxu0
      %v3849 = vadd.f32 %v3688, %v3848
      %v3850 = vpop.f32.mrf.mxu0
      %3851 = vmatprep.mubr.bf16.mxu0 0
      %3852 = vmatmul.mubr.bf16.gmra.mxu0 %v3395
      %v3853 = vpop.f32.mrf.mxu0
      %v3854 = vadd.f32 %v3693, %v3853
      %v3855 = vpop.f32.mrf.mxu0
      %v3856 = vpop.f32.mrf.mxu0
      %v3857 = vadd.f32 %v3696, %v3856
      %v3858 = vpop.f32.mrf.mxu0
      %3859 = vmatprep.mubr.bf16.mxu0 0
      %3860 = vmatmul.mubr.bf16.gmra.mxu0 %v3398
      %v3861 = vpop.f32.mrf.mxu0
      %v3862 = vadd.f32 %v3701, %v3861
      %v3863 = vpop.f32.mrf.mxu0
      %v3864 = vpop.f32.mrf.mxu0
      %v3865 = vadd.f32 %v3704, %v3864
      %v3866 = vpop.f32.mrf.mxu0
      %3867 = vmatprep.mubr.bf16.mxu0 0
      %3868 = vmatmul.mubr.bf16.gmra.mxu0 %v3401
      %v3869 = vpop.f32.mrf.mxu0
      %v3870 = vadd.f32 %v3709, %v3869
      %v3871 = vpop.f32.mrf.mxu0
      %v3872 = vpop.f32.mrf.mxu0
      %v3873 = vadd.f32 %v3712, %v3872
      %v3874 = vpop.f32.mrf.mxu0
      %3875 = vmatprep.mubr.bf16.mxu0 0
      %3876 = vmatmul.mubr.bf16.gmra.mxu0 %v3404
      %v3877 = vpop.f32.mrf.mxu0
      %v3878 = vadd.f32 %v3717, %v3877
      %v3879 = vpop.f32.mrf.mxu0
      %v3880 = vpop.f32.mrf.mxu0
      %v3881 = vadd.f32 %v3720, %v3880
      %v3882 = vpop.f32.mrf.mxu0
      %3883 = vmatprep.mubr.bf16.mxu0 0
      %3884 = vmatmul.mubr.bf16.gmra.mxu0 %v3407
      %v3885 = vpop.f32.mrf.mxu0
      %v3886 = vadd.f32 %v3725, %v3885
      %v3887 = vpop.f32.mrf.mxu0
      %v3888 = vpop.f32.mrf.mxu0
      %v3889 = vadd.f32 %v3728, %v3888
      %v3890 = vpop.f32.mrf.mxu0
      %3891 = vmatprep.mubr.bf16.mxu0 0
      %3892 = vmatmul.mubr.bf16.gmra.mxu0 %v3410
      %v3893 = vpop.f32.mrf.mxu0
      %v3894 = vadd.f32 %v3733, %v3893
      %v3895 = vpop.f32.mrf.mxu0
      %v3896 = vpop.f32.mrf.mxu0
      %v3897 = vadd.f32 %v3736, %v3896
      %v3898 = vpop.f32.mrf.mxu0
      %3899 = vmatprep.mubr.bf16.mxu0 0
      %3900 = vmatmul.mubr.bf16.gmra.mxu0 %v3413
      %v3901 = vpop.f32.mrf.mxu0
      %v3902 = vadd.f32 %v3741, %v3901
      %v3903 = vpop.f32.mrf.mxu0
      %v3904 = vpop.f32.mrf.mxu0
      %v3905 = vadd.f32 %v3744, %v3904
      %v3906 = vpop.f32.mrf.mxu0
      %3907 = vmatprep.mubr.bf16.mxu0 0
      %3908 = vmatmul.mubr.bf16.gmra.mxu0 %v3416
      %v3909 = vpop.f32.mrf.mxu0
      %v3910 = vadd.f32 %v3749, %v3909
      %v3911 = vpop.f32.mrf.mxu0
      %v3912 = vpop.f32.mrf.mxu0
      %v3913 = vadd.f32 %v3752, %v3912
      %v3914 = vpop.f32.mrf.mxu0
      %3915 = vmatprep.mubr.bf16.mxu0 0
      %3916 = vmatmul.mubr.bf16.gmra.mxu0 %v3419
      %v3917 = vpop.f32.mrf.mxu0
      %v3918 = vadd.f32 %v3757, %v3917
      %v3919 = vpop.f32.mrf.mxu0
      %v3920 = vpop.f32.mrf.mxu0
      %v3921 = vadd.f32 %v3760, %v3920
      %v3922 = vpop.f32.mrf.mxu0
      %3923 = vmatprep.mubr.bf16.mxu0 0
      %3924 = vmatmul.mubr.bf16.gmra.mxu0 %v3422
      %v3925 = vpop.f32.mrf.mxu0
      %v3926 = vadd.f32 %v3765, %v3925
      %v3927 = vpop.f32.mrf.mxu0
      %v3928 = vpop.f32.mrf.mxu0
      %v3929 = vadd.f32 %v3768, %v3928
      %v3930 = vpop.f32.mrf.mxu0
      %3931 = vmatprep.mubr.bf16.mxu0 0
      %3932 = vmatmul.mubr.bf16.gmra.mxu0 %v3425
      %v3933 = vpop.f32.mrf.mxu0
      %v3934 = vadd.f32 %v3773, %v3933
      %v3935 = vpop.f32.mrf.mxu0
      %v3936 = vpop.f32.mrf.mxu0
      %v3937 = vadd.f32 %v3776, %v3936
      %v3938 = vpop.f32.mrf.mxu0
      %3939 = vdwg.mxu0
      %v3940 = vadd.f32 %v3072, %v3814
      %v3941 = vadd.f32 %v3073, %v3817
      %v3942 = vadd.f32 %v3074, %v3822
      %v3943 = vadd.f32 %v3075, %v3825
      %v3944 = vadd.f32 %v3076, %v3830
      %v3945 = vadd.f32 %v3077, %v3833
      %v3946 = vadd.f32 %v3078, %v3838
      %v3947 = vadd.f32 %v3079, %v3841
      %v3948 = vadd.f32 %v3080, %v3846
      %v3949 = vadd.f32 %v3081, %v3849
      %v3950 = vadd.f32 %v3082, %v3854
      %v3951 = vadd.f32 %v3083, %v3857
      %v3952 = vadd.f32 %v3084, %v3862
      %v3953 = vadd.f32 %v3085, %v3865
      %v3954 = vadd.f32 %v3086, %v3870
      %v3955 = vadd.f32 %v3087, %v3873
      %v3956 = vadd.f32 %v3088, %v3878
      %v3957 = vadd.f32 %v3089, %v3881
      %v3958 = vadd.f32 %v3090, %v3886
      %v3959 = vadd.f32 %v3091, %v3889
      %v3960 = vadd.f32 %v3092, %v3894
      %v3961 = vadd.f32 %v3093, %v3897
      %v3962 = vadd.f32 %v3094, %v3902
      %v3963 = vadd.f32 %v3095, %v3905
      %v3964 = vadd.f32 %v3096, %v3910
      %v3965 = vadd.f32 %v3097, %v3913
      %v3966 = vadd.f32 %v3098, %v3918
      %v3967 = vadd.f32 %v3099, %v3921
      %v3968 = vadd.f32 %v3100, %v3926
      %v3969 = vadd.f32 %v3101, %v3929
      %v3970 = vadd.f32 %v3102, %v3934
      %v3971 = vadd.f32 %v3103, %v3937
      %3972 = vst [vmem:[#allocation3] sm:$0xff] %v3940
      %3973 = vst [vmem:[#allocation3 + $0x8] sm:$0xff] %v3941
      %3974 = vst [vmem:[#allocation3 + $0x10] sm:$0xff] %v3942
      %3975 = vst [vmem:[#allocation3 + $0x18] sm:$0xff] %v3943
      %3976 = vst [vmem:[#allocation3 + $0x20] sm:$0xff] %v3944
      %3977 = vst [vmem:[#allocation3 + $0x28] sm:$0xff] %v3945
      %3978 = vst [vmem:[#allocation3 + $0x30] sm:$0xff] %v3946
      %3979 = vst [vmem:[#allocation3 + $0x38] sm:$0xff] %v3947
      %3980 = vst [vmem:[#allocation3 + $0x40] sm:$0xff] %v3948
      %3981 = vst [vmem:[#allocation3 + $0x48] sm:$0xff] %v3949
      %3982 = vst [vmem:[#allocation3 + $0x50] sm:$0xff] %v3950
      %3983 = vst [vmem:[#allocation3 + $0x58] sm:$0xff] %v3951
      %3984 = vst [vmem:[#allocation3 + $0x60] sm:$0xff] %v3952
      %3985 = vst [vmem:[#allocation3 + $0x68] sm:$0xff] %v3953
      %3986 = vst [vmem:[#allocation3 + $0x70] sm:$0xff] %v3954
      %3987 = vst [vmem:[#allocation3 + $0x78] sm:$0xff] %v3955
      %3988 = vst [vmem:[#allocation3 + $0x80] sm:$0xff] %v3956
      %3989 = vst [vmem:[#allocation3 + $0x88] sm:$0xff] %v3957
      %3990 = vst [vmem:[#allocation3 + $0x90] sm:$0xff] %v3958
      %3991 = vst [vmem:[#allocation3 + $0x98] sm:$0xff] %v3959
      %3992 = vst [vmem:[#allocation3 + $0xa0] sm:$0xff] %v3960
      %3993 = vst [vmem:[#allocation3 + $0xa8] sm:$0xff] %v3961
      %3994 = vst [vmem:[#allocation3 + $0xb0] sm:$0xff] %v3962
      %3995 = vst [vmem:[#allocation3 + $0xb8] sm:$0xff] %v3963
      %3996 = vst [vmem:[#allocation3 + $0xc0] sm:$0xff] %v3964
      %3997 = vst [vmem:[#allocation3 + $0xc8] sm:$0xff] %v3965
      %3998 = vst [vmem:[#allocation3 + $0xd0] sm:$0xff] %v3966
      %3999 = vst [vmem:[#allocation3 + $0xd8] sm:$0xff] %v3967
      %4000 = vst [vmem:[#allocation3 + $0xe0] sm:$0xff] %v3968
      %4001 = vst [vmem:[#allocation3 + $0xe8] sm:$0xff] %v3969
      %4002 = vst [vmem:[#allocation3 + $0xf0] sm:$0xff] %v3970
      %4003 = vst [vmem:[#allocation3 + $0xf8] sm:$0xff] %v3971
      %v4004 = vld [vmem:[#allocation3] sm:$0xff]
      %v4005 = vld [vmem:[#allocation3 + $0x8] sm:$0xff]
      %v4006 = vld [vmem:[#allocation3 + $0x10] sm:$0xff]
      %v4007 = vld [vmem:[#allocation3 + $0x18] sm:$0xff]
      %v4008 = vld [vmem:[#allocation3 + $0x20] sm:$0xff]
      %v4009 = vld [vmem:[#allocation3 + $0x28] sm:$0xff]
      %v4010 = vld [vmem:[#allocation3 + $0x30] sm:$0xff]
      %v4011 = vld [vmem:[#allocation3 + $0x38] sm:$0xff]
      %v4012 = vld [vmem:[#allocation3 + $0x40] sm:$0xff]
      %v4013 = vld [vmem:[#allocation3 + $0x48] sm:$0xff]
      %v4014 = vld [vmem:[#allocation3 + $0x50] sm:$0xff]
      %v4015 = vld [vmem:[#allocation3 + $0x58] sm:$0xff]
      %v4016 = vld [vmem:[#allocation3 + $0x60] sm:$0xff]
      %v4017 = vld [vmem:[#allocation3 + $0x68] sm:$0xff]
      %v4018 = vld [vmem:[#allocation3 + $0x70] sm:$0xff]
      %v4019 = vld [vmem:[#allocation3 + $0x78] sm:$0xff]
      %v4020 = vld [vmem:[#allocation3 + $0x80] sm:$0xff]
      %v4021 = vld [vmem:[#allocation3 + $0x88] sm:$0xff]
      %v4022 = vld [vmem:[#allocation3 + $0x90] sm:$0xff]
      %v4023 = vld [vmem:[#allocation3 + $0x98] sm:$0xff]
      %v4024 = vld [vmem:[#allocation3 + $0xa0] sm:$0xff]
      %v4025 = vld [vmem:[#allocation3 + $0xa8] sm:$0xff]
      %v4026 = vld [vmem:[#allocation3 + $0xb0] sm:$0xff]
      %v4027 = vld [vmem:[#allocation3 + $0xb8] sm:$0xff]
      %v4028 = vld [vmem:[#allocation3 + $0xc0] sm:$0xff]
      %v4029 = vld [vmem:[#allocation3 + $0xc8] sm:$0xff]
      %v4030 = vld [vmem:[#allocation3 + $0xd0] sm:$0xff]
      %v4031 = vld [vmem:[#allocation3 + $0xd8] sm:$0xff]
      %v4032 = vld [vmem:[#allocation3 + $0xe0] sm:$0xff]
      %v4033 = vld [vmem:[#allocation3 + $0xe8] sm:$0xff]
      %v4034 = vld [vmem:[#allocation3 + $0xf0] sm:$0xff]
      %v4035 = vld [vmem:[#allocation3 + $0xf8] sm:$0xff]
      %v4036 = vpack.c.bf16 %v4005, %v4004
      %v4037 = vpack.c.bf16 %v4007, %v4006
      %v4038 = vpack.c.bf16 %v4009, %v4008
      %v4039 = vpack.c.bf16 %v4011, %v4010
      %v4040 = vpack.c.bf16 %v4013, %v4012
      %v4041 = vpack.c.bf16 %v4015, %v4014
      %v4042 = vpack.c.bf16 %v4017, %v4016
      %v4043 = vpack.c.bf16 %v4019, %v4018
      %v4044 = vpack.c.bf16 %v4021, %v4020
      %v4045 = vpack.c.bf16 %v4023, %v4022
      %v4046 = vpack.c.bf16 %v4025, %v4024
      %v4047 = vpack.c.bf16 %v4027, %v4026
      %v4048 = vpack.c.bf16 %v4029, %v4028
      %v4049 = vpack.c.bf16 %v4031, %v4030
      %v4050 = vpack.c.bf16 %v4033, %v4032
      %v4051 = vpack.c.bf16 %v4035, %v4034
      %v4068 = vunpack.c.l.b16 %v4036
      %v4069 = vunpack.c.h.b16 %v4036
      %v4070 = vunpack.c.l.b16 %v4037
      %v4071 = vunpack.c.h.b16 %v4037
      %v4072 = vunpack.c.l.b16 %v4038
      %v4073 = vunpack.c.h.b16 %v4038
      %v4074 = vunpack.c.l.b16 %v4039
      %v4075 = vunpack.c.h.b16 %v4039
      %v4076 = vunpack.c.l.b16 %v4040
      %v4077 = vunpack.c.h.b16 %v4040
      %v4078 = vunpack.c.l.b16 %v4041
      %v4079 = vunpack.c.h.b16 %v4041
      %v4080 = vunpack.c.l.b16 %v4042
      %v4081 = vunpack.c.h.b16 %v4042
      %v4082 = vunpack.c.l.b16 %v4043
      %v4083 = vunpack.c.h.b16 %v4043
      %v4084 = vunpack.c.l.b16 %v4044
      %v4085 = vunpack.c.h.b16 %v4044
      %v4086 = vunpack.c.l.b16 %v4045
      %v4087 = vunpack.c.h.b16 %v4045
      %v4088 = vunpack.c.l.b16 %v4046
      %v4089 = vunpack.c.h.b16 %v4046
      %v4090 = vunpack.c.l.b16 %v4047
      %v4091 = vunpack.c.h.b16 %v4047
      %v4092 = vunpack.c.l.b16 %v4048
      %v4093 = vunpack.c.h.b16 %v4048
      %v4094 = vunpack.c.l.b16 %v4049
      %v4095 = vunpack.c.h.b16 %v4049
      %v4096 = vunpack.c.l.b16 %v4050
      %v4097 = vunpack.c.h.b16 %v4050
      %v4098 = vunpack.c.l.b16 %v4051
      %v4099 = vunpack.c.h.b16 %v4051
      %v4100 = vpack.c.b16 %v4068, %v4068
      %v4101 = vpack.c.b16 %v4069, %v4069
      %v4102 = vpack.c.b16 %v4070, %v4070
      %v4103 = vpack.c.b16 %v4071, %v4071
      %v4104 = vpack.c.b16 %v4072, %v4072
      %v4105 = vpack.c.b16 %v4073, %v4073
      %v4106 = vpack.c.b16 %v4074, %v4074
      %v4107 = vpack.c.b16 %v4075, %v4075
      %v4108 = vpack.c.b16 %v4076, %v4076
      %v4109 = vpack.c.b16 %v4077, %v4077
      %v4110 = vpack.c.b16 %v4078, %v4078
      %v4111 = vpack.c.b16 %v4079, %v4079
      %v4112 = vpack.c.b16 %v4080, %v4080
      %v4113 = vpack.c.b16 %v4081, %v4081
      %v4114 = vpack.c.b16 %v4082, %v4082
      %v4115 = vpack.c.b16 %v4083, %v4083
      %v4116 = vpack.c.b16 %v4084, %v4084
      %v4117 = vpack.c.b16 %v4085, %v4085
      %v4118 = vpack.c.b16 %v4086, %v4086
      %v4119 = vpack.c.b16 %v4087, %v4087
      %v4120 = vpack.c.b16 %v4088, %v4088
      %v4121 = vpack.c.b16 %v4089, %v4089
      %v4122 = vpack.c.b16 %v4090, %v4090
      %v4123 = vpack.c.b16 %v4091, %v4091
      %v4124 = vpack.c.b16 %v4092, %v4092
      %v4125 = vpack.c.b16 %v4093, %v4093
      %v4126 = vpack.c.b16 %v4094, %v4094
      %v4127 = vpack.c.b16 %v4095, %v4095
      %v4128 = vpack.c.b16 %v4096, %v4096
      %v4129 = vpack.c.b16 %v4097, %v4097
      %v4130 = vpack.c.b16 %v4098, %v4098
      %v4131 = vpack.c.b16 %v4099, %v4099
      %4164 = vst [vmem:[%s249] sm:$0xf] %v4100
      %4165 = vst [vmem:[%s249 + $0x4] sm:$0xf] %v4101
      %4166 = vst [vmem:[%s249 + $0x8] sm:$0xf] %v4102
      %4167 = vst [vmem:[%s249 + $0xc] sm:$0xf] %v4103
      %4168 = vst [vmem:[%s249 + $0x10] sm:$0xf] %v4104
      %4169 = vst [vmem:[%s249 + $0x14] sm:$0xf] %v4105
      %4170 = vst [vmem:[%s249 + $0x18] sm:$0xf] %v4106
      %4171 = vst [vmem:[%s249 + $0x1c] sm:$0xf] %v4107
      %4172 = vst [vmem:[%s249 + $0x20] sm:$0xf] %v4108
      %4173 = vst [vmem:[%s249 + $0x24] sm:$0xf] %v4109
      %4174 = vst [vmem:[%s249 + $0x28] sm:$0xf] %v4110
      %4175 = vst [vmem:[%s249 + $0x2c] sm:$0xf] %v4111
      %4176 = vst [vmem:[%s249 + $0x30] sm:$0xf] %v4112
      %4177 = vst [vmem:[%s249 + $0x34] sm:$0xf] %v4113
      %4178 = vst [vmem:[%s249 + $0x38] sm:$0xf] %v4114
      %4179 = vst [vmem:[%s249 + $0x3c] sm:$0xf] %v4115
      %4180 = vst [vmem:[%s249 + $0x40] sm:$0xf] %v4116
      %4181 = vst [vmem:[%s249 + $0x44] sm:$0xf] %v4117
      %4182 = vst [vmem:[%s249 + $0x48] sm:$0xf] %v4118
      %4183 = vst [vmem:[%s249 + $0x4c] sm:$0xf] %v4119
      %4184 = vst [vmem:[%s249 + $0x50] sm:$0xf] %v4120
      %4185 = vst [vmem:[%s249 + $0x54] sm:$0xf] %v4121
      %4186 = vst [vmem:[%s249 + $0x58] sm:$0xf] %v4122
      %4187 = vst [vmem:[%s249 + $0x5c] sm:$0xf] %v4123
      %4188 = vst [vmem:[%s249 + $0x60] sm:$0xf] %v4124
      %4189 = vst [vmem:[%s249 + $0x64] sm:$0xf] %v4125
      %4190 = vst [vmem:[%s249 + $0x68] sm:$0xf] %v4126
      %4191 = vst [vmem:[%s249 + $0x6c] sm:$0xf] %v4127
      %4192 = vst [vmem:[%s249 + $0x70] sm:$0xf] %v4128
      %4193 = vst [vmem:[%s249 + $0x74] sm:$0xf] %v4129
      %4194 = vst [vmem:[%s249 + $0x78] sm:$0xf] %v4130
      %4195 = vst [vmem:[%s249 + $0x7c] sm:$0xf] %v4131
      %v4196 = vld [vmem:[%s6] sm:$0x1]
      %v4197 = vadd.f32 %v4004, %v4005
      %v4198 = vadd.f32 %v4197, %v4006
      %v4199 = vadd.f32 %v4198, %v4007
      %v4200 = vadd.f32 %v4199, %v4008
      %v4201 = vadd.f32 %v4200, %v4009
      %v4202 = vadd.f32 %v4201, %v4010
      %v4203 = vadd.f32 %v4202, %v4011
      %v4204 = vadd.f32 %v4203, %v4012
      %v4205 = vadd.f32 %v4204, %v4013
      %v4206 = vadd.f32 %v4205, %v4014
      %v4207 = vadd.f32 %v4206, %v4015
      %v4208 = vadd.f32 %v4207, %v4016
      %v4209 = vadd.f32 %v4208, %v4017
      %v4210 = vadd.f32 %v4209, %v4018
      %v4211 = vadd.f32 %v4210, %v4019
      %v4212 = vadd.f32 %v4211, %v4020
      %v4213 = vadd.f32 %v4212, %v4021
      %v4214 = vadd.f32 %v4213, %v4022
      %v4215 = vadd.f32 %v4214, %v4023
      %v4216 = vadd.f32 %v4215, %v4024
      %v4217 = vadd.f32 %v4216, %v4025
      %v4218 = vadd.f32 %v4217, %v4026
      %v4219 = vadd.f32 %v4218, %v4027
      %v4220 = vadd.f32 %v4219, %v4028
      %v4221 = vadd.f32 %v4220, %v4029
      %v4222 = vadd.f32 %v4221, %v4030
      %v4223 = vadd.f32 %v4222, %v4031
      %v4224 = vadd.f32 %v4223, %v4032
      %v4225 = vadd.f32 %v4224, %v4033
      %v4226 = vadd.f32 %v4225, %v4034
      %v4227 = vadd.f32 %v4226, %v4035
      %v4228 = vrot.slane %v4227, 4
      %v4229 = vadd.f32 %v4227, %v4228
      %v4230 = vrot.slane %v4229, 2
      %v4231 = vadd.f32 %v4229, %v4230
      %v4232 = vrot.slane %v4231, 1
      %v4233 = vadd.f32 %v4231, %v4232
      %v4234 = vadd.f32 %v4196, %v4233
      %4235 = vst [vmem:[%s6] sm:$0x1] %v4234
      %v4236 = vld [vmem:[%s6 + $0x1] sm:$0x1]
      %v4237 = vmul.f32 %v4004, %v4004
      %v4238 = vmul.f32 %v4005, %v4005
      %v4239 = vmul.f32 %v4006, %v4006
      %v4240 = vmul.f32 %v4007, %v4007
      %v4241 = vmul.f32 %v4008, %v4008
      %v4242 = vmul.f32 %v4009, %v4009
      %v4243 = vmul.f32 %v4010, %v4010
      %v4244 = vmul.f32 %v4011, %v4011
      %v4245 = vmul.f32 %v4012, %v4012
      %v4246 = vmul.f32 %v4013, %v4013
      %v4247 = vmul.f32 %v4014, %v4014
      %v4248 = vmul.f32 %v4015, %v4015
      %v4249 = vmul.f32 %v4016, %v4016
      %v4250 = vmul.f32 %v4017, %v4017
      %v4251 = vmul.f32 %v4018, %v4018
      %v4252 = vmul.f32 %v4019, %v4019
      %v4253 = vmul.f32 %v4020, %v4020
      %v4254 = vmul.f32 %v4021, %v4021
      %v4255 = vmul.f32 %v4022, %v4022
      %v4256 = vmul.f32 %v4023, %v4023
      %v4257 = vmul.f32 %v4024, %v4024
      %v4258 = vmul.f32 %v4025, %v4025
      %v4259 = vmul.f32 %v4026, %v4026
      %v4260 = vmul.f32 %v4027, %v4027
      %v4261 = vmul.f32 %v4028, %v4028
      %v4262 = vmul.f32 %v4029, %v4029
      %v4263 = vmul.f32 %v4030, %v4030
      %v4264 = vmul.f32 %v4031, %v4031
      %v4265 = vmul.f32 %v4032, %v4032
      %v4266 = vmul.f32 %v4033, %v4033
      %v4267 = vmul.f32 %v4034, %v4034
      %v4268 = vmul.f32 %v4035, %v4035
      %v4269 = vadd.f32 %v4237, %v4238
      %v4270 = vadd.f32 %v4269, %v4239
      %v4271 = vadd.f32 %v4270, %v4240
      %v4272 = vadd.f32 %v4271, %v4241
      %v4273 = vadd.f32 %v4272, %v4242
      %v4274 = vadd.f32 %v4273, %v4243
      %v4275 = vadd.f32 %v4274, %v4244
      %v4276 = vadd.f32 %v4275, %v4245
      %v4277 = vadd.f32 %v4276, %v4246
      %v4278 = vadd.f32 %v4277, %v4247
      %v4279 = vadd.f32 %v4278, %v4248
      %v4280 = vadd.f32 %v4279, %v4249
      %v4281 = vadd.f32 %v4280, %v4250
      %v4282 = vadd.f32 %v4281, %v4251
      %v4283 = vadd.f32 %v4282, %v4252
      %v4284 = vadd.f32 %v4283, %v4253
      %v4285 = vadd.f32 %v4284, %v4254
      %v4286 = vadd.f32 %v4285, %v4255
      %v4287 = vadd.f32 %v4286, %v4256
      %v4288 = vadd.f32 %v4287, %v4257
      %v4289 = vadd.f32 %v4288, %v4258
      %v4290 = vadd.f32 %v4289, %v4259
      %v4291 = vadd.f32 %v4290, %v4260
      %v4292 = vadd.f32 %v4291, %v4261
      %v4293 = vadd.f32 %v4292, %v4262
      %v4294 = vadd.f32 %v4293, %v4263
      %v4295 = vadd.f32 %v4294, %v4264
      %v4296 = vadd.f32 %v4295, %v4265
      %v4297 = vadd.f32 %v4296, %v4266
      %v4298 = vadd.f32 %v4297, %v4267
      %v4299 = vadd.f32 %v4298, %v4268
      %v4300 = vrot.slane %v4299, 4
      %v4301 = vadd.f32 %v4299, %v4300
      %v4302 = vrot.slane %v4301, 2
      %v4303 = vadd.f32 %v4301, %v4302
      %v4304 = vrot.slane %v4303, 1
      %v4305 = vadd.f32 %v4303, %v4304
      %v4306 = vadd.f32 %v4236, %v4305
      %4307 = vst [vmem:[%s6 + $0x1] sm:$0x1] %v4306
      %p4308 = scmp.lt.s32.totalorder %s18, 1
      %s4309 = scalar_select %p4308, %s18, 1
      %s4310 = smul.addr %s4309, 32
      %s4311 = smul.addr %s4310, 4
      %s4312 = scalar_lea.vmem %s5, %s4311
      // Predicated region
      $region45: #{conv_transpose_block_forward.4} parent=39 // pred_check
        %p4313 = pneg %p146
      $region46: #{conv_transpose_block_forward.4} parent=39 // pred_check_branch
        %4315 = sbr.rel (%p4313) target = $region48
      $region47: #{conv_transpose_block_forward.4} parent=39 // pred_region
        _
      $region48: #{conv_transpose_block_forward.4} parent=39 // pred_fallthru
        _
      // Predicated region
      $region49: #{conv_transpose_block_forward.4} parent=39 // pred_check
        %p4316 = pneg %p167
      $region50: #{conv_transpose_block_forward.4} parent=39 // pred_check_branch
        %4318 = sbr.rel (%p4316) target = $region52
      $region51: #{conv_transpose_block_forward.4} parent=39 // pred_region
        _
      $region52: #{conv_transpose_block_forward.4} parent=39 // pred_fallthru
        _
      // Predicated region
      $region53: #{conv_transpose_block_forward.4} parent=39 // pred_check
        %p4319 = pneg %p167
      $region54: #{conv_transpose_block_forward.4} parent=39 // pred_check_branch
        %4321 = sbr.rel (%p4319) target = $region56
      $region55: #{conv_transpose_block_forward.4} parent=39 // pred_region
        _
      $region56: #{conv_transpose_block_forward.4} parent=39 // pred_fallthru
        _
    $region40: #{conv_transpose_block_forward.4} parent=5 // pred_fallthru
      _
    %p4322 = scmp.le.s32.totalorder 2, %s13
    // Predicated region
    $region57: #{conv_transpose_block_forward.4} parent=5 // pred_check
      %p4323 = pneg %p4322
    $region58: #{conv_transpose_block_forward.4} parent=5 // pred_check_branch
      %4325 = sbr.rel (%p4323) target = $region60
    $region59: #{conv_transpose_block_forward.4} parent=5 // pred_region
      %s4326 = ssub.s32 %s13, 2
      // Predicated region
      $region61: #{conv_transpose_block_forward.4} parent=59 // pred_check
        %p4327 = pneg %p152
      $region62: #{conv_transpose_block_forward.4} parent=59 // pred_check_branch
        %4329 = sbr.rel (%p4327) target = $region64
      $region63: #{conv_transpose_block_forward.4} parent=59 // pred_region
        %p4330 = scmp.lt.s32.totalorder %s19, 1
        %s4331 = scalar_select %p4330, %s19, 1
        %s4332 = smul.addr %s4331, 32
        %s4333 = smul.addr %s4332, 4
        %s4334 = scalar_lea.vmem %s5, %s4333
      $region64: #{conv_transpose_block_forward.4} parent=59 // pred_fallthru
        _
    $region60: #{conv_transpose_block_forward.4} parent=5 // pred_fallthru
      _
  $region6: #{conv_transpose_block_forward.4} parent=0 // loop_footer
    %s17 = sadd.s32 1, %s13
  $region7: #{conv_transpose_block_forward.4} parent=0 // loop_footer_branch
    %12 = sbr.rel target = $region3
  $region8: #{conv_transpose_block_forward.4} parent=0 // loop_exit
    _

// kernel: conv_transpose_block_forward.3
$region0: #{conv_transpose_block_forward.3}
  #allocation0 [shape = 'u32[]', space=smem, size = 0x4, offset = 0x4, fixed_abs, tag = 'smem constant byte address 0x4 - core index']
  #allocation1 [shape = 'u32[144,128]{1,0:T(1,128)}', space=vmem, size = 0x12000, scoped, tag = 'internal scratch']
  #allocation2 [shape = 'bf16[18,16,384]{2,1,0:T(8,128)(2,1)}', space=vmem, size = 0x36000, scoped, tag = 'scratch operand']
  #allocation3 [shape = 'f32[256,128]{1,0:T(8,128)}', space=vmem, size = 0x20000, scoped, tag = 'scratch operand']
  %s0 = inlined_call_operand.vmem [shape: bf16[2,18,18,128], index: 0, kind: input, shape index: {}]
  %s1 = inlined_call_operand.vmem [shape: bf16[3,384,128], index: 1, kind: input, shape index: {}]
  %s2 = inlined_call_operand.vmem [shape: bf16[2,16,16,128], index: 2, kind: output, shape index: {0}]
  %s3 = inlined_call_operand.vmem [shape: f32[2,128], index: 3, kind: output, shape index: {1}]
  %4 = xla_tuple %s2, %s3
  %s5 = sld [smem:[#allocation0]]
  $region53: #{conv_transpose_block_forward.3} parent=0
    _
  %s7 = ssub.s32 1, %s5
  %s8 = scalar_select 0, %s7, %s5
  loop: start=0, step=1, limit=4
  $region2: #{conv_transpose_block_forward.3} parent=0 // loop_pre_header
    _
  $region3: #{conv_transpose_block_forward.3} parent=0 // loop_header
    %s10 = sphi 0, %s14
    %p11 = scmp.ge.s32.totalorder %s10, 4
    %s20 = sphi 0, %s22
    %s23 = sphi 0, %s20
    %s24 = sphi 0, %s23
    %s40 = sphi 0, %s24
    %s44 = sphi 0, %s44
    %s46 = sphi 0, %s44
    %s47 = sphi 0, %s46
    %s61 = sphi 0, %s47
    %s67 = sphi 0, %s69
    %s70 = sphi 0, %s67
    %s71 = sphi 0, %s70
    %s87 = sphi 0, %s71
    %s91 = sphi 0, %s91
    %s93 = sphi 0, %s91
    %s94 = sphi 0, %s93
    %s108 = sphi 0, %s94
  $region4: #{conv_transpose_block_forward.3} parent=0 // loop_header_branch
    %13 = sbr.rel (%p11) target = $region8
  $region5: #{conv_transpose_block_forward.3} parent=0 // loop_body
    %s15 = ssub.s32 %s10, 1
    %s16 = ssub.s32 %s10, 2
    %s17 = sadd.s32 %s10, 1
    %s18 = ssub.s32 %s10, %s17
    %p19 = scmp.eq.s32.totalorder %s18, 0
    %s21 = sadd.s32 %s20, 1
    %s22 = scalar_select %p19, %s20, %s21
    %p25 = pneg %p19
    %p26 = scmp.eq.s32.totalorder %s10, 1
    %p27 = por %p25, %p26
    %p28 = scmp.ne.s32.totalorder %s20, %s23
    %p29 = scmp.eq.s32.totalorder %s10, 0
    %p30 = por %p28, %p29
    %p31 = scmp.ne.s32.totalorder %s20, %s23
    %p32 = scmp.eq.s32.totalorder %s15, 1
    %p33 = por %p31, %p32
    %p34 = scmp.ne.s32.totalorder %s23, %s24
    %p35 = scmp.eq.s32.totalorder %s15, 0
    %p36 = por %p34, %p35
    %p37 = scmp.ne.s32.totalorder %s23, %s24
    %p38 = scmp.eq.s32.totalorder %s16, 1
    %p39 = por %p37, %p38
    %p41 = scmp.ne.s32.totalorder %s24, %s40
    %p42 = scmp.eq.s32.totalorder %s16, 0
    %p43 = por %p41, %p42
    %s45 = sadd.s32 %s44, 1
    %p48 = scmp.eq.s32.totalorder %s10, 1
    %p49 = scmp.ne.s32.totalorder %s44, %s46
    %p50 = scmp.eq.s32.totalorder %s10, 0
    %p51 = por %p49, %p50
    %p52 = scmp.ne.s32.totalorder %s44, %s46
    %p53 = scmp.eq.s32.totalorder %s15, 1
    %p54 = por %p52, %p53
    %p55 = scmp.ne.s32.totalorder %s46, %s47
    %p56 = scmp.eq.s32.totalorder %s15, 0
    %p57 = por %p55, %p56
    %p58 = scmp.ne.s32.totalorder %s46, %s47
    %p59 = scmp.eq.s32.totalorder %s16, 1
    %p60 = por %p58, %p59
    %p62 = scmp.ne.s32.totalorder %s47, %s61
    %p63 = scmp.eq.s32.totalorder %s16, 0
    %p64 = por %p62, %p63
    %s65 = ssub.s32 %s10, %s17
    %p66 = scmp.eq.s32.totalorder %s65, 0
    %s68 = sadd.s32 %s67, 1
    %s69 = scalar_select %p66, %s67, %s68
    %p72 = pneg %p66
    %p73 = scmp.eq.s32.totalorder %s10, 1
    %p74 = por %p72, %p73
    %p75 = scmp.ne.s32.totalorder %s67, %s70
    %p76 = scmp.eq.s32.totalorder %s10, 0
    %p77 = por %p75, %p76
    %p78 = scmp.ne.s32.totalorder %s67, %s70
    %p79 = scmp.eq.s32.totalorder %s15, 1
    %p80 = por %p78, %p79
    %p81 = scmp.ne.s32.totalorder %s70, %s71
    %p82 = scmp.eq.s32.totalorder %s15, 0
    %p83 = por %p81, %p82
    %p84 = scmp.ne.s32.totalorder %s70, %s71
    %p85 = scmp.eq.s32.totalorder %s16, 1
    %p86 = por %p84, %p85
    %p88 = scmp.ne.s32.totalorder %s71, %s87
    %p89 = scmp.eq.s32.totalorder %s16, 0
    %p90 = por %p88, %p89
    %s92 = sadd.s32 %s91, 1
    %p95 = scmp.eq.s32.totalorder %s10, 1
    %p96 = scmp.ne.s32.totalorder %s91, %s93
    %p97 = scmp.eq.s32.totalorder %s10, 0
    %p98 = por %p96, %p97
    %p99 = scmp.ne.s32.totalorder %s91, %s93
    %p100 = scmp.eq.s32.totalorder %s15, 1
    %p101 = por %p99, %p100
    %p102 = scmp.ne.s32.totalorder %s93, %s94
    %p103 = scmp.eq.s32.totalorder %s15, 0
    %p104 = por %p102, %p103
    %p105 = scmp.ne.s32.totalorder %s93, %s94
    %p106 = scmp.eq.s32.totalorder %s16, 1
    %p107 = por %p105, %p106
    %p109 = scmp.ne.s32.totalorder %s94, %s108
    %p110 = scmp.eq.s32.totalorder %s16, 0
    %p111 = por %p109, %p110
    %p112 = scmp.le.s32.totalorder 1, %s10
    %p113 = scmp.lt.s32.totalorder %s10, 3
    %p114 = pnand %p112, %p113
    %p115 = pneg %p114
    // Predicated region
    $region9: #{conv_transpose_block_forward.3} parent=5 // pred_check
      _
    $region10: #{conv_transpose_block_forward.3} parent=5 // pred_check_branch
      %117 = sbr.rel (%p114) target = $region12
    $region11: #{conv_transpose_block_forward.3} parent=5 // pred_region
      %s118 = ssub.s32 %s10, 1
      // Predicated region
      $region13: #{conv_transpose_block_forward.3} parent=11 // pred_check
        %p119 = pneg %p57
      $region14: #{conv_transpose_block_forward.3} parent=11 // pred_check_branch
        %121 = sbr.rel (%p119) target = $region16
      $region15: #{conv_transpose_block_forward.3} parent=11 // pred_region
        _
      $region16: #{conv_transpose_block_forward.3} parent=11 // pred_fallthru
        _
    $region12: #{conv_transpose_block_forward.3} parent=5 // pred_fallthru
      _
    %p122 = scmp.lt.s32.totalorder %s10, 2
    // Predicated region
    $region17: #{conv_transpose_block_forward.3} parent=5 // pred_check
      %p123 = pneg %p122
    $region18: #{conv_transpose_block_forward.3} parent=5 // pred_check_branch
      %125 = sbr.rel (%p123) target = $region20
    $region19: #{conv_transpose_block_forward.3} parent=5 // pred_region
      // Predicated region
      $region21: #{conv_transpose_block_forward.3} parent=19 // pred_check
        %p126 = pneg %p30
      $region22: #{conv_transpose_block_forward.3} parent=19 // pred_check_branch
        %128 = sbr.rel (%p126) target = $region24
      $region23: #{conv_transpose_block_forward.3} parent=19 // pred_region
        %p129 = scmp.lt.s32.totalorder %s10, 1
        %s130 = scalar_select %p129, %s10, 1
        %s131 = smul.addr %s130, 54
        %s132 = smul.addr %s131, 4
        %s133 = scalar_lea.vmem %s0, %s132
      $region24: #{conv_transpose_block_forward.3} parent=19 // pred_fallthru
        _
    $region20: #{conv_transpose_block_forward.3} parent=5 // pred_fallthru
      _
    %p134 = scmp.le.s32.totalorder 1, %s10
    %p135 = scmp.lt.s32.totalorder %s10, 3
    %p136 = pnand %p134, %p135
    %p137 = pneg %p136
    // Predicated region
    $region25: #{conv_transpose_block_forward.3} parent=5 // pred_check
      _
    $region26: #{conv_transpose_block_forward.3} parent=5 // pred_check_branch
      %139 = sbr.rel (%p136) target = $region28
    $region27: #{conv_transpose_block_forward.3} parent=5 // pred_region
      %s140 = ssub.s32 %s10, 1
      %p141 = scmp.lt.s32.totalorder %s15, 1
      %s142 = scalar_select %p141, %s15, 1
      %s143 = smul.addr %s142, 54
      %s144 = smul.addr %s143, 4
      %s145 = scalar_lea.vmem %s0, %s144
      %p146 = pneg %p36
      %p147 = pneg %p33
      %p148 = pneg %p57
      %p149 = pneg %p54
      %p150 = pneg %p83
      %p151 = pneg %p80
      %p152 = scmp.lt.s32.totalorder %s15, 1
      %s153 = scalar_select %p152, %s15, 1
      %s154 = smul.addr %s153, 32
      %s155 = smul.addr %s154, 4
      %s156 = scalar_lea.vmem %s2, %s155
      %p157 = pneg %p104
      %p158 = pneg %p101
      %p159 = scmp.lt.s32.totalorder %s15, 1
      %s160 = scalar_select %p159, %s15, 1
      %s161 = smul.addr %s160, 54
      %s162 = smul.addr %s161, 4
      %s163 = scalar_lea.vmem %s0, %s162
      %p164 = scmp.lt.s32.totalorder %s15, 1
      %s165 = scalar_select %p164, %s15, 1
      %s166 = smul.addr %s165, 32
      %s167 = smul.addr %s166, 4
      %s168 = scalar_lea.vmem %s2, %s167
      %v170 = vld [vmem:[%s163] sm:$0xf]
      %v171 = vld [vmem:[%s163 + $0x4] sm:$0xf]
      %v172 = vld [vmem:[%s163 + $0xc] sm:$0xf]
      %v173 = vld [vmem:[%s163 + $0x10] sm:$0xf]
      %v174 = vld [vmem:[%s163 + $0x18] sm:$0xf]
      %v175 = vld [vmem:[%s163 + $0x1c] sm:$0xf]
      %v176 = vld [vmem:[%s163 + $0x24] sm:$0xf]
      %v177 = vld [vmem:[%s163 + $0x28] sm:$0xf]
      %v178 = vld [vmem:[%s163 + $0x30] sm:$0xf]
      %v179 = vld [vmem:[%s163 + $0x34] sm:$0xf]
      %v180 = vld [vmem:[%s163 + $0x3c] sm:$0xf]
      %v181 = vld [vmem:[%s163 + $0x40] sm:$0xf]
      %v182 = vld [vmem:[%s163 + $0x48] sm:$0xf]
      %v183 = vld [vmem:[%s163 + $0x4c] sm:$0xf]
      %v184 = vld [vmem:[%s163 + $0x54] sm:$0xf]
      %v185 = vld [vmem:[%s163 + $0x58] sm:$0xf]
      %v186 = vld [vmem:[%s163 + $0x60] sm:$0xf]
      %v187 = vld [vmem:[%s163 + $0x64] sm:$0xf]
      %v188 = vld [vmem:[%s163 + $0x6c] sm:$0xf]
      %v189 = vld [vmem:[%s163 + $0x70] sm:$0xf]
      %v190 = vld [vmem:[%s163 + $0x78] sm:$0xf]
      %v191 = vld [vmem:[%s163 + $0x7c] sm:$0xf]
      %v192 = vld [vmem:[%s163 + $0x84] sm:$0xf]
      %v193 = vld [vmem:[%s163 + $0x88] sm:$0xf]
      %v194 = vld [vmem:[%s163 + $0x90] sm:$0xf]
      %v195 = vld [vmem:[%s163 + $0x94] sm:$0xf]
      %v196 = vld [vmem:[%s163 + $0x9c] sm:$0xf]
      %v197 = vld [vmem:[%s163 + $0xa0] sm:$0xf]
      %v198 = vld [vmem:[%s163 + $0xa8] sm:$0xf]
      %v199 = vld [vmem:[%s163 + $0xac] sm:$0xf]
      %v200 = vld [vmem:[%s163 + $0xb4] sm:$0xf]
      %v201 = vld [vmem:[%s163 + $0xb8] sm:$0xf]
      %v202 = vld [vmem:[%s163 + $0xc0] sm:$0xf]
      %v203 = vld [vmem:[%s163 + $0xc4] sm:$0xf]
      %v204 = vld [vmem:[%s163 + $0xcc] sm:$0xf]
      %v205 = vld [vmem:[%s163 + $0xd0] sm:$0xf]
      %206 = vst [vmem:[#allocation2] sm:$0xf] %v170
      %207 = vst [vmem:[#allocation2 + $0xc] sm:$0xf] %v171
      %208 = vst [vmem:[#allocation2 + $0x18] sm:$0xf] %v172
      %209 = vst [vmem:[#allocation2 + $0x24] sm:$0xf] %v173
      %210 = vst [vmem:[#allocation2 + $0x30] sm:$0xf] %v174
      %211 = vst [vmem:[#allocation2 + $0x3c] sm:$0xf] %v175
      %212 = vst [vmem:[#allocation2 + $0x48] sm:$0xf] %v176
      %213 = vst [vmem:[#allocation2 + $0x54] sm:$0xf] %v177
      %214 = vst [vmem:[#allocation2 + $0x60] sm:$0xf] %v178
      %215 = vst [vmem:[#allocation2 + $0x6c] sm:$0xf] %v179
      %216 = vst [vmem:[#allocation2 + $0x78] sm:$0xf] %v180
      %217 = vst [vmem:[#allocation2 + $0x84] sm:$0xf] %v181
      %218 = vst [vmem:[#allocation2 + $0x90] sm:$0xf] %v182
      %219 = vst [vmem:[#allocation2 + $0x9c] sm:$0xf] %v183
      %220 = vst [vmem:[#allocation2 + $0xa8] sm:$0xf] %v184
      %221 = vst [vmem:[#allocation2 + $0xb4] sm:$0xf] %v185
      %222 = vst [vmem:[#allocation2 + $0xc0] sm:$0xf] %v186
      %223 = vst [vmem:[#allocation2 + $0xcc] sm:$0xf] %v187
      %224 = vst [vmem:[#allocation2 + $0xd8] sm:$0xf] %v188
      %225 = vst [vmem:[#allocation2 + $0xe4] sm:$0xf] %v189
      %226 = vst [vmem:[#allocation2 + $0xf0] sm:$0xf] %v190
      %227 = vst [vmem:[#allocation2 + $0xfc] sm:$0xf] %v191
      %228 = vst [vmem:[#allocation2 + $0x108] sm:$0xf] %v192
      %229 = vst [vmem:[#allocation2 + $0x114] sm:$0xf] %v193
      %230 = vst [vmem:[#allocation2 + $0x120] sm:$0xf] %v194
      %231 = vst [vmem:[#allocation2 + $0x12c] sm:$0xf] %v195
      %232 = vst [vmem:[#allocation2 + $0x138] sm:$0xf] %v196
      %233 = vst [vmem:[#allocation2 + $0x144] sm:$0xf] %v197
      %234 = vst [vmem:[#allocation2 + $0x150] sm:$0xf] %v198
      %235 = vst [vmem:[#allocation2 + $0x15c] sm:$0xf] %v199
      %236 = vst [vmem:[#allocation2 + $0x168] sm:$0xf] %v200
      %237 = vst [vmem:[#allocation2 + $0x174] sm:$0xf] %v201
      %238 = vst [vmem:[#allocation2 + $0x180] sm:$0xf] %v202
      %239 = vst [vmem:[#allocation2 + $0x18c] sm:$0xf] %v203
      %240 = vst [vmem:[#allocation2 + $0x198] sm:$0xf] %v204
      %241 = vst [vmem:[#allocation2 + $0x1a4] sm:$0xf] %v205
      %v242 = vld [vmem:[%s163] sm:$0xf]
      %v243 = vld [vmem:[%s163 + $0x4] sm:$0xf]
      %v244 = vld [vmem:[%s163 + $0x8] sm:$0x1]
      %v245 = vld [vmem:[%s163 + $0xc] sm:$0xf]
      %v246 = vld [vmem:[%s163 + $0x10] sm:$0xf]
      %v247 = vld [vmem:[%s163 + $0x14] sm:$0x1]
      %v248 = vld [vmem:[%s163 + $0x18] sm:$0xf]
      %v249 = vld [vmem:[%s163 + $0x1c] sm:$0xf]
      %v250 = vld [vmem:[%s163 + $0x20] sm:$0x1]
      %v251 = vld [vmem:[%s163 + $0x24] sm:$0xf]
      %v252 = vld [vmem:[%s163 + $0x28] sm:$0xf]
      %v253 = vld [vmem:[%s163 + $0x2c] sm:$0x1]
      %v254 = vld [vmem:[%s163 + $0x30] sm:$0xf]
      %v255 = vld [vmem:[%s163 + $0x34] sm:$0xf]
      %v256 = vld [vmem:[%s163 + $0x38] sm:$0x1]
      %v257 = vld [vmem:[%s163 + $0x3c] sm:$0xf]
      %v258 = vld [vmem:[%s163 + $0x40] sm:$0xf]
      %v259 = vld [vmem:[%s163 + $0x44] sm:$0x1]
      %v260 = vld [vmem:[%s163 + $0x48] sm:$0xf]
      %v261 = vld [vmem:[%s163 + $0x4c] sm:$0xf]
      %v262 = vld [vmem:[%s163 + $0x50] sm:$0x1]
      %v263 = vld [vmem:[%s163 + $0x54] sm:$0xf]
      %v264 = vld [vmem:[%s163 + $0x58] sm:$0xf]
      %v265 = vld [vmem:[%s163 + $0x5c] sm:$0x1]
      %v266 = vld [vmem:[%s163 + $0x60] sm:$0xf]
      %v267 = vld [vmem:[%s163 + $0x64] sm:$0xf]
      %v268 = vld [vmem:[%s163 + $0x68] sm:$0x1]
      %v269 = vld [vmem:[%s163 + $0x6c] sm:$0xf]
      %v270 = vld [vmem:[%s163 + $0x70] sm:$0xf]
      %v271 = vld [vmem:[%s163 + $0x74] sm:$0x1]
      %v272 = vld [vmem:[%s163 + $0x78] sm:$0xf]
      %v273 = vld [vmem:[%s163 + $0x7c] sm:$0xf]
      %v274 = vld [vmem:[%s163 + $0x80] sm:$0x1]
      %v275 = vld [vmem:[%s163 + $0x84] sm:$0xf]
      %v276 = vld [vmem:[%s163 + $0x88] sm:$0xf]
      %v277 = vld [vmem:[%s163 + $0x8c] sm:$0x1]
      %v278 = vld [vmem:[%s163 + $0x90] sm:$0xf]
      %v279 = vld [vmem:[%s163 + $0x94] sm:$0xf]
      %v280 = vld [vmem:[%s163 + $0x98] sm:$0x1]
      %v281 = vld [vmem:[%s163 + $0x9c] sm:$0xf]
      %v282 = vld [vmem:[%s163 + $0xa0] sm:$0xf]
      %v283 = vld [vmem:[%s163 + $0xa4] sm:$0x1]
      %v284 = vld [vmem:[%s163 + $0xa8] sm:$0xf]
      %v285 = vld [vmem:[%s163 + $0xac] sm:$0xf]
      %v286 = vld [vmem:[%s163 + $0xb0] sm:$0x1]
      %v287 = vld [vmem:[%s163 + $0xb4] sm:$0xf]
      %v288 = vld [vmem:[%s163 + $0xb8] sm:$0xf]
      %v289 = vld [vmem:[%s163 + $0xbc] sm:$0x1]
      %v290 = vld [vmem:[%s163 + $0xc0] sm:$0xf]
      %v291 = vld [vmem:[%s163 + $0xc4] sm:$0xf]
      %v292 = vld [vmem:[%s163 + $0xc8] sm:$0x1]
      %v293 = vld [vmem:[%s163 + $0xcc] sm:$0xf]
      %v294 = vld [vmem:[%s163 + $0xd0] sm:$0xf]
      %v295 = vld [vmem:[%s163 + $0xd4] sm:$0x1]
      %vm296 = vsmask.f32 3328
      %vm297 = vsmask.f32 7440
      %vm298 = vmor %vm296, %vm297
      %v300 = vshrl.u32 %v242, 16
      %v302 = vrot.slane %v300, 4
      %v303 = vshll.u32 %v242, 16
      %v305 = vrot.slane %v303, 5
      %v306 = vor.u32 %v302, %v305
      %v307 = vrot.slane %v306, 4
      %v309 = vshll.u32 %v243, 16
      %v311 = vrot.slane %v309, 5
      %v312 = vsel %vm298, %v307, %v311
      %v313 = vshrl.u32 %v243, 16
      %v315 = vrot.slane %v313, 4
      %v316 = vor.u32 %v315, %v311
      %v317 = vrot.slane %v316, 4
      %v319 = vshll.u32 %v244, 16
      %v321 = vrot.slane %v319, 5
      %v322 = vsel %vm298, %v317, %v321
      %v324 = vshrl.u32 %v245, 16
      %v326 = vrot.slane %v324, 4
      %v327 = vshll.u32 %v245, 16
      %v329 = vrot.slane %v327, 5
      %v330 = vor.u32 %v326, %v329
      %v331 = vrot.slane %v330, 4
      %v333 = vshll.u32 %v246, 16
      %v335 = vrot.slane %v333, 5
      %v336 = vsel %vm298, %v331, %v335
      %v337 = vshrl.u32 %v246, 16
      %v339 = vrot.slane %v337, 4
      %v340 = vor.u32 %v339, %v335
      %v341 = vrot.slane %v340, 4
      %v343 = vshll.u32 %v247, 16
      %v345 = vrot.slane %v343, 5
      %v346 = vsel %vm298, %v341, %v345
      %v348 = vshrl.u32 %v248, 16
      %v350 = vrot.slane %v348, 4
      %v351 = vshll.u32 %v248, 16
      %v353 = vrot.slane %v351, 5
      %v354 = vor.u32 %v350, %v353
      %v355 = vrot.slane %v354, 4
      %v357 = vshll.u32 %v249, 16
      %v359 = vrot.slane %v357, 5
      %v360 = vsel %vm298, %v355, %v359
      %v361 = vshrl.u32 %v249, 16
      %v363 = vrot.slane %v361, 4
      %v364 = vor.u32 %v363, %v359
      %v365 = vrot.slane %v364, 4
      %v367 = vshll.u32 %v250, 16
      %v369 = vrot.slane %v367, 5
      %v370 = vsel %vm298, %v365, %v369
      %v372 = vshrl.u32 %v251, 16
      %v374 = vrot.slane %v372, 4
      %v375 = vshll.u32 %v251, 16
      %v377 = vrot.slane %v375, 5
      %v378 = vor.u32 %v374, %v377
      %v379 = vrot.slane %v378, 4
      %v381 = vshll.u32 %v252, 16
      %v383 = vrot.slane %v381, 5
      %v384 = vsel %vm298, %v379, %v383
      %v385 = vshrl.u32 %v252, 16
      %v387 = vrot.slane %v385, 4
      %v388 = vor.u32 %v387, %v383
      %v389 = vrot.slane %v388, 4
      %v391 = vshll.u32 %v253, 16
      %v393 = vrot.slane %v391, 5
      %v394 = vsel %vm298, %v389, %v393
      %v396 = vshrl.u32 %v254, 16
      %v398 = vrot.slane %v396, 4
      %v399 = vshll.u32 %v254, 16
      %v401 = vrot.slane %v399, 5
      %v402 = vor.u32 %v398, %v401
      %v403 = vrot.slane %v402, 4
      %v405 = vshll.u32 %v255, 16
      %v407 = vrot.slane %v405, 5
      %v408 = vsel %vm298, %v403, %v407
      %v409 = vshrl.u32 %v255, 16
      %v411 = vrot.slane %v409, 4
      %v412 = vor.u32 %v411, %v407
      %v413 = vrot.slane %v412, 4
      %v415 = vshll.u32 %v256, 16
      %v417 = vrot.slane %v415, 5
      %v418 = vsel %vm298, %v413, %v417
      %v420 = vshrl.u32 %v257, 16
      %v422 = vrot.slane %v420, 4
      %v423 = vshll.u32 %v257, 16
      %v425 = vrot.slane %v423, 5
      %v426 = vor.u32 %v422, %v425
      %v427 = vrot.slane %v426, 4
      %v429 = vshll.u32 %v258, 16
      %v431 = vrot.slane %v429, 5
      %v432 = vsel %vm298, %v427, %v431
      %v433 = vshrl.u32 %v258, 16
      %v435 = vrot.slane %v433, 4
      %v436 = vor.u32 %v435, %v431
      %v437 = vrot.slane %v436, 4
      %v439 = vshll.u32 %v259, 16
      %v441 = vrot.slane %v439, 5
      %v442 = vsel %vm298, %v437, %v441
      %v444 = vshrl.u32 %v260, 16
      %v446 = vrot.slane %v444, 4
      %v447 = vshll.u32 %v260, 16
      %v449 = vrot.slane %v447, 5
      %v450 = vor.u32 %v446, %v449
      %v451 = vrot.slane %v450, 4
      %v453 = vshll.u32 %v261, 16
      %v455 = vrot.slane %v453, 5
      %v456 = vsel %vm298, %v451, %v455
      %v457 = vshrl.u32 %v261, 16
      %v459 = vrot.slane %v457, 4
      %v460 = vor.u32 %v459, %v455
      %v461 = vrot.slane %v460, 4
      %v463 = vshll.u32 %v262, 16
      %v465 = vrot.slane %v463, 5
      %v466 = vsel %vm298, %v461, %v465
      %v468 = vshrl.u32 %v263, 16
      %v470 = vrot.slane %v468, 4
      %v471 = vshll.u32 %v263, 16
      %v473 = vrot.slane %v471, 5
      %v474 = vor.u32 %v470, %v473
      %v475 = vrot.slane %v474, 4
      %v477 = vshll.u32 %v264, 16
      %v479 = vrot.slane %v477, 5
      %v480 = vsel %vm298, %v475, %v479
      %v481 = vshrl.u32 %v264, 16
      %v483 = vrot.slane %v481, 4
      %v484 = vor.u32 %v483, %v479
      %v485 = vrot.slane %v484, 4
      %v487 = vshll.u32 %v265, 16
      %v489 = vrot.slane %v487, 5
      %v490 = vsel %vm298, %v485, %v489
      %v492 = vshrl.u32 %v266, 16
      %v494 = vrot.slane %v492, 4
      %v495 = vshll.u32 %v266, 16
      %v497 = vrot.slane %v495, 5
      %v498 = vor.u32 %v494, %v497
      %v499 = vrot.slane %v498, 4
      %v501 = vshll.u32 %v267, 16
      %v503 = vrot.slane %v501, 5
      %v504 = vsel %vm298, %v499, %v503
      %v505 = vshrl.u32 %v267, 16
      %v507 = vrot.slane %v505, 4
      %v508 = vor.u32 %v507, %v503
      %v509 = vrot.slane %v508, 4
      %v511 = vshll.u32 %v268, 16
      %v513 = vrot.slane %v511, 5
      %v514 = vsel %vm298, %v509, %v513
      %v516 = vshrl.u32 %v269, 16
      %v518 = vrot.slane %v516, 4
      %v519 = vshll.u32 %v269, 16
      %v521 = vrot.slane %v519, 5
      %v522 = vor.u32 %v518, %v521
      %v523 = vrot.slane %v522, 4
      %v525 = vshll.u32 %v270, 16
      %v527 = vrot.slane %v525, 5
      %v528 = vsel %vm298, %v523, %v527
      %v529 = vshrl.u32 %v270, 16
      %v531 = vrot.slane %v529, 4
      %v532 = vor.u32 %v531, %v527
      %v533 = vrot.slane %v532, 4
      %v535 = vshll.u32 %v271, 16
      %v537 = vrot.slane %v535, 5
      %v538 = vsel %vm298, %v533, %v537
      %v540 = vshrl.u32 %v272, 16
      %v542 = vrot.slane %v540, 4
      %v543 = vshll.u32 %v272, 16
      %v545 = vrot.slane %v543, 5
      %v546 = vor.u32 %v542, %v545
      %v547 = vrot.slane %v546, 4
      %v549 = vshll.u32 %v273, 16
      %v551 = vrot.slane %v549, 5
      %v552 = vsel %vm298, %v547, %v551
      %v553 = vshrl.u32 %v273, 16
      %v555 = vrot.slane %v553, 4
      %v556 = vor.u32 %v555, %v551
      %v557 = vrot.slane %v556, 4
      %v559 = vshll.u32 %v274, 16
      %v561 = vrot.slane %v559, 5
      %v562 = vsel %vm298, %v557, %v561
      %v564 = vshrl.u32 %v275, 16
      %v566 = vrot.slane %v564, 4
      %v567 = vshll.u32 %v275, 16
      %v569 = vrot.slane %v567, 5
      %v570 = vor.u32 %v566, %v569
      %v571 = vrot.slane %v570, 4
      %v573 = vshll.u32 %v276, 16
      %v575 = vrot.slane %v573, 5
      %v576 = vsel %vm298, %v571, %v575
      %v577 = vshrl.u32 %v276, 16
      %v579 = vrot.slane %v577, 4
      %v580 = vor.u32 %v579, %v575
      %v581 = vrot.slane %v580, 4
      %v583 = vshll.u32 %v277, 16
      %v585 = vrot.slane %v583, 5
      %v586 = vsel %vm298, %v581, %v585
      %v588 = vshrl.u32 %v278, 16
      %v590 = vrot.slane %v588, 4
      %v591 = vshll.u32 %v278, 16
      %v593 = vrot.slane %v591, 5
      %v594 = vor.u32 %v590, %v593
      %v595 = vrot.slane %v594, 4
      %v597 = vshll.u32 %v279, 16
      %v599 = vrot.slane %v597, 5
      %v600 = vsel %vm298, %v595, %v599
      %v601 = vshrl.u32 %v279, 16
      %v603 = vrot.slane %v601, 4
      %v604 = vor.u32 %v603, %v599
      %v605 = vrot.slane %v604, 4
      %v607 = vshll.u32 %v280, 16
      %v609 = vrot.slane %v607, 5
      %v610 = vsel %vm298, %v605, %v609
      %v612 = vshrl.u32 %v281, 16
      %v614 = vrot.slane %v612, 4
      %v615 = vshll.u32 %v281, 16
      %v617 = vrot.slane %v615, 5
      %v618 = vor.u32 %v614, %v617
      %v619 = vrot.slane %v618, 4
      %v621 = vshll.u32 %v282, 16
      %v623 = vrot.slane %v621, 5
      %v624 = vsel %vm298, %v619, %v623
      %v625 = vshrl.u32 %v282, 16
      %v627 = vrot.slane %v625, 4
      %v628 = vor.u32 %v627, %v623
      %v629 = vrot.slane %v628, 4
      %v631 = vshll.u32 %v283, 16
      %v633 = vrot.slane %v631, 5
      %v634 = vsel %vm298, %v629, %v633
      %v636 = vshrl.u32 %v284, 16
      %v638 = vrot.slane %v636, 4
      %v639 = vshll.u32 %v284, 16
      %v641 = vrot.slane %v639, 5
      %v642 = vor.u32 %v638, %v641
      %v643 = vrot.slane %v642, 4
      %v645 = vshll.u32 %v285, 16
      %v647 = vrot.slane %v645, 5
      %v648 = vsel %vm298, %v643, %v647
      %v649 = vshrl.u32 %v285, 16
      %v651 = vrot.slane %v649, 4
      %v652 = vor.u32 %v651, %v647
      %v653 = vrot.slane %v652, 4
      %v655 = vshll.u32 %v286, 16
      %v657 = vrot.slane %v655, 5
      %v658 = vsel %vm298, %v653, %v657
      %v660 = vshrl.u32 %v287, 16
      %v662 = vrot.slane %v660, 4
      %v663 = vshll.u32 %v287, 16
      %v665 = vrot.slane %v663, 5
      %v666 = vor.u32 %v662, %v665
      %v667 = vrot.slane %v666, 4
      %v669 = vshll.u32 %v288, 16
      %v671 = vrot.slane %v669, 5
      %v672 = vsel %vm298, %v667, %v671
      %v673 = vshrl.u32 %v288, 16
      %v675 = vrot.slane %v673, 4
      %v676 = vor.u32 %v675, %v671
      %v677 = vrot.slane %v676, 4
      %v679 = vshll.u32 %v289, 16
      %v681 = vrot.slane %v679, 5
      %v682 = vsel %vm298, %v677, %v681
      %v684 = vshrl.u32 %v290, 16
      %v686 = vrot.slane %v684, 4
      %v687 = vshll.u32 %v290, 16
      %v689 = vrot.slane %v687, 5
      %v690 = vor.u32 %v686, %v689
      %v691 = vrot.slane %v690, 4
      %v693 = vshll.u32 %v291, 16
      %v695 = vrot.slane %v693, 5
      %v696 = vsel %vm298, %v691, %v695
      %v697 = vshrl.u32 %v291, 16
      %v699 = vrot.slane %v697, 4
      %v700 = vor.u32 %v699, %v695
      %v701 = vrot.slane %v700, 4
      %v703 = vshll.u32 %v292, 16
      %v705 = vrot.slane %v703, 5
      %v706 = vsel %vm298, %v701, %v705
      %v708 = vshrl.u32 %v293, 16
      %v710 = vrot.slane %v708, 4
      %v711 = vshll.u32 %v293, 16
      %v713 = vrot.slane %v711, 5
      %v714 = vor.u32 %v710, %v713
      %v715 = vrot.slane %v714, 4
      %v717 = vshll.u32 %v294, 16
      %v719 = vrot.slane %v717, 5
      %v720 = vsel %vm298, %v715, %v719
      %v721 = vshrl.u32 %v294, 16
      %v723 = vrot.slane %v721, 4
      %v724 = vor.u32 %v723, %v719
      %v725 = vrot.slane %v724, 4
      %v727 = vshll.u32 %v295, 16
      %v729 = vrot.slane %v727, 5
      %v730 = vsel %vm298, %v725, %v729
      %767 = vst [vmem:[#allocation2 + $0x4] sm:$0xf] %v312
      %768 = vst [vmem:[#allocation2 + $0x10] sm:$0xf] %v322
      %769 = vst [vmem:[#allocation2 + $0x1c] sm:$0xf] %v336
      %770 = vst [vmem:[#allocation2 + $0x28] sm:$0xf] %v346
      %771 = vst [vmem:[#allocation2 + $0x34] sm:$0xf] %v360
      %772 = vst [vmem:[#allocation2 + $0x40] sm:$0xf] %v370
      %773 = vst [vmem:[#allocation2 + $0x4c] sm:$0xf] %v384
      %774 = vst [vmem:[#allocation2 + $0x58] sm:$0xf] %v394
      %775 = vst [vmem:[#allocation2 + $0x64] sm:$0xf] %v408
      %776 = vst [vmem:[#allocation2 + $0x70] sm:$0xf] %v418
      %777 = vst [vmem:[#allocation2 + $0x7c] sm:$0xf] %v432
      %778 = vst [vmem:[#allocation2 + $0x88] sm:$0xf] %v442
      %779 = vst [vmem:[#allocation2 + $0x94] sm:$0xf] %v456
      %780 = vst [vmem:[#allocation2 + $0xa0] sm:$0xf] %v466
      %781 = vst [vmem:[#allocation2 + $0xac] sm:$0xf] %v480
      %782 = vst [vmem:[#allocation2 + $0xb8] sm:$0xf] %v490
      %783 = vst [vmem:[#allocation2 + $0xc4] sm:$0xf] %v504
      %784 = vst [vmem:[#allocation2 + $0xd0] sm:$0xf] %v514
      %785 = vst [vmem:[#allocation2 + $0xdc] sm:$0xf] %v528
      %786 = vst [vmem:[#allocation2 + $0xe8] sm:$0xf] %v538
      %787 = vst [vmem:[#allocation2 + $0xf4] sm:$0xf] %v552
      %788 = vst [vmem:[#allocation2 + $0x100] sm:$0xf] %v562
      %789 = vst [vmem:[#allocation2 + $0x10c] sm:$0xf] %v576
      %790 = vst [vmem:[#allocation2 + $0x118] sm:$0xf] %v586
      %791 = vst [vmem:[#allocation2 + $0x124] sm:$0xf] %v600
      %792 = vst [vmem:[#allocation2 + $0x130] sm:$0xf] %v610
      %793 = vst [vmem:[#allocation2 + $0x13c] sm:$0xf] %v624
      %794 = vst [vmem:[#allocation2 + $0x148] sm:$0xf] %v634
      %795 = vst [vmem:[#allocation2 + $0x154] sm:$0xf] %v648
      %796 = vst [vmem:[#allocation2 + $0x160] sm:$0xf] %v658
      %797 = vst [vmem:[#allocation2 + $0x16c] sm:$0xf] %v672
      %798 = vst [vmem:[#allocation2 + $0x178] sm:$0xf] %v682
      %799 = vst [vmem:[#allocation2 + $0x184] sm:$0xf] %v696
      %800 = vst [vmem:[#allocation2 + $0x190] sm:$0xf] %v706
      %801 = vst [vmem:[#allocation2 + $0x19c] sm:$0xf] %v720
      %802 = vst [vmem:[#allocation2 + $0x1a8] sm:$0xf] %v730
      %v803 = vld [vmem:[%s163] sm:$0xe]
      %v804 = vld [vmem:[%s163 + $0x4] sm:$0xf]
      %v805 = vld [vmem:[%s163 + $0x8] sm:$0x1]
      %v806 = vld [vmem:[%s163 + $0xc] sm:$0xe]
      %v807 = vld [vmem:[%s163 + $0x10] sm:$0xf]
      %v808 = vld [vmem:[%s163 + $0x14] sm:$0x1]
      %v809 = vld [vmem:[%s163 + $0x18] sm:$0xe]
      %v810 = vld [vmem:[%s163 + $0x1c] sm:$0xf]
      %v811 = vld [vmem:[%s163 + $0x20] sm:$0x1]
      %v812 = vld [vmem:[%s163 + $0x24] sm:$0xe]
      %v813 = vld [vmem:[%s163 + $0x28] sm:$0xf]
      %v814 = vld [vmem:[%s163 + $0x2c] sm:$0x1]
      %v815 = vld [vmem:[%s163 + $0x30] sm:$0xe]
      %v816 = vld [vmem:[%s163 + $0x34] sm:$0xf]
      %v817 = vld [vmem:[%s163 + $0x38] sm:$0x1]
      %v818 = vld [vmem:[%s163 + $0x3c] sm:$0xe]
      %v819 = vld [vmem:[%s163 + $0x40] sm:$0xf]
      %v820 = vld [vmem:[%s163 + $0x44] sm:$0x1]
      %v821 = vld [vmem:[%s163 + $0x48] sm:$0xe]
      %v822 = vld [vmem:[%s163 + $0x4c] sm:$0xf]
      %v823 = vld [vmem:[%s163 + $0x50] sm:$0x1]
      %v824 = vld [vmem:[%s163 + $0x54] sm:$0xe]
      %v825 = vld [vmem:[%s163 + $0x58] sm:$0xf]
      %v826 = vld [vmem:[%s163 + $0x5c] sm:$0x1]
      %v827 = vld [vmem:[%s163 + $0x60] sm:$0xe]
      %v828 = vld [vmem:[%s163 + $0x64] sm:$0xf]
      %v829 = vld [vmem:[%s163 + $0x68] sm:$0x1]
      %v830 = vld [vmem:[%s163 + $0x6c] sm:$0xe]
      %v831 = vld [vmem:[%s163 + $0x70] sm:$0xf]
      %v832 = vld [vmem:[%s163 + $0x74] sm:$0x1]
      %v833 = vld [vmem:[%s163 + $0x78] sm:$0xe]
      %v834 = vld [vmem:[%s163 + $0x7c] sm:$0xf]
      %v835 = vld [vmem:[%s163 + $0x80] sm:$0x1]
      %v836 = vld [vmem:[%s163 + $0x84] sm:$0xe]
      %v837 = vld [vmem:[%s163 + $0x88] sm:$0xf]
      %v838 = vld [vmem:[%s163 + $0x8c] sm:$0x1]
      %v839 = vld [vmem:[%s163 + $0x90] sm:$0xe]
      %v840 = vld [vmem:[%s163 + $0x94] sm:$0xf]
      %v841 = vld [vmem:[%s163 + $0x98] sm:$0x1]
      %v842 = vld [vmem:[%s163 + $0x9c] sm:$0xe]
      %v843 = vld [vmem:[%s163 + $0xa0] sm:$0xf]
      %v844 = vld [vmem:[%s163 + $0xa4] sm:$0x1]
      %v845 = vld [vmem:[%s163 + $0xa8] sm:$0xe]
      %v846 = vld [vmem:[%s163 + $0xac] sm:$0xf]
      %v847 = vld [vmem:[%s163 + $0xb0] sm:$0x1]
      %v848 = vld [vmem:[%s163 + $0xb4] sm:$0xe]
      %v849 = vld [vmem:[%s163 + $0xb8] sm:$0xf]
      %v850 = vld [vmem:[%s163 + $0xbc] sm:$0x1]
      %v851 = vld [vmem:[%s163 + $0xc0] sm:$0xe]
      %v852 = vld [vmem:[%s163 + $0xc4] sm:$0xf]
      %v853 = vld [vmem:[%s163 + $0xc8] sm:$0x1]
      %v854 = vld [vmem:[%s163 + $0xcc] sm:$0xe]
      %v855 = vld [vmem:[%s163 + $0xd0] sm:$0xf]
      %v856 = vld [vmem:[%s163 + $0xd4] sm:$0x1]
      %vm911 = vcmask 1042432
      %vm912 = vcmask 1046532
      %vm913 = vmor %vm911, %vm912
      %v914 = vrot.slane %v803, 5
      %v915 = vrot.slane %v914, 4
      %v916 = vrot.slane %v804, 5
      %v917 = vsel %vm913, %v915, %v916
      %v918 = vrot.slane %v916, 4
      %v919 = vrot.slane %v805, 5
      %v920 = vsel %vm913, %v918, %v919
      %v921 = vrot.slane %v806, 5
      %v922 = vrot.slane %v921, 4
      %v923 = vrot.slane %v807, 5
      %v924 = vsel %vm913, %v922, %v923
      %v925 = vrot.slane %v923, 4
      %v926 = vrot.slane %v808, 5
      %v927 = vsel %vm913, %v925, %v926
      %v928 = vrot.slane %v809, 5
      %v929 = vrot.slane %v928, 4
      %v930 = vrot.slane %v810, 5
      %v931 = vsel %vm913, %v929, %v930
      %v932 = vrot.slane %v930, 4
      %v933 = vrot.slane %v811, 5
      %v934 = vsel %vm913, %v932, %v933
      %v935 = vrot.slane %v812, 5
      %v936 = vrot.slane %v935, 4
      %v937 = vrot.slane %v813, 5
      %v938 = vsel %vm913, %v936, %v937
      %v939 = vrot.slane %v937, 4
      %v940 = vrot.slane %v814, 5
      %v941 = vsel %vm913, %v939, %v940
      %v942 = vrot.slane %v815, 5
      %v943 = vrot.slane %v942, 4
      %v944 = vrot.slane %v816, 5
      %v945 = vsel %vm913, %v943, %v944
      %v946 = vrot.slane %v944, 4
      %v947 = vrot.slane %v817, 5
      %v948 = vsel %vm913, %v946, %v947
      %v949 = vrot.slane %v818, 5
      %v950 = vrot.slane %v949, 4
      %v951 = vrot.slane %v819, 5
      %v952 = vsel %vm913, %v950, %v951
      %v953 = vrot.slane %v951, 4
      %v954 = vrot.slane %v820, 5
      %v955 = vsel %vm913, %v953, %v954
      %v956 = vrot.slane %v821, 5
      %v957 = vrot.slane %v956, 4
      %v958 = vrot.slane %v822, 5
      %v959 = vsel %vm913, %v957, %v958
      %v960 = vrot.slane %v958, 4
      %v961 = vrot.slane %v823, 5
      %v962 = vsel %vm913, %v960, %v961
      %v963 = vrot.slane %v824, 5
      %v964 = vrot.slane %v963, 4
      %v965 = vrot.slane %v825, 5
      %v966 = vsel %vm913, %v964, %v965
      %v967 = vrot.slane %v965, 4
      %v968 = vrot.slane %v826, 5
      %v969 = vsel %vm913, %v967, %v968
      %v970 = vrot.slane %v827, 5
      %v971 = vrot.slane %v970, 4
      %v972 = vrot.slane %v828, 5
      %v973 = vsel %vm913, %v971, %v972
      %v974 = vrot.slane %v972, 4
      %v975 = vrot.slane %v829, 5
      %v976 = vsel %vm913, %v974, %v975
      %v977 = vrot.slane %v830, 5
      %v978 = vrot.slane %v977, 4
      %v979 = vrot.slane %v831, 5
      %v980 = vsel %vm913, %v978, %v979
      %v981 = vrot.slane %v979, 4
      %v982 = vrot.slane %v832, 5
      %v983 = vsel %vm913, %v981, %v982
      %v984 = vrot.slane %v833, 5
      %v985 = vrot.slane %v984, 4
      %v986 = vrot.slane %v834, 5
      %v987 = vsel %vm913, %v985, %v986
      %v988 = vrot.slane %v986, 4
      %v989 = vrot.slane %v835, 5
      %v990 = vsel %vm913, %v988, %v989
      %v991 = vrot.slane %v836, 5
      %v992 = vrot.slane %v991, 4
      %v993 = vrot.slane %v837, 5
      %v994 = vsel %vm913, %v992, %v993
      %v995 = vrot.slane %v993, 4
      %v996 = vrot.slane %v838, 5
      %v997 = vsel %vm913, %v995, %v996
      %v998 = vrot.slane %v839, 5
      %v999 = vrot.slane %v998, 4
      %v1000 = vrot.slane %v840, 5
      %v1001 = vsel %vm913, %v999, %v1000
      %v1002 = vrot.slane %v1000, 4
      %v1003 = vrot.slane %v841, 5
      %v1004 = vsel %vm913, %v1002, %v1003
      %v1005 = vrot.slane %v842, 5
      %v1006 = vrot.slane %v1005, 4
      %v1007 = vrot.slane %v843, 5
      %v1008 = vsel %vm913, %v1006, %v1007
      %v1009 = vrot.slane %v1007, 4
      %v1010 = vrot.slane %v844, 5
      %v1011 = vsel %vm913, %v1009, %v1010
      %v1012 = vrot.slane %v845, 5
      %v1013 = vrot.slane %v1012, 4
      %v1014 = vrot.slane %v846, 5
      %v1015 = vsel %vm913, %v1013, %v1014
      %v1016 = vrot.slane %v1014, 4
      %v1017 = vrot.slane %v847, 5
      %v1018 = vsel %vm913, %v1016, %v1017
      %v1019 = vrot.slane %v848, 5
      %v1020 = vrot.slane %v1019, 4
      %v1021 = vrot.slane %v849, 5
      %v1022 = vsel %vm913, %v1020, %v1021
      %v1023 = vrot.slane %v1021, 4
      %v1024 = vrot.slane %v850, 5
      %v1025 = vsel %vm913, %v1023, %v1024
      %v1026 = vrot.slane %v851, 5
      %v1027 = vrot.slane %v1026, 4
      %v1028 = vrot.slane %v852, 5
      %v1029 = vsel %vm913, %v1027, %v1028
      %v1030 = vrot.slane %v1028, 4
      %v1031 = vrot.slane %v853, 5
      %v1032 = vsel %vm913, %v1030, %v1031
      %v1033 = vrot.slane %v854, 5
      %v1034 = vrot.slane %v1033, 4
      %v1035 = vrot.slane %v855, 5
      %v1036 = vsel %vm913, %v1034, %v1035
      %v1037 = vrot.slane %v1035, 4
      %v1038 = vrot.slane %v856, 5
      %v1039 = vsel %vm913, %v1037, %v1038
      %1076 = vst [vmem:[#allocation2 + $0x8] sm:$0xf] %v917
      %1077 = vst [vmem:[#allocation2 + $0x14] sm:$0xf] %v920
      %1078 = vst [vmem:[#allocation2 + $0x20] sm:$0xf] %v924
      %1079 = vst [vmem:[#allocation2 + $0x2c] sm:$0xf] %v927
      %1080 = vst [vmem:[#allocation2 + $0x38] sm:$0xf] %v931
      %1081 = vst [vmem:[#allocation2 + $0x44] sm:$0xf] %v934
      %1082 = vst [vmem:[#allocation2 + $0x50] sm:$0xf] %v938
      %1083 = vst [vmem:[#allocation2 + $0x5c] sm:$0xf] %v941
      %1084 = vst [vmem:[#allocation2 + $0x68] sm:$0xf] %v945
      %1085 = vst [vmem:[#allocation2 + $0x74] sm:$0xf] %v948
      %1086 = vst [vmem:[#allocation2 + $0x80] sm:$0xf] %v952
      %1087 = vst [vmem:[#allocation2 + $0x8c] sm:$0xf] %v955
      %1088 = vst [vmem:[#allocation2 + $0x98] sm:$0xf] %v959
      %1089 = vst [vmem:[#allocation2 + $0xa4] sm:$0xf] %v962
      %1090 = vst [vmem:[#allocation2 + $0xb0] sm:$0xf] %v966
      %1091 = vst [vmem:[#allocation2 + $0xbc] sm:$0xf] %v969
      %1092 = vst [vmem:[#allocation2 + $0xc8] sm:$0xf] %v973
      %1093 = vst [vmem:[#allocation2 + $0xd4] sm:$0xf] %v976
      %1094 = vst [vmem:[#allocation2 + $0xe0] sm:$0xf] %v980
      %1095 = vst [vmem:[#allocation2 + $0xec] sm:$0xf] %v983
      %1096 = vst [vmem:[#allocation2 + $0xf8] sm:$0xf] %v987
      %1097 = vst [vmem:[#allocation2 + $0x104] sm:$0xf] %v990
      %1098 = vst [vmem:[#allocation2 + $0x110] sm:$0xf] %v994
      %1099 = vst [vmem:[#allocation2 + $0x11c] sm:$0xf] %v997
      %1100 = vst [vmem:[#allocation2 + $0x128] sm:$0xf] %v1001
      %1101 = vst [vmem:[#allocation2 + $0x134] sm:$0xf] %v1004
      %1102 = vst [vmem:[#allocation2 + $0x140] sm:$0xf] %v1008
      %1103 = vst [vmem:[#allocation2 + $0x14c] sm:$0xf] %v1011
      %1104 = vst [vmem:[#allocation2 + $0x158] sm:$0xf] %v1015
      %1105 = vst [vmem:[#allocation2 + $0x164] sm:$0xf] %v1018
      %1106 = vst [vmem:[#allocation2 + $0x170] sm:$0xf] %v1022
      %1107 = vst [vmem:[#allocation2 + $0x17c] sm:$0xf] %v1025
      %1108 = vst [vmem:[#allocation2 + $0x188] sm:$0xf] %v1029
      %1109 = vst [vmem:[#allocation2 + $0x194] sm:$0xf] %v1032
      %1110 = vst [vmem:[#allocation2 + $0x1a0] sm:$0xf] %v1036
      %1111 = vst [vmem:[#allocation2 + $0x1ac] sm:$0xf] %v1039
      %v1112 = vld [vmem:[#allocation2] sm:$0xff]
      %v1113 = vld [vmem:[#allocation2 + $0x8] sm:$0xf]
      %v1114 = vld [vmem:[#allocation2 + $0xc] sm:$0xff]
      %v1115 = vld [vmem:[#allocation2 + $0x14] sm:$0xf]
      %v1116 = vld [vmem:[#allocation2 + $0x18] sm:$0xff]
      %v1117 = vld [vmem:[#allocation2 + $0x20] sm:$0xf]
      %v1118 = vld [vmem:[#allocation2 + $0x24] sm:$0xff]
      %v1119 = vld [vmem:[#allocation2 + $0x2c] sm:$0xf]
      %v1120 = vld [vmem:[#allocation2 + $0x30] sm:$0xff]
      %v1121 = vld [vmem:[#allocation2 + $0x38] sm:$0xf]
      %v1122 = vld [vmem:[#allocation2 + $0x3c] sm:$0xff]
      %v1123 = vld [vmem:[#allocation2 + $0x44] sm:$0xf]
      %v1124 = vld [vmem:[#allocation2 + $0x48] sm:$0xff]
      %v1125 = vld [vmem:[#allocation2 + $0x50] sm:$0xf]
      %v1126 = vld [vmem:[#allocation2 + $0x54] sm:$0xff]
      %v1127 = vld [vmem:[#allocation2 + $0x5c] sm:$0xf]
      %v1128 = vld [vmem:[#allocation2 + $0x60] sm:$0xff]
      %v1129 = vld [vmem:[#allocation2 + $0x68] sm:$0xf]
      %v1130 = vld [vmem:[#allocation2 + $0x6c] sm:$0xff]
      %v1131 = vld [vmem:[#allocation2 + $0x74] sm:$0xf]
      %v1132 = vld [vmem:[#allocation2 + $0x78] sm:$0xff]
      %v1133 = vld [vmem:[#allocation2 + $0x80] sm:$0xf]
      %v1134 = vld [vmem:[#allocation2 + $0x84] sm:$0xff]
      %v1135 = vld [vmem:[#allocation2 + $0x8c] sm:$0xf]
      %v1136 = vld [vmem:[#allocation2 + $0x90] sm:$0xff]
      %v1137 = vld [vmem:[#allocation2 + $0x98] sm:$0xf]
      %v1138 = vld [vmem:[#allocation2 + $0x9c] sm:$0xff]
      %v1139 = vld [vmem:[#allocation2 + $0xa4] sm:$0xf]
      %v1140 = vld [vmem:[#allocation2 + $0xa8] sm:$0xff]
      %v1141 = vld [vmem:[#allocation2 + $0xb0] sm:$0xf]
      %v1142 = vld [vmem:[#allocation2 + $0xb4] sm:$0xff]
      %v1143 = vld [vmem:[#allocation2 + $0xbc] sm:$0xf]
      %v1144 = vld [vmem:[#allocation2 + $0xc0] sm:$0xff]
      %v1145 = vld [vmem:[#allocation2 + $0xc8] sm:$0xf]
      %v1146 = vld [vmem:[#allocation2 + $0xcc] sm:$0xff]
      %v1147 = vld [vmem:[#allocation2 + $0xd4] sm:$0xf]
      %v1148 = vld [vmem:[#allocation2 + $0xd8] sm:$0xff]
      %v1149 = vld [vmem:[#allocation2 + $0xe0] sm:$0xf]
      %v1150 = vld [vmem:[#allocation2 + $0xe4] sm:$0xff]
      %v1151 = vld [vmem:[#allocation2 + $0xec] sm:$0xf]
      %v1152 = vld [vmem:[#allocation2 + $0xf0] sm:$0xff]
      %v1153 = vld [vmem:[#allocation2 + $0xf8] sm:$0xf]
      %v1154 = vld [vmem:[#allocation2 + $0xfc] sm:$0xff]
      %v1155 = vld [vmem:[#allocation2 + $0x104] sm:$0xf]
      %v1156 = vld [vmem:[#allocation2 + $0x108] sm:$0xff]
      %v1157 = vld [vmem:[#allocation2 + $0x110] sm:$0xf]
      %v1158 = vld [vmem:[#allocation2 + $0x114] sm:$0xff]
      %v1159 = vld [vmem:[#allocation2 + $0x11c] sm:$0xf]
      %v1160 = vld [vmem:[#allocation2 + $0x120] sm:$0xff]
      %v1161 = vld [vmem:[#allocation2 + $0x128] sm:$0xf]
      %v1162 = vld [vmem:[#allocation2 + $0x12c] sm:$0xff]
      %v1163 = vld [vmem:[#allocation2 + $0x134] sm:$0xf]
      %v1164 = vld [vmem:[#allocation2 + $0x138] sm:$0xff]
      %v1165 = vld [vmem:[#allocation2 + $0x140] sm:$0xf]
      %v1166 = vld [vmem:[#allocation2 + $0x144] sm:$0xff]
      %v1167 = vld [vmem:[#allocation2 + $0x14c] sm:$0xf]
      %v1168 = vld [vmem:[#allocation2 + $0x150] sm:$0xff]
      %v1169 = vld [vmem:[#allocation2 + $0x158] sm:$0xf]
      %v1170 = vld [vmem:[#allocation2 + $0x15c] sm:$0xff]
      %v1171 = vld [vmem:[#allocation2 + $0x164] sm:$0xf]
      %v1172 = vld [vmem:[#allocation2 + $0x168] sm:$0xff]
      %v1173 = vld [vmem:[#allocation2 + $0x170] sm:$0xf]
      %v1174 = vld [vmem:[#allocation2 + $0x174] sm:$0xff]
      %v1175 = vld [vmem:[#allocation2 + $0x17c] sm:$0xf]
      %v1176 = vld [vmem:[%s1] sm:$0xf]
      %v1177 = vld [vmem:[%s1 + $0x4] sm:$0xf]
      %v1178 = vld [vmem:[%s1 + $0x8] sm:$0xf]
      %v1179 = vld [vmem:[%s1 + $0xc] sm:$0xf]
      %v1180 = vld [vmem:[%s1 + $0x10] sm:$0xf]
      %v1181 = vld [vmem:[%s1 + $0x14] sm:$0xf]
      %v1182 = vld [vmem:[%s1 + $0x18] sm:$0xf]
      %v1183 = vld [vmem:[%s1 + $0x1c] sm:$0xf]
      %v1184 = vld [vmem:[%s1 + $0x20] sm:$0xf]
      %v1185 = vld [vmem:[%s1 + $0x24] sm:$0xf]
      %v1186 = vld [vmem:[%s1 + $0x28] sm:$0xf]
      %v1187 = vld [vmem:[%s1 + $0x2c] sm:$0xf]
      %v1188 = vld [vmem:[%s1 + $0x30] sm:$0xf]
      %v1189 = vld [vmem:[%s1 + $0x34] sm:$0xf]
      %v1190 = vld [vmem:[%s1 + $0x38] sm:$0xf]
      %v1191 = vld [vmem:[%s1 + $0x3c] sm:$0xf]
      %v1192 = vld [vmem:[%s1 + $0x40] sm:$0xf]
      %v1193 = vld [vmem:[%s1 + $0x44] sm:$0xf]
      %v1194 = vld [vmem:[%s1 + $0x48] sm:$0xf]
      %v1195 = vld [vmem:[%s1 + $0x4c] sm:$0xf]
      %v1196 = vld [vmem:[%s1 + $0x50] sm:$0xf]
      %v1197 = vld [vmem:[%s1 + $0x54] sm:$0xf]
      %v1198 = vld [vmem:[%s1 + $0x58] sm:$0xf]
      %v1199 = vld [vmem:[%s1 + $0x5c] sm:$0xf]
      %v1200 = vld [vmem:[%s1 + $0x60] sm:$0xf]
      %v1201 = vld [vmem:[%s1 + $0x64] sm:$0xf]
      %v1202 = vld [vmem:[%s1 + $0x68] sm:$0xf]
      %v1203 = vld [vmem:[%s1 + $0x6c] sm:$0xf]
      %v1204 = vld [vmem:[%s1 + $0x70] sm:$0xf]
      %v1205 = vld [vmem:[%s1 + $0x74] sm:$0xf]
      %v1206 = vld [vmem:[%s1 + $0x78] sm:$0xf]
      %v1207 = vld [vmem:[%s1 + $0x7c] sm:$0xf]
      %v1208 = vld [vmem:[%s1 + $0x80] sm:$0xf]
      %v1209 = vld [vmem:[%s1 + $0x84] sm:$0xf]
      %v1210 = vld [vmem:[%s1 + $0x88] sm:$0xf]
      %v1211 = vld [vmem:[%s1 + $0x8c] sm:$0xf]
      %v1212 = vld [vmem:[%s1 + $0x90] sm:$0xf]
      %v1213 = vld [vmem:[%s1 + $0x94] sm:$0xf]
      %v1214 = vld [vmem:[%s1 + $0x98] sm:$0xf]
      %v1215 = vld [vmem:[%s1 + $0x9c] sm:$0xf]
      %v1216 = vld [vmem:[%s1 + $0xa0] sm:$0xf]
      %v1217 = vld [vmem:[%s1 + $0xa4] sm:$0xf]
      %v1218 = vld [vmem:[%s1 + $0xa8] sm:$0xf]
      %v1219 = vld [vmem:[%s1 + $0xac] sm:$0xf]
      %v1220 = vld [vmem:[%s1 + $0xb0] sm:$0xf]
      %v1221 = vld [vmem:[%s1 + $0xb4] sm:$0xf]
      %v1222 = vld [vmem:[%s1 + $0xb8] sm:$0xf]
      %v1223 = vld [vmem:[%s1 + $0xbc] sm:$0xf]
      %v1288 = vunpack.c.l.b16 %v1112
      %v1289 = vunpack.c.h.b16 %v1112
      %v1290 = vunpack.c.l.b16 %v1113
      %v1291 = vunpack.c.l.b16 %v1114
      %v1292 = vunpack.c.h.b16 %v1114
      %v1293 = vunpack.c.l.b16 %v1115
      %v1294 = vunpack.c.l.b16 %v1116
      %v1295 = vunpack.c.h.b16 %v1116
      %v1296 = vunpack.c.l.b16 %v1117
      %v1297 = vunpack.c.l.b16 %v1118
      %v1298 = vunpack.c.h.b16 %v1118
      %v1299 = vunpack.c.l.b16 %v1119
      %v1300 = vunpack.c.l.b16 %v1120
      %v1301 = vunpack.c.h.b16 %v1120
      %v1302 = vunpack.c.l.b16 %v1121
      %v1303 = vunpack.c.l.b16 %v1122
      %v1304 = vunpack.c.h.b16 %v1122
      %v1305 = vunpack.c.l.b16 %v1123
      %v1306 = vunpack.c.l.b16 %v1124
      %v1307 = vunpack.c.h.b16 %v1124
      %v1308 = vunpack.c.l.b16 %v1125
      %v1309 = vunpack.c.l.b16 %v1126
      %v1310 = vunpack.c.h.b16 %v1126
      %v1311 = vunpack.c.l.b16 %v1127
      %v1312 = vunpack.c.l.b16 %v1128
      %v1313 = vunpack.c.h.b16 %v1128
      %v1314 = vunpack.c.l.b16 %v1129
      %v1315 = vunpack.c.l.b16 %v1130
      %v1316 = vunpack.c.h.b16 %v1130
      %v1317 = vunpack.c.l.b16 %v1131
      %v1318 = vunpack.c.l.b16 %v1132
      %v1319 = vunpack.c.h.b16 %v1132
      %v1320 = vunpack.c.l.b16 %v1133
      %v1321 = vunpack.c.l.b16 %v1134
      %v1322 = vunpack.c.h.b16 %v1134
      %v1323 = vunpack.c.l.b16 %v1135
      %v1324 = vunpack.c.l.b16 %v1136
      %v1325 = vunpack.c.h.b16 %v1136
      %v1326 = vunpack.c.l.b16 %v1137
      %v1327 = vunpack.c.l.b16 %v1138
      %v1328 = vunpack.c.h.b16 %v1138
      %v1329 = vunpack.c.l.b16 %v1139
      %v1330 = vunpack.c.l.b16 %v1140
      %v1331 = vunpack.c.h.b16 %v1140
      %v1332 = vunpack.c.l.b16 %v1141
      %v1333 = vunpack.c.l.b16 %v1142
      %v1334 = vunpack.c.h.b16 %v1142
      %v1335 = vunpack.c.l.b16 %v1143
      %v1336 = vunpack.c.l.b16 %v1144
      %v1337 = vunpack.c.h.b16 %v1144
      %v1338 = vunpack.c.l.b16 %v1145
      %v1339 = vunpack.c.l.b16 %v1146
      %v1340 = vunpack.c.h.b16 %v1146
      %v1341 = vunpack.c.l.b16 %v1147
      %v1342 = vunpack.c.l.b16 %v1148
      %v1343 = vunpack.c.h.b16 %v1148
      %v1344 = vunpack.c.l.b16 %v1149
      %v1345 = vunpack.c.l.b16 %v1150
      %v1346 = vunpack.c.h.b16 %v1150
      %v1347 = vunpack.c.l.b16 %v1151
      %v1348 = vunpack.c.l.b16 %v1152
      %v1349 = vunpack.c.h.b16 %v1152
      %v1350 = vunpack.c.l.b16 %v1153
      %v1351 = vunpack.c.l.b16 %v1154
      %v1352 = vunpack.c.h.b16 %v1154
      %v1353 = vunpack.c.l.b16 %v1155
      %v1354 = vunpack.c.l.b16 %v1156
      %v1355 = vunpack.c.h.b16 %v1156
      %v1356 = vunpack.c.l.b16 %v1157
      %v1357 = vunpack.c.l.b16 %v1158
      %v1358 = vunpack.c.h.b16 %v1158
      %v1359 = vunpack.c.l.b16 %v1159
      %v1360 = vunpack.c.l.b16 %v1160
      %v1361 = vunpack.c.h.b16 %v1160
      %v1362 = vunpack.c.l.b16 %v1161
      %v1363 = vunpack.c.l.b16 %v1162
      %v1364 = vunpack.c.h.b16 %v1162
      %v1365 = vunpack.c.l.b16 %v1163
      %v1366 = vunpack.c.l.b16 %v1164
      %v1367 = vunpack.c.h.b16 %v1164
      %v1368 = vunpack.c.l.b16 %v1165
      %v1369 = vunpack.c.l.b16 %v1166
      %v1370 = vunpack.c.h.b16 %v1166
      %v1371 = vunpack.c.l.b16 %v1167
      %v1372 = vunpack.c.l.b16 %v1168
      %v1373 = vunpack.c.h.b16 %v1168
      %v1374 = vunpack.c.l.b16 %v1169
      %v1375 = vunpack.c.l.b16 %v1170
      %v1376 = vunpack.c.h.b16 %v1170
      %v1377 = vunpack.c.l.b16 %v1171
      %v1378 = vunpack.c.l.b16 %v1172
      %v1379 = vunpack.c.h.b16 %v1172
      %v1380 = vunpack.c.l.b16 %v1173
      %v1381 = vunpack.c.l.b16 %v1174
      %v1382 = vunpack.c.h.b16 %v1174
      %v1383 = vunpack.c.l.b16 %v1175
      %v1384 = vpack.c.b16 %v1291, %v1288
      %v1385 = vpack.c.b16 %v1292, %v1289
      %v1386 = vpack.c.b16 %v1293, %v1290
      %v1387 = vpack.c.b16 %v1297, %v1294
      %v1388 = vpack.c.b16 %v1298, %v1295
      %v1389 = vpack.c.b16 %v1299, %v1296
      %v1390 = vpack.c.b16 %v1303, %v1300
      %v1391 = vpack.c.b16 %v1304, %v1301
      %v1392 = vpack.c.b16 %v1305, %v1302
      %v1393 = vpack.c.b16 %v1309, %v1306
      %v1394 = vpack.c.b16 %v1310, %v1307
      %v1395 = vpack.c.b16 %v1311, %v1308
      %v1396 = vpack.c.b16 %v1315, %v1312
      %v1397 = vpack.c.b16 %v1316, %v1313
      %v1398 = vpack.c.b16 %v1317, %v1314
      %v1399 = vpack.c.b16 %v1321, %v1318
      %v1400 = vpack.c.b16 %v1322, %v1319
      %v1401 = vpack.c.b16 %v1323, %v1320
      %v1402 = vpack.c.b16 %v1327, %v1324
      %v1403 = vpack.c.b16 %v1328, %v1325
      %v1404 = vpack.c.b16 %v1329, %v1326
      %v1405 = vpack.c.b16 %v1333, %v1330
      %v1406 = vpack.c.b16 %v1334, %v1331
      %v1407 = vpack.c.b16 %v1335, %v1332
      %v1408 = vpack.c.b16 %v1339, %v1336
      %v1409 = vpack.c.b16 %v1340, %v1337
      %v1410 = vpack.c.b16 %v1341, %v1338
      %v1411 = vpack.c.b16 %v1345, %v1342
      %v1412 = vpack.c.b16 %v1346, %v1343
      %v1413 = vpack.c.b16 %v1347, %v1344
      %v1414 = vpack.c.b16 %v1351, %v1348
      %v1415 = vpack.c.b16 %v1352, %v1349
      %v1416 = vpack.c.b16 %v1353, %v1350
      %v1417 = vpack.c.b16 %v1357, %v1354
      %v1418 = vpack.c.b16 %v1358, %v1355
      %v1419 = vpack.c.b16 %v1359, %v1356
      %v1420 = vpack.c.b16 %v1363, %v1360
      %v1421 = vpack.c.b16 %v1364, %v1361
      %v1422 = vpack.c.b16 %v1365, %v1362
      %v1423 = vpack.c.b16 %v1369, %v1366
      %v1424 = vpack.c.b16 %v1370, %v1367
      %v1425 = vpack.c.b16 %v1371, %v1368
      %v1426 = vpack.c.b16 %v1375, %v1372
      %v1427 = vpack.c.b16 %v1376, %v1373
      %v1428 = vpack.c.b16 %v1377, %v1374
      %v1429 = vpack.c.b16 %v1381, %v1378
      %v1430 = vpack.c.b16 %v1382, %v1379
      %v1431 = vpack.c.b16 %v1383, %v1380
      %v1528 = vunpack.c.l.b16 %v1176
      %v1529 = vunpack.c.l.b16 %v1177
      %v1530 = vunpack.c.l.b16 %v1178
      %v1531 = vunpack.c.l.b16 %v1179
      %v1532 = vunpack.c.l.b16 %v1180
      %v1533 = vunpack.c.l.b16 %v1181
      %v1534 = vunpack.c.l.b16 %v1182
      %v1535 = vunpack.c.l.b16 %v1183
      %v1536 = vunpack.c.l.b16 %v1184
      %v1537 = vunpack.c.l.b16 %v1185
      %v1538 = vunpack.c.l.b16 %v1186
      %v1539 = vunpack.c.l.b16 %v1187
      %v1540 = vunpack.c.l.b16 %v1188
      %v1541 = vunpack.c.l.b16 %v1189
      %v1542 = vunpack.c.l.b16 %v1190
      %v1543 = vunpack.c.l.b16 %v1191
      %v1544 = vunpack.c.l.b16 %v1192
      %v1545 = vunpack.c.l.b16 %v1193
      %v1546 = vunpack.c.l.b16 %v1194
      %v1547 = vunpack.c.l.b16 %v1195
      %v1548 = vunpack.c.l.b16 %v1196
      %v1549 = vunpack.c.l.b16 %v1197
      %v1550 = vunpack.c.l.b16 %v1198
      %v1551 = vunpack.c.l.b16 %v1199
      %v1552 = vunpack.c.l.b16 %v1200
      %v1553 = vunpack.c.l.b16 %v1201
      %v1554 = vunpack.c.l.b16 %v1202
      %v1555 = vunpack.c.l.b16 %v1203
      %v1556 = vunpack.c.l.b16 %v1204
      %v1557 = vunpack.c.l.b16 %v1205
      %v1558 = vunpack.c.l.b16 %v1206
      %v1559 = vunpack.c.l.b16 %v1207
      %v1560 = vunpack.c.l.b16 %v1208
      %v1561 = vunpack.c.l.b16 %v1209
      %v1562 = vunpack.c.l.b16 %v1210
      %v1563 = vunpack.c.l.b16 %v1211
      %v1564 = vunpack.c.l.b16 %v1212
      %v1565 = vunpack.c.l.b16 %v1213
      %v1566 = vunpack.c.l.b16 %v1214
      %v1567 = vunpack.c.l.b16 %v1215
      %v1568 = vunpack.c.l.b16 %v1216
      %v1569 = vunpack.c.l.b16 %v1217
      %v1570 = vunpack.c.l.b16 %v1218
      %v1571 = vunpack.c.l.b16 %v1219
      %v1572 = vunpack.c.l.b16 %v1220
      %v1573 = vunpack.c.l.b16 %v1221
      %v1574 = vunpack.c.l.b16 %v1222
      %v1575 = vunpack.c.l.b16 %v1223
      %v1576 = vpack.c.b16 %v1529, %v1528
      %v1577 = vpack.c.b16 %v1531, %v1530
      %v1578 = vpack.c.b16 %v1533, %v1532
      %v1579 = vpack.c.b16 %v1535, %v1534
      %v1580 = vpack.c.b16 %v1537, %v1536
      %v1581 = vpack.c.b16 %v1539, %v1538
      %v1582 = vpack.c.b16 %v1541, %v1540
      %v1583 = vpack.c.b16 %v1543, %v1542
      %v1584 = vpack.c.b16 %v1545, %v1544
      %v1585 = vpack.c.b16 %v1547, %v1546
      %v1586 = vpack.c.b16 %v1549, %v1548
      %v1587 = vpack.c.b16 %v1551, %v1550
      %v1588 = vpack.c.b16 %v1553, %v1552
      %v1589 = vpack.c.b16 %v1555, %v1554
      %v1590 = vpack.c.b16 %v1557, %v1556
      %v1591 = vpack.c.b16 %v1559, %v1558
      %v1592 = vpack.c.b16 %v1561, %v1560
      %v1593 = vpack.c.b16 %v1563, %v1562
      %v1594 = vpack.c.b16 %v1565, %v1564
      %v1595 = vpack.c.b16 %v1567, %v1566
      %v1596 = vpack.c.b16 %v1569, %v1568
      %v1597 = vpack.c.b16 %v1571, %v1570
      %v1598 = vpack.c.b16 %v1573, %v1572
      %v1599 = vpack.c.b16 %v1575, %v1574
      %1624 = vmatprep.subr.bf16.mxu0 0
      %1625 = vmatpush1.bf16.msra.mxu0 %v1583
      %1626 = vmatprep.subr.bf16.mxu0 0
      %1627 = vmatpush1.bf16.msra.mxu0 %v1582
      %1628 = vmatprep.subr.bf16.mxu0 0
      %1629 = vmatpush1.bf16.msra.mxu0 %v1581
      %1630 = vmatprep.subr.bf16.mxu0 0
      %1631 = vmatpush1.bf16.msra.mxu0 %v1580
      %1632 = vmatprep.subr.bf16.mxu0 0
      %1633 = vmatpush1.bf16.msra.mxu0 %v1579
      %1634 = vmatprep.subr.bf16.mxu0 0
      %1635 = vmatpush1.bf16.msra.mxu0 %v1578
      %1636 = vmatprep.subr.bf16.mxu0 0
      %1637 = vmatpush1.bf16.msra.mxu0 %v1577
      %1638 = vmatprep.subr.bf16.mxu0 0
      %1639 = vmatpush1.bf16.msra.mxu0 %v1576
      %1640 = vmatprep.subr.bf16.mxu0 0
      %1641 = vmatpush2.bf16.msra.mxu0 %v1591
      %1642 = vmatprep.subr.bf16.mxu0 0
      %1643 = vmatpush2.bf16.msra.mxu0 %v1590
      %1644 = vmatprep.subr.bf16.mxu0 0
      %1645 = vmatpush2.bf16.msra.mxu0 %v1589
      %1646 = vmatprep.subr.bf16.mxu0 0
      %1647 = vmatpush2.bf16.msra.mxu0 %v1588
      %1648 = vmatprep.subr.bf16.mxu0 0
      %1649 = vmatpush2.bf16.msra.mxu0 %v1587
      %1650 = vmatprep.subr.bf16.mxu0 0
      %1651 = vmatpush2.bf16.msra.mxu0 %v1586
      %1652 = vmatprep.subr.bf16.mxu0 0
      %1653 = vmatpush2.bf16.msra.mxu0 %v1585
      %1654 = vmatprep.subr.bf16.mxu0 0
      %1655 = vmatpush2.bf16.msra.mxu0 %v1584
      %1656 = vmatprep.mubr.bf16.mxu0 %v1385
      %1657 = vmatmul.mubr.bf16.gmra.mxu0 %v1384
      %v1658 = vpop.f32.mrf.mxu0
      %v1659 = vadd.f32 0.0, %v1658
      %v1660 = vpop.f32.mrf.mxu0
      %v1661 = vpop.f32.mrf.mxu0
      %v1662 = vadd.f32 0.0, %v1661
      %v1663 = vpop.f32.mrf.mxu0
      %1664 = vmatprep.mubr.bf16.mxu0 %v1388
      %1665 = vmatmul.mubr.bf16.gmra.mxu0 %v1387
      %v1666 = vpop.f32.mrf.mxu0
      %v1667 = vadd.f32 0.0, %v1666
      %v1668 = vpop.f32.mrf.mxu0
      %v1669 = vpop.f32.mrf.mxu0
      %v1670 = vadd.f32 0.0, %v1669
      %v1671 = vpop.f32.mrf.mxu0
      %1672 = vmatprep.mubr.bf16.mxu0 %v1391
      %1673 = vmatmul.mubr.bf16.gmra.mxu0 %v1390
      %v1674 = vpop.f32.mrf.mxu0
      %v1675 = vadd.f32 0.0, %v1674
      %v1676 = vpop.f32.mrf.mxu0
      %v1677 = vpop.f32.mrf.mxu0
      %v1678 = vadd.f32 0.0, %v1677
      %v1679 = vpop.f32.mrf.mxu0
      %1680 = vmatprep.mubr.bf16.mxu0 %v1394
      %1681 = vmatmul.mubr.bf16.gmra.mxu0 %v1393
      %v1682 = vpop.f32.mrf.mxu0
      %v1683 = vadd.f32 0.0, %v1682
      %v1684 = vpop.f32.mrf.mxu0
      %v1685 = vpop.f32.mrf.mxu0
      %v1686 = vadd.f32 0.0, %v1685
      %v1687 = vpop.f32.mrf.mxu0
      %1688 = vmatprep.mubr.bf16.mxu0 %v1397
      %1689 = vmatmul.mubr.bf16.gmra.mxu0 %v1396
      %v1690 = vpop.f32.mrf.mxu0
      %v1691 = vadd.f32 0.0, %v1690
      %v1692 = vpop.f32.mrf.mxu0
      %v1693 = vpop.f32.mrf.mxu0
      %v1694 = vadd.f32 0.0, %v1693
      %v1695 = vpop.f32.mrf.mxu0
      %1696 = vmatprep.mubr.bf16.mxu0 %v1400
      %1697 = vmatmul.mubr.bf16.gmra.mxu0 %v1399
      %v1698 = vpop.f32.mrf.mxu0
      %v1699 = vadd.f32 0.0, %v1698
      %v1700 = vpop.f32.mrf.mxu0
      %v1701 = vpop.f32.mrf.mxu0
      %v1702 = vadd.f32 0.0, %v1701
      %v1703 = vpop.f32.mrf.mxu0
      %1704 = vmatprep.mubr.bf16.mxu0 %v1403
      %1705 = vmatmul.mubr.bf16.gmra.mxu0 %v1402
      %v1706 = vpop.f32.mrf.mxu0
      %v1707 = vadd.f32 0.0, %v1706
      %v1708 = vpop.f32.mrf.mxu0
      %v1709 = vpop.f32.mrf.mxu0
      %v1710 = vadd.f32 0.0, %v1709
      %v1711 = vpop.f32.mrf.mxu0
      %1712 = vmatprep.mubr.bf16.mxu0 %v1406
      %1713 = vmatmul.mubr.bf16.gmra.mxu0 %v1405
      %v1714 = vpop.f32.mrf.mxu0
      %v1715 = vadd.f32 0.0, %v1714
      %v1716 = vpop.f32.mrf.mxu0
      %v1717 = vpop.f32.mrf.mxu0
      %v1718 = vadd.f32 0.0, %v1717
      %v1719 = vpop.f32.mrf.mxu0
      %1720 = vmatprep.mubr.bf16.mxu0 %v1409
      %1721 = vmatmul.mubr.bf16.gmra.mxu0 %v1408
      %v1722 = vpop.f32.mrf.mxu0
      %v1723 = vadd.f32 0.0, %v1722
      %v1724 = vpop.f32.mrf.mxu0
      %v1725 = vpop.f32.mrf.mxu0
      %v1726 = vadd.f32 0.0, %v1725
      %v1727 = vpop.f32.mrf.mxu0
      %1728 = vmatprep.mubr.bf16.mxu0 %v1412
      %1729 = vmatmul.mubr.bf16.gmra.mxu0 %v1411
      %v1730 = vpop.f32.mrf.mxu0
      %v1731 = vadd.f32 0.0, %v1730
      %v1732 = vpop.f32.mrf.mxu0
      %v1733 = vpop.f32.mrf.mxu0
      %v1734 = vadd.f32 0.0, %v1733
      %v1735 = vpop.f32.mrf.mxu0
      %1736 = vmatprep.mubr.bf16.mxu0 %v1415
      %1737 = vmatmul.mubr.bf16.gmra.mxu0 %v1414
      %v1738 = vpop.f32.mrf.mxu0
      %v1739 = vadd.f32 0.0, %v1738
      %v1740 = vpop.f32.mrf.mxu0
      %v1741 = vpop.f32.mrf.mxu0
      %v1742 = vadd.f32 0.0, %v1741
      %v1743 = vpop.f32.mrf.mxu0
      %1744 = vmatprep.mubr.bf16.mxu0 %v1418
      %1745 = vmatmul.mubr.bf16.gmra.mxu0 %v1417
      %v1746 = vpop.f32.mrf.mxu0
      %v1747 = vadd.f32 0.0, %v1746
      %v1748 = vpop.f32.mrf.mxu0
      %v1749 = vpop.f32.mrf.mxu0
      %v1750 = vadd.f32 0.0, %v1749
      %v1751 = vpop.f32.mrf.mxu0
      %1752 = vmatprep.mubr.bf16.mxu0 %v1421
      %1753 = vmatmul.mubr.bf16.gmra.mxu0 %v1420
      %v1754 = vpop.f32.mrf.mxu0
      %v1755 = vadd.f32 0.0, %v1754
      %v1756 = vpop.f32.mrf.mxu0
      %v1757 = vpop.f32.mrf.mxu0
      %v1758 = vadd.f32 0.0, %v1757
      %v1759 = vpop.f32.mrf.mxu0
      %1760 = vmatprep.mubr.bf16.mxu0 %v1424
      %1761 = vmatmul.mubr.bf16.gmra.mxu0 %v1423
      %v1762 = vpop.f32.mrf.mxu0
      %v1763 = vadd.f32 0.0, %v1762
      %v1764 = vpop.f32.mrf.mxu0
      %v1765 = vpop.f32.mrf.mxu0
      %v1766 = vadd.f32 0.0, %v1765
      %v1767 = vpop.f32.mrf.mxu0
      %1768 = vmatprep.mubr.bf16.mxu0 %v1427
      %1769 = vmatmul.mubr.bf16.gmra.mxu0 %v1426
      %v1770 = vpop.f32.mrf.mxu0
      %v1771 = vadd.f32 0.0, %v1770
      %v1772 = vpop.f32.mrf.mxu0
      %v1773 = vpop.f32.mrf.mxu0
      %v1774 = vadd.f32 0.0, %v1773
      %v1775 = vpop.f32.mrf.mxu0
      %1776 = vmatprep.mubr.bf16.mxu0 %v1430
      %1777 = vmatmul.mubr.bf16.gmra.mxu0 %v1429
      %v1778 = vpop.f32.mrf.mxu0
      %v1779 = vadd.f32 0.0, %v1778
      %v1780 = vpop.f32.mrf.mxu0
      %v1781 = vpop.f32.mrf.mxu0
      %v1782 = vadd.f32 0.0, %v1781
      %v1783 = vpop.f32.mrf.mxu0
      %1784 = vdwg.mxu0
      %1785 = vmatprep.subr.bf16.mxu0 0
      %1786 = vmatpush1.bf16.msra.mxu0 %v1599
      %1787 = vmatprep.subr.bf16.mxu0 0
      %1788 = vmatpush1.bf16.msra.mxu0 %v1598
      %1789 = vmatprep.subr.bf16.mxu0 0
      %1790 = vmatpush1.bf16.msra.mxu0 %v1597
      %1791 = vmatprep.subr.bf16.mxu0 0
      %1792 = vmatpush1.bf16.msra.mxu0 %v1596
      %1793 = vmatprep.subr.bf16.mxu0 0
      %1794 = vmatpush1.bf16.msra.mxu0 %v1595
      %1795 = vmatprep.subr.bf16.mxu0 0
      %1796 = vmatpush1.bf16.msra.mxu0 %v1594
      %1797 = vmatprep.subr.bf16.mxu0 0
      %1798 = vmatpush1.bf16.msra.mxu0 %v1593
      %1799 = vmatprep.subr.bf16.mxu0 0
      %1800 = vmatpush1.bf16.msra.mxu0 %v1592
      %1801 = vmatprep.subr.bf16.mxu0 0
      %1802 = vmatpush2.bf16.msra.mxu0 0
      %1803 = vmatprep.subr.bf16.mxu0 0
      %1804 = vmatpush2.bf16.msra.mxu0 0
      %1805 = vmatprep.subr.bf16.mxu0 0
      %1806 = vmatpush2.bf16.msra.mxu0 0
      %1807 = vmatprep.subr.bf16.mxu0 0
      %1808 = vmatpush2.bf16.msra.mxu0 0
      %1809 = vmatprep.subr.bf16.mxu0 0
      %1810 = vmatpush2.bf16.msra.mxu0 0
      %1811 = vmatprep.subr.bf16.mxu0 0
      %1812 = vmatpush2.bf16.msra.mxu0 0
      %1813 = vmatprep.subr.bf16.mxu0 0
      %1814 = vmatpush2.bf16.msra.mxu0 0
      %1815 = vmatprep.subr.bf16.mxu0 0
      %1816 = vmatpush2.bf16.msra.mxu0 0
      %1817 = vmatprep.mubr.bf16.mxu0 0
      %1818 = vmatmul.mubr.bf16.gmra.mxu0 %v1386
      %v1819 = vpop.f32.mrf.mxu0
      %v1820 = vadd.f32 %v1659, %v1819
      %v1821 = vpop.f32.mrf.mxu0
      %v1822 = vpop.f32.mrf.mxu0
      %v1823 = vadd.f32 %v1662, %v1822
      %v1824 = vpop.f32.mrf.mxu0
      %1825 = vmatprep.mubr.bf16.mxu0 0
      %1826 = vmatmul.mubr.bf16.gmra.mxu0 %v1389
      %v1827 = vpop.f32.mrf.mxu0
      %v1828 = vadd.f32 %v1667, %v1827
      %v1829 = vpop.f32.mrf.mxu0
      %v1830 = vpop.f32.mrf.mxu0
      %v1831 = vadd.f32 %v1670, %v1830
      %v1832 = vpop.f32.mrf.mxu0
      %1833 = vmatprep.mubr.bf16.mxu0 0
      %1834 = vmatmul.mubr.bf16.gmra.mxu0 %v1392
      %v1835 = vpop.f32.mrf.mxu0
      %v1836 = vadd.f32 %v1675, %v1835
      %v1837 = vpop.f32.mrf.mxu0
      %v1838 = vpop.f32.mrf.mxu0
      %v1839 = vadd.f32 %v1678, %v1838
      %v1840 = vpop.f32.mrf.mxu0
      %1841 = vmatprep.mubr.bf16.mxu0 0
      %1842 = vmatmul.mubr.bf16.gmra.mxu0 %v1395
      %v1843 = vpop.f32.mrf.mxu0
      %v1844 = vadd.f32 %v1683, %v1843
      %v1845 = vpop.f32.mrf.mxu0
      %v1846 = vpop.f32.mrf.mxu0
      %v1847 = vadd.f32 %v1686, %v1846
      %v1848 = vpop.f32.mrf.mxu0
      %1849 = vmatprep.mubr.bf16.mxu0 0
      %1850 = vmatmul.mubr.bf16.gmra.mxu0 %v1398
      %v1851 = vpop.f32.mrf.mxu0
      %v1852 = vadd.f32 %v1691, %v1851
      %v1853 = vpop.f32.mrf.mxu0
      %v1854 = vpop.f32.mrf.mxu0
      %v1855 = vadd.f32 %v1694, %v1854
      %v1856 = vpop.f32.mrf.mxu0
      %1857 = vmatprep.mubr.bf16.mxu0 0
      %1858 = vmatmul.mubr.bf16.gmra.mxu0 %v1401
      %v1859 = vpop.f32.mrf.mxu0
      %v1860 = vadd.f32 %v1699, %v1859
      %v1861 = vpop.f32.mrf.mxu0
      %v1862 = vpop.f32.mrf.mxu0
      %v1863 = vadd.f32 %v1702, %v1862
      %v1864 = vpop.f32.mrf.mxu0
      %1865 = vmatprep.mubr.bf16.mxu0 0
      %1866 = vmatmul.mubr.bf16.gmra.mxu0 %v1404
      %v1867 = vpop.f32.mrf.mxu0
      %v1868 = vadd.f32 %v1707, %v1867
      %v1869 = vpop.f32.mrf.mxu0
      %v1870 = vpop.f32.mrf.mxu0
      %v1871 = vadd.f32 %v1710, %v1870
      %v1872 = vpop.f32.mrf.mxu0
      %1873 = vmatprep.mubr.bf16.mxu0 0
      %1874 = vmatmul.mubr.bf16.gmra.mxu0 %v1407
      %v1875 = vpop.f32.mrf.mxu0
      %v1876 = vadd.f32 %v1715, %v1875
      %v1877 = vpop.f32.mrf.mxu0
      %v1878 = vpop.f32.mrf.mxu0
      %v1879 = vadd.f32 %v1718, %v1878
      %v1880 = vpop.f32.mrf.mxu0
      %1881 = vmatprep.mubr.bf16.mxu0 0
      %1882 = vmatmul.mubr.bf16.gmra.mxu0 %v1410
      %v1883 = vpop.f32.mrf.mxu0
      %v1884 = vadd.f32 %v1723, %v1883
      %v1885 = vpop.f32.mrf.mxu0
      %v1886 = vpop.f32.mrf.mxu0
      %v1887 = vadd.f32 %v1726, %v1886
      %v1888 = vpop.f32.mrf.mxu0
      %1889 = vmatprep.mubr.bf16.mxu0 0
      %1890 = vmatmul.mubr.bf16.gmra.mxu0 %v1413
      %v1891 = vpop.f32.mrf.mxu0
      %v1892 = vadd.f32 %v1731, %v1891
      %v1893 = vpop.f32.mrf.mxu0
      %v1894 = vpop.f32.mrf.mxu0
      %v1895 = vadd.f32 %v1734, %v1894
      %v1896 = vpop.f32.mrf.mxu0
      %1897 = vmatprep.mubr.bf16.mxu0 0
      %1898 = vmatmul.mubr.bf16.gmra.mxu0 %v1416
      %v1899 = vpop.f32.mrf.mxu0
      %v1900 = vadd.f32 %v1739, %v1899
      %v1901 = vpop.f32.mrf.mxu0
      %v1902 = vpop.f32.mrf.mxu0
      %v1903 = vadd.f32 %v1742, %v1902
      %v1904 = vpop.f32.mrf.mxu0
      %1905 = vmatprep.mubr.bf16.mxu0 0
      %1906 = vmatmul.mubr.bf16.gmra.mxu0 %v1419
      %v1907 = vpop.f32.mrf.mxu0
      %v1908 = vadd.f32 %v1747, %v1907
      %v1909 = vpop.f32.mrf.mxu0
      %v1910 = vpop.f32.mrf.mxu0
      %v1911 = vadd.f32 %v1750, %v1910
      %v1912 = vpop.f32.mrf.mxu0
      %1913 = vmatprep.mubr.bf16.mxu0 0
      %1914 = vmatmul.mubr.bf16.gmra.mxu0 %v1422
      %v1915 = vpop.f32.mrf.mxu0
      %v1916 = vadd.f32 %v1755, %v1915
      %v1917 = vpop.f32.mrf.mxu0
      %v1918 = vpop.f32.mrf.mxu0
      %v1919 = vadd.f32 %v1758, %v1918
      %v1920 = vpop.f32.mrf.mxu0
      %1921 = vmatprep.mubr.bf16.mxu0 0
      %1922 = vmatmul.mubr.bf16.gmra.mxu0 %v1425
      %v1923 = vpop.f32.mrf.mxu0
      %v1924 = vadd.f32 %v1763, %v1923
      %v1925 = vpop.f32.mrf.mxu0
      %v1926 = vpop.f32.mrf.mxu0
      %v1927 = vadd.f32 %v1766, %v1926
      %v1928 = vpop.f32.mrf.mxu0
      %1929 = vmatprep.mubr.bf16.mxu0 0
      %1930 = vmatmul.mubr.bf16.gmra.mxu0 %v1428
      %v1931 = vpop.f32.mrf.mxu0
      %v1932 = vadd.f32 %v1771, %v1931
      %v1933 = vpop.f32.mrf.mxu0
      %v1934 = vpop.f32.mrf.mxu0
      %v1935 = vadd.f32 %v1774, %v1934
      %v1936 = vpop.f32.mrf.mxu0
      %1937 = vmatprep.mubr.bf16.mxu0 0
      %1938 = vmatmul.mubr.bf16.gmra.mxu0 %v1431
      %v1939 = vpop.f32.mrf.mxu0
      %v1940 = vadd.f32 %v1779, %v1939
      %v1941 = vpop.f32.mrf.mxu0
      %v1942 = vpop.f32.mrf.mxu0
      %v1943 = vadd.f32 %v1782, %v1942
      %v1944 = vpop.f32.mrf.mxu0
      %1945 = vdwg.mxu0
      %1946 = vst [vmem:[#allocation3] sm:$0xff] %v1820
      %1947 = vst [vmem:[#allocation3 + $0x8] sm:$0xff] %v1823
      %1948 = vst [vmem:[#allocation3 + $0x10] sm:$0xff] %v1828
      %1949 = vst [vmem:[#allocation3 + $0x18] sm:$0xff] %v1831
      %1950 = vst [vmem:[#allocation3 + $0x20] sm:$0xff] %v1836
      %1951 = vst [vmem:[#allocation3 + $0x28] sm:$0xff] %v1839
      %1952 = vst [vmem:[#allocation3 + $0x30] sm:$0xff] %v1844
      %1953 = vst [vmem:[#allocation3 + $0x38] sm:$0xff] %v1847
      %1954 = vst [vmem:[#allocation3 + $0x40] sm:$0xff] %v1852
      %1955 = vst [vmem:[#allocation3 + $0x48] sm:$0xff] %v1855
      %1956 = vst [vmem:[#allocation3 + $0x50] sm:$0xff] %v1860
      %1957 = vst [vmem:[#allocation3 + $0x58] sm:$0xff] %v1863
      %1958 = vst [vmem:[#allocation3 + $0x60] sm:$0xff] %v1868
      %1959 = vst [vmem:[#allocation3 + $0x68] sm:$0xff] %v1871
      %1960 = vst [vmem:[#allocation3 + $0x70] sm:$0xff] %v1876
      %1961 = vst [vmem:[#allocation3 + $0x78] sm:$0xff] %v1879
      %1962 = vst [vmem:[#allocation3 + $0x80] sm:$0xff] %v1884
      %1963 = vst [vmem:[#allocation3 + $0x88] sm:$0xff] %v1887
      %1964 = vst [vmem:[#allocation3 + $0x90] sm:$0xff] %v1892
      %1965 = vst [vmem:[#allocation3 + $0x98] sm:$0xff] %v1895
      %1966 = vst [vmem:[#allocation3 + $0xa0] sm:$0xff] %v1900
      %1967 = vst [vmem:[#allocation3 + $0xa8] sm:$0xff] %v1903
      %1968 = vst [vmem:[#allocation3 + $0xb0] sm:$0xff] %v1908
      %1969 = vst [vmem:[#allocation3 + $0xb8] sm:$0xff] %v1911
      %1970 = vst [vmem:[#allocation3 + $0xc0] sm:$0xff] %v1916
      %1971 = vst [vmem:[#allocation3 + $0xc8] sm:$0xff] %v1919
      %1972 = vst [vmem:[#allocation3 + $0xd0] sm:$0xff] %v1924
      %1973 = vst [vmem:[#allocation3 + $0xd8] sm:$0xff] %v1927
      %1974 = vst [vmem:[#allocation3 + $0xe0] sm:$0xff] %v1932
      %1975 = vst [vmem:[#allocation3 + $0xe8] sm:$0xff] %v1935
      %1976 = vst [vmem:[#allocation3 + $0xf0] sm:$0xff] %v1940
      %1977 = vst [vmem:[#allocation3 + $0xf8] sm:$0xff] %v1943
      %v1978 = vld [vmem:[#allocation3] sm:$0xff]
      %v1979 = vld [vmem:[#allocation3 + $0x8] sm:$0xff]
      %v1980 = vld [vmem:[#allocation3 + $0x10] sm:$0xff]
      %v1981 = vld [vmem:[#allocation3 + $0x18] sm:$0xff]
      %v1982 = vld [vmem:[#allocation3 + $0x20] sm:$0xff]
      %v1983 = vld [vmem:[#allocation3 + $0x28] sm:$0xff]
      %v1984 = vld [vmem:[#allocation3 + $0x30] sm:$0xff]
      %v1985 = vld [vmem:[#allocation3 + $0x38] sm:$0xff]
      %v1986 = vld [vmem:[#allocation3 + $0x40] sm:$0xff]
      %v1987 = vld [vmem:[#allocation3 + $0x48] sm:$0xff]
      %v1988 = vld [vmem:[#allocation3 + $0x50] sm:$0xff]
      %v1989 = vld [vmem:[#allocation3 + $0x58] sm:$0xff]
      %v1990 = vld [vmem:[#allocation3 + $0x60] sm:$0xff]
      %v1991 = vld [vmem:[#allocation3 + $0x68] sm:$0xff]
      %v1992 = vld [vmem:[#allocation3 + $0x70] sm:$0xff]
      %v1993 = vld [vmem:[#allocation3 + $0x78] sm:$0xff]
      %v1994 = vld [vmem:[#allocation3 + $0x80] sm:$0xff]
      %v1995 = vld [vmem:[#allocation3 + $0x88] sm:$0xff]
      %v1996 = vld [vmem:[#allocation3 + $0x90] sm:$0xff]
      %v1997 = vld [vmem:[#allocation3 + $0x98] sm:$0xff]
      %v1998 = vld [vmem:[#allocation3 + $0xa0] sm:$0xff]
      %v1999 = vld [vmem:[#allocation3 + $0xa8] sm:$0xff]
      %v2000 = vld [vmem:[#allocation3 + $0xb0] sm:$0xff]
      %v2001 = vld [vmem:[#allocation3 + $0xb8] sm:$0xff]
      %v2002 = vld [vmem:[#allocation3 + $0xc0] sm:$0xff]
      %v2003 = vld [vmem:[#allocation3 + $0xc8] sm:$0xff]
      %v2004 = vld [vmem:[#allocation3 + $0xd0] sm:$0xff]
      %v2005 = vld [vmem:[#allocation3 + $0xd8] sm:$0xff]
      %v2006 = vld [vmem:[#allocation3 + $0xe0] sm:$0xff]
      %v2007 = vld [vmem:[#allocation3 + $0xe8] sm:$0xff]
      %v2008 = vld [vmem:[#allocation3 + $0xf0] sm:$0xff]
      %v2009 = vld [vmem:[#allocation3 + $0xf8] sm:$0xff]
      %s2010 = scalar_lea.vmem [#allocation2], 24
      %v2011 = vld [vmem:[%s2010] sm:$0xff]
      %v2012 = vld [vmem:[%s2010 + $0x8] sm:$0xf]
      %v2013 = vld [vmem:[%s2010 + $0xc] sm:$0xff]
      %v2014 = vld [vmem:[%s2010 + $0x14] sm:$0xf]
      %v2015 = vld [vmem:[%s2010 + $0x18] sm:$0xff]
      %v2016 = vld [vmem:[%s2010 + $0x20] sm:$0xf]
      %v2017 = vld [vmem:[%s2010 + $0x24] sm:$0xff]
      %v2018 = vld [vmem:[%s2010 + $0x2c] sm:$0xf]
      %v2019 = vld [vmem:[%s2010 + $0x30] sm:$0xff]
      %v2020 = vld [vmem:[%s2010 + $0x38] sm:$0xf]
      %v2021 = vld [vmem:[%s2010 + $0x3c] sm:$0xff]
      %v2022 = vld [vmem:[%s2010 + $0x44] sm:$0xf]
      %v2023 = vld [vmem:[%s2010 + $0x48] sm:$0xff]
      %v2024 = vld [vmem:[%s2010 + $0x50] sm:$0xf]
      %v2025 = vld [vmem:[%s2010 + $0x54] sm:$0xff]
      %v2026 = vld [vmem:[%s2010 + $0x5c] sm:$0xf]
      %v2027 = vld [vmem:[%s2010 + $0x60] sm:$0xff]
      %v2028 = vld [vmem:[%s2010 + $0x68] sm:$0xf]
      %v2029 = vld [vmem:[%s2010 + $0x6c] sm:$0xff]
      %v2030 = vld [vmem:[%s2010 + $0x74] sm:$0xf]
      %v2031 = vld [vmem:[%s2010 + $0x78] sm:$0xff]
      %v2032 = vld [vmem:[%s2010 + $0x80] sm:$0xf]
      %v2033 = vld [vmem:[%s2010 + $0x84] sm:$0xff]
      %v2034 = vld [vmem:[%s2010 + $0x8c] sm:$0xf]
      %v2035 = vld [vmem:[%s2010 + $0x90] sm:$0xff]
      %v2036 = vld [vmem:[%s2010 + $0x98] sm:$0xf]
      %v2037 = vld [vmem:[%s2010 + $0x9c] sm:$0xff]
      %v2038 = vld [vmem:[%s2010 + $0xa4] sm:$0xf]
      %v2039 = vld [vmem:[%s2010 + $0xa8] sm:$0xff]
      %v2040 = vld [vmem:[%s2010 + $0xb0] sm:$0xf]
      %v2041 = vld [vmem:[%s2010 + $0xb4] sm:$0xff]
      %v2042 = vld [vmem:[%s2010 + $0xbc] sm:$0xf]
      %v2043 = vld [vmem:[%s2010 + $0xc0] sm:$0xff]
      %v2044 = vld [vmem:[%s2010 + $0xc8] sm:$0xf]
      %v2045 = vld [vmem:[%s2010 + $0xcc] sm:$0xff]
      %v2046 = vld [vmem:[%s2010 + $0xd4] sm:$0xf]
      %v2047 = vld [vmem:[%s2010 + $0xd8] sm:$0xff]
      %v2048 = vld [vmem:[%s2010 + $0xe0] sm:$0xf]
      %v2049 = vld [vmem:[%s2010 + $0xe4] sm:$0xff]
      %v2050 = vld [vmem:[%s2010 + $0xec] sm:$0xf]
      %v2051 = vld [vmem:[%s2010 + $0xf0] sm:$0xff]
      %v2052 = vld [vmem:[%s2010 + $0xf8] sm:$0xf]
      %v2053 = vld [vmem:[%s2010 + $0xfc] sm:$0xff]
      %v2054 = vld [vmem:[%s2010 + $0x104] sm:$0xf]
      %v2055 = vld [vmem:[%s2010 + $0x108] sm:$0xff]
      %v2056 = vld [vmem:[%s2010 + $0x110] sm:$0xf]
      %v2057 = vld [vmem:[%s2010 + $0x114] sm:$0xff]
      %v2058 = vld [vmem:[%s2010 + $0x11c] sm:$0xf]
      %v2059 = vld [vmem:[%s2010 + $0x120] sm:$0xff]
      %v2060 = vld [vmem:[%s2010 + $0x128] sm:$0xf]
      %v2061 = vld [vmem:[%s2010 + $0x12c] sm:$0xff]
      %v2062 = vld [vmem:[%s2010 + $0x134] sm:$0xf]
      %v2063 = vld [vmem:[%s2010 + $0x138] sm:$0xff]
      %v2064 = vld [vmem:[%s2010 + $0x140] sm:$0xf]
      %v2065 = vld [vmem:[%s2010 + $0x144] sm:$0xff]
      %v2066 = vld [vmem:[%s2010 + $0x14c] sm:$0xf]
      %v2067 = vld [vmem:[%s2010 + $0x150] sm:$0xff]
      %v2068 = vld [vmem:[%s2010 + $0x158] sm:$0xf]
      %v2069 = vld [vmem:[%s2010 + $0x15c] sm:$0xff]
      %v2070 = vld [vmem:[%s2010 + $0x164] sm:$0xf]
      %v2071 = vld [vmem:[%s2010 + $0x168] sm:$0xff]
      %v2072 = vld [vmem:[%s2010 + $0x170] sm:$0xf]
      %v2073 = vld [vmem:[%s2010 + $0x174] sm:$0xff]
      %v2074 = vld [vmem:[%s2010 + $0x17c] sm:$0xf]
      %s2075 = scalar_lea.vmem %s1, 192
      %v2076 = vld [vmem:[%s2075] sm:$0xf]
      %v2077 = vld [vmem:[%s2075 + $0x4] sm:$0xf]
      %v2078 = vld [vmem:[%s2075 + $0x8] sm:$0xf]
      %v2079 = vld [vmem:[%s2075 + $0xc] sm:$0xf]
      %v2080 = vld [vmem:[%s2075 + $0x10] sm:$0xf]
      %v2081 = vld [vmem:[%s2075 + $0x14] sm:$0xf]
      %v2082 = vld [vmem:[%s2075 + $0x18] sm:$0xf]
      %v2083 = vld [vmem:[%s2075 + $0x1c] sm:$0xf]
      %v2084 = vld [vmem:[%s2075 + $0x20] sm:$0xf]
      %v2085 = vld [vmem:[%s2075 + $0x24] sm:$0xf]
      %v2086 = vld [vmem:[%s2075 + $0x28] sm:$0xf]
      %v2087 = vld [vmem:[%s2075 + $0x2c] sm:$0xf]
      %v2088 = vld [vmem:[%s2075 + $0x30] sm:$0xf]
      %v2089 = vld [vmem:[%s2075 + $0x34] sm:$0xf]
      %v2090 = vld [vmem:[%s2075 + $0x38] sm:$0xf]
      %v2091 = vld [vmem:[%s2075 + $0x3c] sm:$0xf]
      %v2092 = vld [vmem:[%s2075 + $0x40] sm:$0xf]
      %v2093 = vld [vmem:[%s2075 + $0x44] sm:$0xf]
      %v2094 = vld [vmem:[%s2075 + $0x48] sm:$0xf]
      %v2095 = vld [vmem:[%s2075 + $0x4c] sm:$0xf]
      %v2096 = vld [vmem:[%s2075 + $0x50] sm:$0xf]
      %v2097 = vld [vmem:[%s2075 + $0x54] sm:$0xf]
      %v2098 = vld [vmem:[%s2075 + $0x58] sm:$0xf]
      %v2099 = vld [vmem:[%s2075 + $0x5c] sm:$0xf]
      %v2100 = vld [vmem:[%s2075 + $0x60] sm:$0xf]
      %v2101 = vld [vmem:[%s2075 + $0x64] sm:$0xf]
      %v2102 = vld [vmem:[%s2075 + $0x68] sm:$0xf]
      %v2103 = vld [vmem:[%s2075 + $0x6c] sm:$0xf]
      %v2104 = vld [vmem:[%s2075 + $0x70] sm:$0xf]
      %v2105 = vld [vmem:[%s2075 + $0x74] sm:$0xf]
      %v2106 = vld [vmem:[%s2075 + $0x78] sm:$0xf]
      %v2107 = vld [vmem:[%s2075 + $0x7c] sm:$0xf]
      %v2108 = vld [vmem:[%s2075 + $0x80] sm:$0xf]
      %v2109 = vld [vmem:[%s2075 + $0x84] sm:$0xf]
      %v2110 = vld [vmem:[%s2075 + $0x88] sm:$0xf]
      %v2111 = vld [vmem:[%s2075 + $0x8c] sm:$0xf]
      %v2112 = vld [vmem:[%s2075 + $0x90] sm:$0xf]
      %v2113 = vld [vmem:[%s2075 + $0x94] sm:$0xf]
      %v2114 = vld [vmem:[%s2075 + $0x98] sm:$0xf]
      %v2115 = vld [vmem:[%s2075 + $0x9c] sm:$0xf]
      %v2116 = vld [vmem:[%s2075 + $0xa0] sm:$0xf]
      %v2117 = vld [vmem:[%s2075 + $0xa4] sm:$0xf]
      %v2118 = vld [vmem:[%s2075 + $0xa8] sm:$0xf]
      %v2119 = vld [vmem:[%s2075 + $0xac] sm:$0xf]
      %v2120 = vld [vmem:[%s2075 + $0xb0] sm:$0xf]
      %v2121 = vld [vmem:[%s2075 + $0xb4] sm:$0xf]
      %v2122 = vld [vmem:[%s2075 + $0xb8] sm:$0xf]
      %v2123 = vld [vmem:[%s2075 + $0xbc] sm:$0xf]
      %v2188 = vunpack.c.l.b16 %v2011
      %v2189 = vunpack.c.h.b16 %v2011
      %v2190 = vunpack.c.l.b16 %v2012
      %v2191 = vunpack.c.l.b16 %v2013
      %v2192 = vunpack.c.h.b16 %v2013
      %v2193 = vunpack.c.l.b16 %v2014
      %v2194 = vunpack.c.l.b16 %v2015
      %v2195 = vunpack.c.h.b16 %v2015
      %v2196 = vunpack.c.l.b16 %v2016
      %v2197 = vunpack.c.l.b16 %v2017
      %v2198 = vunpack.c.h.b16 %v2017
      %v2199 = vunpack.c.l.b16 %v2018
      %v2200 = vunpack.c.l.b16 %v2019
      %v2201 = vunpack.c.h.b16 %v2019
      %v2202 = vunpack.c.l.b16 %v2020
      %v2203 = vunpack.c.l.b16 %v2021
      %v2204 = vunpack.c.h.b16 %v2021
      %v2205 = vunpack.c.l.b16 %v2022
      %v2206 = vunpack.c.l.b16 %v2023
      %v2207 = vunpack.c.h.b16 %v2023
      %v2208 = vunpack.c.l.b16 %v2024
      %v2209 = vunpack.c.l.b16 %v2025
      %v2210 = vunpack.c.h.b16 %v2025
      %v2211 = vunpack.c.l.b16 %v2026
      %v2212 = vunpack.c.l.b16 %v2027
      %v2213 = vunpack.c.h.b16 %v2027
      %v2214 = vunpack.c.l.b16 %v2028
      %v2215 = vunpack.c.l.b16 %v2029
      %v2216 = vunpack.c.h.b16 %v2029
      %v2217 = vunpack.c.l.b16 %v2030
      %v2218 = vunpack.c.l.b16 %v2031
      %v2219 = vunpack.c.h.b16 %v2031
      %v2220 = vunpack.c.l.b16 %v2032
      %v2221 = vunpack.c.l.b16 %v2033
      %v2222 = vunpack.c.h.b16 %v2033
      %v2223 = vunpack.c.l.b16 %v2034
      %v2224 = vunpack.c.l.b16 %v2035
      %v2225 = vunpack.c.h.b16 %v2035
      %v2226 = vunpack.c.l.b16 %v2036
      %v2227 = vunpack.c.l.b16 %v2037
      %v2228 = vunpack.c.h.b16 %v2037
      %v2229 = vunpack.c.l.b16 %v2038
      %v2230 = vunpack.c.l.b16 %v2039
      %v2231 = vunpack.c.h.b16 %v2039
      %v2232 = vunpack.c.l.b16 %v2040
      %v2233 = vunpack.c.l.b16 %v2041
      %v2234 = vunpack.c.h.b16 %v2041
      %v2235 = vunpack.c.l.b16 %v2042
      %v2236 = vunpack.c.l.b16 %v2043
      %v2237 = vunpack.c.h.b16 %v2043
      %v2238 = vunpack.c.l.b16 %v2044
      %v2239 = vunpack.c.l.b16 %v2045
      %v2240 = vunpack.c.h.b16 %v2045
      %v2241 = vunpack.c.l.b16 %v2046
      %v2242 = vunpack.c.l.b16 %v2047
      %v2243 = vunpack.c.h.b16 %v2047
      %v2244 = vunpack.c.l.b16 %v2048
      %v2245 = vunpack.c.l.b16 %v2049
      %v2246 = vunpack.c.h.b16 %v2049
      %v2247 = vunpack.c.l.b16 %v2050
      %v2248 = vunpack.c.l.b16 %v2051
      %v2249 = vunpack.c.h.b16 %v2051
      %v2250 = vunpack.c.l.b16 %v2052
      %v2251 = vunpack.c.l.b16 %v2053
      %v2252 = vunpack.c.h.b16 %v2053
      %v2253 = vunpack.c.l.b16 %v2054
      %v2254 = vunpack.c.l.b16 %v2055
      %v2255 = vunpack.c.h.b16 %v2055
      %v2256 = vunpack.c.l.b16 %v2056
      %v2257 = vunpack.c.l.b16 %v2057
      %v2258 = vunpack.c.h.b16 %v2057
      %v2259 = vunpack.c.l.b16 %v2058
      %v2260 = vunpack.c.l.b16 %v2059
      %v2261 = vunpack.c.h.b16 %v2059
      %v2262 = vunpack.c.l.b16 %v2060
      %v2263 = vunpack.c.l.b16 %v2061
      %v2264 = vunpack.c.h.b16 %v2061
      %v2265 = vunpack.c.l.b16 %v2062
      %v2266 = vunpack.c.l.b16 %v2063
      %v2267 = vunpack.c.h.b16 %v2063
      %v2268 = vunpack.c.l.b16 %v2064
      %v2269 = vunpack.c.l.b16 %v2065
      %v2270 = vunpack.c.h.b16 %v2065
      %v2271 = vunpack.c.l.b16 %v2066
      %v2272 = vunpack.c.l.b16 %v2067
      %v2273 = vunpack.c.h.b16 %v2067
      %v2274 = vunpack.c.l.b16 %v2068
      %v2275 = vunpack.c.l.b16 %v2069
      %v2276 = vunpack.c.h.b16 %v2069
      %v2277 = vunpack.c.l.b16 %v2070
      %v2278 = vunpack.c.l.b16 %v2071
      %v2279 = vunpack.c.h.b16 %v2071
      %v2280 = vunpack.c.l.b16 %v2072
      %v2281 = vunpack.c.l.b16 %v2073
      %v2282 = vunpack.c.h.b16 %v2073
      %v2283 = vunpack.c.l.b16 %v2074
      %v2284 = vpack.c.b16 %v2191, %v2188
      %v2285 = vpack.c.b16 %v2192, %v2189
      %v2286 = vpack.c.b16 %v2193, %v2190
      %v2287 = vpack.c.b16 %v2197, %v2194
      %v2288 = vpack.c.b16 %v2198, %v2195
      %v2289 = vpack.c.b16 %v2199, %v2196
      %v2290 = vpack.c.b16 %v2203, %v2200
      %v2291 = vpack.c.b16 %v2204, %v2201
      %v2292 = vpack.c.b16 %v2205, %v2202
      %v2293 = vpack.c.b16 %v2209, %v2206
      %v2294 = vpack.c.b16 %v2210, %v2207
      %v2295 = vpack.c.b16 %v2211, %v2208
      %v2296 = vpack.c.b16 %v2215, %v2212
      %v2297 = vpack.c.b16 %v2216, %v2213
      %v2298 = vpack.c.b16 %v2217, %v2214
      %v2299 = vpack.c.b16 %v2221, %v2218
      %v2300 = vpack.c.b16 %v2222, %v2219
      %v2301 = vpack.c.b16 %v2223, %v2220
      %v2302 = vpack.c.b16 %v2227, %v2224
      %v2303 = vpack.c.b16 %v2228, %v2225
      %v2304 = vpack.c.b16 %v2229, %v2226
      %v2305 = vpack.c.b16 %v2233, %v2230
      %v2306 = vpack.c.b16 %v2234, %v2231
      %v2307 = vpack.c.b16 %v2235, %v2232
      %v2308 = vpack.c.b16 %v2239, %v2236
      %v2309 = vpack.c.b16 %v2240, %v2237
      %v2310 = vpack.c.b16 %v2241, %v2238
      %v2311 = vpack.c.b16 %v2245, %v2242
      %v2312 = vpack.c.b16 %v2246, %v2243
      %v2313 = vpack.c.b16 %v2247, %v2244
      %v2314 = vpack.c.b16 %v2251, %v2248
      %v2315 = vpack.c.b16 %v2252, %v2249
      %v2316 = vpack.c.b16 %v2253, %v2250
      %v2317 = vpack.c.b16 %v2257, %v2254
      %v2318 = vpack.c.b16 %v2258, %v2255
      %v2319 = vpack.c.b16 %v2259, %v2256
      %v2320 = vpack.c.b16 %v2263, %v2260
      %v2321 = vpack.c.b16 %v2264, %v2261
      %v2322 = vpack.c.b16 %v2265, %v2262
      %v2323 = vpack.c.b16 %v2269, %v2266
      %v2324 = vpack.c.b16 %v2270, %v2267
      %v2325 = vpack.c.b16 %v2271, %v2268
      %v2326 = vpack.c.b16 %v2275, %v2272
      %v2327 = vpack.c.b16 %v2276, %v2273
      %v2328 = vpack.c.b16 %v2277, %v2274
      %v2329 = vpack.c.b16 %v2281, %v2278
      %v2330 = vpack.c.b16 %v2282, %v2279
      %v2331 = vpack.c.b16 %v2283, %v2280
      %v2428 = vunpack.c.l.b16 %v2076
      %v2429 = vunpack.c.l.b16 %v2077
      %v2430 = vunpack.c.l.b16 %v2078
      %v2431 = vunpack.c.l.b16 %v2079
      %v2432 = vunpack.c.l.b16 %v2080
      %v2433 = vunpack.c.l.b16 %v2081
      %v2434 = vunpack.c.l.b16 %v2082
      %v2435 = vunpack.c.l.b16 %v2083
      %v2436 = vunpack.c.l.b16 %v2084
      %v2437 = vunpack.c.l.b16 %v2085
      %v2438 = vunpack.c.l.b16 %v2086
      %v2439 = vunpack.c.l.b16 %v2087
      %v2440 = vunpack.c.l.b16 %v2088
      %v2441 = vunpack.c.l.b16 %v2089
      %v2442 = vunpack.c.l.b16 %v2090
      %v2443 = vunpack.c.l.b16 %v2091
      %v2444 = vunpack.c.l.b16 %v2092
      %v2445 = vunpack.c.l.b16 %v2093
      %v2446 = vunpack.c.l.b16 %v2094
      %v2447 = vunpack.c.l.b16 %v2095
      %v2448 = vunpack.c.l.b16 %v2096
      %v2449 = vunpack.c.l.b16 %v2097
      %v2450 = vunpack.c.l.b16 %v2098
      %v2451 = vunpack.c.l.b16 %v2099
      %v2452 = vunpack.c.l.b16 %v2100
      %v2453 = vunpack.c.l.b16 %v2101
      %v2454 = vunpack.c.l.b16 %v2102
      %v2455 = vunpack.c.l.b16 %v2103
      %v2456 = vunpack.c.l.b16 %v2104
      %v2457 = vunpack.c.l.b16 %v2105
      %v2458 = vunpack.c.l.b16 %v2106
      %v2459 = vunpack.c.l.b16 %v2107
      %v2460 = vunpack.c.l.b16 %v2108
      %v2461 = vunpack.c.l.b16 %v2109
      %v2462 = vunpack.c.l.b16 %v2110
      %v2463 = vunpack.c.l.b16 %v2111
      %v2464 = vunpack.c.l.b16 %v2112
      %v2465 = vunpack.c.l.b16 %v2113
      %v2466 = vunpack.c.l.b16 %v2114
      %v2467 = vunpack.c.l.b16 %v2115
      %v2468 = vunpack.c.l.b16 %v2116
      %v2469 = vunpack.c.l.b16 %v2117
      %v2470 = vunpack.c.l.b16 %v2118
      %v2471 = vunpack.c.l.b16 %v2119
      %v2472 = vunpack.c.l.b16 %v2120
      %v2473 = vunpack.c.l.b16 %v2121
      %v2474 = vunpack.c.l.b16 %v2122
      %v2475 = vunpack.c.l.b16 %v2123
      %v2476 = vpack.c.b16 %v2429, %v2428
      %v2477 = vpack.c.b16 %v2431, %v2430
      %v2478 = vpack.c.b16 %v2433, %v2432
      %v2479 = vpack.c.b16 %v2435, %v2434
      %v2480 = vpack.c.b16 %v2437, %v2436
      %v2481 = vpack.c.b16 %v2439, %v2438
      %v2482 = vpack.c.b16 %v2441, %v2440
      %v2483 = vpack.c.b16 %v2443, %v2442
      %v2484 = vpack.c.b16 %v2445, %v2444
      %v2485 = vpack.c.b16 %v2447, %v2446
      %v2486 = vpack.c.b16 %v2449, %v2448
      %v2487 = vpack.c.b16 %v2451, %v2450
      %v2488 = vpack.c.b16 %v2453, %v2452
      %v2489 = vpack.c.b16 %v2455, %v2454
      %v2490 = vpack.c.b16 %v2457, %v2456
      %v2491 = vpack.c.b16 %v2459, %v2458
      %v2492 = vpack.c.b16 %v2461, %v2460
      %v2493 = vpack.c.b16 %v2463, %v2462
      %v2494 = vpack.c.b16 %v2465, %v2464
      %v2495 = vpack.c.b16 %v2467, %v2466
      %v2496 = vpack.c.b16 %v2469, %v2468
      %v2497 = vpack.c.b16 %v2471, %v2470
      %v2498 = vpack.c.b16 %v2473, %v2472
      %v2499 = vpack.c.b16 %v2475, %v2474
      %2524 = vmatprep.subr.bf16.mxu0 0
      %2525 = vmatpush1.bf16.msra.mxu0 %v2483
      %2526 = vmatprep.subr.bf16.mxu0 0
      %2527 = vmatpush1.bf16.msra.mxu0 %v2482
      %2528 = vmatprep.subr.bf16.mxu0 0
      %2529 = vmatpush1.bf16.msra.mxu0 %v2481
      %2530 = vmatprep.subr.bf16.mxu0 0
      %2531 = vmatpush1.bf16.msra.mxu0 %v2480
      %2532 = vmatprep.subr.bf16.mxu0 0
      %2533 = vmatpush1.bf16.msra.mxu0 %v2479
      %2534 = vmatprep.subr.bf16.mxu0 0
      %2535 = vmatpush1.bf16.msra.mxu0 %v2478
      %2536 = vmatprep.subr.bf16.mxu0 0
      %2537 = vmatpush1.bf16.msra.mxu0 %v2477
      %2538 = vmatprep.subr.bf16.mxu0 0
      %2539 = vmatpush1.bf16.msra.mxu0 %v2476
      %2540 = vmatprep.subr.bf16.mxu0 0
      %2541 = vmatpush2.bf16.msra.mxu0 %v2491
      %2542 = vmatprep.subr.bf16.mxu0 0
      %2543 = vmatpush2.bf16.msra.mxu0 %v2490
      %2544 = vmatprep.subr.bf16.mxu0 0
      %2545 = vmatpush2.bf16.msra.mxu0 %v2489
      %2546 = vmatprep.subr.bf16.mxu0 0
      %2547 = vmatpush2.bf16.msra.mxu0 %v2488
      %2548 = vmatprep.subr.bf16.mxu0 0
      %2549 = vmatpush2.bf16.msra.mxu0 %v2487
      %2550 = vmatprep.subr.bf16.mxu0 0
      %2551 = vmatpush2.bf16.msra.mxu0 %v2486
      %2552 = vmatprep.subr.bf16.mxu0 0
      %2553 = vmatpush2.bf16.msra.mxu0 %v2485
      %2554 = vmatprep.subr.bf16.mxu0 0
      %2555 = vmatpush2.bf16.msra.mxu0 %v2484
      %2556 = vmatprep.mubr.bf16.mxu0 %v2285
      %2557 = vmatmul.mubr.bf16.gmra.mxu0 %v2284
      %v2558 = vpop.f32.mrf.mxu0
      %v2559 = vadd.f32 0.0, %v2558
      %v2560 = vpop.f32.mrf.mxu0
      %v2561 = vpop.f32.mrf.mxu0
      %v2562 = vadd.f32 0.0, %v2561
      %v2563 = vpop.f32.mrf.mxu0
      %2564 = vmatprep.mubr.bf16.mxu0 %v2288
      %2565 = vmatmul.mubr.bf16.gmra.mxu0 %v2287
      %v2566 = vpop.f32.mrf.mxu0
      %v2567 = vadd.f32 0.0, %v2566
      %v2568 = vpop.f32.mrf.mxu0
      %v2569 = vpop.f32.mrf.mxu0
      %v2570 = vadd.f32 0.0, %v2569
      %v2571 = vpop.f32.mrf.mxu0
      %2572 = vmatprep.mubr.bf16.mxu0 %v2291
      %2573 = vmatmul.mubr.bf16.gmra.mxu0 %v2290
      %v2574 = vpop.f32.mrf.mxu0
      %v2575 = vadd.f32 0.0, %v2574
      %v2576 = vpop.f32.mrf.mxu0
      %v2577 = vpop.f32.mrf.mxu0
      %v2578 = vadd.f32 0.0, %v2577
      %v2579 = vpop.f32.mrf.mxu0
      %2580 = vmatprep.mubr.bf16.mxu0 %v2294
      %2581 = vmatmul.mubr.bf16.gmra.mxu0 %v2293
      %v2582 = vpop.f32.mrf.mxu0
      %v2583 = vadd.f32 0.0, %v2582
      %v2584 = vpop.f32.mrf.mxu0
      %v2585 = vpop.f32.mrf.mxu0
      %v2586 = vadd.f32 0.0, %v2585
      %v2587 = vpop.f32.mrf.mxu0
      %2588 = vmatprep.mubr.bf16.mxu0 %v2297
      %2589 = vmatmul.mubr.bf16.gmra.mxu0 %v2296
      %v2590 = vpop.f32.mrf.mxu0
      %v2591 = vadd.f32 0.0, %v2590
      %v2592 = vpop.f32.mrf.mxu0
      %v2593 = vpop.f32.mrf.mxu0
      %v2594 = vadd.f32 0.0, %v2593
      %v2595 = vpop.f32.mrf.mxu0
      %2596 = vmatprep.mubr.bf16.mxu0 %v2300
      %2597 = vmatmul.mubr.bf16.gmra.mxu0 %v2299
      %v2598 = vpop.f32.mrf.mxu0
      %v2599 = vadd.f32 0.0, %v2598
      %v2600 = vpop.f32.mrf.mxu0
      %v2601 = vpop.f32.mrf.mxu0
      %v2602 = vadd.f32 0.0, %v2601
      %v2603 = vpop.f32.mrf.mxu0
      %2604 = vmatprep.mubr.bf16.mxu0 %v2303
      %2605 = vmatmul.mubr.bf16.gmra.mxu0 %v2302
      %v2606 = vpop.f32.mrf.mxu0
      %v2607 = vadd.f32 0.0, %v2606
      %v2608 = vpop.f32.mrf.mxu0
      %v2609 = vpop.f32.mrf.mxu0
      %v2610 = vadd.f32 0.0, %v2609
      %v2611 = vpop.f32.mrf.mxu0
      %2612 = vmatprep.mubr.bf16.mxu0 %v2306
      %2613 = vmatmul.mubr.bf16.gmra.mxu0 %v2305
      %v2614 = vpop.f32.mrf.mxu0
      %v2615 = vadd.f32 0.0, %v2614
      %v2616 = vpop.f32.mrf.mxu0
      %v2617 = vpop.f32.mrf.mxu0
      %v2618 = vadd.f32 0.0, %v2617
      %v2619 = vpop.f32.mrf.mxu0
      %2620 = vmatprep.mubr.bf16.mxu0 %v2309
      %2621 = vmatmul.mubr.bf16.gmra.mxu0 %v2308
      %v2622 = vpop.f32.mrf.mxu0
      %v2623 = vadd.f32 0.0, %v2622
      %v2624 = vpop.f32.mrf.mxu0
      %v2625 = vpop.f32.mrf.mxu0
      %v2626 = vadd.f32 0.0, %v2625
      %v2627 = vpop.f32.mrf.mxu0
      %2628 = vmatprep.mubr.bf16.mxu0 %v2312
      %2629 = vmatmul.mubr.bf16.gmra.mxu0 %v2311
      %v2630 = vpop.f32.mrf.mxu0
      %v2631 = vadd.f32 0.0, %v2630
      %v2632 = vpop.f32.mrf.mxu0
      %v2633 = vpop.f32.mrf.mxu0
      %v2634 = vadd.f32 0.0, %v2633
      %v2635 = vpop.f32.mrf.mxu0
      %2636 = vmatprep.mubr.bf16.mxu0 %v2315
      %2637 = vmatmul.mubr.bf16.gmra.mxu0 %v2314
      %v2638 = vpop.f32.mrf.mxu0
      %v2639 = vadd.f32 0.0, %v2638
      %v2640 = vpop.f32.mrf.mxu0
      %v2641 = vpop.f32.mrf.mxu0
      %v2642 = vadd.f32 0.0, %v2641
      %v2643 = vpop.f32.mrf.mxu0
      %2644 = vmatprep.mubr.bf16.mxu0 %v2318
      %2645 = vmatmul.mubr.bf16.gmra.mxu0 %v2317
      %v2646 = vpop.f32.mrf.mxu0
      %v2647 = vadd.f32 0.0, %v2646
      %v2648 = vpop.f32.mrf.mxu0
      %v2649 = vpop.f32.mrf.mxu0
      %v2650 = vadd.f32 0.0, %v2649
      %v2651 = vpop.f32.mrf.mxu0
      %2652 = vmatprep.mubr.bf16.mxu0 %v2321
      %2653 = vmatmul.mubr.bf16.gmra.mxu0 %v2320
      %v2654 = vpop.f32.mrf.mxu0
      %v2655 = vadd.f32 0.0, %v2654
      %v2656 = vpop.f32.mrf.mxu0
      %v2657 = vpop.f32.mrf.mxu0
      %v2658 = vadd.f32 0.0, %v2657
      %v2659 = vpop.f32.mrf.mxu0
      %2660 = vmatprep.mubr.bf16.mxu0 %v2324
      %2661 = vmatmul.mubr.bf16.gmra.mxu0 %v2323
      %v2662 = vpop.f32.mrf.mxu0
      %v2663 = vadd.f32 0.0, %v2662
      %v2664 = vpop.f32.mrf.mxu0
      %v2665 = vpop.f32.mrf.mxu0
      %v2666 = vadd.f32 0.0, %v2665
      %v2667 = vpop.f32.mrf.mxu0
      %2668 = vmatprep.mubr.bf16.mxu0 %v2327
      %2669 = vmatmul.mubr.bf16.gmra.mxu0 %v2326
      %v2670 = vpop.f32.mrf.mxu0
      %v2671 = vadd.f32 0.0, %v2670
      %v2672 = vpop.f32.mrf.mxu0
      %v2673 = vpop.f32.mrf.mxu0
      %v2674 = vadd.f32 0.0, %v2673
      %v2675 = vpop.f32.mrf.mxu0
      %2676 = vmatprep.mubr.bf16.mxu0 %v2330
      %2677 = vmatmul.mubr.bf16.gmra.mxu0 %v2329
      %v2678 = vpop.f32.mrf.mxu0
      %v2679 = vadd.f32 0.0, %v2678
      %v2680 = vpop.f32.mrf.mxu0
      %v2681 = vpop.f32.mrf.mxu0
      %v2682 = vadd.f32 0.0, %v2681
      %v2683 = vpop.f32.mrf.mxu0
      %2684 = vdwg.mxu0
      %2685 = vmatprep.subr.bf16.mxu0 0
      %2686 = vmatpush1.bf16.msra.mxu0 %v2499
      %2687 = vmatprep.subr.bf16.mxu0 0
      %2688 = vmatpush1.bf16.msra.mxu0 %v2498
      %2689 = vmatprep.subr.bf16.mxu0 0
      %2690 = vmatpush1.bf16.msra.mxu0 %v2497
      %2691 = vmatprep.subr.bf16.mxu0 0
      %2692 = vmatpush1.bf16.msra.mxu0 %v2496
      %2693 = vmatprep.subr.bf16.mxu0 0
      %2694 = vmatpush1.bf16.msra.mxu0 %v2495
      %2695 = vmatprep.subr.bf16.mxu0 0
      %2696 = vmatpush1.bf16.msra.mxu0 %v2494
      %2697 = vmatprep.subr.bf16.mxu0 0
      %2698 = vmatpush1.bf16.msra.mxu0 %v2493
      %2699 = vmatprep.subr.bf16.mxu0 0
      %2700 = vmatpush1.bf16.msra.mxu0 %v2492
      %2701 = vmatprep.subr.bf16.mxu0 0
      %2702 = vmatpush2.bf16.msra.mxu0 0
      %2703 = vmatprep.subr.bf16.mxu0 0
      %2704 = vmatpush2.bf16.msra.mxu0 0
      %2705 = vmatprep.subr.bf16.mxu0 0
      %2706 = vmatpush2.bf16.msra.mxu0 0
      %2707 = vmatprep.subr.bf16.mxu0 0
      %2708 = vmatpush2.bf16.msra.mxu0 0
      %2709 = vmatprep.subr.bf16.mxu0 0
      %2710 = vmatpush2.bf16.msra.mxu0 0
      %2711 = vmatprep.subr.bf16.mxu0 0
      %2712 = vmatpush2.bf16.msra.mxu0 0
      %2713 = vmatprep.subr.bf16.mxu0 0
      %2714 = vmatpush2.bf16.msra.mxu0 0
      %2715 = vmatprep.subr.bf16.mxu0 0
      %2716 = vmatpush2.bf16.msra.mxu0 0
      %2717 = vmatprep.mubr.bf16.mxu0 0
      %2718 = vmatmul.mubr.bf16.gmra.mxu0 %v2286
      %v2719 = vpop.f32.mrf.mxu0
      %v2720 = vadd.f32 %v2559, %v2719
      %v2721 = vpop.f32.mrf.mxu0
      %v2722 = vpop.f32.mrf.mxu0
      %v2723 = vadd.f32 %v2562, %v2722
      %v2724 = vpop.f32.mrf.mxu0
      %2725 = vmatprep.mubr.bf16.mxu0 0
      %2726 = vmatmul.mubr.bf16.gmra.mxu0 %v2289
      %v2727 = vpop.f32.mrf.mxu0
      %v2728 = vadd.f32 %v2567, %v2727
      %v2729 = vpop.f32.mrf.mxu0
      %v2730 = vpop.f32.mrf.mxu0
      %v2731 = vadd.f32 %v2570, %v2730
      %v2732 = vpop.f32.mrf.mxu0
      %2733 = vmatprep.mubr.bf16.mxu0 0
      %2734 = vmatmul.mubr.bf16.gmra.mxu0 %v2292
      %v2735 = vpop.f32.mrf.mxu0
      %v2736 = vadd.f32 %v2575, %v2735
      %v2737 = vpop.f32.mrf.mxu0
      %v2738 = vpop.f32.mrf.mxu0
      %v2739 = vadd.f32 %v2578, %v2738
      %v2740 = vpop.f32.mrf.mxu0
      %2741 = vmatprep.mubr.bf16.mxu0 0
      %2742 = vmatmul.mubr.bf16.gmra.mxu0 %v2295
      %v2743 = vpop.f32.mrf.mxu0
      %v2744 = vadd.f32 %v2583, %v2743
      %v2745 = vpop.f32.mrf.mxu0
      %v2746 = vpop.f32.mrf.mxu0
      %v2747 = vadd.f32 %v2586, %v2746
      %v2748 = vpop.f32.mrf.mxu0
      %2749 = vmatprep.mubr.bf16.mxu0 0
      %2750 = vmatmul.mubr.bf16.gmra.mxu0 %v2298
      %v2751 = vpop.f32.mrf.mxu0
      %v2752 = vadd.f32 %v2591, %v2751
      %v2753 = vpop.f32.mrf.mxu0
      %v2754 = vpop.f32.mrf.mxu0
      %v2755 = vadd.f32 %v2594, %v2754
      %v2756 = vpop.f32.mrf.mxu0
      %2757 = vmatprep.mubr.bf16.mxu0 0
      %2758 = vmatmul.mubr.bf16.gmra.mxu0 %v2301
      %v2759 = vpop.f32.mrf.mxu0
      %v2760 = vadd.f32 %v2599, %v2759
      %v2761 = vpop.f32.mrf.mxu0
      %v2762 = vpop.f32.mrf.mxu0
      %v2763 = vadd.f32 %v2602, %v2762
      %v2764 = vpop.f32.mrf.mxu0
      %2765 = vmatprep.mubr.bf16.mxu0 0
      %2766 = vmatmul.mubr.bf16.gmra.mxu0 %v2304
      %v2767 = vpop.f32.mrf.mxu0
      %v2768 = vadd.f32 %v2607, %v2767
      %v2769 = vpop.f32.mrf.mxu0
      %v2770 = vpop.f32.mrf.mxu0
      %v2771 = vadd.f32 %v2610, %v2770
      %v2772 = vpop.f32.mrf.mxu0
      %2773 = vmatprep.mubr.bf16.mxu0 0
      %2774 = vmatmul.mubr.bf16.gmra.mxu0 %v2307
      %v2775 = vpop.f32.mrf.mxu0
      %v2776 = vadd.f32 %v2615, %v2775
      %v2777 = vpop.f32.mrf.mxu0
      %v2778 = vpop.f32.mrf.mxu0
      %v2779 = vadd.f32 %v2618, %v2778
      %v2780 = vpop.f32.mrf.mxu0
      %2781 = vmatprep.mubr.bf16.mxu0 0
      %2782 = vmatmul.mubr.bf16.gmra.mxu0 %v2310
      %v2783 = vpop.f32.mrf.mxu0
      %v2784 = vadd.f32 %v2623, %v2783
      %v2785 = vpop.f32.mrf.mxu0
      %v2786 = vpop.f32.mrf.mxu0
      %v2787 = vadd.f32 %v2626, %v2786
      %v2788 = vpop.f32.mrf.mxu0
      %2789 = vmatprep.mubr.bf16.mxu0 0
      %2790 = vmatmul.mubr.bf16.gmra.mxu0 %v2313
      %v2791 = vpop.f32.mrf.mxu0
      %v2792 = vadd.f32 %v2631, %v2791
      %v2793 = vpop.f32.mrf.mxu0
      %v2794 = vpop.f32.mrf.mxu0
      %v2795 = vadd.f32 %v2634, %v2794
      %v2796 = vpop.f32.mrf.mxu0
      %2797 = vmatprep.mubr.bf16.mxu0 0
      %2798 = vmatmul.mubr.bf16.gmra.mxu0 %v2316
      %v2799 = vpop.f32.mrf.mxu0
      %v2800 = vadd.f32 %v2639, %v2799
      %v2801 = vpop.f32.mrf.mxu0
      %v2802 = vpop.f32.mrf.mxu0
      %v2803 = vadd.f32 %v2642, %v2802
      %v2804 = vpop.f32.mrf.mxu0
      %2805 = vmatprep.mubr.bf16.mxu0 0
      %2806 = vmatmul.mubr.bf16.gmra.mxu0 %v2319
      %v2807 = vpop.f32.mrf.mxu0
      %v2808 = vadd.f32 %v2647, %v2807
      %v2809 = vpop.f32.mrf.mxu0
      %v2810 = vpop.f32.mrf.mxu0
      %v2811 = vadd.f32 %v2650, %v2810
      %v2812 = vpop.f32.mrf.mxu0
      %2813 = vmatprep.mubr.bf16.mxu0 0
      %2814 = vmatmul.mubr.bf16.gmra.mxu0 %v2322
      %v2815 = vpop.f32.mrf.mxu0
      %v2816 = vadd.f32 %v2655, %v2815
      %v2817 = vpop.f32.mrf.mxu0
      %v2818 = vpop.f32.mrf.mxu0
      %v2819 = vadd.f32 %v2658, %v2818
      %v2820 = vpop.f32.mrf.mxu0
      %2821 = vmatprep.mubr.bf16.mxu0 0
      %2822 = vmatmul.mubr.bf16.gmra.mxu0 %v2325
      %v2823 = vpop.f32.mrf.mxu0
      %v2824 = vadd.f32 %v2663, %v2823
      %v2825 = vpop.f32.mrf.mxu0
      %v2826 = vpop.f32.mrf.mxu0
      %v2827 = vadd.f32 %v2666, %v2826
      %v2828 = vpop.f32.mrf.mxu0
      %2829 = vmatprep.mubr.bf16.mxu0 0
      %2830 = vmatmul.mubr.bf16.gmra.mxu0 %v2328
      %v2831 = vpop.f32.mrf.mxu0
      %v2832 = vadd.f32 %v2671, %v2831
      %v2833 = vpop.f32.mrf.mxu0
      %v2834 = vpop.f32.mrf.mxu0
      %v2835 = vadd.f32 %v2674, %v2834
      %v2836 = vpop.f32.mrf.mxu0
      %2837 = vmatprep.mubr.bf16.mxu0 0
      %2838 = vmatmul.mubr.bf16.gmra.mxu0 %v2331
      %v2839 = vpop.f32.mrf.mxu0
      %v2840 = vadd.f32 %v2679, %v2839
      %v2841 = vpop.f32.mrf.mxu0
      %v2842 = vpop.f32.mrf.mxu0
      %v2843 = vadd.f32 %v2682, %v2842
      %v2844 = vpop.f32.mrf.mxu0
      %2845 = vdwg.mxu0
      %v2846 = vadd.f32 %v1978, %v2720
      %v2847 = vadd.f32 %v1979, %v2723
      %v2848 = vadd.f32 %v1980, %v2728
      %v2849 = vadd.f32 %v1981, %v2731
      %v2850 = vadd.f32 %v1982, %v2736
      %v2851 = vadd.f32 %v1983, %v2739
      %v2852 = vadd.f32 %v1984, %v2744
      %v2853 = vadd.f32 %v1985, %v2747
      %v2854 = vadd.f32 %v1986, %v2752
      %v2855 = vadd.f32 %v1987, %v2755
      %v2856 = vadd.f32 %v1988, %v2760
      %v2857 = vadd.f32 %v1989, %v2763
      %v2858 = vadd.f32 %v1990, %v2768
      %v2859 = vadd.f32 %v1991, %v2771
      %v2860 = vadd.f32 %v1992, %v2776
      %v2861 = vadd.f32 %v1993, %v2779
      %v2862 = vadd.f32 %v1994, %v2784
      %v2863 = vadd.f32 %v1995, %v2787
      %v2864 = vadd.f32 %v1996, %v2792
      %v2865 = vadd.f32 %v1997, %v2795
      %v2866 = vadd.f32 %v1998, %v2800
      %v2867 = vadd.f32 %v1999, %v2803
      %v2868 = vadd.f32 %v2000, %v2808
      %v2869 = vadd.f32 %v2001, %v2811
      %v2870 = vadd.f32 %v2002, %v2816
      %v2871 = vadd.f32 %v2003, %v2819
      %v2872 = vadd.f32 %v2004, %v2824
      %v2873 = vadd.f32 %v2005, %v2827
      %v2874 = vadd.f32 %v2006, %v2832
      %v2875 = vadd.f32 %v2007, %v2835
      %v2876 = vadd.f32 %v2008, %v2840
      %v2877 = vadd.f32 %v2009, %v2843
      %2878 = vst [vmem:[#allocation3] sm:$0xff] %v2846
      %2879 = vst [vmem:[#allocation3 + $0x8] sm:$0xff] %v2847
      %2880 = vst [vmem:[#allocation3 + $0x10] sm:$0xff] %v2848
      %2881 = vst [vmem:[#allocation3 + $0x18] sm:$0xff] %v2849
      %2882 = vst [vmem:[#allocation3 + $0x20] sm:$0xff] %v2850
      %2883 = vst [vmem:[#allocation3 + $0x28] sm:$0xff] %v2851
      %2884 = vst [vmem:[#allocation3 + $0x30] sm:$0xff] %v2852
      %2885 = vst [vmem:[#allocation3 + $0x38] sm:$0xff] %v2853
      %2886 = vst [vmem:[#allocation3 + $0x40] sm:$0xff] %v2854
      %2887 = vst [vmem:[#allocation3 + $0x48] sm:$0xff] %v2855
      %2888 = vst [vmem:[#allocation3 + $0x50] sm:$0xff] %v2856
      %2889 = vst [vmem:[#allocation3 + $0x58] sm:$0xff] %v2857
      %2890 = vst [vmem:[#allocation3 + $0x60] sm:$0xff] %v2858
      %2891 = vst [vmem:[#allocation3 + $0x68] sm:$0xff] %v2859
      %2892 = vst [vmem:[#allocation3 + $0x70] sm:$0xff] %v2860
      %2893 = vst [vmem:[#allocation3 + $0x78] sm:$0xff] %v2861
      %2894 = vst [vmem:[#allocation3 + $0x80] sm:$0xff] %v2862
      %2895 = vst [vmem:[#allocation3 + $0x88] sm:$0xff] %v2863
      %2896 = vst [vmem:[#allocation3 + $0x90] sm:$0xff] %v2864
      %2897 = vst [vmem:[#allocation3 + $0x98] sm:$0xff] %v2865
      %2898 = vst [vmem:[#allocation3 + $0xa0] sm:$0xff] %v2866
      %2899 = vst [vmem:[#allocation3 + $0xa8] sm:$0xff] %v2867
      %2900 = vst [vmem:[#allocation3 + $0xb0] sm:$0xff] %v2868
      %2901 = vst [vmem:[#allocation3 + $0xb8] sm:$0xff] %v2869
      %2902 = vst [vmem:[#allocation3 + $0xc0] sm:$0xff] %v2870
      %2903 = vst [vmem:[#allocation3 + $0xc8] sm:$0xff] %v2871
      %2904 = vst [vmem:[#allocation3 + $0xd0] sm:$0xff] %v2872
      %2905 = vst [vmem:[#allocation3 + $0xd8] sm:$0xff] %v2873
      %2906 = vst [vmem:[#allocation3 + $0xe0] sm:$0xff] %v2874
      %2907 = vst [vmem:[#allocation3 + $0xe8] sm:$0xff] %v2875
      %2908 = vst [vmem:[#allocation3 + $0xf0] sm:$0xff] %v2876
      %2909 = vst [vmem:[#allocation3 + $0xf8] sm:$0xff] %v2877
      %v2910 = vld [vmem:[#allocation3] sm:$0xff]
      %v2911 = vld [vmem:[#allocation3 + $0x8] sm:$0xff]
      %v2912 = vld [vmem:[#allocation3 + $0x10] sm:$0xff]
      %v2913 = vld [vmem:[#allocation3 + $0x18] sm:$0xff]
      %v2914 = vld [vmem:[#allocation3 + $0x20] sm:$0xff]
      %v2915 = vld [vmem:[#allocation3 + $0x28] sm:$0xff]
      %v2916 = vld [vmem:[#allocation3 + $0x30] sm:$0xff]
      %v2917 = vld [vmem:[#allocation3 + $0x38] sm:$0xff]
      %v2918 = vld [vmem:[#allocation3 + $0x40] sm:$0xff]
      %v2919 = vld [vmem:[#allocation3 + $0x48] sm:$0xff]
      %v2920 = vld [vmem:[#allocation3 + $0x50] sm:$0xff]
      %v2921 = vld [vmem:[#allocation3 + $0x58] sm:$0xff]
      %v2922 = vld [vmem:[#allocation3 + $0x60] sm:$0xff]
      %v2923 = vld [vmem:[#allocation3 + $0x68] sm:$0xff]
      %v2924 = vld [vmem:[#allocation3 + $0x70] sm:$0xff]
      %v2925 = vld [vmem:[#allocation3 + $0x78] sm:$0xff]
      %v2926 = vld [vmem:[#allocation3 + $0x80] sm:$0xff]
      %v2927 = vld [vmem:[#allocation3 + $0x88] sm:$0xff]
      %v2928 = vld [vmem:[#allocation3 + $0x90] sm:$0xff]
      %v2929 = vld [vmem:[#allocation3 + $0x98] sm:$0xff]
      %v2930 = vld [vmem:[#allocation3 + $0xa0] sm:$0xff]
      %v2931 = vld [vmem:[#allocation3 + $0xa8] sm:$0xff]
      %v2932 = vld [vmem:[#allocation3 + $0xb0] sm:$0xff]
      %v2933 = vld [vmem:[#allocation3 + $0xb8] sm:$0xff]
      %v2934 = vld [vmem:[#allocation3 + $0xc0] sm:$0xff]
      %v2935 = vld [vmem:[#allocation3 + $0xc8] sm:$0xff]
      %v2936 = vld [vmem:[#allocation3 + $0xd0] sm:$0xff]
      %v2937 = vld [vmem:[#allocation3 + $0xd8] sm:$0xff]
      %v2938 = vld [vmem:[#allocation3 + $0xe0] sm:$0xff]
      %v2939 = vld [vmem:[#allocation3 + $0xe8] sm:$0xff]
      %v2940 = vld [vmem:[#allocation3 + $0xf0] sm:$0xff]
      %v2941 = vld [vmem:[#allocation3 + $0xf8] sm:$0xff]
      %s2942 = scalar_lea.vmem [#allocation2], 48
      %v2943 = vld [vmem:[%s2942] sm:$0xff]
      %v2944 = vld [vmem:[%s2942 + $0x8] sm:$0xf]
      %v2945 = vld [vmem:[%s2942 + $0xc] sm:$0xff]
      %v2946 = vld [vmem:[%s2942 + $0x14] sm:$0xf]
      %v2947 = vld [vmem:[%s2942 + $0x18] sm:$0xff]
      %v2948 = vld [vmem:[%s2942 + $0x20] sm:$0xf]
      %v2949 = vld [vmem:[%s2942 + $0x24] sm:$0xff]
      %v2950 = vld [vmem:[%s2942 + $0x2c] sm:$0xf]
      %v2951 = vld [vmem:[%s2942 + $0x30] sm:$0xff]
      %v2952 = vld [vmem:[%s2942 + $0x38] sm:$0xf]
      %v2953 = vld [vmem:[%s2942 + $0x3c] sm:$0xff]
      %v2954 = vld [vmem:[%s2942 + $0x44] sm:$0xf]
      %v2955 = vld [vmem:[%s2942 + $0x48] sm:$0xff]
      %v2956 = vld [vmem:[%s2942 + $0x50] sm:$0xf]
      %v2957 = vld [vmem:[%s2942 + $0x54] sm:$0xff]
      %v2958 = vld [vmem:[%s2942 + $0x5c] sm:$0xf]
      %v2959 = vld [vmem:[%s2942 + $0x60] sm:$0xff]
      %v2960 = vld [vmem:[%s2942 + $0x68] sm:$0xf]
      %v2961 = vld [vmem:[%s2942 + $0x6c] sm:$0xff]
      %v2962 = vld [vmem:[%s2942 + $0x74] sm:$0xf]
      %v2963 = vld [vmem:[%s2942 + $0x78] sm:$0xff]
      %v2964 = vld [vmem:[%s2942 + $0x80] sm:$0xf]
      %v2965 = vld [vmem:[%s2942 + $0x84] sm:$0xff]
      %v2966 = vld [vmem:[%s2942 + $0x8c] sm:$0xf]
      %v2967 = vld [vmem:[%s2942 + $0x90] sm:$0xff]
      %v2968 = vld [vmem:[%s2942 + $0x98] sm:$0xf]
      %v2969 = vld [vmem:[%s2942 + $0x9c] sm:$0xff]
      %v2970 = vld [vmem:[%s2942 + $0xa4] sm:$0xf]
      %v2971 = vld [vmem:[%s2942 + $0xa8] sm:$0xff]
      %v2972 = vld [vmem:[%s2942 + $0xb0] sm:$0xf]
      %v2973 = vld [vmem:[%s2942 + $0xb4] sm:$0xff]
      %v2974 = vld [vmem:[%s2942 + $0xbc] sm:$0xf]
      %v2975 = vld [vmem:[%s2942 + $0xc0] sm:$0xff]
      %v2976 = vld [vmem:[%s2942 + $0xc8] sm:$0xf]
      %v2977 = vld [vmem:[%s2942 + $0xcc] sm:$0xff]
      %v2978 = vld [vmem:[%s2942 + $0xd4] sm:$0xf]
      %v2979 = vld [vmem:[%s2942 + $0xd8] sm:$0xff]
      %v2980 = vld [vmem:[%s2942 + $0xe0] sm:$0xf]
      %v2981 = vld [vmem:[%s2942 + $0xe4] sm:$0xff]
      %v2982 = vld [vmem:[%s2942 + $0xec] sm:$0xf]
      %v2983 = vld [vmem:[%s2942 + $0xf0] sm:$0xff]
      %v2984 = vld [vmem:[%s2942 + $0xf8] sm:$0xf]
      %v2985 = vld [vmem:[%s2942 + $0xfc] sm:$0xff]
      %v2986 = vld [vmem:[%s2942 + $0x104] sm:$0xf]
      %v2987 = vld [vmem:[%s2942 + $0x108] sm:$0xff]
      %v2988 = vld [vmem:[%s2942 + $0x110] sm:$0xf]
      %v2989 = vld [vmem:[%s2942 + $0x114] sm:$0xff]
      %v2990 = vld [vmem:[%s2942 + $0x11c] sm:$0xf]
      %v2991 = vld [vmem:[%s2942 + $0x120] sm:$0xff]
      %v2992 = vld [vmem:[%s2942 + $0x128] sm:$0xf]
      %v2993 = vld [vmem:[%s2942 + $0x12c] sm:$0xff]
      %v2994 = vld [vmem:[%s2942 + $0x134] sm:$0xf]
      %v2995 = vld [vmem:[%s2942 + $0x138] sm:$0xff]
      %v2996 = vld [vmem:[%s2942 + $0x140] sm:$0xf]
      %v2997 = vld [vmem:[%s2942 + $0x144] sm:$0xff]
      %v2998 = vld [vmem:[%s2942 + $0x14c] sm:$0xf]
      %v2999 = vld [vmem:[%s2942 + $0x150] sm:$0xff]
      %v3000 = vld [vmem:[%s2942 + $0x158] sm:$0xf]
      %v3001 = vld [vmem:[%s2942 + $0x15c] sm:$0xff]
      %v3002 = vld [vmem:[%s2942 + $0x164] sm:$0xf]
      %v3003 = vld [vmem:[%s2942 + $0x168] sm:$0xff]
      %v3004 = vld [vmem:[%s2942 + $0x170] sm:$0xf]
      %v3005 = vld [vmem:[%s2942 + $0x174] sm:$0xff]
      %v3006 = vld [vmem:[%s2942 + $0x17c] sm:$0xf]
      %s3007 = scalar_lea.vmem %s1, 384
      %v3008 = vld [vmem:[%s3007] sm:$0xf]
      %v3009 = vld [vmem:[%s3007 + $0x4] sm:$0xf]
      %v3010 = vld [vmem:[%s3007 + $0x8] sm:$0xf]
      %v3011 = vld [vmem:[%s3007 + $0xc] sm:$0xf]
      %v3012 = vld [vmem:[%s3007 + $0x10] sm:$0xf]
      %v3013 = vld [vmem:[%s3007 + $0x14] sm:$0xf]
      %v3014 = vld [vmem:[%s3007 + $0x18] sm:$0xf]
      %v3015 = vld [vmem:[%s3007 + $0x1c] sm:$0xf]
      %v3016 = vld [vmem:[%s3007 + $0x20] sm:$0xf]
      %v3017 = vld [vmem:[%s3007 + $0x24] sm:$0xf]
      %v3018 = vld [vmem:[%s3007 + $0x28] sm:$0xf]
      %v3019 = vld [vmem:[%s3007 + $0x2c] sm:$0xf]
      %v3020 = vld [vmem:[%s3007 + $0x30] sm:$0xf]
      %v3021 = vld [vmem:[%s3007 + $0x34] sm:$0xf]
      %v3022 = vld [vmem:[%s3007 + $0x38] sm:$0xf]
      %v3023 = vld [vmem:[%s3007 + $0x3c] sm:$0xf]
      %v3024 = vld [vmem:[%s3007 + $0x40] sm:$0xf]
      %v3025 = vld [vmem:[%s3007 + $0x44] sm:$0xf]
      %v3026 = vld [vmem:[%s3007 + $0x48] sm:$0xf]
      %v3027 = vld [vmem:[%s3007 + $0x4c] sm:$0xf]
      %v3028 = vld [vmem:[%s3007 + $0x50] sm:$0xf]
      %v3029 = vld [vmem:[%s3007 + $0x54] sm:$0xf]
      %v3030 = vld [vmem:[%s3007 + $0x58] sm:$0xf]
      %v3031 = vld [vmem:[%s3007 + $0x5c] sm:$0xf]
      %v3032 = vld [vmem:[%s3007 + $0x60] sm:$0xf]
      %v3033 = vld [vmem:[%s3007 + $0x64] sm:$0xf]
      %v3034 = vld [vmem:[%s3007 + $0x68] sm:$0xf]
      %v3035 = vld [vmem:[%s3007 + $0x6c] sm:$0xf]
      %v3036 = vld [vmem:[%s3007 + $0x70] sm:$0xf]
      %v3037 = vld [vmem:[%s3007 + $0x74] sm:$0xf]
      %v3038 = vld [vmem:[%s3007 + $0x78] sm:$0xf]
      %v3039 = vld [vmem:[%s3007 + $0x7c] sm:$0xf]
      %v3040 = vld [vmem:[%s3007 + $0x80] sm:$0xf]
      %v3041 = vld [vmem:[%s3007 + $0x84] sm:$0xf]
      %v3042 = vld [vmem:[%s3007 + $0x88] sm:$0xf]
      %v3043 = vld [vmem:[%s3007 + $0x8c] sm:$0xf]
      %v3044 = vld [vmem:[%s3007 + $0x90] sm:$0xf]
      %v3045 = vld [vmem:[%s3007 + $0x94] sm:$0xf]
      %v3046 = vld [vmem:[%s3007 + $0x98] sm:$0xf]
      %v3047 = vld [vmem:[%s3007 + $0x9c] sm:$0xf]
      %v3048 = vld [vmem:[%s3007 + $0xa0] sm:$0xf]
      %v3049 = vld [vmem:[%s3007 + $0xa4] sm:$0xf]
      %v3050 = vld [vmem:[%s3007 + $0xa8] sm:$0xf]
      %v3051 = vld [vmem:[%s3007 + $0xac] sm:$0xf]
      %v3052 = vld [vmem:[%s3007 + $0xb0] sm:$0xf]
      %v3053 = vld [vmem:[%s3007 + $0xb4] sm:$0xf]
      %v3054 = vld [vmem:[%s3007 + $0xb8] sm:$0xf]
      %v3055 = vld [vmem:[%s3007 + $0xbc] sm:$0xf]
      %v3120 = vunpack.c.l.b16 %v2943
      %v3121 = vunpack.c.h.b16 %v2943
      %v3122 = vunpack.c.l.b16 %v2944
      %v3123 = vunpack.c.l.b16 %v2945
      %v3124 = vunpack.c.h.b16 %v2945
      %v3125 = vunpack.c.l.b16 %v2946
      %v3126 = vunpack.c.l.b16 %v2947
      %v3127 = vunpack.c.h.b16 %v2947
      %v3128 = vunpack.c.l.b16 %v2948
      %v3129 = vunpack.c.l.b16 %v2949
      %v3130 = vunpack.c.h.b16 %v2949
      %v3131 = vunpack.c.l.b16 %v2950
      %v3132 = vunpack.c.l.b16 %v2951
      %v3133 = vunpack.c.h.b16 %v2951
      %v3134 = vunpack.c.l.b16 %v2952
      %v3135 = vunpack.c.l.b16 %v2953
      %v3136 = vunpack.c.h.b16 %v2953
      %v3137 = vunpack.c.l.b16 %v2954
      %v3138 = vunpack.c.l.b16 %v2955
      %v3139 = vunpack.c.h.b16 %v2955
      %v3140 = vunpack.c.l.b16 %v2956
      %v3141 = vunpack.c.l.b16 %v2957
      %v3142 = vunpack.c.h.b16 %v2957
      %v3143 = vunpack.c.l.b16 %v2958
      %v3144 = vunpack.c.l.b16 %v2959
      %v3145 = vunpack.c.h.b16 %v2959
      %v3146 = vunpack.c.l.b16 %v2960
      %v3147 = vunpack.c.l.b16 %v2961
      %v3148 = vunpack.c.h.b16 %v2961
      %v3149 = vunpack.c.l.b16 %v2962
      %v3150 = vunpack.c.l.b16 %v2963
      %v3151 = vunpack.c.h.b16 %v2963
      %v3152 = vunpack.c.l.b16 %v2964
      %v3153 = vunpack.c.l.b16 %v2965
      %v3154 = vunpack.c.h.b16 %v2965
      %v3155 = vunpack.c.l.b16 %v2966
      %v3156 = vunpack.c.l.b16 %v2967
      %v3157 = vunpack.c.h.b16 %v2967
      %v3158 = vunpack.c.l.b16 %v2968
      %v3159 = vunpack.c.l.b16 %v2969
      %v3160 = vunpack.c.h.b16 %v2969
      %v3161 = vunpack.c.l.b16 %v2970
      %v3162 = vunpack.c.l.b16 %v2971
      %v3163 = vunpack.c.h.b16 %v2971
      %v3164 = vunpack.c.l.b16 %v2972
      %v3165 = vunpack.c.l.b16 %v2973
      %v3166 = vunpack.c.h.b16 %v2973
      %v3167 = vunpack.c.l.b16 %v2974
      %v3168 = vunpack.c.l.b16 %v2975
      %v3169 = vunpack.c.h.b16 %v2975
      %v3170 = vunpack.c.l.b16 %v2976
      %v3171 = vunpack.c.l.b16 %v2977
      %v3172 = vunpack.c.h.b16 %v2977
      %v3173 = vunpack.c.l.b16 %v2978
      %v3174 = vunpack.c.l.b16 %v2979
      %v3175 = vunpack.c.h.b16 %v2979
      %v3176 = vunpack.c.l.b16 %v2980
      %v3177 = vunpack.c.l.b16 %v2981
      %v3178 = vunpack.c.h.b16 %v2981
      %v3179 = vunpack.c.l.b16 %v2982
      %v3180 = vunpack.c.l.b16 %v2983
      %v3181 = vunpack.c.h.b16 %v2983
      %v3182 = vunpack.c.l.b16 %v2984
      %v3183 = vunpack.c.l.b16 %v2985
      %v3184 = vunpack.c.h.b16 %v2985
      %v3185 = vunpack.c.l.b16 %v2986
      %v3186 = vunpack.c.l.b16 %v2987
      %v3187 = vunpack.c.h.b16 %v2987
      %v3188 = vunpack.c.l.b16 %v2988
      %v3189 = vunpack.c.l.b16 %v2989
      %v3190 = vunpack.c.h.b16 %v2989
      %v3191 = vunpack.c.l.b16 %v2990
      %v3192 = vunpack.c.l.b16 %v2991
      %v3193 = vunpack.c.h.b16 %v2991
      %v3194 = vunpack.c.l.b16 %v2992
      %v3195 = vunpack.c.l.b16 %v2993
      %v3196 = vunpack.c.h.b16 %v2993
      %v3197 = vunpack.c.l.b16 %v2994
      %v3198 = vunpack.c.l.b16 %v2995
      %v3199 = vunpack.c.h.b16 %v2995
      %v3200 = vunpack.c.l.b16 %v2996
      %v3201 = vunpack.c.l.b16 %v2997
      %v3202 = vunpack.c.h.b16 %v2997
      %v3203 = vunpack.c.l.b16 %v2998
      %v3204 = vunpack.c.l.b16 %v2999
      %v3205 = vunpack.c.h.b16 %v2999
      %v3206 = vunpack.c.l.b16 %v3000
      %v3207 = vunpack.c.l.b16 %v3001
      %v3208 = vunpack.c.h.b16 %v3001
      %v3209 = vunpack.c.l.b16 %v3002
      %v3210 = vunpack.c.l.b16 %v3003
      %v3211 = vunpack.c.h.b16 %v3003
      %v3212 = vunpack.c.l.b16 %v3004
      %v3213 = vunpack.c.l.b16 %v3005
      %v3214 = vunpack.c.h.b16 %v3005
      %v3215 = vunpack.c.l.b16 %v3006
      %v3216 = vpack.c.b16 %v3123, %v3120
      %v3217 = vpack.c.b16 %v3124, %v3121
      %v3218 = vpack.c.b16 %v3125, %v3122
      %v3219 = vpack.c.b16 %v3129, %v3126
      %v3220 = vpack.c.b16 %v3130, %v3127
      %v3221 = vpack.c.b16 %v3131, %v3128
      %v3222 = vpack.c.b16 %v3135, %v3132
      %v3223 = vpack.c.b16 %v3136, %v3133
      %v3224 = vpack.c.b16 %v3137, %v3134
      %v3225 = vpack.c.b16 %v3141, %v3138
      %v3226 = vpack.c.b16 %v3142, %v3139
      %v3227 = vpack.c.b16 %v3143, %v3140
      %v3228 = vpack.c.b16 %v3147, %v3144
      %v3229 = vpack.c.b16 %v3148, %v3145
      %v3230 = vpack.c.b16 %v3149, %v3146
      %v3231 = vpack.c.b16 %v3153, %v3150
      %v3232 = vpack.c.b16 %v3154, %v3151
      %v3233 = vpack.c.b16 %v3155, %v3152
      %v3234 = vpack.c.b16 %v3159, %v3156
      %v3235 = vpack.c.b16 %v3160, %v3157
      %v3236 = vpack.c.b16 %v3161, %v3158
      %v3237 = vpack.c.b16 %v3165, %v3162
      %v3238 = vpack.c.b16 %v3166, %v3163
      %v3239 = vpack.c.b16 %v3167, %v3164
      %v3240 = vpack.c.b16 %v3171, %v3168
      %v3241 = vpack.c.b16 %v3172, %v3169
      %v3242 = vpack.c.b16 %v3173, %v3170
      %v3243 = vpack.c.b16 %v3177, %v3174
      %v3244 = vpack.c.b16 %v3178, %v3175
      %v3245 = vpack.c.b16 %v3179, %v3176
      %v3246 = vpack.c.b16 %v3183, %v3180
      %v3247 = vpack.c.b16 %v3184, %v3181
      %v3248 = vpack.c.b16 %v3185, %v3182
      %v3249 = vpack.c.b16 %v3189, %v3186
      %v3250 = vpack.c.b16 %v3190, %v3187
      %v3251 = vpack.c.b16 %v3191, %v3188
      %v3252 = vpack.c.b16 %v3195, %v3192
      %v3253 = vpack.c.b16 %v3196, %v3193
      %v3254 = vpack.c.b16 %v3197, %v3194
      %v3255 = vpack.c.b16 %v3201, %v3198
      %v3256 = vpack.c.b16 %v3202, %v3199
      %v3257 = vpack.c.b16 %v3203, %v3200
      %v3258 = vpack.c.b16 %v3207, %v3204
      %v3259 = vpack.c.b16 %v3208, %v3205
      %v3260 = vpack.c.b16 %v3209, %v3206
      %v3261 = vpack.c.b16 %v3213, %v3210
      %v3262 = vpack.c.b16 %v3214, %v3211
      %v3263 = vpack.c.b16 %v3215, %v3212
      %v3360 = vunpack.c.l.b16 %v3008
      %v3361 = vunpack.c.l.b16 %v3009
      %v3362 = vunpack.c.l.b16 %v3010
      %v3363 = vunpack.c.l.b16 %v3011
      %v3364 = vunpack.c.l.b16 %v3012
      %v3365 = vunpack.c.l.b16 %v3013
      %v3366 = vunpack.c.l.b16 %v3014
      %v3367 = vunpack.c.l.b16 %v3015
      %v3368 = vunpack.c.l.b16 %v3016
      %v3369 = vunpack.c.l.b16 %v3017
      %v3370 = vunpack.c.l.b16 %v3018
      %v3371 = vunpack.c.l.b16 %v3019
      %v3372 = vunpack.c.l.b16 %v3020
      %v3373 = vunpack.c.l.b16 %v3021
      %v3374 = vunpack.c.l.b16 %v3022
      %v3375 = vunpack.c.l.b16 %v3023
      %v3376 = vunpack.c.l.b16 %v3024
      %v3377 = vunpack.c.l.b16 %v3025
      %v3378 = vunpack.c.l.b16 %v3026
      %v3379 = vunpack.c.l.b16 %v3027
      %v3380 = vunpack.c.l.b16 %v3028
      %v3381 = vunpack.c.l.b16 %v3029
      %v3382 = vunpack.c.l.b16 %v3030
      %v3383 = vunpack.c.l.b16 %v3031
      %v3384 = vunpack.c.l.b16 %v3032
      %v3385 = vunpack.c.l.b16 %v3033
      %v3386 = vunpack.c.l.b16 %v3034
      %v3387 = vunpack.c.l.b16 %v3035
      %v3388 = vunpack.c.l.b16 %v3036
      %v3389 = vunpack.c.l.b16 %v3037
      %v3390 = vunpack.c.l.b16 %v3038
      %v3391 = vunpack.c.l.b16 %v3039
      %v3392 = vunpack.c.l.b16 %v3040
      %v3393 = vunpack.c.l.b16 %v3041
      %v3394 = vunpack.c.l.b16 %v3042
      %v3395 = vunpack.c.l.b16 %v3043
      %v3396 = vunpack.c.l.b16 %v3044
      %v3397 = vunpack.c.l.b16 %v3045
      %v3398 = vunpack.c.l.b16 %v3046
      %v3399 = vunpack.c.l.b16 %v3047
      %v3400 = vunpack.c.l.b16 %v3048
      %v3401 = vunpack.c.l.b16 %v3049
      %v3402 = vunpack.c.l.b16 %v3050
      %v3403 = vunpack.c.l.b16 %v3051
      %v3404 = vunpack.c.l.b16 %v3052
      %v3405 = vunpack.c.l.b16 %v3053
      %v3406 = vunpack.c.l.b16 %v3054
      %v3407 = vunpack.c.l.b16 %v3055
      %v3408 = vpack.c.b16 %v3361, %v3360
      %v3409 = vpack.c.b16 %v3363, %v3362
      %v3410 = vpack.c.b16 %v3365, %v3364
      %v3411 = vpack.c.b16 %v3367, %v3366
      %v3412 = vpack.c.b16 %v3369, %v3368
      %v3413 = vpack.c.b16 %v3371, %v3370
      %v3414 = vpack.c.b16 %v3373, %v3372
      %v3415 = vpack.c.b16 %v3375, %v3374
      %v3416 = vpack.c.b16 %v3377, %v3376
      %v3417 = vpack.c.b16 %v3379, %v3378
      %v3418 = vpack.c.b16 %v3381, %v3380
      %v3419 = vpack.c.b16 %v3383, %v3382
      %v3420 = vpack.c.b16 %v3385, %v3384
      %v3421 = vpack.c.b16 %v3387, %v3386
      %v3422 = vpack.c.b16 %v3389, %v3388
      %v3423 = vpack.c.b16 %v3391, %v3390
      %v3424 = vpack.c.b16 %v3393, %v3392
      %v3425 = vpack.c.b16 %v3395, %v3394
      %v3426 = vpack.c.b16 %v3397, %v3396
      %v3427 = vpack.c.b16 %v3399, %v3398
      %v3428 = vpack.c.b16 %v3401, %v3400
      %v3429 = vpack.c.b16 %v3403, %v3402
      %v3430 = vpack.c.b16 %v3405, %v3404
      %v3431 = vpack.c.b16 %v3407, %v3406
      %3456 = vmatprep.subr.bf16.mxu0 0
      %3457 = vmatpush1.bf16.msra.mxu0 %v3415
      %3458 = vmatprep.subr.bf16.mxu0 0
      %3459 = vmatpush1.bf16.msra.mxu0 %v3414
      %3460 = vmatprep.subr.bf16.mxu0 0
      %3461 = vmatpush1.bf16.msra.mxu0 %v3413
      %3462 = vmatprep.subr.bf16.mxu0 0
      %3463 = vmatpush1.bf16.msra.mxu0 %v3412
      %3464 = vmatprep.subr.bf16.mxu0 0
      %3465 = vmatpush1.bf16.msra.mxu0 %v3411
      %3466 = vmatprep.subr.bf16.mxu0 0
      %3467 = vmatpush1.bf16.msra.mxu0 %v3410
      %3468 = vmatprep.subr.bf16.mxu0 0
      %3469 = vmatpush1.bf16.msra.mxu0 %v3409
      %3470 = vmatprep.subr.bf16.mxu0 0
      %3471 = vmatpush1.bf16.msra.mxu0 %v3408
      %3472 = vmatprep.subr.bf16.mxu0 0
      %3473 = vmatpush2.bf16.msra.mxu0 %v3423
      %3474 = vmatprep.subr.bf16.mxu0 0
      %3475 = vmatpush2.bf16.msra.mxu0 %v3422
      %3476 = vmatprep.subr.bf16.mxu0 0
      %3477 = vmatpush2.bf16.msra.mxu0 %v3421
      %3478 = vmatprep.subr.bf16.mxu0 0
      %3479 = vmatpush2.bf16.msra.mxu0 %v3420
      %3480 = vmatprep.subr.bf16.mxu0 0
      %3481 = vmatpush2.bf16.msra.mxu0 %v3419
      %3482 = vmatprep.subr.bf16.mxu0 0
      %3483 = vmatpush2.bf16.msra.mxu0 %v3418
      %3484 = vmatprep.subr.bf16.mxu0 0
      %3485 = vmatpush2.bf16.msra.mxu0 %v3417
      %3486 = vmatprep.subr.bf16.mxu0 0
      %3487 = vmatpush2.bf16.msra.mxu0 %v3416
      %3488 = vmatprep.mubr.bf16.mxu0 %v3217
      %3489 = vmatmul.mubr.bf16.gmra.mxu0 %v3216
      %v3490 = vpop.f32.mrf.mxu0
      %v3491 = vadd.f32 0.0, %v3490
      %v3492 = vpop.f32.mrf.mxu0
      %v3493 = vpop.f32.mrf.mxu0
      %v3494 = vadd.f32 0.0, %v3493
      %v3495 = vpop.f32.mrf.mxu0
      %3496 = vmatprep.mubr.bf16.mxu0 %v3220
      %3497 = vmatmul.mubr.bf16.gmra.mxu0 %v3219
      %v3498 = vpop.f32.mrf.mxu0
      %v3499 = vadd.f32 0.0, %v3498
      %v3500 = vpop.f32.mrf.mxu0
      %v3501 = vpop.f32.mrf.mxu0
      %v3502 = vadd.f32 0.0, %v3501
      %v3503 = vpop.f32.mrf.mxu0
      %3504 = vmatprep.mubr.bf16.mxu0 %v3223
      %3505 = vmatmul.mubr.bf16.gmra.mxu0 %v3222
      %v3506 = vpop.f32.mrf.mxu0
      %v3507 = vadd.f32 0.0, %v3506
      %v3508 = vpop.f32.mrf.mxu0
      %v3509 = vpop.f32.mrf.mxu0
      %v3510 = vadd.f32 0.0, %v3509
      %v3511 = vpop.f32.mrf.mxu0
      %3512 = vmatprep.mubr.bf16.mxu0 %v3226
      %3513 = vmatmul.mubr.bf16.gmra.mxu0 %v3225
      %v3514 = vpop.f32.mrf.mxu0
      %v3515 = vadd.f32 0.0, %v3514
      %v3516 = vpop.f32.mrf.mxu0
      %v3517 = vpop.f32.mrf.mxu0
      %v3518 = vadd.f32 0.0, %v3517
      %v3519 = vpop.f32.mrf.mxu0
      %3520 = vmatprep.mubr.bf16.mxu0 %v3229
      %3521 = vmatmul.mubr.bf16.gmra.mxu0 %v3228
      %v3522 = vpop.f32.mrf.mxu0
      %v3523 = vadd.f32 0.0, %v3522
      %v3524 = vpop.f32.mrf.mxu0
      %v3525 = vpop.f32.mrf.mxu0
      %v3526 = vadd.f32 0.0, %v3525
      %v3527 = vpop.f32.mrf.mxu0
      %3528 = vmatprep.mubr.bf16.mxu0 %v3232
      %3529 = vmatmul.mubr.bf16.gmra.mxu0 %v3231
      %v3530 = vpop.f32.mrf.mxu0
      %v3531 = vadd.f32 0.0, %v3530
      %v3532 = vpop.f32.mrf.mxu0
      %v3533 = vpop.f32.mrf.mxu0
      %v3534 = vadd.f32 0.0, %v3533
      %v3535 = vpop.f32.mrf.mxu0
      %3536 = vmatprep.mubr.bf16.mxu0 %v3235
      %3537 = vmatmul.mubr.bf16.gmra.mxu0 %v3234
      %v3538 = vpop.f32.mrf.mxu0
      %v3539 = vadd.f32 0.0, %v3538
      %v3540 = vpop.f32.mrf.mxu0
      %v3541 = vpop.f32.mrf.mxu0
      %v3542 = vadd.f32 0.0, %v3541
      %v3543 = vpop.f32.mrf.mxu0
      %3544 = vmatprep.mubr.bf16.mxu0 %v3238
      %3545 = vmatmul.mubr.bf16.gmra.mxu0 %v3237
      %v3546 = vpop.f32.mrf.mxu0
      %v3547 = vadd.f32 0.0, %v3546
      %v3548 = vpop.f32.mrf.mxu0
      %v3549 = vpop.f32.mrf.mxu0
      %v3550 = vadd.f32 0.0, %v3549
      %v3551 = vpop.f32.mrf.mxu0
      %3552 = vmatprep.mubr.bf16.mxu0 %v3241
      %3553 = vmatmul.mubr.bf16.gmra.mxu0 %v3240
      %v3554 = vpop.f32.mrf.mxu0
      %v3555 = vadd.f32 0.0, %v3554
      %v3556 = vpop.f32.mrf.mxu0
      %v3557 = vpop.f32.mrf.mxu0
      %v3558 = vadd.f32 0.0, %v3557
      %v3559 = vpop.f32.mrf.mxu0
      %3560 = vmatprep.mubr.bf16.mxu0 %v3244
      %3561 = vmatmul.mubr.bf16.gmra.mxu0 %v3243
      %v3562 = vpop.f32.mrf.mxu0
      %v3563 = vadd.f32 0.0, %v3562
      %v3564 = vpop.f32.mrf.mxu0
      %v3565 = vpop.f32.mrf.mxu0
      %v3566 = vadd.f32 0.0, %v3565
      %v3567 = vpop.f32.mrf.mxu0
      %3568 = vmatprep.mubr.bf16.mxu0 %v3247
      %3569 = vmatmul.mubr.bf16.gmra.mxu0 %v3246
      %v3570 = vpop.f32.mrf.mxu0
      %v3571 = vadd.f32 0.0, %v3570
      %v3572 = vpop.f32.mrf.mxu0
      %v3573 = vpop.f32.mrf.mxu0
      %v3574 = vadd.f32 0.0, %v3573
      %v3575 = vpop.f32.mrf.mxu0
      %3576 = vmatprep.mubr.bf16.mxu0 %v3250
      %3577 = vmatmul.mubr.bf16.gmra.mxu0 %v3249
      %v3578 = vpop.f32.mrf.mxu0
      %v3579 = vadd.f32 0.0, %v3578
      %v3580 = vpop.f32.mrf.mxu0
      %v3581 = vpop.f32.mrf.mxu0
      %v3582 = vadd.f32 0.0, %v3581
      %v3583 = vpop.f32.mrf.mxu0
      %3584 = vmatprep.mubr.bf16.mxu0 %v3253
      %3585 = vmatmul.mubr.bf16.gmra.mxu0 %v3252
      %v3586 = vpop.f32.mrf.mxu0
      %v3587 = vadd.f32 0.0, %v3586
      %v3588 = vpop.f32.mrf.mxu0
      %v3589 = vpop.f32.mrf.mxu0
      %v3590 = vadd.f32 0.0, %v3589
      %v3591 = vpop.f32.mrf.mxu0
      %3592 = vmatprep.mubr.bf16.mxu0 %v3256
      %3593 = vmatmul.mubr.bf16.gmra.mxu0 %v3255
      %v3594 = vpop.f32.mrf.mxu0
      %v3595 = vadd.f32 0.0, %v3594
      %v3596 = vpop.f32.mrf.mxu0
      %v3597 = vpop.f32.mrf.mxu0
      %v3598 = vadd.f32 0.0, %v3597
      %v3599 = vpop.f32.mrf.mxu0
      %3600 = vmatprep.mubr.bf16.mxu0 %v3259
      %3601 = vmatmul.mubr.bf16.gmra.mxu0 %v3258
      %v3602 = vpop.f32.mrf.mxu0
      %v3603 = vadd.f32 0.0, %v3602
      %v3604 = vpop.f32.mrf.mxu0
      %v3605 = vpop.f32.mrf.mxu0
      %v3606 = vadd.f32 0.0, %v3605
      %v3607 = vpop.f32.mrf.mxu0
      %3608 = vmatprep.mubr.bf16.mxu0 %v3262
      %3609 = vmatmul.mubr.bf16.gmra.mxu0 %v3261
      %v3610 = vpop.f32.mrf.mxu0
      %v3611 = vadd.f32 0.0, %v3610
      %v3612 = vpop.f32.mrf.mxu0
      %v3613 = vpop.f32.mrf.mxu0
      %v3614 = vadd.f32 0.0, %v3613
      %v3615 = vpop.f32.mrf.mxu0
      %3616 = vdwg.mxu0
      %3617 = vmatprep.subr.bf16.mxu0 0
      %3618 = vmatpush1.bf16.msra.mxu0 %v3431
      %3619 = vmatprep.subr.bf16.mxu0 0
      %3620 = vmatpush1.bf16.msra.mxu0 %v3430
      %3621 = vmatprep.subr.bf16.mxu0 0
      %3622 = vmatpush1.bf16.msra.mxu0 %v3429
      %3623 = vmatprep.subr.bf16.mxu0 0
      %3624 = vmatpush1.bf16.msra.mxu0 %v3428
      %3625 = vmatprep.subr.bf16.mxu0 0
      %3626 = vmatpush1.bf16.msra.mxu0 %v3427
      %3627 = vmatprep.subr.bf16.mxu0 0
      %3628 = vmatpush1.bf16.msra.mxu0 %v3426
      %3629 = vmatprep.subr.bf16.mxu0 0
      %3630 = vmatpush1.bf16.msra.mxu0 %v3425
      %3631 = vmatprep.subr.bf16.mxu0 0
      %3632 = vmatpush1.bf16.msra.mxu0 %v3424
      %3633 = vmatprep.subr.bf16.mxu0 0
      %3634 = vmatpush2.bf16.msra.mxu0 0
      %3635 = vmatprep.subr.bf16.mxu0 0
      %3636 = vmatpush2.bf16.msra.mxu0 0
      %3637 = vmatprep.subr.bf16.mxu0 0
      %3638 = vmatpush2.bf16.msra.mxu0 0
      %3639 = vmatprep.subr.bf16.mxu0 0
      %3640 = vmatpush2.bf16.msra.mxu0 0
      %3641 = vmatprep.subr.bf16.mxu0 0
      %3642 = vmatpush2.bf16.msra.mxu0 0
      %3643 = vmatprep.subr.bf16.mxu0 0
      %3644 = vmatpush2.bf16.msra.mxu0 0
      %3645 = vmatprep.subr.bf16.mxu0 0
      %3646 = vmatpush2.bf16.msra.mxu0 0
      %3647 = vmatprep.subr.bf16.mxu0 0
      %3648 = vmatpush2.bf16.msra.mxu0 0
      %3649 = vmatprep.mubr.bf16.mxu0 0
      %3650 = vmatmul.mubr.bf16.gmra.mxu0 %v3218
      %v3651 = vpop.f32.mrf.mxu0
      %v3652 = vadd.f32 %v3491, %v3651
      %v3653 = vpop.f32.mrf.mxu0
      %v3654 = vpop.f32.mrf.mxu0
      %v3655 = vadd.f32 %v3494, %v3654
      %v3656 = vpop.f32.mrf.mxu0
      %3657 = vmatprep.mubr.bf16.mxu0 0
      %3658 = vmatmul.mubr.bf16.gmra.mxu0 %v3221
      %v3659 = vpop.f32.mrf.mxu0
      %v3660 = vadd.f32 %v3499, %v3659
      %v3661 = vpop.f32.mrf.mxu0
      %v3662 = vpop.f32.mrf.mxu0
      %v3663 = vadd.f32 %v3502, %v3662
      %v3664 = vpop.f32.mrf.mxu0
      %3665 = vmatprep.mubr.bf16.mxu0 0
      %3666 = vmatmul.mubr.bf16.gmra.mxu0 %v3224
      %v3667 = vpop.f32.mrf.mxu0
      %v3668 = vadd.f32 %v3507, %v3667
      %v3669 = vpop.f32.mrf.mxu0
      %v3670 = vpop.f32.mrf.mxu0
      %v3671 = vadd.f32 %v3510, %v3670
      %v3672 = vpop.f32.mrf.mxu0
      %3673 = vmatprep.mubr.bf16.mxu0 0
      %3674 = vmatmul.mubr.bf16.gmra.mxu0 %v3227
      %v3675 = vpop.f32.mrf.mxu0
      %v3676 = vadd.f32 %v3515, %v3675
      %v3677 = vpop.f32.mrf.mxu0
      %v3678 = vpop.f32.mrf.mxu0
      %v3679 = vadd.f32 %v3518, %v3678
      %v3680 = vpop.f32.mrf.mxu0
      %3681 = vmatprep.mubr.bf16.mxu0 0
      %3682 = vmatmul.mubr.bf16.gmra.mxu0 %v3230
      %v3683 = vpop.f32.mrf.mxu0
      %v3684 = vadd.f32 %v3523, %v3683
      %v3685 = vpop.f32.mrf.mxu0
      %v3686 = vpop.f32.mrf.mxu0
      %v3687 = vadd.f32 %v3526, %v3686
      %v3688 = vpop.f32.mrf.mxu0
      %3689 = vmatprep.mubr.bf16.mxu0 0
      %3690 = vmatmul.mubr.bf16.gmra.mxu0 %v3233
      %v3691 = vpop.f32.mrf.mxu0
      %v3692 = vadd.f32 %v3531, %v3691
      %v3693 = vpop.f32.mrf.mxu0
      %v3694 = vpop.f32.mrf.mxu0
      %v3695 = vadd.f32 %v3534, %v3694
      %v3696 = vpop.f32.mrf.mxu0
      %3697 = vmatprep.mubr.bf16.mxu0 0
      %3698 = vmatmul.mubr.bf16.gmra.mxu0 %v3236
      %v3699 = vpop.f32.mrf.mxu0
      %v3700 = vadd.f32 %v3539, %v3699
      %v3701 = vpop.f32.mrf.mxu0
      %v3702 = vpop.f32.mrf.mxu0
      %v3703 = vadd.f32 %v3542, %v3702
      %v3704 = vpop.f32.mrf.mxu0
      %3705 = vmatprep.mubr.bf16.mxu0 0
      %3706 = vmatmul.mubr.bf16.gmra.mxu0 %v3239
      %v3707 = vpop.f32.mrf.mxu0
      %v3708 = vadd.f32 %v3547, %v3707
      %v3709 = vpop.f32.mrf.mxu0
      %v3710 = vpop.f32.mrf.mxu0
      %v3711 = vadd.f32 %v3550, %v3710
      %v3712 = vpop.f32.mrf.mxu0
      %3713 = vmatprep.mubr.bf16.mxu0 0
      %3714 = vmatmul.mubr.bf16.gmra.mxu0 %v3242
      %v3715 = vpop.f32.mrf.mxu0
      %v3716 = vadd.f32 %v3555, %v3715
      %v3717 = vpop.f32.mrf.mxu0
      %v3718 = vpop.f32.mrf.mxu0
      %v3719 = vadd.f32 %v3558, %v3718
      %v3720 = vpop.f32.mrf.mxu0
      %3721 = vmatprep.mubr.bf16.mxu0 0
      %3722 = vmatmul.mubr.bf16.gmra.mxu0 %v3245
      %v3723 = vpop.f32.mrf.mxu0
      %v3724 = vadd.f32 %v3563, %v3723
      %v3725 = vpop.f32.mrf.mxu0
      %v3726 = vpop.f32.mrf.mxu0
      %v3727 = vadd.f32 %v3566, %v3726
      %v3728 = vpop.f32.mrf.mxu0
      %3729 = vmatprep.mubr.bf16.mxu0 0
      %3730 = vmatmul.mubr.bf16.gmra.mxu0 %v3248
      %v3731 = vpop.f32.mrf.mxu0
      %v3732 = vadd.f32 %v3571, %v3731
      %v3733 = vpop.f32.mrf.mxu0
      %v3734 = vpop.f32.mrf.mxu0
      %v3735 = vadd.f32 %v3574, %v3734
      %v3736 = vpop.f32.mrf.mxu0
      %3737 = vmatprep.mubr.bf16.mxu0 0
      %3738 = vmatmul.mubr.bf16.gmra.mxu0 %v3251
      %v3739 = vpop.f32.mrf.mxu0
      %v3740 = vadd.f32 %v3579, %v3739
      %v3741 = vpop.f32.mrf.mxu0
      %v3742 = vpop.f32.mrf.mxu0
      %v3743 = vadd.f32 %v3582, %v3742
      %v3744 = vpop.f32.mrf.mxu0
      %3745 = vmatprep.mubr.bf16.mxu0 0
      %3746 = vmatmul.mubr.bf16.gmra.mxu0 %v3254
      %v3747 = vpop.f32.mrf.mxu0
      %v3748 = vadd.f32 %v3587, %v3747
      %v3749 = vpop.f32.mrf.mxu0
      %v3750 = vpop.f32.mrf.mxu0
      %v3751 = vadd.f32 %v3590, %v3750
      %v3752 = vpop.f32.mrf.mxu0
      %3753 = vmatprep.mubr.bf16.mxu0 0
      %3754 = vmatmul.mubr.bf16.gmra.mxu0 %v3257
      %v3755 = vpop.f32.mrf.mxu0
      %v3756 = vadd.f32 %v3595, %v3755
      %v3757 = vpop.f32.mrf.mxu0
      %v3758 = vpop.f32.mrf.mxu0
      %v3759 = vadd.f32 %v3598, %v3758
      %v3760 = vpop.f32.mrf.mxu0
      %3761 = vmatprep.mubr.bf16.mxu0 0
      %3762 = vmatmul.mubr.bf16.gmra.mxu0 %v3260
      %v3763 = vpop.f32.mrf.mxu0
      %v3764 = vadd.f32 %v3603, %v3763
      %v3765 = vpop.f32.mrf.mxu0
      %v3766 = vpop.f32.mrf.mxu0
      %v3767 = vadd.f32 %v3606, %v3766
      %v3768 = vpop.f32.mrf.mxu0
      %3769 = vmatprep.mubr.bf16.mxu0 0
      %3770 = vmatmul.mubr.bf16.gmra.mxu0 %v3263
      %v3771 = vpop.f32.mrf.mxu0
      %v3772 = vadd.f32 %v3611, %v3771
      %v3773 = vpop.f32.mrf.mxu0
      %v3774 = vpop.f32.mrf.mxu0
      %v3775 = vadd.f32 %v3614, %v3774
      %v3776 = vpop.f32.mrf.mxu0
      %3777 = vdwg.mxu0
      %v3778 = vadd.f32 %v2910, %v3652
      %v3779 = vadd.f32 %v2911, %v3655
      %v3780 = vadd.f32 %v2912, %v3660
      %v3781 = vadd.f32 %v2913, %v3663
      %v3782 = vadd.f32 %v2914, %v3668
      %v3783 = vadd.f32 %v2915, %v3671
      %v3784 = vadd.f32 %v2916, %v3676
      %v3785 = vadd.f32 %v2917, %v3679
      %v3786 = vadd.f32 %v2918, %v3684
      %v3787 = vadd.f32 %v2919, %v3687
      %v3788 = vadd.f32 %v2920, %v3692
      %v3789 = vadd.f32 %v2921, %v3695
      %v3790 = vadd.f32 %v2922, %v3700
      %v3791 = vadd.f32 %v2923, %v3703
      %v3792 = vadd.f32 %v2924, %v3708
      %v3793 = vadd.f32 %v2925, %v3711
      %v3794 = vadd.f32 %v2926, %v3716
      %v3795 = vadd.f32 %v2927, %v3719
      %v3796 = vadd.f32 %v2928, %v3724
      %v3797 = vadd.f32 %v2929, %v3727
      %v3798 = vadd.f32 %v2930, %v3732
      %v3799 = vadd.f32 %v2931, %v3735
      %v3800 = vadd.f32 %v2932, %v3740
      %v3801 = vadd.f32 %v2933, %v3743
      %v3802 = vadd.f32 %v2934, %v3748
      %v3803 = vadd.f32 %v2935, %v3751
      %v3804 = vadd.f32 %v2936, %v3756
      %v3805 = vadd.f32 %v2937, %v3759
      %v3806 = vadd.f32 %v2938, %v3764
      %v3807 = vadd.f32 %v2939, %v3767
      %v3808 = vadd.f32 %v2940, %v3772
      %v3809 = vadd.f32 %v2941, %v3775
      %3810 = vst [vmem:[#allocation3] sm:$0xff] %v3778
      %3811 = vst [vmem:[#allocation3 + $0x8] sm:$0xff] %v3779
      %3812 = vst [vmem:[#allocation3 + $0x10] sm:$0xff] %v3780
      %3813 = vst [vmem:[#allocation3 + $0x18] sm:$0xff] %v3781
      %3814 = vst [vmem:[#allocation3 + $0x20] sm:$0xff] %v3782
      %3815 = vst [vmem:[#allocation3 + $0x28] sm:$0xff] %v3783
      %3816 = vst [vmem:[#allocation3 + $0x30] sm:$0xff] %v3784
      %3817 = vst [vmem:[#allocation3 + $0x38] sm:$0xff] %v3785
      %3818 = vst [vmem:[#allocation3 + $0x40] sm:$0xff] %v3786
      %3819 = vst [vmem:[#allocation3 + $0x48] sm:$0xff] %v3787
      %3820 = vst [vmem:[#allocation3 + $0x50] sm:$0xff] %v3788
      %3821 = vst [vmem:[#allocation3 + $0x58] sm:$0xff] %v3789
      %3822 = vst [vmem:[#allocation3 + $0x60] sm:$0xff] %v3790
      %3823 = vst [vmem:[#allocation3 + $0x68] sm:$0xff] %v3791
      %3824 = vst [vmem:[#allocation3 + $0x70] sm:$0xff] %v3792
      %3825 = vst [vmem:[#allocation3 + $0x78] sm:$0xff] %v3793
      %3826 = vst [vmem:[#allocation3 + $0x80] sm:$0xff] %v3794
      %3827 = vst [vmem:[#allocation3 + $0x88] sm:$0xff] %v3795
      %3828 = vst [vmem:[#allocation3 + $0x90] sm:$0xff] %v3796
      %3829 = vst [vmem:[#allocation3 + $0x98] sm:$0xff] %v3797
      %3830 = vst [vmem:[#allocation3 + $0xa0] sm:$0xff] %v3798
      %3831 = vst [vmem:[#allocation3 + $0xa8] sm:$0xff] %v3799
      %3832 = vst [vmem:[#allocation3 + $0xb0] sm:$0xff] %v3800
      %3833 = vst [vmem:[#allocation3 + $0xb8] sm:$0xff] %v3801
      %3834 = vst [vmem:[#allocation3 + $0xc0] sm:$0xff] %v3802
      %3835 = vst [vmem:[#allocation3 + $0xc8] sm:$0xff] %v3803
      %3836 = vst [vmem:[#allocation3 + $0xd0] sm:$0xff] %v3804
      %3837 = vst [vmem:[#allocation3 + $0xd8] sm:$0xff] %v3805
      %3838 = vst [vmem:[#allocation3 + $0xe0] sm:$0xff] %v3806
      %3839 = vst [vmem:[#allocation3 + $0xe8] sm:$0xff] %v3807
      %3840 = vst [vmem:[#allocation3 + $0xf0] sm:$0xff] %v3808
      %3841 = vst [vmem:[#allocation3 + $0xf8] sm:$0xff] %v3809
      %v3842 = vld [vmem:[#allocation3] sm:$0xff]
      %v3843 = vld [vmem:[#allocation3 + $0x8] sm:$0xff]
      %v3844 = vld [vmem:[#allocation3 + $0x10] sm:$0xff]
      %v3845 = vld [vmem:[#allocation3 + $0x18] sm:$0xff]
      %v3846 = vld [vmem:[#allocation3 + $0x20] sm:$0xff]
      %v3847 = vld [vmem:[#allocation3 + $0x28] sm:$0xff]
      %v3848 = vld [vmem:[#allocation3 + $0x30] sm:$0xff]
      %v3849 = vld [vmem:[#allocation3 + $0x38] sm:$0xff]
      %v3850 = vld [vmem:[#allocation3 + $0x40] sm:$0xff]
      %v3851 = vld [vmem:[#allocation3 + $0x48] sm:$0xff]
      %v3852 = vld [vmem:[#allocation3 + $0x50] sm:$0xff]
      %v3853 = vld [vmem:[#allocation3 + $0x58] sm:$0xff]
      %v3854 = vld [vmem:[#allocation3 + $0x60] sm:$0xff]
      %v3855 = vld [vmem:[#allocation3 + $0x68] sm:$0xff]
      %v3856 = vld [vmem:[#allocation3 + $0x70] sm:$0xff]
      %v3857 = vld [vmem:[#allocation3 + $0x78] sm:$0xff]
      %v3858 = vld [vmem:[#allocation3 + $0x80] sm:$0xff]
      %v3859 = vld [vmem:[#allocation3 + $0x88] sm:$0xff]
      %v3860 = vld [vmem:[#allocation3 + $0x90] sm:$0xff]
      %v3861 = vld [vmem:[#allocation3 + $0x98] sm:$0xff]
      %v3862 = vld [vmem:[#allocation3 + $0xa0] sm:$0xff]
      %v3863 = vld [vmem:[#allocation3 + $0xa8] sm:$0xff]
      %v3864 = vld [vmem:[#allocation3 + $0xb0] sm:$0xff]
      %v3865 = vld [vmem:[#allocation3 + $0xb8] sm:$0xff]
      %v3866 = vld [vmem:[#allocation3 + $0xc0] sm:$0xff]
      %v3867 = vld [vmem:[#allocation3 + $0xc8] sm:$0xff]
      %v3868 = vld [vmem:[#allocation3 + $0xd0] sm:$0xff]
      %v3869 = vld [vmem:[#allocation3 + $0xd8] sm:$0xff]
      %v3870 = vld [vmem:[#allocation3 + $0xe0] sm:$0xff]
      %v3871 = vld [vmem:[#allocation3 + $0xe8] sm:$0xff]
      %v3872 = vld [vmem:[#allocation3 + $0xf0] sm:$0xff]
      %v3873 = vld [vmem:[#allocation3 + $0xf8] sm:$0xff]
      %v3874 = vpack.c.bf16 %v3843, %v3842
      %v3875 = vpack.c.bf16 %v3845, %v3844
      %v3876 = vpack.c.bf16 %v3847, %v3846
      %v3877 = vpack.c.bf16 %v3849, %v3848
      %v3878 = vpack.c.bf16 %v3851, %v3850
      %v3879 = vpack.c.bf16 %v3853, %v3852
      %v3880 = vpack.c.bf16 %v3855, %v3854
      %v3881 = vpack.c.bf16 %v3857, %v3856
      %v3882 = vpack.c.bf16 %v3859, %v3858
      %v3883 = vpack.c.bf16 %v3861, %v3860
      %v3884 = vpack.c.bf16 %v3863, %v3862
      %v3885 = vpack.c.bf16 %v3865, %v3864
      %v3886 = vpack.c.bf16 %v3867, %v3866
      %v3887 = vpack.c.bf16 %v3869, %v3868
      %v3888 = vpack.c.bf16 %v3871, %v3870
      %v3889 = vpack.c.bf16 %v3873, %v3872
      %v3906 = vunpack.c.l.b16 %v3874
      %v3907 = vunpack.c.h.b16 %v3874
      %v3908 = vunpack.c.l.b16 %v3875
      %v3909 = vunpack.c.h.b16 %v3875
      %v3910 = vunpack.c.l.b16 %v3876
      %v3911 = vunpack.c.h.b16 %v3876
      %v3912 = vunpack.c.l.b16 %v3877
      %v3913 = vunpack.c.h.b16 %v3877
      %v3914 = vunpack.c.l.b16 %v3878
      %v3915 = vunpack.c.h.b16 %v3878
      %v3916 = vunpack.c.l.b16 %v3879
      %v3917 = vunpack.c.h.b16 %v3879
      %v3918 = vunpack.c.l.b16 %v3880
      %v3919 = vunpack.c.h.b16 %v3880
      %v3920 = vunpack.c.l.b16 %v3881
      %v3921 = vunpack.c.h.b16 %v3881
      %v3922 = vunpack.c.l.b16 %v3882
      %v3923 = vunpack.c.h.b16 %v3882
      %v3924 = vunpack.c.l.b16 %v3883
      %v3925 = vunpack.c.h.b16 %v3883
      %v3926 = vunpack.c.l.b16 %v3884
      %v3927 = vunpack.c.h.b16 %v3884
      %v3928 = vunpack.c.l.b16 %v3885
      %v3929 = vunpack.c.h.b16 %v3885
      %v3930 = vunpack.c.l.b16 %v3886
      %v3931 = vunpack.c.h.b16 %v3886
      %v3932 = vunpack.c.l.b16 %v3887
      %v3933 = vunpack.c.h.b16 %v3887
      %v3934 = vunpack.c.l.b16 %v3888
      %v3935 = vunpack.c.h.b16 %v3888
      %v3936 = vunpack.c.l.b16 %v3889
      %v3937 = vunpack.c.h.b16 %v3889
      %v3938 = vpack.c.b16 %v3906, %v3906
      %v3939 = vpack.c.b16 %v3907, %v3907
      %v3940 = vpack.c.b16 %v3908, %v3908
      %v3941 = vpack.c.b16 %v3909, %v3909
      %v3942 = vpack.c.b16 %v3910, %v3910
      %v3943 = vpack.c.b16 %v3911, %v3911
      %v3944 = vpack.c.b16 %v3912, %v3912
      %v3945 = vpack.c.b16 %v3913, %v3913
      %v3946 = vpack.c.b16 %v3914, %v3914
      %v3947 = vpack.c.b16 %v3915, %v3915
      %v3948 = vpack.c.b16 %v3916, %v3916
      %v3949 = vpack.c.b16 %v3917, %v3917
      %v3950 = vpack.c.b16 %v3918, %v3918
      %v3951 = vpack.c.b16 %v3919, %v3919
      %v3952 = vpack.c.b16 %v3920, %v3920
      %v3953 = vpack.c.b16 %v3921, %v3921
      %v3954 = vpack.c.b16 %v3922, %v3922
      %v3955 = vpack.c.b16 %v3923, %v3923
      %v3956 = vpack.c.b16 %v3924, %v3924
      %v3957 = vpack.c.b16 %v3925, %v3925
      %v3958 = vpack.c.b16 %v3926, %v3926
      %v3959 = vpack.c.b16 %v3927, %v3927
      %v3960 = vpack.c.b16 %v3928, %v3928
      %v3961 = vpack.c.b16 %v3929, %v3929
      %v3962 = vpack.c.b16 %v3930, %v3930
      %v3963 = vpack.c.b16 %v3931, %v3931
      %v3964 = vpack.c.b16 %v3932, %v3932
      %v3965 = vpack.c.b16 %v3933, %v3933
      %v3966 = vpack.c.b16 %v3934, %v3934
      %v3967 = vpack.c.b16 %v3935, %v3935
      %v3968 = vpack.c.b16 %v3936, %v3936
      %v3969 = vpack.c.b16 %v3937, %v3937
      %4002 = vst [vmem:[%s168] sm:$0xf] %v3938
      %4003 = vst [vmem:[%s168 + $0x4] sm:$0xf] %v3939
      %4004 = vst [vmem:[%s168 + $0x8] sm:$0xf] %v3940
      %4005 = vst [vmem:[%s168 + $0xc] sm:$0xf] %v3941
      %4006 = vst [vmem:[%s168 + $0x10] sm:$0xf] %v3942
      %4007 = vst [vmem:[%s168 + $0x14] sm:$0xf] %v3943
      %4008 = vst [vmem:[%s168 + $0x18] sm:$0xf] %v3944
      %4009 = vst [vmem:[%s168 + $0x1c] sm:$0xf] %v3945
      %4010 = vst [vmem:[%s168 + $0x20] sm:$0xf] %v3946
      %4011 = vst [vmem:[%s168 + $0x24] sm:$0xf] %v3947
      %4012 = vst [vmem:[%s168 + $0x28] sm:$0xf] %v3948
      %4013 = vst [vmem:[%s168 + $0x2c] sm:$0xf] %v3949
      %4014 = vst [vmem:[%s168 + $0x30] sm:$0xf] %v3950
      %4015 = vst [vmem:[%s168 + $0x34] sm:$0xf] %v3951
      %4016 = vst [vmem:[%s168 + $0x38] sm:$0xf] %v3952
      %4017 = vst [vmem:[%s168 + $0x3c] sm:$0xf] %v3953
      %4018 = vst [vmem:[%s168 + $0x40] sm:$0xf] %v3954
      %4019 = vst [vmem:[%s168 + $0x44] sm:$0xf] %v3955
      %4020 = vst [vmem:[%s168 + $0x48] sm:$0xf] %v3956
      %4021 = vst [vmem:[%s168 + $0x4c] sm:$0xf] %v3957
      %4022 = vst [vmem:[%s168 + $0x50] sm:$0xf] %v3958
      %4023 = vst [vmem:[%s168 + $0x54] sm:$0xf] %v3959
      %4024 = vst [vmem:[%s168 + $0x58] sm:$0xf] %v3960
      %4025 = vst [vmem:[%s168 + $0x5c] sm:$0xf] %v3961
      %4026 = vst [vmem:[%s168 + $0x60] sm:$0xf] %v3962
      %4027 = vst [vmem:[%s168 + $0x64] sm:$0xf] %v3963
      %4028 = vst [vmem:[%s168 + $0x68] sm:$0xf] %v3964
      %4029 = vst [vmem:[%s168 + $0x6c] sm:$0xf] %v3965
      %4030 = vst [vmem:[%s168 + $0x70] sm:$0xf] %v3966
      %4031 = vst [vmem:[%s168 + $0x74] sm:$0xf] %v3967
      %4032 = vst [vmem:[%s168 + $0x78] sm:$0xf] %v3968
      %4033 = vst [vmem:[%s168 + $0x7c] sm:$0xf] %v3969
      %p4034 = scmp.eq.s32.totalorder %s15, 0
      // Predicated region
      $region29: #{conv_transpose_block_forward.3} parent=27 // pred_check
        %p4035 = pneg %p4034
      $region30: #{conv_transpose_block_forward.3} parent=27 // pred_check_branch
        %4037 = sbr.rel (%p4035) target = $region32
      $region31: #{conv_transpose_block_forward.3} parent=27 // pred_region
        %4038 = vst [vmem:[%s3] sm:$0x3] 0.0
      $region32: #{conv_transpose_block_forward.3} parent=27 // pred_fallthru
        _
      %v4039 = vld [vmem:[%s3] sm:$0x1]
      %v4040 = vadd.f32 %v3842, %v3843
      %v4041 = vadd.f32 %v4040, %v3844
      %v4042 = vadd.f32 %v4041, %v3845
      %v4043 = vadd.f32 %v4042, %v3846
      %v4044 = vadd.f32 %v4043, %v3847
      %v4045 = vadd.f32 %v4044, %v3848
      %v4046 = vadd.f32 %v4045, %v3849
      %v4047 = vadd.f32 %v4046, %v3850
      %v4048 = vadd.f32 %v4047, %v3851
      %v4049 = vadd.f32 %v4048, %v3852
      %v4050 = vadd.f32 %v4049, %v3853
      %v4051 = vadd.f32 %v4050, %v3854
      %v4052 = vadd.f32 %v4051, %v3855
      %v4053 = vadd.f32 %v4052, %v3856
      %v4054 = vadd.f32 %v4053, %v3857
      %v4055 = vadd.f32 %v4054, %v3858
      %v4056 = vadd.f32 %v4055, %v3859
      %v4057 = vadd.f32 %v4056, %v3860
      %v4058 = vadd.f32 %v4057, %v3861
      %v4059 = vadd.f32 %v4058, %v3862
      %v4060 = vadd.f32 %v4059, %v3863
      %v4061 = vadd.f32 %v4060, %v3864
      %v4062 = vadd.f32 %v4061, %v3865
      %v4063 = vadd.f32 %v4062, %v3866
      %v4064 = vadd.f32 %v4063, %v3867
      %v4065 = vadd.f32 %v4064, %v3868
      %v4066 = vadd.f32 %v4065, %v3869
      %v4067 = vadd.f32 %v4066, %v3870
      %v4068 = vadd.f32 %v4067, %v3871
      %v4069 = vadd.f32 %v4068, %v3872
      %v4070 = vadd.f32 %v4069, %v3873
      %v4071 = vrot.slane %v4070, 4
      %v4072 = vadd.f32 %v4070, %v4071
      %v4073 = vrot.slane %v4072, 2
      %v4074 = vadd.f32 %v4072, %v4073
      %v4075 = vrot.slane %v4074, 1
      %v4076 = vadd.f32 %v4074, %v4075
      %v4077 = vadd.f32 %v4039, %v4076
      %4078 = vst [vmem:[%s3] sm:$0x1] %v4077
      %v4079 = vld [vmem:[%s3 + $0x1] sm:$0x1]
      %v4080 = vmul.f32 %v3842, %v3842
      %v4081 = vmul.f32 %v3843, %v3843
      %v4082 = vmul.f32 %v3844, %v3844
      %v4083 = vmul.f32 %v3845, %v3845
      %v4084 = vmul.f32 %v3846, %v3846
      %v4085 = vmul.f32 %v3847, %v3847
      %v4086 = vmul.f32 %v3848, %v3848
      %v4087 = vmul.f32 %v3849, %v3849
      %v4088 = vmul.f32 %v3850, %v3850
      %v4089 = vmul.f32 %v3851, %v3851
      %v4090 = vmul.f32 %v3852, %v3852
      %v4091 = vmul.f32 %v3853, %v3853
      %v4092 = vmul.f32 %v3854, %v3854
      %v4093 = vmul.f32 %v3855, %v3855
      %v4094 = vmul.f32 %v3856, %v3856
      %v4095 = vmul.f32 %v3857, %v3857
      %v4096 = vmul.f32 %v3858, %v3858
      %v4097 = vmul.f32 %v3859, %v3859
      %v4098 = vmul.f32 %v3860, %v3860
      %v4099 = vmul.f32 %v3861, %v3861
      %v4100 = vmul.f32 %v3862, %v3862
      %v4101 = vmul.f32 %v3863, %v3863
      %v4102 = vmul.f32 %v3864, %v3864
      %v4103 = vmul.f32 %v3865, %v3865
      %v4104 = vmul.f32 %v3866, %v3866
      %v4105 = vmul.f32 %v3867, %v3867
      %v4106 = vmul.f32 %v3868, %v3868
      %v4107 = vmul.f32 %v3869, %v3869
      %v4108 = vmul.f32 %v3870, %v3870
      %v4109 = vmul.f32 %v3871, %v3871
      %v4110 = vmul.f32 %v3872, %v3872
      %v4111 = vmul.f32 %v3873, %v3873
      %v4112 = vadd.f32 %v4080, %v4081
      %v4113 = vadd.f32 %v4112, %v4082
      %v4114 = vadd.f32 %v4113, %v4083
      %v4115 = vadd.f32 %v4114, %v4084
      %v4116 = vadd.f32 %v4115, %v4085
      %v4117 = vadd.f32 %v4116, %v4086
      %v4118 = vadd.f32 %v4117, %v4087
      %v4119 = vadd.f32 %v4118, %v4088
      %v4120 = vadd.f32 %v4119, %v4089
      %v4121 = vadd.f32 %v4120, %v4090
      %v4122 = vadd.f32 %v4121, %v4091
      %v4123 = vadd.f32 %v4122, %v4092
      %v4124 = vadd.f32 %v4123, %v4093
      %v4125 = vadd.f32 %v4124, %v4094
      %v4126 = vadd.f32 %v4125, %v4095
      %v4127 = vadd.f32 %v4126, %v4096
      %v4128 = vadd.f32 %v4127, %v4097
      %v4129 = vadd.f32 %v4128, %v4098
      %v4130 = vadd.f32 %v4129, %v4099
      %v4131 = vadd.f32 %v4130, %v4100
      %v4132 = vadd.f32 %v4131, %v4101
      %v4133 = vadd.f32 %v4132, %v4102
      %v4134 = vadd.f32 %v4133, %v4103
      %v4135 = vadd.f32 %v4134, %v4104
      %v4136 = vadd.f32 %v4135, %v4105
      %v4137 = vadd.f32 %v4136, %v4106
      %v4138 = vadd.f32 %v4137, %v4107
      %v4139 = vadd.f32 %v4138, %v4108
      %v4140 = vadd.f32 %v4139, %v4109
      %v4141 = vadd.f32 %v4140, %v4110
      %v4142 = vadd.f32 %v4141, %v4111
      %v4143 = vrot.slane %v4142, 4
      %v4144 = vadd.f32 %v4142, %v4143
      %v4145 = vrot.slane %v4144, 2
      %v4146 = vadd.f32 %v4144, %v4145
      %v4147 = vrot.slane %v4146, 1
      %v4148 = vadd.f32 %v4146, %v4147
      %v4149 = vadd.f32 %v4079, %v4148
      %4150 = vst [vmem:[%s3 + $0x1] sm:$0x1] %v4149
      %p4151 = scmp.lt.s32.totalorder %s15, 1
      %s4152 = scalar_select %p4151, %s15, 1
      %s4153 = smul.addr %s4152, 32
      %s4154 = smul.addr %s4153, 4
      %s4155 = scalar_lea.vmem %s2, %s4154
      // Predicated region
      $region33: #{conv_transpose_block_forward.3} parent=27 // pred_check
        %p4156 = pneg %p80
      $region34: #{conv_transpose_block_forward.3} parent=27 // pred_check_branch
        %4158 = sbr.rel (%p4156) target = $region36
      $region35: #{conv_transpose_block_forward.3} parent=27 // pred_region
        _
      $region36: #{conv_transpose_block_forward.3} parent=27 // pred_fallthru
        _
      // Predicated region
      $region37: #{conv_transpose_block_forward.3} parent=27 // pred_check
        %p4159 = pneg %p101
      $region38: #{conv_transpose_block_forward.3} parent=27 // pred_check_branch
        %4161 = sbr.rel (%p4159) target = $region40
      $region39: #{conv_transpose_block_forward.3} parent=27 // pred_region
        _
      $region40: #{conv_transpose_block_forward.3} parent=27 // pred_fallthru
        _
      // Predicated region
      $region41: #{conv_transpose_block_forward.3} parent=27 // pred_check
        %p4162 = pneg %p101
      $region42: #{conv_transpose_block_forward.3} parent=27 // pred_check_branch
        %4164 = sbr.rel (%p4162) target = $region44
      $region43: #{conv_transpose_block_forward.3} parent=27 // pred_region
        _
      $region44: #{conv_transpose_block_forward.3} parent=27 // pred_fallthru
        _
    $region28: #{conv_transpose_block_forward.3} parent=5 // pred_fallthru
      _
    %p4165 = scmp.le.s32.totalorder 2, %s10
    // Predicated region
    $region45: #{conv_transpose_block_forward.3} parent=5 // pred_check
      %p4166 = pneg %p4165
    $region46: #{conv_transpose_block_forward.3} parent=5 // pred_check_branch
      %4168 = sbr.rel (%p4166) target = $region48
    $region47: #{conv_transpose_block_forward.3} parent=5 // pred_region
      %s4169 = ssub.s32 %s10, 2
      // Predicated region
      $region49: #{conv_transpose_block_forward.3} parent=47 // pred_check
        %p4170 = pneg %p86
      $region50: #{conv_transpose_block_forward.3} parent=47 // pred_check_branch
        %4172 = sbr.rel (%p4170) target = $region52
      $region51: #{conv_transpose_block_forward.3} parent=47 // pred_region
        %p4173 = scmp.lt.s32.totalorder %s16, 1
        %s4174 = scalar_select %p4173, %s16, 1
        %s4175 = smul.addr %s4174, 32
        %s4176 = smul.addr %s4175, 4
        %s4177 = scalar_lea.vmem %s2, %s4176
      $region52: #{conv_transpose_block_forward.3} parent=47 // pred_fallthru
        _
    $region48: #{conv_transpose_block_forward.3} parent=5 // pred_fallthru
      _
  $region6: #{conv_transpose_block_forward.3} parent=0 // loop_footer
    %s14 = sadd.s32 1, %s10
  $region7: #{conv_transpose_block_forward.3} parent=0 // loop_footer_branch
    %9 = sbr.rel target = $region3
  $region8: #{conv_transpose_block_forward.3} parent=0 // loop_exit
    _

</llo_original>
